<compile_context>
chip_gen: v6e
topology: v6e:2x2x1
jax: 0.10.0
libtpu: 0.0.40
codegen_flags: <defaults>
</compile_context>

<pallas_src>
import functools

import jax
import jax.numpy as jnp
import numpy as np
from jax import lax
from jax.experimental import pallas as pl
from jax.experimental.pallas import tpu as pltpu


# ------------------------------ shared math ----------------------------------

def _layer_norm(x, gamma, beta, eps=1e-5):
    mean = jnp.mean(x, axis=-1, keepdims=True)
    var = jnp.mean((x - mean) ** 2, axis=-1, keepdims=True)
    return (x - mean) * lax.rsqrt(var + eps) * gamma + beta


# ------------------------------ kernel ----------------------------------------

def _mm(a, b):
    """a @ b (contract a's last dim with b's first), f32 accumulation."""
    return lax.dot_general(a, b, (((1,), (0,)), ((), ())),
                           preferred_element_type=jnp.float32)


def _mm_t(a, b):
    """a @ b.T (contract last dims of both), f32 accumulation."""
    return lax.dot_general(a, b, (((1,), (1,)), ((), ())),
                           preferred_element_type=jnp.float32)


def _res_mha(x, kv_bf, madd, prm, l, H, dk, scale):
    """Pre-LN residual attention sublayer: x + MHA(LN(x), kv, kv, mask).

    x:     (Sq, Dc) f32 residual stream
    kv_bf: (Sk, Dk) bf16 key/value source, or None => self-attention on LN(x)
    madd:  (Sq or 1, Sk) f32 additive mask bias (0 / -1e30), hoisted out of head loop
    prm:   10 stacked refs: ln_g, ln_b, wq, bq, wk, bk, wv, bv, wo, bo
    """
    bf16 = jnp.bfloat16
    ln_g, ln_b, wq, bq, wk, bk, wv, bv, wo, bo = (r[l] for r in prm)

    h = _layer_norm(x, ln_g, ln_b)
    h_bf = h.astype(bf16)
    if kv_bf is None:
        kv_bf = h_bf                                  # self-attention: Q = K = V = LN(x)

    q = _mm(h_bf, wq) + bq                            # (Sq, Dm) f32
    k = _mm(kv_bf, wk) + bk                           # (Sk, Dm) f32
    v = _mm(kv_bf, wv) + bv                           # (Sk, Dm) f32
    q = q * scale                                     # fold 1/sqrt(dk) once (hoisted)

    # Per-head attention; heads accumulate through the matching dk-row slice of Wo
    # instead of a lane-axis concatenate.
    ctx = None
    for hh in range(H):
        lo, hi = hh * dk, (hh + 1) * dk
        s = _mm_t(q[:, lo:hi].astype(bf16), k[:, lo:hi].astype(bf16)) + madd  # (Sq, Sk)
        s = s - jnp.max(s, axis=-1, keepdims=True)
        e = jnp.exp(s)
        p = e * pl.reciprocal(jnp.sum(e, axis=-1, keepdims=True), approx=True)
        o = _mm(p.astype(bf16), v[:, lo:hi].astype(bf16))                     # (Sq, dk)
        c = _mm(o.astype(bf16), wo[lo:hi, :])                                 # (Sq, Dc)
        ctx = c if ctx is None else ctx + c
    # TODO(synk): attention-weight & residual dropouts omitted (eval-mode forward).
    return x + ctx + bo


def bm_fusion_kernel(N, H, dk,
                     c_ref, a_ref, v_ref, cm_ref, am_ref, vm_ref, af_ref, *rest):
    *prefs, out_ref = rest
    sa_p = prefs[0:10]              # self attention (+ its residual LayerNorm)
    ea_p = prefs[10:20]             # cross attention over Av
    ev_p = prefs[20:30]             # cross attention over Va
    nca_g, nca_b, ncv_g, ncv_b = prefs[30:34]

    scale = dk ** -0.5

    C = c_ref[0]                                      # (Sc, Dc) f32, VMEM-resident
    A_bf = a_ref[0].astype(jnp.bfloat16)              # (Sa, Da)
    V_bf = v_ref[0].astype(jnp.bfloat16)              # (Sv, Dv)

    # masked_fill(-inf) -> additive bias, computed once per batch element and reused
    # across all layers and all heads.  (A fully-masked row would give a uniform
    # softmax instead of NaN; the example masks always keep >= 1 valid key.)
    neg = jnp.float32(-1e30)
    zero = jnp.float32(0.0)
    madd_c = jnp.where(cm_ref[0] < 0.5, neg, zero)    # (Sc, Sc)
    madd_a = jnp.where(am_ref[0] < 0.5, neg, zero)    # (1, Sa)
    madd_v = jnp.where(vm_ref[0] < 0.5, neg, zero)    # (1, Sv)

    for l in range(N):                                # layer stack, unrolled in-kernel
        C = _res_mha(C, None, madd_c, sa_p, l, H, dk, scale)
        Ca = _res_mha(C, A_bf, madd_a, ea_p, l, H, dk, scale)
        Cv = _res_mha(C, V_bf, madd_v, ev_p, l, H, dk, scale)
        Ca = _layer_norm(Ca, nca_g[l], nca_b[l])
        Cv = _layer_norm(Cv, ncv_g[l], ncv_b[l])
        af = af_ref[l]                                # (1, 1) = sigmoid(clamp(a_v))
        C = af * Cv + (1.0 - af) * Ca

    out_ref[0] = C


# ------------------------------ wrapper ---------------------------------------

def bm_fusion_forward(C, Av, Va, C_mask, A_mask, V_mask, params, H):
    """BMFusion.forward: returns the fused caption stream C after N layers."""
    *mats, a_v = params
    N = int(a_v.shape[0])
    B, Sc, Dc = C.shape
    _, Sa, Da = Av.shape
    _, Sv, Dv = Va.shape
    Dm = mats[2].shape[-1]              # stacked self-att Wq: (N, Dc, d_model)
    assert Dm % H == 0
    dk = Dm // H

    # MXU operands in bf16 (accumulation stays f32 inside the kernel); biases, LN params
    # and activations stay f32.  Casting here also halves weight DMA bytes.
    mats = [m.astype(jnp.bfloat16) if m.ndim == 3 else m for m in mats]

    # sigmoid(clamp(a_v_constant, -2, 2)) is a pure parameter transform -> precompute.
    av_factor = jax.nn.sigmoid(jnp.clip(a_v, -2.0, 2.0)).reshape(N, 1, 1).astype(jnp.float32)

    def full(a):
        return pl.BlockSpec(a.shape, lambda b, _n=a.ndim: (0,) * _n)

    in_specs = [
        pl.BlockSpec((1, Sc, Dc), lambda b: (b, 0, 0)),
        pl.BlockSpec((1, Sa, Da), lambda b: (b, 0, 0)),
        pl.BlockSpec((1, Sv, Dv), lambda b: (b, 0, 0)),
        pl.BlockSpec((1, Sc, Sc), lambda b: (b, 0, 0)),
        pl.BlockSpec((1, 1, Sa), lambda b: (b, 0, 0)),
        pl.BlockSpec((1, 1, Sv), lambda b: (b, 0, 0)),
        full(av_factor),
    ] + [full(m) for m in mats]

    # NOTE: at real model sizes give the constant weight specs pipeline_mode=pl.Buffered(1)
    # so they are not double-buffered (matters first on v7x's 64 MiB VMEM).
    return pl.pallas_call(
        functools.partial(bm_fusion_kernel, N, H, dk),
        out_shape=jax.ShapeDtypeStruct((B, Sc, Dc), jnp.float32),
        grid=(B,),
        in_specs=in_specs,
        out_specs=pl.BlockSpec((1, Sc, Dc), lambda b: (b, 0, 0)),
        compiler_params=pltpu.CompilerParams(
            dimension_semantics=("parallel",),        # v7x: one batch element per TC
            vmem_limit_bytes=32 * 1024 * 1024,
        ),
    )(C, Av, Va, C_mask, A_mask, V_mask, av_factor, *mats)


# ------------------------ pure-JAX (f32) reference -----------------------------

def _ref_mha(Q, K, V, mask, wq, bq, wk, bk, wv, bv, wo, bo, H):
    B, Sq, _ = Q.shape
    Dm = wq.shape[-1]
    dk = Dm // H
    q = (Q @ wq + bq).reshape(B, Sq, H, dk).transpose(0, 2, 1, 3)
    k = (K @ wk + bk).reshape(B, K.shape[1], H, dk).transpose(0, 2, 1, 3)
    v = (V @ wv + bv).reshape(B, V.shape[1], H, dk).transpose(0, 2, 1, 3)
    s = jnp.einsum('bhqd,bhkd->bhqk', q, k) / jnp.sqrt(jnp.float32(dk))
    s = jnp.where(mask[:, None] < 0.5, jnp.float32(-1e30), s)
    p = jax.nn.softmax(s, axis=-1)
    o = jnp.einsum('bhqk,bhkd->bhqd', p, v).transpose(0, 2, 1, 3).reshape(B, Sq, Dm)
    return o @ wo + bo


def bm_fusion_ref(C, Av, Va, C_mask, A_mask, V_mask, params, H):
    *mats, a_v = params
    N = a_v.shape[0]

    def res_att(x, kv, mask, p):
        ln_g, ln_b, wq, bq, wk, bk, wv, bv, wo, bo = p
        h = _layer_norm(x, ln_g, ln_b)
        kk = h if kv is None else kv
        return x + _ref_mha(h, kk, kk, mask, wq, bq, wk, bk, wv, bv, wo, bo, H)

    for l in range(N):
        m = [w[l] for w in mats]
        sa, ea, ev = m[0:10], m[10:20], m[20:30]
        nca_g, nca_b, ncv_g, ncv_b = m[30:34]
        C1 = res_att(C, None, C_mask, sa)
        Ca = res_att(C1, Av, A_mask, ea)
        Cv = res_att(C1, Va, V_mask, ev)
        Ca = _layer_norm(Ca, nca_g, nca_b)
        Cv = _layer_norm(Cv, ncv_g, ncv_b)
        af = jax.nn.sigmoid(jnp.clip(a_v[l], -2.0, 2.0))
        C = af * Cv + (1.0 - af) * Ca
    return C


# ------------------------------- param init ------------------------------------

def init_layer_params(key, Dc, Da, Dv, Dm):
    """One BMFusionLayer.  Canonical order (35 entries):
       [self-att 10] [enc-att-A 10] [enc-att-V 10] [normCA g,b  normCV g,b] [a_v]."""
    f32 = jnp.float32
    ks = iter(jax.random.split(key, 40))

    def lin(din, dout):
        return (0.05 * jax.random.normal(next(ks), (din, dout), f32),
                0.02 * jax.random.normal(next(ks), (dout,), f32))

    def ln(dim):
        return (1.0 + 0.1 * jax.random.normal(next(ks), (dim,), f32),
                0.1 * jax.random.normal(next(ks), (dim,), f32))

    def att(dq, dkv):
        ln_g, ln_b = ln(dq)
        wq, bq = lin(dq, Dm)
        wk, bk = lin(dkv, Dm)
        wv, bv = lin(dkv, Dm)
        wo, bo = lin(Dm, dq)
        return (ln_g, ln_b, wq, bq, wk, bk, wv, bv, wo, bo)

    sa = att(Dc, Dc)                # self_att  (+ res_layer_self_att LayerNorm)
    ea = att(Dc, Da)                # enc_att_A (+ res_layer_enc_att_A LayerNorm)
    ev = att(Dc, Dv)                # enc_att_V (+ res_layer_enc_att_V LayerNorm)
    norms = ln(Dc) + ln(Dc)         # normCA, normCV
    a_v = 0.5 * jax.random.normal(next(ks), (), f32)   # a_v_constant
    return sa + ea + ev + norms + (a_v,)


def init_params(key, N, Dc, Da, Dv, Dm):
    per_layer = [init_layer_params(k, Dc, Da, Dv, Dm) for k in jax.random.split(key, N)]
    return tuple(jnp.stack(ps) for ps in zip(*per_layer))   # each param stacked over N


# ---------------------------------- main ----------------------------------------

if __name__ == "__main__":
    # BMFusion(d_model_A=32, d_model_V=32, d_model_C=32, d_model=32, d_ff_c=64,
    #          dout_p=0.1, H=4, N=2); d_ff_c is unused (feed_forward never called).
    B = 2
    Sc, Sa, Sv = 8, 16, 24
    Dc, Da, Dv, Dm = 32, 32, 32, 32
    H, N = 4, 2

    key = jax.random.PRNGKey(0)
    kc, ka, kv, kp = jax.random.split(key, 4)
    C = jax.random.normal(kc, (B, Sc, Dc), jnp.float32)
    Av = jax.random.normal(ka, (B, Sa, Da), jnp.float32)
    Va = jax.random.normal(kv, (B, Sv, Dv), jnp.float32)

    # masks: 1.0 = attend, 0.0 = masked.
    causal = jnp.tril(jnp.ones((Sc, Sc), jnp.float32))
    pad_c = jnp.where(jnp.arange(Sc) < Sc - 2, 1.0, 0.0).astype(jnp.float32)
    C_mask = jnp.stack([causal, causal * pad_c[None, :]])        # (B, Sc, Sc)
    A_mask = jnp.ones((B, 1, Sa), jnp.float32).at[1, 0, Sa - 5:].set(0.0)
    V_mask = jnp.ones((B, 1, Sv), jnp.float32).at[1, 0, Sv - 7:].set(0.0)

    params = init_params(kp, N, Dc, Da, Dv, Dm)

    out = bm_fusion_forward(C, Av, Va, C_mask, A_mask, V_mask, params, H)
    out = jax.block_until_ready(out)

    ref = jax.block_until_ready(bm_fusion_ref(C, Av, Va, C_mask, A_mask, V_mask, params, H))
    # Kernel uses bf16 MXU operands (f32 accumulation) + approx-reciprocal softmax;
    # reference is all-f32 -> compare at bf16-level tolerance.
    np.testing.assert_allclose(np.asarray(out), np.asarray(ref), rtol=2e-2, atol=2e-2)

    print("KERNEL_OK")
</pallas_src>

<mosaic_0001>
module attributes {stable_mosaic.version = 11 : i64} {
  func.func @bm_fusion_kernel(%arg0: i32, %arg1: memref<1x8x32xf32, #tpu.memory_space<vmem>>, %arg2: memref<1x16x32xf32, #tpu.memory_space<vmem>>, %arg3: memref<1x24x32xf32, #tpu.memory_space<vmem>>, %arg4: memref<1x8x8xf32, #tpu.memory_space<vmem>>, %arg5: memref<1x1x16xf32, #tpu.memory_space<vmem>>, %arg6: memref<1x1x24xf32, #tpu.memory_space<vmem>>, %arg7: memref<2x1x1xf32, #tpu.memory_space<vmem>>, %arg8: memref<2x32xf32, #tpu.memory_space<vmem>>, %arg9: memref<2x32xf32, #tpu.memory_space<vmem>>, %arg10: memref<2x32x32xbf16, #tpu.memory_space<vmem>>, %arg11: memref<2x32xf32, #tpu.memory_space<vmem>>, %arg12: memref<2x32x32xbf16, #tpu.memory_space<vmem>>, %arg13: memref<2x32xf32, #tpu.memory_space<vmem>>, %arg14: memref<2x32x32xbf16, #tpu.memory_space<vmem>>, %arg15: memref<2x32xf32, #tpu.memory_space<vmem>>, %arg16: memref<2x32x32xbf16, #tpu.memory_space<vmem>>, %arg17: memref<2x32xf32, #tpu.memory_space<vmem>>, %arg18: memref<2x32xf32, #tpu.memory_space<vmem>>, %arg19: memref<2x32xf32, #tpu.memory_space<vmem>>, %arg20: memref<2x32x32xbf16, #tpu.memory_space<vmem>>, %arg21: memref<2x32xf32, #tpu.memory_space<vmem>>, %arg22: memref<2x32x32xbf16, #tpu.memory_space<vmem>>, %arg23: memref<2x32xf32, #tpu.memory_space<vmem>>, %arg24: memref<2x32x32xbf16, #tpu.memory_space<vmem>>, %arg25: memref<2x32xf32, #tpu.memory_space<vmem>>, %arg26: memref<2x32x32xbf16, #tpu.memory_space<vmem>>, %arg27: memref<2x32xf32, #tpu.memory_space<vmem>>, %arg28: memref<2x32xf32, #tpu.memory_space<vmem>>, %arg29: memref<2x32xf32, #tpu.memory_space<vmem>>, %arg30: memref<2x32x32xbf16, #tpu.memory_space<vmem>>, %arg31: memref<2x32xf32, #tpu.memory_space<vmem>>, %arg32: memref<2x32x32xbf16, #tpu.memory_space<vmem>>, %arg33: memref<2x32xf32, #tpu.memory_space<vmem>>, %arg34: memref<2x32x32xbf16, #tpu.memory_space<vmem>>, %arg35: memref<2x32xf32, #tpu.memory_space<vmem>>, %arg36: memref<2x32x32xbf16, #tpu.memory_space<vmem>>, %arg37: memref<2x32xf32, #tpu.memory_space<vmem>>, %arg38: memref<2x32xf32, #tpu.memory_space<vmem>>, %arg39: memref<2x32xf32, #tpu.memory_space<vmem>>, %arg40: memref<2x32xf32, #tpu.memory_space<vmem>>, %arg41: memref<2x32xf32, #tpu.memory_space<vmem>>, %arg42: memref<1x8x32xf32, #tpu.memory_space<vmem>>) attributes {dimension_semantics = [#tpu.dimension_semantics<parallel>], iteration_bounds = array<i64: 2>, scalar_prefetch = 0 : i64, scratch_operands = 0 : i64, tpu.core_type = #tpu.core_type<tc>, window_params = [{transform_indices = @transform_0, window_bounds = array<i64: 1, 8, 32>}, {transform_indices = @transform_1, window_bounds = array<i64: 1, 16, 32>}, {transform_indices = @transform_2, window_bounds = array<i64: 1, 24, 32>}, {transform_indices = @transform_3, window_bounds = array<i64: 1, 8, 8>}, {transform_indices = @transform_4, window_bounds = array<i64: 1, 1, 16>}, {transform_indices = @transform_5, window_bounds = array<i64: 1, 1, 24>}, {pipeline_mode = #tpu.pipeline_mode<synchronous>, transform_indices = @transform_6, window_bounds = array<i64: 2, 1, 1>}, {pipeline_mode = #tpu.pipeline_mode<synchronous>, transform_indices = @transform_7, window_bounds = array<i64: 2, 32>}, {pipeline_mode = #tpu.pipeline_mode<synchronous>, transform_indices = @transform_8, window_bounds = array<i64: 2, 32>}, {pipeline_mode = #tpu.pipeline_mode<synchronous>, transform_indices = @transform_9, window_bounds = array<i64: 2, 32, 32>}, {pipeline_mode = #tpu.pipeline_mode<synchronous>, transform_indices = @transform_10, window_bounds = array<i64: 2, 32>}, {pipeline_mode = #tpu.pipeline_mode<synchronous>, transform_indices = @transform_11, window_bounds = array<i64: 2, 32, 32>}, {pipeline_mode = #tpu.pipeline_mode<synchronous>, transform_indices = @transform_12, window_bounds = array<i64: 2, 32>}, {pipeline_mode = #tpu.pipeline_mode<synchronous>, transform_indices = @transform_13, window_bounds = array<i64: 2, 32, 32>}, {pipeline_mode = #tpu.pipeline_mode<synchronous>, transform_indices = @transform_14, window_bounds = array<i64: 2, 32>}, {pipeline_mode = #tpu.pipeline_mode<synchronous>, transform_indices = @transform_15, window_bounds = array<i64: 2, 32, 32>}, {pipeline_mode = #tpu.pipeline_mode<synchronous>, transform_indices = @transform_16, window_bounds = array<i64: 2, 32>}, {pipeline_mode = #tpu.pipeline_mode<synchronous>, transform_indices = @transform_17, window_bounds = array<i64: 2, 32>}, {pipeline_mode = #tpu.pipeline_mode<synchronous>, transform_indices = @transform_18, window_bounds = array<i64: 2, 32>}, {pipeline_mode = #tpu.pipeline_mode<synchronous>, transform_indices = @transform_19, window_bounds = array<i64: 2, 32, 32>}, {pipeline_mode = #tpu.pipeline_mode<synchronous>, transform_indices = @transform_20, window_bounds = array<i64: 2, 32>}, {pipeline_mode = #tpu.pipeline_mode<synchronous>, transform_indices = @transform_21, window_bounds = array<i64: 2, 32, 32>}, {pipeline_mode = #tpu.pipeline_mode<synchronous>, transform_indices = @transform_22, window_bounds = array<i64: 2, 32>}, {pipeline_mode = #tpu.pipeline_mode<synchronous>, transform_indices = @transform_23, window_bounds = array<i64: 2, 32, 32>}, {pipeline_mode = #tpu.pipeline_mode<synchronous>, transform_indices = @transform_24, window_bounds = array<i64: 2, 32>}, {pipeline_mode = #tpu.pipeline_mode<synchronous>, transform_indices = @transform_25, window_bounds = array<i64: 2, 32, 32>}, {pipeline_mode = #tpu.pipeline_mode<synchronous>, transform_indices = @transform_26, window_bounds = array<i64: 2, 32>}, {pipeline_mode = #tpu.pipeline_mode<synchronous>, transform_indices = @transform_27, window_bounds = array<i64: 2, 32>}, {pipeline_mode = #tpu.pipeline_mode<synchronous>, transform_indices = @transform_28, window_bounds = array<i64: 2, 32>}, {pipeline_mode = #tpu.pipeline_mode<synchronous>, transform_indices = @transform_29, window_bounds = array<i64: 2, 32, 32>}, {pipeline_mode = #tpu.pipeline_mode<synchronous>, transform_indices = @transform_30, window_bounds = array<i64: 2, 32>}, {pipeline_mode = #tpu.pipeline_mode<synchronous>, transform_indices = @transform_31, window_bounds = array<i64: 2, 32, 32>}, {pipeline_mode = #tpu.pipeline_mode<synchronous>, transform_indices = @transform_32, window_bounds = array<i64: 2, 32>}, {pipeline_mode = #tpu.pipeline_mode<synchronous>, transform_indices = @transform_33, window_bounds = array<i64: 2, 32, 32>}, {pipeline_mode = #tpu.pipeline_mode<synchronous>, transform_indices = @transform_34, window_bounds = array<i64: 2, 32>}, {pipeline_mode = #tpu.pipeline_mode<synchronous>, transform_indices = @transform_35, window_bounds = array<i64: 2, 32, 32>}, {pipeline_mode = #tpu.pipeline_mode<synchronous>, transform_indices = @transform_36, window_bounds = array<i64: 2, 32>}, {pipeline_mode = #tpu.pipeline_mode<synchronous>, transform_indices = @transform_37, window_bounds = array<i64: 2, 32>}, {pipeline_mode = #tpu.pipeline_mode<synchronous>, transform_indices = @transform_38, window_bounds = array<i64: 2, 32>}, {pipeline_mode = #tpu.pipeline_mode<synchronous>, transform_indices = @transform_39, window_bounds = array<i64: 2, 32>}, {pipeline_mode = #tpu.pipeline_mode<synchronous>, transform_indices = @transform_40, window_bounds = array<i64: 2, 32>}, {transform_indices = @transform_41, window_bounds = array<i64: 1, 8, 32>}]} {
    %c0 = arith.constant 0 : index
    %c0_0 = arith.constant 0 : index
    %c0_1 = arith.constant 0 : index
    %0 = vector.load %arg1[%c0, %c0_0, %c0_1] : memref<1x8x32xf32, #tpu.memory_space<vmem>>, vector<1x8x32xf32>
    %1 = vector.shape_cast %0 : vector<1x8x32xf32> to vector<8x32xf32>
    %c0_2 = arith.constant 0 : index
    %c0_3 = arith.constant 0 : index
    %c0_4 = arith.constant 0 : index
    %2 = vector.load %arg2[%c0_2, %c0_3, %c0_4] : memref<1x16x32xf32, #tpu.memory_space<vmem>>, vector<1x16x32xf32>
    %3 = vector.shape_cast %2 : vector<1x16x32xf32> to vector<16x32xf32>
    %4 = arith.truncf %3 : vector<16x32xf32> to vector<16x32xbf16>
    %c0_5 = arith.constant 0 : index
    %c0_6 = arith.constant 0 : index
    %c0_7 = arith.constant 0 : index
    %5 = vector.load %arg3[%c0_5, %c0_6, %c0_7] : memref<1x24x32xf32, #tpu.memory_space<vmem>>, vector<1x24x32xf32>
    %6 = vector.shape_cast %5 : vector<1x24x32xf32> to vector<24x32xf32>
    %7 = arith.truncf %6 : vector<24x32xf32> to vector<24x32xbf16>
    %c0_8 = arith.constant 0 : index
    %c0_9 = arith.constant 0 : index
    %c0_10 = arith.constant 0 : index
    %8 = vector.load %arg4[%c0_8, %c0_9, %c0_10] : memref<1x8x8xf32, #tpu.memory_space<vmem>>, vector<1x8x8xf32>
    %9 = vector.shape_cast %8 : vector<1x8x8xf32> to vector<8x8xf32>
    %cst = arith.constant 5.000000e-01 : f32
    %10 = vector.broadcast %cst : f32 to vector<8x8xf32>
    %11 = arith.cmpf olt, %9, %10 : vector<8x8xf32>
    %cst_11 = arith.constant -1.000000e+30 : f32
    %cst_12 = arith.constant 0.000000e+00 : f32
    %12 = vector.broadcast %cst_11 : f32 to vector<8x8xf32>
    %13 = vector.broadcast %cst_12 : f32 to vector<8x8xf32>
    %14 = arith.select %11, %12, %13 : vector<8x8xi1>, vector<8x8xf32>
    %c0_13 = arith.constant 0 : index
    %c0_14 = arith.constant 0 : index
    %c0_15 = arith.constant 0 : index
    %15 = vector.load %arg5[%c0_13, %c0_14, %c0_15] : memref<1x1x16xf32, #tpu.memory_space<vmem>>, vector<1x1x16xf32>
    %16 = vector.shape_cast %15 : vector<1x1x16xf32> to vector<1x16xf32>
    %cst_16 = arith.constant 5.000000e-01 : f32
    %17 = vector.broadcast %cst_16 : f32 to vector<1x16xf32>
    %18 = arith.cmpf olt, %16, %17 : vector<1x16xf32>
    %cst_17 = arith.constant -1.000000e+30 : f32
    %cst_18 = arith.constant 0.000000e+00 : f32
    %19 = vector.broadcast %cst_17 : f32 to vector<1x16xf32>
    %20 = vector.broadcast %cst_18 : f32 to vector<1x16xf32>
    %21 = arith.select %18, %19, %20 : vector<1x16xi1>, vector<1x16xf32>
    %c0_19 = arith.constant 0 : index
    %c0_20 = arith.constant 0 : index
    %c0_21 = arith.constant 0 : index
    %22 = vector.load %arg6[%c0_19, %c0_20, %c0_21] : memref<1x1x24xf32, #tpu.memory_space<vmem>>, vector<1x1x24xf32>
    %23 = vector.shape_cast %22 : vector<1x1x24xf32> to vector<1x24xf32>
    %cst_22 = arith.constant 5.000000e-01 : f32
    %24 = vector.broadcast %cst_22 : f32 to vector<1x24xf32>
    %25 = arith.cmpf olt, %23, %24 : vector<1x24xf32>
    %cst_23 = arith.constant -1.000000e+30 : f32
    %cst_24 = arith.constant 0.000000e+00 : f32
    %26 = vector.broadcast %cst_23 : f32 to vector<1x24xf32>
    %27 = vector.broadcast %cst_24 : f32 to vector<1x24xf32>
    %28 = arith.select %25, %26, %27 : vector<1x24xi1>, vector<1x24xf32>
    %c0_25 = arith.constant 0 : index
    %c0_26 = arith.constant 0 : index
    %29 = vector.load %arg8[%c0_25, %c0_26] : memref<2x32xf32, #tpu.memory_space<vmem>>, vector<1x32xf32>
    %30 = vector.shape_cast %29 : vector<1x32xf32> to vector<32xf32>
    %c0_27 = arith.constant 0 : index
    %c0_28 = arith.constant 0 : index
    %31 = vector.load %arg9[%c0_27, %c0_28] : memref<2x32xf32, #tpu.memory_space<vmem>>, vector<1x32xf32>
    %32 = vector.shape_cast %31 : vector<1x32xf32> to vector<32xf32>
    %c0_29 = arith.constant 0 : index
    %c0_30 = arith.constant 0 : index
    %c0_31 = arith.constant 0 : index
    %33 = vector.load %arg10[%c0_29, %c0_30, %c0_31] : memref<2x32x32xbf16, #tpu.memory_space<vmem>>, vector<1x32x32xbf16>
    %34 = vector.shape_cast %33 : vector<1x32x32xbf16> to vector<32x32xbf16>
    %c0_32 = arith.constant 0 : index
    %c0_33 = arith.constant 0 : index
    %35 = vector.load %arg11[%c0_32, %c0_33] : memref<2x32xf32, #tpu.memory_space<vmem>>, vector<1x32xf32>
    %36 = vector.shape_cast %35 : vector<1x32xf32> to vector<32xf32>
    %c0_34 = arith.constant 0 : index
    %c0_35 = arith.constant 0 : index
    %c0_36 = arith.constant 0 : index
    %37 = vector.load %arg12[%c0_34, %c0_35, %c0_36] : memref<2x32x32xbf16, #tpu.memory_space<vmem>>, vector<1x32x32xbf16>
    %38 = vector.shape_cast %37 : vector<1x32x32xbf16> to vector<32x32xbf16>
    %c0_37 = arith.constant 0 : index
    %c0_38 = arith.constant 0 : index
    %39 = vector.load %arg13[%c0_37, %c0_38] : memref<2x32xf32, #tpu.memory_space<vmem>>, vector<1x32xf32>
    %40 = vector.shape_cast %39 : vector<1x32xf32> to vector<32xf32>
    %c0_39 = arith.constant 0 : index
    %c0_40 = arith.constant 0 : index
    %c0_41 = arith.constant 0 : index
    %41 = vector.load %arg14[%c0_39, %c0_40, %c0_41] : memref<2x32x32xbf16, #tpu.memory_space<vmem>>, vector<1x32x32xbf16>
    %42 = vector.shape_cast %41 : vector<1x32x32xbf16> to vector<32x32xbf16>
    %c0_42 = arith.constant 0 : index
    %c0_43 = arith.constant 0 : index
    %43 = vector.load %arg15[%c0_42, %c0_43] : memref<2x32xf32, #tpu.memory_space<vmem>>, vector<1x32xf32>
    %44 = vector.shape_cast %43 : vector<1x32xf32> to vector<32xf32>
    %c0_44 = arith.constant 0 : index
    %c0_45 = arith.constant 0 : index
    %c0_46 = arith.constant 0 : index
    %45 = vector.load %arg16[%c0_44, %c0_45, %c0_46] : memref<2x32x32xbf16, #tpu.memory_space<vmem>>, vector<1x32x32xbf16>
    %46 = vector.shape_cast %45 : vector<1x32x32xbf16> to vector<32x32xbf16>
    %c0_47 = arith.constant 0 : index
    %c0_48 = arith.constant 0 : index
    %47 = vector.load %arg17[%c0_47, %c0_48] : memref<2x32xf32, #tpu.memory_space<vmem>>, vector<1x32xf32>
    %48 = vector.shape_cast %47 : vector<1x32xf32> to vector<32xf32>
    %cst_49 = arith.constant dense<0.000000e+00> : vector<8xf32>
    %49 = vector.multi_reduction <add>, %1, %cst_49 [1] : vector<8x32xf32> to vector<8xf32>
    %50 = vector.shape_cast %49 : vector<8xf32> to vector<8x1xf32>
    %cst_50 = arith.constant 3.200000e+01 : f32
    %51 = vector.broadcast %cst_50 : f32 to vector<8x1xf32>
    %52 = arith.divf %50, %51 : vector<8x1xf32>
    %53 = vector.broadcast %52 : vector<8x1xf32> to vector<8x32xf32>
    %54 = arith.subf %1, %53 : vector<8x32xf32>
    %55 = arith.mulf %54, %54 : vector<8x32xf32>
    %cst_51 = arith.constant dense<0.000000e+00> : vector<8xf32>
    %56 = vector.multi_reduction <add>, %55, %cst_51 [1] : vector<8x32xf32> to vector<8xf32>
    %57 = vector.shape_cast %56 : vector<8xf32> to vector<8x1xf32>
    %cst_52 = arith.constant 3.200000e+01 : f32
    %58 = vector.broadcast %cst_52 : f32 to vector<8x1xf32>
    %59 = arith.divf %57, %58 : vector<8x1xf32>
    %60 = vector.broadcast %52 : vector<8x1xf32> to vector<8x32xf32>
    %61 = arith.subf %1, %60 : vector<8x32xf32>
    %cst_53 = arith.constant 9.99999974E-6 : f32
    %62 = vector.broadcast %cst_53 : f32 to vector<8x1xf32>
    %63 = arith.addf %59, %62 : vector<8x1xf32>
    %64 = math.rsqrt %63 : vector<8x1xf32>
    %65 = vector.broadcast %64 : vector<8x1xf32> to vector<8x32xf32>
    %66 = arith.mulf %61, %65 : vector<8x32xf32>
    %67 = vector.shape_cast %30 : vector<32xf32> to vector<1x32xf32>
    %68 = vector.broadcast %67 : vector<1x32xf32> to vector<8x32xf32>
    %69 = arith.mulf %66, %68 : vector<8x32xf32>
    %70 = vector.shape_cast %32 : vector<32xf32> to vector<1x32xf32>
    %71 = vector.broadcast %70 : vector<1x32xf32> to vector<8x32xf32>
    %72 = arith.addf %69, %71 : vector<8x32xf32>
    %73 = arith.truncf %72 : vector<8x32xf32> to vector<8x32xbf16>
    %cst_54 = arith.constant dense<0.000000e+00> : vector<8x32xf32>
    %74 = tpu.matmul %73, %34, %cst_54 {dimension_numbers = #tpu.dot_dimension_numbers<[1], [0], [0], [1], [0, 0, 1, 1], [], []>} : vector<8x32xbf16>, vector<32x32xbf16>, vector<8x32xf32> -> vector<8x32xf32>
    %75 = vector.shape_cast %36 : vector<32xf32> to vector<1x32xf32>
    %76 = vector.broadcast %75 : vector<1x32xf32> to vector<8x32xf32>
    %77 = arith.addf %74, %76 : vector<8x32xf32>
    %cst_55 = arith.constant dense<0.000000e+00> : vector<8x32xf32>
    %78 = tpu.matmul %73, %38, %cst_55 {dimension_numbers = #tpu.dot_dimension_numbers<[1], [0], [0], [1], [0, 0, 1, 1], [], []>} : vector<8x32xbf16>, vector<32x32xbf16>, vector<8x32xf32> -> vector<8x32xf32>
    %79 = vector.shape_cast %40 : vector<32xf32> to vector<1x32xf32>
    %80 = vector.broadcast %79 : vector<1x32xf32> to vector<8x32xf32>
    %81 = arith.addf %78, %80 : vector<8x32xf32>
    %cst_56 = arith.constant dense<0.000000e+00> : vector<8x32xf32>
    %82 = tpu.matmul %73, %42, %cst_56 {dimension_numbers = #tpu.dot_dimension_numbers<[1], [0], [0], [1], [0, 0, 1, 1], [], []>} : vector<8x32xbf16>, vector<32x32xbf16>, vector<8x32xf32> -> vector<8x32xf32>
    %83 = vector.shape_cast %44 : vector<32xf32> to vector<1x32xf32>
    %84 = vector.broadcast %83 : vector<1x32xf32> to vector<8x32xf32>
    %85 = arith.addf %82, %84 : vector<8x32xf32>
    %cst_57 = arith.constant 0.353553385 : f32
    %86 = vector.broadcast %cst_57 : f32 to vector<8x32xf32>
    %87 = arith.mulf %77, %86 : vector<8x32xf32>
    %88 = vector.extract_strided_slice %87 {offsets = [0, 0], sizes = [8, 8], strides = [1, 1]} : vector<8x32xf32> to vector<8x8xf32>
    %89 = arith.truncf %88 : vector<8x8xf32> to vector<8x8xbf16>
    %90 = vector.extract_strided_slice %81 {offsets = [0, 0], sizes = [8, 8], strides = [1, 1]} : vector<8x32xf32> to vector<8x8xf32>
    %91 = arith.truncf %90 : vector<8x8xf32> to vector<8x8xbf16>
    %cst_58 = arith.constant dense<0.000000e+00> : vector<8x8xf32>
    %92 = tpu.matmul %89, %91, %cst_58 {dimension_numbers = #tpu.dot_dimension_numbers<[1], [1], [0], [0], [0, 0, 1, 0], [], []>} : vector<8x8xbf16>, vector<8x8xbf16>, vector<8x8xf32> -> vector<8x8xf32>
    %93 = arith.addf %92, %14 : vector<8x8xf32>
    %cst_59 = arith.constant dense<0xFF800000> : vector<8xf32>
    %94 = vector.multi_reduction <maximumf>, %93, %cst_59 [1] : vector<8x8xf32> to vector<8xf32>
    %95 = vector.shape_cast %94 : vector<8xf32> to vector<8x1xf32>
    %96 = vector.broadcast %95 : vector<8x1xf32> to vector<8x8xf32>
    %97 = arith.subf %93, %96 : vector<8x8xf32>
    %98 = math.exp %97 : vector<8x8xf32>
    %cst_60 = arith.constant dense<0.000000e+00> : vector<8xf32>
    %99 = vector.multi_reduction <add>, %98, %cst_60 [1] : vector<8x8xf32> to vector<8xf32>
    %100 = vector.shape_cast %99 : vector<8xf32> to vector<8x1xf32>
    %101 = tpu.reciprocal %100 {approx = true} : vector<8x1xf32> -> vector<8x1xf32>
    %102 = vector.broadcast %101 : vector<8x1xf32> to vector<8x8xf32>
    %103 = arith.mulf %98, %102 : vector<8x8xf32>
    %104 = arith.truncf %103 : vector<8x8xf32> to vector<8x8xbf16>
    %105 = vector.extract_strided_slice %85 {offsets = [0, 0], sizes = [8, 8], strides = [1, 1]} : vector<8x32xf32> to vector<8x8xf32>
    %106 = arith.truncf %105 : vector<8x8xf32> to vector<8x8xbf16>
    %cst_61 = arith.constant dense<0.000000e+00> : vector<8x8xf32>
    %107 = tpu.matmul %104, %106, %cst_61 {dimension_numbers = #tpu.dot_dimension_numbers<[1], [0], [0], [1], [0, 0, 1, 1], [], []>} : vector<8x8xbf16>, vector<8x8xbf16>, vector<8x8xf32> -> vector<8x8xf32>
    %108 = arith.truncf %107 : vector<8x8xf32> to vector<8x8xbf16>
    %109 = vector.extract_strided_slice %46 {offsets = [0, 0], sizes = [8, 32], strides = [1, 1]} : vector<32x32xbf16> to vector<8x32xbf16>
    %cst_62 = arith.constant dense<0.000000e+00> : vector<8x32xf32>
    %110 = tpu.matmul %108, %109, %cst_62 {dimension_numbers = #tpu.dot_dimension_numbers<[1], [0], [0], [1], [0, 0, 1, 1], [], []>} : vector<8x8xbf16>, vector<8x32xbf16>, vector<8x32xf32> -> vector<8x32xf32>
    %111 = vector.extract_strided_slice %87 {offsets = [0, 8], sizes = [8, 8], strides = [1, 1]} : vector<8x32xf32> to vector<8x8xf32>
    %112 = arith.truncf %111 : vector<8x8xf32> to vector<8x8xbf16>
    %113 = vector.extract_strided_slice %81 {offsets = [0, 8], sizes = [8, 8], strides = [1, 1]} : vector<8x32xf32> to vector<8x8xf32>
    %114 = arith.truncf %113 : vector<8x8xf32> to vector<8x8xbf16>
    %cst_63 = arith.constant dense<0.000000e+00> : vector<8x8xf32>
    %115 = tpu.matmul %112, %114, %cst_63 {dimension_numbers = #tpu.dot_dimension_numbers<[1], [1], [0], [0], [0, 0, 1, 0], [], []>} : vector<8x8xbf16>, vector<8x8xbf16>, vector<8x8xf32> -> vector<8x8xf32>
    %116 = arith.addf %115, %14 : vector<8x8xf32>
    %cst_64 = arith.constant dense<0xFF800000> : vector<8xf32>
    %117 = vector.multi_reduction <maximumf>, %116, %cst_64 [1] : vector<8x8xf32> to vector<8xf32>
    %118 = vector.shape_cast %117 : vector<8xf32> to vector<8x1xf32>
    %119 = vector.broadcast %118 : vector<8x1xf32> to vector<8x8xf32>
    %120 = arith.subf %116, %119 : vector<8x8xf32>
    %121 = math.exp %120 : vector<8x8xf32>
    %cst_65 = arith.constant dense<0.000000e+00> : vector<8xf32>
    %122 = vector.multi_reduction <add>, %121, %cst_65 [1] : vector<8x8xf32> to vector<8xf32>
    %123 = vector.shape_cast %122 : vector<8xf32> to vector<8x1xf32>
    %124 = tpu.reciprocal %123 {approx = true} : vector<8x1xf32> -> vector<8x1xf32>
    %125 = vector.broadcast %124 : vector<8x1xf32> to vector<8x8xf32>
    %126 = arith.mulf %121, %125 : vector<8x8xf32>
    %127 = arith.truncf %126 : vector<8x8xf32> to vector<8x8xbf16>
    %128 = vector.extract_strided_slice %85 {offsets = [0, 8], sizes = [8, 8], strides = [1, 1]} : vector<8x32xf32> to vector<8x8xf32>
    %129 = arith.truncf %128 : vector<8x8xf32> to vector<8x8xbf16>
    %cst_66 = arith.constant dense<0.000000e+00> : vector<8x8xf32>
    %130 = tpu.matmul %127, %129, %cst_66 {dimension_numbers = #tpu.dot_dimension_numbers<[1], [0], [0], [1], [0, 0, 1, 1], [], []>} : vector<8x8xbf16>, vector<8x8xbf16>, vector<8x8xf32> -> vector<8x8xf32>
    %131 = arith.truncf %130 : vector<8x8xf32> to vector<8x8xbf16>
    %132 = vector.extract_strided_slice %46 {offsets = [8, 0], sizes = [8, 32], strides = [1, 1]} : vector<32x32xbf16> to vector<8x32xbf16>
    %cst_67 = arith.constant dense<0.000000e+00> : vector<8x32xf32>
    %133 = tpu.matmul %131, %132, %cst_67 {dimension_numbers = #tpu.dot_dimension_numbers<[1], [0], [0], [1], [0, 0, 1, 1], [], []>} : vector<8x8xbf16>, vector<8x32xbf16>, vector<8x32xf32> -> vector<8x32xf32>
    %134 = arith.addf %110, %133 : vector<8x32xf32>
    %135 = vector.extract_strided_slice %87 {offsets = [0, 16], sizes = [8, 8], strides = [1, 1]} : vector<8x32xf32> to vector<8x8xf32>
    %136 = arith.truncf %135 : vector<8x8xf32> to vector<8x8xbf16>
    %137 = vector.extract_strided_slice %81 {offsets = [0, 16], sizes = [8, 8], strides = [1, 1]} : vector<8x32xf32> to vector<8x8xf32>
    %138 = arith.truncf %137 : vector<8x8xf32> to vector<8x8xbf16>
    %cst_68 = arith.constant dense<0.000000e+00> : vector<8x8xf32>
    %139 = tpu.matmul %136, %138, %cst_68 {dimension_numbers = #tpu.dot_dimension_numbers<[1], [1], [0], [0], [0, 0, 1, 0], [], []>} : vector<8x8xbf16>, vector<8x8xbf16>, vector<8x8xf32> -> vector<8x8xf32>
    %140 = arith.addf %139, %14 : vector<8x8xf32>
    %cst_69 = arith.constant dense<0xFF800000> : vector<8xf32>
    %141 = vector.multi_reduction <maximumf>, %140, %cst_69 [1] : vector<8x8xf32> to vector<8xf32>
    %142 = vector.shape_cast %141 : vector<8xf32> to vector<8x1xf32>
    %143 = vector.broadcast %142 : vector<8x1xf32> to vector<8x8xf32>
    %144 = arith.subf %140, %143 : vector<8x8xf32>
    %145 = math.exp %144 : vector<8x8xf32>
    %cst_70 = arith.constant dense<0.000000e+00> : vector<8xf32>
    %146 = vector.multi_reduction <add>, %145, %cst_70 [1] : vector<8x8xf32> to vector<8xf32>
    %147 = vector.shape_cast %146 : vector<8xf32> to vector<8x1xf32>
    %148 = tpu.reciprocal %147 {approx = true} : vector<8x1xf32> -> vector<8x1xf32>
    %149 = vector.broadcast %148 : vector<8x1xf32> to vector<8x8xf32>
    %150 = arith.mulf %145, %149 : vector<8x8xf32>
    %151 = arith.truncf %150 : vector<8x8xf32> to vector<8x8xbf16>
    %152 = vector.extract_strided_slice %85 {offsets = [0, 16], sizes = [8, 8], strides = [1, 1]} : vector<8x32xf32> to vector<8x8xf32>
    %153 = arith.truncf %152 : vector<8x8xf32> to vector<8x8xbf16>
    %cst_71 = arith.constant dense<0.000000e+00> : vector<8x8xf32>
    %154 = tpu.matmul %151, %153, %cst_71 {dimension_numbers = #tpu.dot_dimension_numbers<[1], [0], [0], [1], [0, 0, 1, 1], [], []>} : vector<8x8xbf16>, vector<8x8xbf16>, vector<8x8xf32> -> vector<8x8xf32>
    %155 = arith.truncf %154 : vector<8x8xf32> to vector<8x8xbf16>
    %156 = vector.extract_strided_slice %46 {offsets = [16, 0], sizes = [8, 32], strides = [1, 1]} : vector<32x32xbf16> to vector<8x32xbf16>
    %cst_72 = arith.constant dense<0.000000e+00> : vector<8x32xf32>
    %157 = tpu.matmul %155, %156, %cst_72 {dimension_numbers = #tpu.dot_dimension_numbers<[1], [0], [0], [1], [0, 0, 1, 1], [], []>} : vector<8x8xbf16>, vector<8x32xbf16>, vector<8x32xf32> -> vector<8x32xf32>
    %158 = arith.addf %134, %157 : vector<8x32xf32>
    %159 = vector.extract_strided_slice %87 {offsets = [0, 24], sizes = [8, 8], strides = [1, 1]} : vector<8x32xf32> to vector<8x8xf32>
    %160 = arith.truncf %159 : vector<8x8xf32> to vector<8x8xbf16>
    %161 = vector.extract_strided_slice %81 {offsets = [0, 24], sizes = [8, 8], strides = [1, 1]} : vector<8x32xf32> to vector<8x8xf32>
    %162 = arith.truncf %161 : vector<8x8xf32> to vector<8x8xbf16>
    %cst_73 = arith.constant dense<0.000000e+00> : vector<8x8xf32>
    %163 = tpu.matmul %160, %162, %cst_73 {dimension_numbers = #tpu.dot_dimension_numbers<[1], [1], [0], [0], [0, 0, 1, 0], [], []>} : vector<8x8xbf16>, vector<8x8xbf16>, vector<8x8xf32> -> vector<8x8xf32>
    %164 = arith.addf %163, %14 : vector<8x8xf32>
    %cst_74 = arith.constant dense<0xFF800000> : vector<8xf32>
    %165 = vector.multi_reduction <maximumf>, %164, %cst_74 [1] : vector<8x8xf32> to vector<8xf32>
    %166 = vector.shape_cast %165 : vector<8xf32> to vector<8x1xf32>
    %167 = vector.broadcast %166 : vector<8x1xf32> to vector<8x8xf32>
    %168 = arith.subf %164, %167 : vector<8x8xf32>
    %169 = math.exp %168 : vector<8x8xf32>
    %cst_75 = arith.constant dense<0.000000e+00> : vector<8xf32>
    %170 = vector.multi_reduction <add>, %169, %cst_75 [1] : vector<8x8xf32> to vector<8xf32>
    %171 = vector.shape_cast %170 : vector<8xf32> to vector<8x1xf32>
    %172 = tpu.reciprocal %171 {approx = true} : vector<8x1xf32> -> vector<8x1xf32>
    %173 = vector.broadcast %172 : vector<8x1xf32> to vector<8x8xf32>
    %174 = arith.mulf %169, %173 : vector<8x8xf32>
    %175 = arith.truncf %174 : vector<8x8xf32> to vector<8x8xbf16>
    %176 = vector.extract_strided_slice %85 {offsets = [0, 24], sizes = [8, 8], strides = [1, 1]} : vector<8x32xf32> to vector<8x8xf32>
    %177 = arith.truncf %176 : vector<8x8xf32> to vector<8x8xbf16>
    %cst_76 = arith.constant dense<0.000000e+00> : vector<8x8xf32>
    %178 = tpu.matmul %175, %177, %cst_76 {dimension_numbers = #tpu.dot_dimension_numbers<[1], [0], [0], [1], [0, 0, 1, 1], [], []>} : vector<8x8xbf16>, vector<8x8xbf16>, vector<8x8xf32> -> vector<8x8xf32>
    %179 = arith.truncf %178 : vector<8x8xf32> to vector<8x8xbf16>
    %180 = vector.extract_strided_slice %46 {offsets = [24, 0], sizes = [8, 32], strides = [1, 1]} : vector<32x32xbf16> to vector<8x32xbf16>
    %cst_77 = arith.constant dense<0.000000e+00> : vector<8x32xf32>
    %181 = tpu.matmul %179, %180, %cst_77 {dimension_numbers = #tpu.dot_dimension_numbers<[1], [0], [0], [1], [0, 0, 1, 1], [], []>} : vector<8x8xbf16>, vector<8x32xbf16>, vector<8x32xf32> -> vector<8x32xf32>
    %182 = arith.addf %158, %181 : vector<8x32xf32>
    %183 = arith.addf %1, %182 : vector<8x32xf32>
    %184 = vector.shape_cast %48 : vector<32xf32> to vector<1x32xf32>
    %185 = vector.broadcast %184 : vector<1x32xf32> to vector<8x32xf32>
    %186 = arith.addf %183, %185 : vector<8x32xf32>
    %c0_78 = arith.constant 0 : index
    %c0_79 = arith.constant 0 : index
    %187 = vector.load %arg18[%c0_78, %c0_79] : memref<2x32xf32, #tpu.memory_space<vmem>>, vector<1x32xf32>
    %188 = vector.shape_cast %187 : vector<1x32xf32> to vector<32xf32>
    %c0_80 = arith.constant 0 : index
    %c0_81 = arith.constant 0 : index
    %189 = vector.load %arg19[%c0_80, %c0_81] : memref<2x32xf32, #tpu.memory_space<vmem>>, vector<1x32xf32>
    %190 = vector.shape_cast %189 : vector<1x32xf32> to vector<32xf32>
    %c0_82 = arith.constant 0 : index
    %c0_83 = arith.constant 0 : index
    %c0_84 = arith.constant 0 : index
    %191 = vector.load %arg20[%c0_82, %c0_83, %c0_84] : memref<2x32x32xbf16, #tpu.memory_space<vmem>>, vector<1x32x32xbf16>
    %192 = vector.shape_cast %191 : vector<1x32x32xbf16> to vector<32x32xbf16>
    %c0_85 = arith.constant 0 : index
    %c0_86 = arith.constant 0 : index
    %193 = vector.load %arg21[%c0_85, %c0_86] : memref<2x32xf32, #tpu.memory_space<vmem>>, vector<1x32xf32>
    %194 = vector.shape_cast %193 : vector<1x32xf32> to vector<32xf32>
    %c0_87 = arith.constant 0 : index
    %c0_88 = arith.constant 0 : index
    %c0_89 = arith.constant 0 : index
    %195 = vector.load %arg22[%c0_87, %c0_88, %c0_89] : memref<2x32x32xbf16, #tpu.memory_space<vmem>>, vector<1x32x32xbf16>
    %196 = vector.shape_cast %195 : vector<1x32x32xbf16> to vector<32x32xbf16>
    %c0_90 = arith.constant 0 : index
    %c0_91 = arith.constant 0 : index
    %197 = vector.load %arg23[%c0_90, %c0_91] : memref<2x32xf32, #tpu.memory_space<vmem>>, vector<1x32xf32>
    %198 = vector.shape_cast %197 : vector<1x32xf32> to vector<32xf32>
    %c0_92 = arith.constant 0 : index
    %c0_93 = arith.constant 0 : index
    %c0_94 = arith.constant 0 : index
    %199 = vector.load %arg24[%c0_92, %c0_93, %c0_94] : memref<2x32x32xbf16, #tpu.memory_space<vmem>>, vector<1x32x32xbf16>
    %200 = vector.shape_cast %199 : vector<1x32x32xbf16> to vector<32x32xbf16>
    %c0_95 = arith.constant 0 : index
    %c0_96 = arith.constant 0 : index
    %201 = vector.load %arg25[%c0_95, %c0_96] : memref<2x32xf32, #tpu.memory_space<vmem>>, vector<1x32xf32>
    %202 = vector.shape_cast %201 : vector<1x32xf32> to vector<32xf32>
    %c0_97 = arith.constant 0 : index
    %c0_98 = arith.constant 0 : index
    %c0_99 = arith.constant 0 : index
    %203 = vector.load %arg26[%c0_97, %c0_98, %c0_99] : memref<2x32x32xbf16, #tpu.memory_space<vmem>>, vector<1x32x32xbf16>
    %204 = vector.shape_cast %203 : vector<1x32x32xbf16> to vector<32x32xbf16>
    %c0_100 = arith.constant 0 : index
    %c0_101 = arith.constant 0 : index
    %205 = vector.load %arg27[%c0_100, %c0_101] : memref<2x32xf32, #tpu.memory_space<vmem>>, vector<1x32xf32>
    %206 = vector.shape_cast %205 : vector<1x32xf32> to vector<32xf32>
    %cst_102 = arith.constant dense<0.000000e+00> : vector<8xf32>
    %207 = vector.multi_reduction <add>, %186, %cst_102 [1] : vector<8x32xf32> to vector<8xf32>
    %208 = vector.shape_cast %207 : vector<8xf32> to vector<8x1xf32>
    %cst_103 = arith.constant 3.200000e+01 : f32
    %209 = vector.broadcast %cst_103 : f32 to vector<8x1xf32>
    %210 = arith.divf %208, %209 : vector<8x1xf32>
    %211 = vector.broadcast %210 : vector<8x1xf32> to vector<8x32xf32>
    %212 = arith.subf %186, %211 : vector<8x32xf32>
    %213 = arith.mulf %212, %212 : vector<8x32xf32>
    %cst_104 = arith.constant dense<0.000000e+00> : vector<8xf32>
    %214 = vector.multi_reduction <add>, %213, %cst_104 [1] : vector<8x32xf32> to vector<8xf32>
    %215 = vector.shape_cast %214 : vector<8xf32> to vector<8x1xf32>
    %cst_105 = arith.constant 3.200000e+01 : f32
    %216 = vector.broadcast %cst_105 : f32 to vector<8x1xf32>
    %217 = arith.divf %215, %216 : vector<8x1xf32>
    %218 = vector.broadcast %210 : vector<8x1xf32> to vector<8x32xf32>
    %219 = arith.subf %186, %218 : vector<8x32xf32>
    %cst_106 = arith.constant 9.99999974E-6 : f32
    %220 = vector.broadcast %cst_106 : f32 to vector<8x1xf32>
    %221 = arith.addf %217, %220 : vector<8x1xf32>
    %222 = math.rsqrt %221 : vector<8x1xf32>
    %223 = vector.broadcast %222 : vector<8x1xf32> to vector<8x32xf32>
    %224 = arith.mulf %219, %223 : vector<8x32xf32>
    %225 = vector.shape_cast %188 : vector<32xf32> to vector<1x32xf32>
    %226 = vector.broadcast %225 : vector<1x32xf32> to vector<8x32xf32>
    %227 = arith.mulf %224, %226 : vector<8x32xf32>
    %228 = vector.shape_cast %190 : vector<32xf32> to vector<1x32xf32>
    %229 = vector.broadcast %228 : vector<1x32xf32> to vector<8x32xf32>
    %230 = arith.addf %227, %229 : vector<8x32xf32>
    %231 = arith.truncf %230 : vector<8x32xf32> to vector<8x32xbf16>
    %cst_107 = arith.constant dense<0.000000e+00> : vector<8x32xf32>
    %232 = tpu.matmul %231, %192, %cst_107 {dimension_numbers = #tpu.dot_dimension_numbers<[1], [0], [0], [1], [0, 0, 1, 1], [], []>} : vector<8x32xbf16>, vector<32x32xbf16>, vector<8x32xf32> -> vector<8x32xf32>
    %233 = vector.shape_cast %194 : vector<32xf32> to vector<1x32xf32>
    %234 = vector.broadcast %233 : vector<1x32xf32> to vector<8x32xf32>
    %235 = arith.addf %232, %234 : vector<8x32xf32>
    %cst_108 = arith.constant dense<0.000000e+00> : vector<16x32xf32>
    %236 = tpu.matmul %4, %196, %cst_108 {dimension_numbers = #tpu.dot_dimension_numbers<[1], [0], [0], [1], [0, 0, 1, 1], [], []>} : vector<16x32xbf16>, vector<32x32xbf16>, vector<16x32xf32> -> vector<16x32xf32>
    %237 = vector.shape_cast %198 : vector<32xf32> to vector<1x32xf32>
    %238 = vector.broadcast %237 : vector<1x32xf32> to vector<16x32xf32>
    %239 = arith.addf %236, %238 : vector<16x32xf32>
    %cst_109 = arith.constant dense<0.000000e+00> : vector<16x32xf32>
    %240 = tpu.matmul %4, %200, %cst_109 {dimension_numbers = #tpu.dot_dimension_numbers<[1], [0], [0], [1], [0, 0, 1, 1], [], []>} : vector<16x32xbf16>, vector<32x32xbf16>, vector<16x32xf32> -> vector<16x32xf32>
    %241 = vector.shape_cast %202 : vector<32xf32> to vector<1x32xf32>
    %242 = vector.broadcast %241 : vector<1x32xf32> to vector<16x32xf32>
    %243 = arith.addf %240, %242 : vector<16x32xf32>
    %cst_110 = arith.constant 0.353553385 : f32
    %244 = vector.broadcast %cst_110 : f32 to vector<8x32xf32>
    %245 = arith.mulf %235, %244 : vector<8x32xf32>
    %246 = vector.extract_strided_slice %245 {offsets = [0, 0], sizes = [8, 8], strides = [1, 1]} : vector<8x32xf32> to vector<8x8xf32>
    %247 = arith.truncf %246 : vector<8x8xf32> to vector<8x8xbf16>
    %248 = vector.extract_strided_slice %239 {offsets = [0, 0], sizes = [16, 8], strides = [1, 1]} : vector<16x32xf32> to vector<16x8xf32>
    %249 = arith.truncf %248 : vector<16x8xf32> to vector<16x8xbf16>
    %cst_111 = arith.constant dense<0.000000e+00> : vector<8x16xf32>
    %250 = tpu.matmul %247, %249, %cst_111 {dimension_numbers = #tpu.dot_dimension_numbers<[1], [1], [0], [0], [0, 0, 1, 0], [], []>} : vector<8x8xbf16>, vector<16x8xbf16>, vector<8x16xf32> -> vector<8x16xf32>
    %251 = vector.broadcast %21 : vector<1x16xf32> to vector<8x16xf32>
    %252 = arith.addf %250, %251 : vector<8x16xf32>
    %cst_112 = arith.constant dense<0xFF800000> : vector<8xf32>
    %253 = vector.multi_reduction <maximumf>, %252, %cst_112 [1] : vector<8x16xf32> to vector<8xf32>
    %254 = vector.shape_cast %253 : vector<8xf32> to vector<8x1xf32>
    %255 = vector.broadcast %254 : vector<8x1xf32> to vector<8x16xf32>
    %256 = arith.subf %252, %255 : vector<8x16xf32>
    %257 = math.exp %256 : vector<8x16xf32>
    %cst_113 = arith.constant dense<0.000000e+00> : vector<8xf32>
    %258 = vector.multi_reduction <add>, %257, %cst_113 [1] : vector<8x16xf32> to vector<8xf32>
    %259 = vector.shape_cast %258 : vector<8xf32> to vector<8x1xf32>
    %260 = tpu.reciprocal %259 {approx = true} : vector<8x1xf32> -> vector<8x1xf32>
    %261 = vector.broadcast %260 : vector<8x1xf32> to vector<8x16xf32>
    %262 = arith.mulf %257, %261 : vector<8x16xf32>
    %263 = arith.truncf %262 : vector<8x16xf32> to vector<8x16xbf16>
    %264 = vector.extract_strided_slice %243 {offsets = [0, 0], sizes = [16, 8], strides = [1, 1]} : vector<16x32xf32> to vector<16x8xf32>
    %265 = arith.truncf %264 : vector<16x8xf32> to vector<16x8xbf16>
    %cst_114 = arith.constant dense<0.000000e+00> : vector<8x8xf32>
    %266 = tpu.matmul %263, %265, %cst_114 {dimension_numbers = #tpu.dot_dimension_numbers<[1], [0], [0], [1], [0, 0, 1, 1], [], []>} : vector<8x16xbf16>, vector<16x8xbf16>, vector<8x8xf32> -> vector<8x8xf32>
    %267 = arith.truncf %266 : vector<8x8xf32> to vector<8x8xbf16>
    %268 = vector.extract_strided_slice %204 {offsets = [0, 0], sizes = [8, 32], strides = [1, 1]} : vector<32x32xbf16> to vector<8x32xbf16>
    %cst_115 = arith.constant dense<0.000000e+00> : vector<8x32xf32>
    %269 = tpu.matmul %267, %268, %cst_115 {dimension_numbers = #tpu.dot_dimension_numbers<[1], [0], [0], [1], [0, 0, 1, 1], [], []>} : vector<8x8xbf16>, vector<8x32xbf16>, vector<8x32xf32> -> vector<8x32xf32>
    %270 = vector.extract_strided_slice %245 {offsets = [0, 8], sizes = [8, 8], strides = [1, 1]} : vector<8x32xf32> to vector<8x8xf32>
    %271 = arith.truncf %270 : vector<8x8xf32> to vector<8x8xbf16>
    %272 = vector.extract_strided_slice %239 {offsets = [0, 8], sizes = [16, 8], strides = [1, 1]} : vector<16x32xf32> to vector<16x8xf32>
    %273 = arith.truncf %272 : vector<16x8xf32> to vector<16x8xbf16>
    %cst_116 = arith.constant dense<0.000000e+00> : vector<8x16xf32>
    %274 = tpu.matmul %271, %273, %cst_116 {dimension_numbers = #tpu.dot_dimension_numbers<[1], [1], [0], [0], [0, 0, 1, 0], [], []>} : vector<8x8xbf16>, vector<16x8xbf16>, vector<8x16xf32> -> vector<8x16xf32>
    %275 = vector.broadcast %21 : vector<1x16xf32> to vector<8x16xf32>
    %276 = arith.addf %274, %275 : vector<8x16xf32>
    %cst_117 = arith.constant dense<0xFF800000> : vector<8xf32>
    %277 = vector.multi_reduction <maximumf>, %276, %cst_117 [1] : vector<8x16xf32> to vector<8xf32>
    %278 = vector.shape_cast %277 : vector<8xf32> to vector<8x1xf32>
    %279 = vector.broadcast %278 : vector<8x1xf32> to vector<8x16xf32>
    %280 = arith.subf %276, %279 : vector<8x16xf32>
    %281 = math.exp %280 : vector<8x16xf32>
    %cst_118 = arith.constant dense<0.000000e+00> : vector<8xf32>
    %282 = vector.multi_reduction <add>, %281, %cst_118 [1] : vector<8x16xf32> to vector<8xf32>
    %283 = vector.shape_cast %282 : vector<8xf32> to vector<8x1xf32>
    %284 = tpu.reciprocal %283 {approx = true} : vector<8x1xf32> -> vector<8x1xf32>
    %285 = vector.broadcast %284 : vector<8x1xf32> to vector<8x16xf32>
    %286 = arith.mulf %281, %285 : vector<8x16xf32>
    %287 = arith.truncf %286 : vector<8x16xf32> to vector<8x16xbf16>
    %288 = vector.extract_strided_slice %243 {offsets = [0, 8], sizes = [16, 8], strides = [1, 1]} : vector<16x32xf32> to vector<16x8xf32>
    %289 = arith.truncf %288 : vector<16x8xf32> to vector<16x8xbf16>
    %cst_119 = arith.constant dense<0.000000e+00> : vector<8x8xf32>
    %290 = tpu.matmul %287, %289, %cst_119 {dimension_numbers = #tpu.dot_dimension_numbers<[1], [0], [0], [1], [0, 0, 1, 1], [], []>} : vector<8x16xbf16>, vector<16x8xbf16>, vector<8x8xf32> -> vector<8x8xf32>
    %291 = arith.truncf %290 : vector<8x8xf32> to vector<8x8xbf16>
    %292 = vector.extract_strided_slice %204 {offsets = [8, 0], sizes = [8, 32], strides = [1, 1]} : vector<32x32xbf16> to vector<8x32xbf16>
    %cst_120 = arith.constant dense<0.000000e+00> : vector<8x32xf32>
    %293 = tpu.matmul %291, %292, %cst_120 {dimension_numbers = #tpu.dot_dimension_numbers<[1], [0], [0], [1], [0, 0, 1, 1], [], []>} : vector<8x8xbf16>, vector<8x32xbf16>, vector<8x32xf32> -> vector<8x32xf32>
    %294 = arith.addf %269, %293 : vector<8x32xf32>
    %295 = vector.extract_strided_slice %245 {offsets = [0, 16], sizes = [8, 8], strides = [1, 1]} : vector<8x32xf32> to vector<8x8xf32>
    %296 = arith.truncf %295 : vector<8x8xf32> to vector<8x8xbf16>
    %297 = vector.extract_strided_slice %239 {offsets = [0, 16], sizes = [16, 8], strides = [1, 1]} : vector<16x32xf32> to vector<16x8xf32>
    %298 = arith.truncf %297 : vector<16x8xf32> to vector<16x8xbf16>
    %cst_121 = arith.constant dense<0.000000e+00> : vector<8x16xf32>
    %299 = tpu.matmul %296, %298, %cst_121 {dimension_numbers = #tpu.dot_dimension_numbers<[1], [1], [0], [0], [0, 0, 1, 0], [], []>} : vector<8x8xbf16>, vector<16x8xbf16>, vector<8x16xf32> -> vector<8x16xf32>
    %300 = vector.broadcast %21 : vector<1x16xf32> to vector<8x16xf32>
    %301 = arith.addf %299, %300 : vector<8x16xf32>
    %cst_122 = arith.constant dense<0xFF800000> : vector<8xf32>
    %302 = vector.multi_reduction <maximumf>, %301, %cst_122 [1] : vector<8x16xf32> to vector<8xf32>
    %303 = vector.shape_cast %302 : vector<8xf32> to vector<8x1xf32>
    %304 = vector.broadcast %303 : vector<8x1xf32> to vector<8x16xf32>
    %305 = arith.subf %301, %304 : vector<8x16xf32>
    %306 = math.exp %305 : vector<8x16xf32>
    %cst_123 = arith.constant dense<0.000000e+00> : vector<8xf32>
    %307 = vector.multi_reduction <add>, %306, %cst_123 [1] : vector<8x16xf32> to vector<8xf32>
    %308 = vector.shape_cast %307 : vector<8xf32> to vector<8x1xf32>
    %309 = tpu.reciprocal %308 {approx = true} : vector<8x1xf32> -> vector<8x1xf32>
    %310 = vector.broadcast %309 : vector<8x1xf32> to vector<8x16xf32>
    %311 = arith.mulf %306, %310 : vector<8x16xf32>
    %312 = arith.truncf %311 : vector<8x16xf32> to vector<8x16xbf16>
    %313 = vector.extract_strided_slice %243 {offsets = [0, 16], sizes = [16, 8], strides = [1, 1]} : vector<16x32xf32> to vector<16x8xf32>
    %314 = arith.truncf %313 : vector<16x8xf32> to vector<16x8xbf16>
    %cst_124 = arith.constant dense<0.000000e+00> : vector<8x8xf32>
    %315 = tpu.matmul %312, %314, %cst_124 {dimension_numbers = #tpu.dot_dimension_numbers<[1], [0], [0], [1], [0, 0, 1, 1], [], []>} : vector<8x16xbf16>, vector<16x8xbf16>, vector<8x8xf32> -> vector<8x8xf32>
    %316 = arith.truncf %315 : vector<8x8xf32> to vector<8x8xbf16>
    %317 = vector.extract_strided_slice %204 {offsets = [16, 0], sizes = [8, 32], strides = [1, 1]} : vector<32x32xbf16> to vector<8x32xbf16>
    %cst_125 = arith.constant dense<0.000000e+00> : vector<8x32xf32>
    %318 = tpu.matmul %316, %317, %cst_125 {dimension_numbers = #tpu.dot_dimension_numbers<[1], [0], [0], [1], [0, 0, 1, 1], [], []>} : vector<8x8xbf16>, vector<8x32xbf16>, vector<8x32xf32> -> vector<8x32xf32>
    %319 = arith.addf %294, %318 : vector<8x32xf32>
    %320 = vector.extract_strided_slice %245 {offsets = [0, 24], sizes = [8, 8], strides = [1, 1]} : vector<8x32xf32> to vector<8x8xf32>
    %321 = arith.truncf %320 : vector<8x8xf32> to vector<8x8xbf16>
    %322 = vector.extract_strided_slice %239 {offsets = [0, 24], sizes = [16, 8], strides = [1, 1]} : vector<16x32xf32> to vector<16x8xf32>
    %323 = arith.truncf %322 : vector<16x8xf32> to vector<16x8xbf16>
    %cst_126 = arith.constant dense<0.000000e+00> : vector<8x16xf32>
    %324 = tpu.matmul %321, %323, %cst_126 {dimension_numbers = #tpu.dot_dimension_numbers<[1], [1], [0], [0], [0, 0, 1, 0], [], []>} : vector<8x8xbf16>, vector<16x8xbf16>, vector<8x16xf32> -> vector<8x16xf32>
    %325 = vector.broadcast %21 : vector<1x16xf32> to vector<8x16xf32>
    %326 = arith.addf %324, %325 : vector<8x16xf32>
    %cst_127 = arith.constant dense<0xFF800000> : vector<8xf32>
    %327 = vector.multi_reduction <maximumf>, %326, %cst_127 [1] : vector<8x16xf32> to vector<8xf32>
    %328 = vector.shape_cast %327 : vector<8xf32> to vector<8x1xf32>
    %329 = vector.broadcast %328 : vector<8x1xf32> to vector<8x16xf32>
    %330 = arith.subf %326, %329 : vector<8x16xf32>
    %331 = math.exp %330 : vector<8x16xf32>
    %cst_128 = arith.constant dense<0.000000e+00> : vector<8xf32>
    %332 = vector.multi_reduction <add>, %331, %cst_128 [1] : vector<8x16xf32> to vector<8xf32>
    %333 = vector.shape_cast %332 : vector<8xf32> to vector<8x1xf32>
    %334 = tpu.reciprocal %333 {approx = true} : vector<8x1xf32> -> vector<8x1xf32>
    %335 = vector.broadcast %334 : vector<8x1xf32> to vector<8x16xf32>
    %336 = arith.mulf %331, %335 : vector<8x16xf32>
    %337 = arith.truncf %336 : vector<8x16xf32> to vector<8x16xbf16>
    %338 = vector.extract_strided_slice %243 {offsets = [0, 24], sizes = [16, 8], strides = [1, 1]} : vector<16x32xf32> to vector<16x8xf32>
    %339 = arith.truncf %338 : vector<16x8xf32> to vector<16x8xbf16>
    %cst_129 = arith.constant dense<0.000000e+00> : vector<8x8xf32>
    %340 = tpu.matmul %337, %339, %cst_129 {dimension_numbers = #tpu.dot_dimension_numbers<[1], [0], [0], [1], [0, 0, 1, 1], [], []>} : vector<8x16xbf16>, vector<16x8xbf16>, vector<8x8xf32> -> vector<8x8xf32>
    %341 = arith.truncf %340 : vector<8x8xf32> to vector<8x8xbf16>
    %342 = vector.extract_strided_slice %204 {offsets = [24, 0], sizes = [8, 32], strides = [1, 1]} : vector<32x32xbf16> to vector<8x32xbf16>
    %cst_130 = arith.constant dense<0.000000e+00> : vector<8x32xf32>
    %343 = tpu.matmul %341, %342, %cst_130 {dimension_numbers = #tpu.dot_dimension_numbers<[1], [0], [0], [1], [0, 0, 1, 1], [], []>} : vector<8x8xbf16>, vector<8x32xbf16>, vector<8x32xf32> -> vector<8x32xf32>
    %344 = arith.addf %319, %343 : vector<8x32xf32>
    %345 = arith.addf %186, %344 : vector<8x32xf32>
    %346 = vector.shape_cast %206 : vector<32xf32> to vector<1x32xf32>
    %347 = vector.broadcast %346 : vector<1x32xf32> to vector<8x32xf32>
    %348 = arith.addf %345, %347 : vector<8x32xf32>
    %c0_131 = arith.constant 0 : index
    %c0_132 = arith.constant 0 : index
    %349 = vector.load %arg28[%c0_131, %c0_132] : memref<2x32xf32, #tpu.memory_space<vmem>>, vector<1x32xf32>
    %350 = vector.shape_cast %349 : vector<1x32xf32> to vector<32xf32>
    %c0_133 = arith.constant 0 : index
    %c0_134 = arith.constant 0 : index
    %351 = vector.load %arg29[%c0_133, %c0_134] : memref<2x32xf32, #tpu.memory_space<vmem>>, vector<1x32xf32>
    %352 = vector.shape_cast %351 : vector<1x32xf32> to vector<32xf32>
    %c0_135 = arith.constant 0 : index
    %c0_136 = arith.constant 0 : index
    %c0_137 = arith.constant 0 : index
    %353 = vector.load %arg30[%c0_135, %c0_136, %c0_137] : memref<2x32x32xbf16, #tpu.memory_space<vmem>>, vector<1x32x32xbf16>
    %354 = vector.shape_cast %353 : vector<1x32x32xbf16> to vector<32x32xbf16>
    %c0_138 = arith.constant 0 : index
    %c0_139 = arith.constant 0 : index
    %355 = vector.load %arg31[%c0_138, %c0_139] : memref<2x32xf32, #tpu.memory_space<vmem>>, vector<1x32xf32>
    %356 = vector.shape_cast %355 : vector<1x32xf32> to vector<32xf32>
    %c0_140 = arith.constant 0 : index
    %c0_141 = arith.constant 0 : index
    %c0_142 = arith.constant 0 : index
    %357 = vector.load %arg32[%c0_140, %c0_141, %c0_142] : memref<2x32x32xbf16, #tpu.memory_space<vmem>>, vector<1x32x32xbf16>
    %358 = vector.shape_cast %357 : vector<1x32x32xbf16> to vector<32x32xbf16>
    %c0_143 = arith.constant 0 : index
    %c0_144 = arith.constant 0 : index
    %359 = vector.load %arg33[%c0_143, %c0_144] : memref<2x32xf32, #tpu.memory_space<vmem>>, vector<1x32xf32>
    %360 = vector.shape_cast %359 : vector<1x32xf32> to vector<32xf32>
    %c0_145 = arith.constant 0 : index
    %c0_146 = arith.constant 0 : index
    %c0_147 = arith.constant 0 : index
    %361 = vector.load %arg34[%c0_145, %c0_146, %c0_147] : memref<2x32x32xbf16, #tpu.memory_space<vmem>>, vector<1x32x32xbf16>
    %362 = vector.shape_cast %361 : vector<1x32x32xbf16> to vector<32x32xbf16>
    %c0_148 = arith.constant 0 : index
    %c0_149 = arith.constant 0 : index
    %363 = vector.load %arg35[%c0_148, %c0_149] : memref<2x32xf32, #tpu.memory_space<vmem>>, vector<1x32xf32>
    %364 = vector.shape_cast %363 : vector<1x32xf32> to vector<32xf32>
    %c0_150 = arith.constant 0 : index
    %c0_151 = arith.constant 0 : index
    %c0_152 = arith.constant 0 : index
    %365 = vector.load %arg36[%c0_150, %c0_151, %c0_152] : memref<2x32x32xbf16, #tpu.memory_space<vmem>>, vector<1x32x32xbf16>
    %366 = vector.shape_cast %365 : vector<1x32x32xbf16> to vector<32x32xbf16>
    %c0_153 = arith.constant 0 : index
    %c0_154 = arith.constant 0 : index
    %367 = vector.load %arg37[%c0_153, %c0_154] : memref<2x32xf32, #tpu.memory_space<vmem>>, vector<1x32xf32>
    %368 = vector.shape_cast %367 : vector<1x32xf32> to vector<32xf32>
    %cst_155 = arith.constant dense<0.000000e+00> : vector<8xf32>
    %369 = vector.multi_reduction <add>, %186, %cst_155 [1] : vector<8x32xf32> to vector<8xf32>
    %370 = vector.shape_cast %369 : vector<8xf32> to vector<8x1xf32>
    %cst_156 = arith.constant 3.200000e+01 : f32
    %371 = vector.broadcast %cst_156 : f32 to vector<8x1xf32>
    %372 = arith.divf %370, %371 : vector<8x1xf32>
    %373 = vector.broadcast %372 : vector<8x1xf32> to vector<8x32xf32>
    %374 = arith.subf %186, %373 : vector<8x32xf32>
    %375 = arith.mulf %374, %374 : vector<8x32xf32>
    %cst_157 = arith.constant dense<0.000000e+00> : vector<8xf32>
    %376 = vector.multi_reduction <add>, %375, %cst_157 [1] : vector<8x32xf32> to vector<8xf32>
    %377 = vector.shape_cast %376 : vector<8xf32> to vector<8x1xf32>
    %cst_158 = arith.constant 3.200000e+01 : f32
    %378 = vector.broadcast %cst_158 : f32 to vector<8x1xf32>
    %379 = arith.divf %377, %378 : vector<8x1xf32>
    %380 = vector.broadcast %372 : vector<8x1xf32> to vector<8x32xf32>
    %381 = arith.subf %186, %380 : vector<8x32xf32>
    %cst_159 = arith.constant 9.99999974E-6 : f32
    %382 = vector.broadcast %cst_159 : f32 to vector<8x1xf32>
    %383 = arith.addf %379, %382 : vector<8x1xf32>
    %384 = math.rsqrt %383 : vector<8x1xf32>
    %385 = vector.broadcast %384 : vector<8x1xf32> to vector<8x32xf32>
    %386 = arith.mulf %381, %385 : vector<8x32xf32>
    %387 = vector.shape_cast %350 : vector<32xf32> to vector<1x32xf32>
    %388 = vector.broadcast %387 : vector<1x32xf32> to vector<8x32xf32>
    %389 = arith.mulf %386, %388 : vector<8x32xf32>
    %390 = vector.shape_cast %352 : vector<32xf32> to vector<1x32xf32>
    %391 = vector.broadcast %390 : vector<1x32xf32> to vector<8x32xf32>
    %392 = arith.addf %389, %391 : vector<8x32xf32>
    %393 = arith.truncf %392 : vector<8x32xf32> to vector<8x32xbf16>
    %cst_160 = arith.constant dense<0.000000e+00> : vector<8x32xf32>
    %394 = tpu.matmul %393, %354, %cst_160 {dimension_numbers = #tpu.dot_dimension_numbers<[1], [0], [0], [1], [0, 0, 1, 1], [], []>} : vector<8x32xbf16>, vector<32x32xbf16>, vector<8x32xf32> -> vector<8x32xf32>
    %395 = vector.shape_cast %356 : vector<32xf32> to vector<1x32xf32>
    %396 = vector.broadcast %395 : vector<1x32xf32> to vector<8x32xf32>
    %397 = arith.addf %394, %396 : vector<8x32xf32>
    %cst_161 = arith.constant dense<0.000000e+00> : vector<24x32xf32>
    %398 = tpu.matmul %7, %358, %cst_161 {dimension_numbers = #tpu.dot_dimension_numbers<[1], [0], [0], [1], [0, 0, 1, 1], [], []>} : vector<24x32xbf16>, vector<32x32xbf16>, vector<24x32xf32> -> vector<24x32xf32>
    %399 = vector.shape_cast %360 : vector<32xf32> to vector<1x32xf32>
    %400 = vector.broadcast %399 : vector<1x32xf32> to vector<24x32xf32>
    %401 = arith.addf %398, %400 : vector<24x32xf32>
    %cst_162 = arith.constant dense<0.000000e+00> : vector<24x32xf32>
    %402 = tpu.matmul %7, %362, %cst_162 {dimension_numbers = #tpu.dot_dimension_numbers<[1], [0], [0], [1], [0, 0, 1, 1], [], []>} : vector<24x32xbf16>, vector<32x32xbf16>, vector<24x32xf32> -> vector<24x32xf32>
    %403 = vector.shape_cast %364 : vector<32xf32> to vector<1x32xf32>
    %404 = vector.broadcast %403 : vector<1x32xf32> to vector<24x32xf32>
    %405 = arith.addf %402, %404 : vector<24x32xf32>
    %cst_163 = arith.constant 0.353553385 : f32
    %406 = vector.broadcast %cst_163 : f32 to vector<8x32xf32>
    %407 = arith.mulf %397, %406 : vector<8x32xf32>
    %408 = vector.extract_strided_slice %407 {offsets = [0, 0], sizes = [8, 8], strides = [1, 1]} : vector<8x32xf32> to vector<8x8xf32>
    %409 = arith.truncf %408 : vector<8x8xf32> to vector<8x8xbf16>
    %410 = vector.extract_strided_slice %401 {offsets = [0, 0], sizes = [24, 8], strides = [1, 1]} : vector<24x32xf32> to vector<24x8xf32>
    %411 = arith.truncf %410 : vector<24x8xf32> to vector<24x8xbf16>
    %cst_164 = arith.constant dense<0.000000e+00> : vector<8x24xf32>
    %412 = tpu.matmul %409, %411, %cst_164 {dimension_numbers = #tpu.dot_dimension_numbers<[1], [1], [0], [0], [0, 0, 1, 0], [], []>} : vector<8x8xbf16>, vector<24x8xbf16>, vector<8x24xf32> -> vector<8x24xf32>
    %413 = vector.broadcast %28 : vector<1x24xf32> to vector<8x24xf32>
    %414 = arith.addf %412, %413 : vector<8x24xf32>
    %cst_165 = arith.constant dense<0xFF800000> : vector<8xf32>
    %415 = vector.multi_reduction <maximumf>, %414, %cst_165 [1] : vector<8x24xf32> to vector<8xf32>
    %416 = vector.shape_cast %415 : vector<8xf32> to vector<8x1xf32>
    %417 = vector.broadcast %416 : vector<8x1xf32> to vector<8x24xf32>
    %418 = arith.subf %414, %417 : vector<8x24xf32>
    %419 = math.exp %418 : vector<8x24xf32>
    %cst_166 = arith.constant dense<0.000000e+00> : vector<8xf32>
    %420 = vector.multi_reduction <add>, %419, %cst_166 [1] : vector<8x24xf32> to vector<8xf32>
    %421 = vector.shape_cast %420 : vector<8xf32> to vector<8x1xf32>
    %422 = tpu.reciprocal %421 {approx = true} : vector<8x1xf32> -> vector<8x1xf32>
    %423 = vector.broadcast %422 : vector<8x1xf32> to vector<8x24xf32>
    %424 = arith.mulf %419, %423 : vector<8x24xf32>
    %425 = arith.truncf %424 : vector<8x24xf32> to vector<8x24xbf16>
    %426 = vector.extract_strided_slice %405 {offsets = [0, 0], sizes = [24, 8], strides = [1, 1]} : vector<24x32xf32> to vector<24x8xf32>
    %427 = arith.truncf %426 : vector<24x8xf32> to vector<24x8xbf16>
    %cst_167 = arith.constant dense<0.000000e+00> : vector<8x8xf32>
    %428 = tpu.matmul %425, %427, %cst_167 {dimension_numbers = #tpu.dot_dimension_numbers<[1], [0], [0], [1], [0, 0, 1, 1], [], []>} : vector<8x24xbf16>, vector<24x8xbf16>, vector<8x8xf32> -> vector<8x8xf32>
    %429 = arith.truncf %428 : vector<8x8xf32> to vector<8x8xbf16>
    %430 = vector.extract_strided_slice %366 {offsets = [0, 0], sizes = [8, 32], strides = [1, 1]} : vector<32x32xbf16> to vector<8x32xbf16>
    %cst_168 = arith.constant dense<0.000000e+00> : vector<8x32xf32>
    %431 = tpu.matmul %429, %430, %cst_168 {dimension_numbers = #tpu.dot_dimension_numbers<[1], [0], [0], [1], [0, 0, 1, 1], [], []>} : vector<8x8xbf16>, vector<8x32xbf16>, vector<8x32xf32> -> vector<8x32xf32>
    %432 = vector.extract_strided_slice %407 {offsets = [0, 8], sizes = [8, 8], strides = [1, 1]} : vector<8x32xf32> to vector<8x8xf32>
    %433 = arith.truncf %432 : vector<8x8xf32> to vector<8x8xbf16>
    %434 = vector.extract_strided_slice %401 {offsets = [0, 8], sizes = [24, 8], strides = [1, 1]} : vector<24x32xf32> to vector<24x8xf32>
    %435 = arith.truncf %434 : vector<24x8xf32> to vector<24x8xbf16>
    %cst_169 = arith.constant dense<0.000000e+00> : vector<8x24xf32>
    %436 = tpu.matmul %433, %435, %cst_169 {dimension_numbers = #tpu.dot_dimension_numbers<[1], [1], [0], [0], [0, 0, 1, 0], [], []>} : vector<8x8xbf16>, vector<24x8xbf16>, vector<8x24xf32> -> vector<8x24xf32>
    %437 = vector.broadcast %28 : vector<1x24xf32> to vector<8x24xf32>
    %438 = arith.addf %436, %437 : vector<8x24xf32>
    %cst_170 = arith.constant dense<0xFF800000> : vector<8xf32>
    %439 = vector.multi_reduction <maximumf>, %438, %cst_170 [1] : vector<8x24xf32> to vector<8xf32>
    %440 = vector.shape_cast %439 : vector<8xf32> to vector<8x1xf32>
    %441 = vector.broadcast %440 : vector<8x1xf32> to vector<8x24xf32>
    %442 = arith.subf %438, %441 : vector<8x24xf32>
    %443 = math.exp %442 : vector<8x24xf32>
    %cst_171 = arith.constant dense<0.000000e+00> : vector<8xf32>
    %444 = vector.multi_reduction <add>, %443, %cst_171 [1] : vector<8x24xf32> to vector<8xf32>
    %445 = vector.shape_cast %444 : vector<8xf32> to vector<8x1xf32>
    %446 = tpu.reciprocal %445 {approx = true} : vector<8x1xf32> -> vector<8x1xf32>
    %447 = vector.broadcast %446 : vector<8x1xf32> to vector<8x24xf32>
    %448 = arith.mulf %443, %447 : vector<8x24xf32>
    %449 = arith.truncf %448 : vector<8x24xf32> to vector<8x24xbf16>
    %450 = vector.extract_strided_slice %405 {offsets = [0, 8], sizes = [24, 8], strides = [1, 1]} : vector<24x32xf32> to vector<24x8xf32>
    %451 = arith.truncf %450 : vector<24x8xf32> to vector<24x8xbf16>
    %cst_172 = arith.constant dense<0.000000e+00> : vector<8x8xf32>
    %452 = tpu.matmul %449, %451, %cst_172 {dimension_numbers = #tpu.dot_dimension_numbers<[1], [0], [0], [1], [0, 0, 1, 1], [], []>} : vector<8x24xbf16>, vector<24x8xbf16>, vector<8x8xf32> -> vector<8x8xf32>
    %453 = arith.truncf %452 : vector<8x8xf32> to vector<8x8xbf16>
    %454 = vector.extract_strided_slice %366 {offsets = [8, 0], sizes = [8, 32], strides = [1, 1]} : vector<32x32xbf16> to vector<8x32xbf16>
    %cst_173 = arith.constant dense<0.000000e+00> : vector<8x32xf32>
    %455 = tpu.matmul %453, %454, %cst_173 {dimension_numbers = #tpu.dot_dimension_numbers<[1], [0], [0], [1], [0, 0, 1, 1], [], []>} : vector<8x8xbf16>, vector<8x32xbf16>, vector<8x32xf32> -> vector<8x32xf32>
    %456 = arith.addf %431, %455 : vector<8x32xf32>
    %457 = vector.extract_strided_slice %407 {offsets = [0, 16], sizes = [8, 8], strides = [1, 1]} : vector<8x32xf32> to vector<8x8xf32>
    %458 = arith.truncf %457 : vector<8x8xf32> to vector<8x8xbf16>
    %459 = vector.extract_strided_slice %401 {offsets = [0, 16], sizes = [24, 8], strides = [1, 1]} : vector<24x32xf32> to vector<24x8xf32>
    %460 = arith.truncf %459 : vector<24x8xf32> to vector<24x8xbf16>
    %cst_174 = arith.constant dense<0.000000e+00> : vector<8x24xf32>
    %461 = tpu.matmul %458, %460, %cst_174 {dimension_numbers = #tpu.dot_dimension_numbers<[1], [1], [0], [0], [0, 0, 1, 0], [], []>} : vector<8x8xbf16>, vector<24x8xbf16>, vector<8x24xf32> -> vector<8x24xf32>
    %462 = vector.broadcast %28 : vector<1x24xf32> to vector<8x24xf32>
    %463 = arith.addf %461, %462 : vector<8x24xf32>
    %cst_175 = arith.constant dense<0xFF800000> : vector<8xf32>
    %464 = vector.multi_reduction <maximumf>, %463, %cst_175 [1] : vector<8x24xf32> to vector<8xf32>
    %465 = vector.shape_cast %464 : vector<8xf32> to vector<8x1xf32>
    %466 = vector.broadcast %465 : vector<8x1xf32> to vector<8x24xf32>
    %467 = arith.subf %463, %466 : vector<8x24xf32>
    %468 = math.exp %467 : vector<8x24xf32>
    %cst_176 = arith.constant dense<0.000000e+00> : vector<8xf32>
    %469 = vector.multi_reduction <add>, %468, %cst_176 [1] : vector<8x24xf32> to vector<8xf32>
    %470 = vector.shape_cast %469 : vector<8xf32> to vector<8x1xf32>
    %471 = tpu.reciprocal %470 {approx = true} : vector<8x1xf32> -> vector<8x1xf32>
    %472 = vector.broadcast %471 : vector<8x1xf32> to vector<8x24xf32>
    %473 = arith.mulf %468, %472 : vector<8x24xf32>
    %474 = arith.truncf %473 : vector<8x24xf32> to vector<8x24xbf16>
    %475 = vector.extract_strided_slice %405 {offsets = [0, 16], sizes = [24, 8], strides = [1, 1]} : vector<24x32xf32> to vector<24x8xf32>
    %476 = arith.truncf %475 : vector<24x8xf32> to vector<24x8xbf16>
    %cst_177 = arith.constant dense<0.000000e+00> : vector<8x8xf32>
    %477 = tpu.matmul %474, %476, %cst_177 {dimension_numbers = #tpu.dot_dimension_numbers<[1], [0], [0], [1], [0, 0, 1, 1], [], []>} : vector<8x24xbf16>, vector<24x8xbf16>, vector<8x8xf32> -> vector<8x8xf32>
    %478 = arith.truncf %477 : vector<8x8xf32> to vector<8x8xbf16>
    %479 = vector.extract_strided_slice %366 {offsets = [16, 0], sizes = [8, 32], strides = [1, 1]} : vector<32x32xbf16> to vector<8x32xbf16>
    %cst_178 = arith.constant dense<0.000000e+00> : vector<8x32xf32>
    %480 = tpu.matmul %478, %479, %cst_178 {dimension_numbers = #tpu.dot_dimension_numbers<[1], [0], [0], [1], [0, 0, 1, 1], [], []>} : vector<8x8xbf16>, vector<8x32xbf16>, vector<8x32xf32> -> vector<8x32xf32>
    %481 = arith.addf %456, %480 : vector<8x32xf32>
    %482 = vector.extract_strided_slice %407 {offsets = [0, 24], sizes = [8, 8], strides = [1, 1]} : vector<8x32xf32> to vector<8x8xf32>
    %483 = arith.truncf %482 : vector<8x8xf32> to vector<8x8xbf16>
    %484 = vector.extract_strided_slice %401 {offsets = [0, 24], sizes = [24, 8], strides = [1, 1]} : vector<24x32xf32> to vector<24x8xf32>
    %485 = arith.truncf %484 : vector<24x8xf32> to vector<24x8xbf16>
    %cst_179 = arith.constant dense<0.000000e+00> : vector<8x24xf32>
    %486 = tpu.matmul %483, %485, %cst_179 {dimension_numbers = #tpu.dot_dimension_numbers<[1], [1], [0], [0], [0, 0, 1, 0], [], []>} : vector<8x8xbf16>, vector<24x8xbf16>, vector<8x24xf32> -> vector<8x24xf32>
    %487 = vector.broadcast %28 : vector<1x24xf32> to vector<8x24xf32>
    %488 = arith.addf %486, %487 : vector<8x24xf32>
    %cst_180 = arith.constant dense<0xFF800000> : vector<8xf32>
    %489 = vector.multi_reduction <maximumf>, %488, %cst_180 [1] : vector<8x24xf32> to vector<8xf32>
    %490 = vector.shape_cast %489 : vector<8xf32> to vector<8x1xf32>
    %491 = vector.broadcast %490 : vector<8x1xf32> to vector<8x24xf32>
    %492 = arith.subf %488, %491 : vector<8x24xf32>
    %493 = math.exp %492 : vector<8x24xf32>
    %cst_181 = arith.constant dense<0.000000e+00> : vector<8xf32>
    %494 = vector.multi_reduction <add>, %493, %cst_181 [1] : vector<8x24xf32> to vector<8xf32>
    %495 = vector.shape_cast %494 : vector<8xf32> to vector<8x1xf32>
    %496 = tpu.reciprocal %495 {approx = true} : vector<8x1xf32> -> vector<8x1xf32>
    %497 = vector.broadcast %496 : vector<8x1xf32> to vector<8x24xf32>
    %498 = arith.mulf %493, %497 : vector<8x24xf32>
    %499 = arith.truncf %498 : vector<8x24xf32> to vector<8x24xbf16>
    %500 = vector.extract_strided_slice %405 {offsets = [0, 24], sizes = [24, 8], strides = [1, 1]} : vector<24x32xf32> to vector<24x8xf32>
    %501 = arith.truncf %500 : vector<24x8xf32> to vector<24x8xbf16>
    %cst_182 = arith.constant dense<0.000000e+00> : vector<8x8xf32>
    %502 = tpu.matmul %499, %501, %cst_182 {dimension_numbers = #tpu.dot_dimension_numbers<[1], [0], [0], [1], [0, 0, 1, 1], [], []>} : vector<8x24xbf16>, vector<24x8xbf16>, vector<8x8xf32> -> vector<8x8xf32>
    %503 = arith.truncf %502 : vector<8x8xf32> to vector<8x8xbf16>
    %504 = vector.extract_strided_slice %366 {offsets = [24, 0], sizes = [8, 32], strides = [1, 1]} : vector<32x32xbf16> to vector<8x32xbf16>
    %cst_183 = arith.constant dense<0.000000e+00> : vector<8x32xf32>
    %505 = tpu.matmul %503, %504, %cst_183 {dimension_numbers = #tpu.dot_dimension_numbers<[1], [0], [0], [1], [0, 0, 1, 1], [], []>} : vector<8x8xbf16>, vector<8x32xbf16>, vector<8x32xf32> -> vector<8x32xf32>
    %506 = arith.addf %481, %505 : vector<8x32xf32>
    %507 = arith.addf %186, %506 : vector<8x32xf32>
    %508 = vector.shape_cast %368 : vector<32xf32> to vector<1x32xf32>
    %509 = vector.broadcast %508 : vector<1x32xf32> to vector<8x32xf32>
    %510 = arith.addf %507, %509 : vector<8x32xf32>
    %c0_184 = arith.constant 0 : index
    %c0_185 = arith.constant 0 : index
    %511 = vector.load %arg38[%c0_184, %c0_185] : memref<2x32xf32, #tpu.memory_space<vmem>>, vector<1x32xf32>
    %512 = vector.shape_cast %511 : vector<1x32xf32> to vector<32xf32>
    %c0_186 = arith.constant 0 : index
    %c0_187 = arith.constant 0 : index
    %513 = vector.load %arg39[%c0_186, %c0_187] : memref<2x32xf32, #tpu.memory_space<vmem>>, vector<1x32xf32>
    %514 = vector.shape_cast %513 : vector<1x32xf32> to vector<32xf32>
    %cst_188 = arith.constant dense<0.000000e+00> : vector<8xf32>
    %515 = vector.multi_reduction <add>, %348, %cst_188 [1] : vector<8x32xf32> to vector<8xf32>
    %516 = vector.shape_cast %515 : vector<8xf32> to vector<8x1xf32>
    %cst_189 = arith.constant 3.200000e+01 : f32
    %517 = vector.broadcast %cst_189 : f32 to vector<8x1xf32>
    %518 = arith.divf %516, %517 : vector<8x1xf32>
    %519 = vector.broadcast %518 : vector<8x1xf32> to vector<8x32xf32>
    %520 = arith.subf %348, %519 : vector<8x32xf32>
    %521 = arith.mulf %520, %520 : vector<8x32xf32>
    %cst_190 = arith.constant dense<0.000000e+00> : vector<8xf32>
    %522 = vector.multi_reduction <add>, %521, %cst_190 [1] : vector<8x32xf32> to vector<8xf32>
    %523 = vector.shape_cast %522 : vector<8xf32> to vector<8x1xf32>
    %cst_191 = arith.constant 3.200000e+01 : f32
    %524 = vector.broadcast %cst_191 : f32 to vector<8x1xf32>
    %525 = arith.divf %523, %524 : vector<8x1xf32>
    %526 = vector.broadcast %518 : vector<8x1xf32> to vector<8x32xf32>
    %527 = arith.subf %348, %526 : vector<8x32xf32>
    %cst_192 = arith.constant 9.99999974E-6 : f32
    %528 = vector.broadcast %cst_192 : f32 to vector<8x1xf32>
    %529 = arith.addf %525, %528 : vector<8x1xf32>
    %530 = math.rsqrt %529 : vector<8x1xf32>
    %531 = vector.broadcast %530 : vector<8x1xf32> to vector<8x32xf32>
    %532 = arith.mulf %527, %531 : vector<8x32xf32>
    %533 = vector.shape_cast %512 : vector<32xf32> to vector<1x32xf32>
    %534 = vector.broadcast %533 : vector<1x32xf32> to vector<8x32xf32>
    %535 = arith.mulf %532, %534 : vector<8x32xf32>
    %536 = vector.shape_cast %514 : vector<32xf32> to vector<1x32xf32>
    %537 = vector.broadcast %536 : vector<1x32xf32> to vector<8x32xf32>
    %538 = arith.addf %535, %537 : vector<8x32xf32>
    %c0_193 = arith.constant 0 : index
    %c0_194 = arith.constant 0 : index
    %539 = vector.load %arg40[%c0_193, %c0_194] : memref<2x32xf32, #tpu.memory_space<vmem>>, vector<1x32xf32>
    %540 = vector.shape_cast %539 : vector<1x32xf32> to vector<32xf32>
    %c0_195 = arith.constant 0 : index
    %c0_196 = arith.constant 0 : index
    %541 = vector.load %arg41[%c0_195, %c0_196] : memref<2x32xf32, #tpu.memory_space<vmem>>, vector<1x32xf32>
    %542 = vector.shape_cast %541 : vector<1x32xf32> to vector<32xf32>
    %cst_197 = arith.constant dense<0.000000e+00> : vector<8xf32>
    %543 = vector.multi_reduction <add>, %510, %cst_197 [1] : vector<8x32xf32> to vector<8xf32>
    %544 = vector.shape_cast %543 : vector<8xf32> to vector<8x1xf32>
    %cst_198 = arith.constant 3.200000e+01 : f32
    %545 = vector.broadcast %cst_198 : f32 to vector<8x1xf32>
    %546 = arith.divf %544, %545 : vector<8x1xf32>
    %547 = vector.broadcast %546 : vector<8x1xf32> to vector<8x32xf32>
    %548 = arith.subf %510, %547 : vector<8x32xf32>
    %549 = arith.mulf %548, %548 : vector<8x32xf32>
    %cst_199 = arith.constant dense<0.000000e+00> : vector<8xf32>
    %550 = vector.multi_reduction <add>, %549, %cst_199 [1] : vector<8x32xf32> to vector<8xf32>
    %551 = vector.shape_cast %550 : vector<8xf32> to vector<8x1xf32>
    %cst_200 = arith.constant 3.200000e+01 : f32
    %552 = vector.broadcast %cst_200 : f32 to vector<8x1xf32>
    %553 = arith.divf %551, %552 : vector<8x1xf32>
    %554 = vector.broadcast %546 : vector<8x1xf32> to vector<8x32xf32>
    %555 = arith.subf %510, %554 : vector<8x32xf32>
    %cst_201 = arith.constant 9.99999974E-6 : f32
    %556 = vector.broadcast %cst_201 : f32 to vector<8x1xf32>
    %557 = arith.addf %553, %556 : vector<8x1xf32>
    %558 = math.rsqrt %557 : vector<8x1xf32>
    %559 = vector.broadcast %558 : vector<8x1xf32> to vector<8x32xf32>
    %560 = arith.mulf %555, %559 : vector<8x32xf32>
    %561 = vector.shape_cast %540 : vector<32xf32> to vector<1x32xf32>
    %562 = vector.broadcast %561 : vector<1x32xf32> to vector<8x32xf32>
    %563 = arith.mulf %560, %562 : vector<8x32xf32>
    %564 = vector.shape_cast %542 : vector<32xf32> to vector<1x32xf32>
    %565 = vector.broadcast %564 : vector<1x32xf32> to vector<8x32xf32>
    %566 = arith.addf %563, %565 : vector<8x32xf32>
    %c0_202 = arith.constant 0 : index
    %c0_203 = arith.constant 0 : index
    %c0_204 = arith.constant 0 : index
    %567 = vector.load %arg7[%c0_202, %c0_203, %c0_204] : memref<2x1x1xf32, #tpu.memory_space<vmem>>, vector<1x1x1xf32>
    %568 = vector.shape_cast %567 : vector<1x1x1xf32> to vector<1x1xf32>
    %569 = vector.broadcast %568 : vector<1x1xf32> to vector<8x32xf32>
    %570 = arith.mulf %569, %566 : vector<8x32xf32>
    %cst_205 = arith.constant 1.000000e+00 : f32
    %571 = vector.broadcast %cst_205 : f32 to vector<1x1xf32>
    %572 = arith.subf %571, %568 : vector<1x1xf32>
    %573 = vector.broadcast %572 : vector<1x1xf32> to vector<8x32xf32>
    %574 = arith.mulf %573, %538 : vector<8x32xf32>
    %575 = arith.addf %570, %574 : vector<8x32xf32>
    %c1 = arith.constant 1 : index
    %c0_206 = arith.constant 0 : index
    %576 = vector.load %arg8[%c1, %c0_206] : memref<2x32xf32, #tpu.memory_space<vmem>>, vector<1x32xf32>
    %577 = vector.shape_cast %576 : vector<1x32xf32> to vector<32xf32>
    %c1_207 = arith.constant 1 : index
    %c0_208 = arith.constant 0 : index
    %578 = vector.load %arg9[%c1_207, %c0_208] : memref<2x32xf32, #tpu.memory_space<vmem>>, vector<1x32xf32>
    %579 = vector.shape_cast %578 : vector<1x32xf32> to vector<32xf32>
    %c1_209 = arith.constant 1 : index
    %c0_210 = arith.constant 0 : index
    %c0_211 = arith.constant 0 : index
    %580 = vector.load %arg10[%c1_209, %c0_210, %c0_211] : memref<2x32x32xbf16, #tpu.memory_space<vmem>>, vector<1x32x32xbf16>
    %581 = vector.shape_cast %580 : vector<1x32x32xbf16> to vector<32x32xbf16>
    %c1_212 = arith.constant 1 : index
    %c0_213 = arith.constant 0 : index
    %582 = vector.load %arg11[%c1_212, %c0_213] : memref<2x32xf32, #tpu.memory_space<vmem>>, vector<1x32xf32>
    %583 = vector.shape_cast %582 : vector<1x32xf32> to vector<32xf32>
    %c1_214 = arith.constant 1 : index
    %c0_215 = arith.constant 0 : index
    %c0_216 = arith.constant 0 : index
    %584 = vector.load %arg12[%c1_214, %c0_215, %c0_216] : memref<2x32x32xbf16, #tpu.memory_space<vmem>>, vector<1x32x32xbf16>
    %585 = vector.shape_cast %584 : vector<1x32x32xbf16> to vector<32x32xbf16>
    %c1_217 = arith.constant 1 : index
    %c0_218 = arith.constant 0 : index
    %586 = vector.load %arg13[%c1_217, %c0_218] : memref<2x32xf32, #tpu.memory_space<vmem>>, vector<1x32xf32>
    %587 = vector.shape_cast %586 : vector<1x32xf32> to vector<32xf32>
    %c1_219 = arith.constant 1 : index
    %c0_220 = arith.constant 0 : index
    %c0_221 = arith.constant 0 : index
    %588 = vector.load %arg14[%c1_219, %c0_220, %c0_221] : memref<2x32x32xbf16, #tpu.memory_space<vmem>>, vector<1x32x32xbf16>
    %589 = vector.shape_cast %588 : vector<1x32x32xbf16> to vector<32x32xbf16>
    %c1_222 = arith.constant 1 : index
    %c0_223 = arith.constant 0 : index
    %590 = vector.load %arg15[%c1_222, %c0_223] : memref<2x32xf32, #tpu.memory_space<vmem>>, vector<1x32xf32>
    %591 = vector.shape_cast %590 : vector<1x32xf32> to vector<32xf32>
    %c1_224 = arith.constant 1 : index
    %c0_225 = arith.constant 0 : index
    %c0_226 = arith.constant 0 : index
    %592 = vector.load %arg16[%c1_224, %c0_225, %c0_226] : memref<2x32x32xbf16, #tpu.memory_space<vmem>>, vector<1x32x32xbf16>
    %593 = vector.shape_cast %592 : vector<1x32x32xbf16> to vector<32x32xbf16>
    %c1_227 = arith.constant 1 : index
    %c0_228 = arith.constant 0 : index
    %594 = vector.load %arg17[%c1_227, %c0_228] : memref<2x32xf32, #tpu.memory_space<vmem>>, vector<1x32xf32>
    %595 = vector.shape_cast %594 : vector<1x32xf32> to vector<32xf32>
    %cst_229 = arith.constant dense<0.000000e+00> : vector<8xf32>
    %596 = vector.multi_reduction <add>, %575, %cst_229 [1] : vector<8x32xf32> to vector<8xf32>
    %597 = vector.shape_cast %596 : vector<8xf32> to vector<8x1xf32>
    %cst_230 = arith.constant 3.200000e+01 : f32
    %598 = vector.broadcast %cst_230 : f32 to vector<8x1xf32>
    %599 = arith.divf %597, %598 : vector<8x1xf32>
    %600 = vector.broadcast %599 : vector<8x1xf32> to vector<8x32xf32>
    %601 = arith.subf %575, %600 : vector<8x32xf32>
    %602 = arith.mulf %601, %601 : vector<8x32xf32>
    %cst_231 = arith.constant dense<0.000000e+00> : vector<8xf32>
    %603 = vector.multi_reduction <add>, %602, %cst_231 [1] : vector<8x32xf32> to vector<8xf32>
    %604 = vector.shape_cast %603 : vector<8xf32> to vector<8x1xf32>
    %cst_232 = arith.constant 3.200000e+01 : f32
    %605 = vector.broadcast %cst_232 : f32 to vector<8x1xf32>
    %606 = arith.divf %604, %605 : vector<8x1xf32>
    %607 = vector.broadcast %599 : vector<8x1xf32> to vector<8x32xf32>
    %608 = arith.subf %575, %607 : vector<8x32xf32>
    %cst_233 = arith.constant 9.99999974E-6 : f32
    %609 = vector.broadcast %cst_233 : f32 to vector<8x1xf32>
    %610 = arith.addf %606, %609 : vector<8x1xf32>
    %611 = math.rsqrt %610 : vector<8x1xf32>
    %612 = vector.broadcast %611 : vector<8x1xf32> to vector<8x32xf32>
    %613 = arith.mulf %608, %612 : vector<8x32xf32>
    %614 = vector.shape_cast %577 : vector<32xf32> to vector<1x32xf32>
    %615 = vector.broadcast %614 : vector<1x32xf32> to vector<8x32xf32>
    %616 = arith.mulf %613, %615 : vector<8x32xf32>
    %617 = vector.shape_cast %579 : vector<32xf32> to vector<1x32xf32>
    %618 = vector.broadcast %617 : vector<1x32xf32> to vector<8x32xf32>
    %619 = arith.addf %616, %618 : vector<8x32xf32>
    %620 = arith.truncf %619 : vector<8x32xf32> to vector<8x32xbf16>
    %cst_234 = arith.constant dense<0.000000e+00> : vector<8x32xf32>
    %621 = tpu.matmul %620, %581, %cst_234 {dimension_numbers = #tpu.dot_dimension_numbers<[1], [0], [0], [1], [0, 0, 1, 1], [], []>} : vector<8x32xbf16>, vector<32x32xbf16>, vector<8x32xf32> -> vector<8x32xf32>
    %622 = vector.shape_cast %583 : vector<32xf32> to vector<1x32xf32>
    %623 = vector.broadcast %622 : vector<1x32xf32> to vector<8x32xf32>
    %624 = arith.addf %621, %623 : vector<8x32xf32>
    %cst_235 = arith.constant dense<0.000000e+00> : vector<8x32xf32>
    %625 = tpu.matmul %620, %585, %cst_235 {dimension_numbers = #tpu.dot_dimension_numbers<[1], [0], [0], [1], [0, 0, 1, 1], [], []>} : vector<8x32xbf16>, vector<32x32xbf16>, vector<8x32xf32> -> vector<8x32xf32>
    %626 = vector.shape_cast %587 : vector<32xf32> to vector<1x32xf32>
    %627 = vector.broadcast %626 : vector<1x32xf32> to vector<8x32xf32>
    %628 = arith.addf %625, %627 : vector<8x32xf32>
    %cst_236 = arith.constant dense<0.000000e+00> : vector<8x32xf32>
    %629 = tpu.matmul %620, %589, %cst_236 {dimension_numbers = #tpu.dot_dimension_numbers<[1], [0], [0], [1], [0, 0, 1, 1], [], []>} : vector<8x32xbf16>, vector<32x32xbf16>, vector<8x32xf32> -> vector<8x32xf32>
    %630 = vector.shape_cast %591 : vector<32xf32> to vector<1x32xf32>
    %631 = vector.broadcast %630 : vector<1x32xf32> to vector<8x32xf32>
    %632 = arith.addf %629, %631 : vector<8x32xf32>
    %cst_237 = arith.constant 0.353553385 : f32
    %633 = vector.broadcast %cst_237 : f32 to vector<8x32xf32>
    %634 = arith.mulf %624, %633 : vector<8x32xf32>
    %635 = vector.extract_strided_slice %634 {offsets = [0, 0], sizes = [8, 8], strides = [1, 1]} : vector<8x32xf32> to vector<8x8xf32>
    %636 = arith.truncf %635 : vector<8x8xf32> to vector<8x8xbf16>
    %637 = vector.extract_strided_slice %628 {offsets = [0, 0], sizes = [8, 8], strides = [1, 1]} : vector<8x32xf32> to vector<8x8xf32>
    %638 = arith.truncf %637 : vector<8x8xf32> to vector<8x8xbf16>
    %cst_238 = arith.constant dense<0.000000e+00> : vector<8x8xf32>
    %639 = tpu.matmul %636, %638, %cst_238 {dimension_numbers = #tpu.dot_dimension_numbers<[1], [1], [0], [0], [0, 0, 1, 0], [], []>} : vector<8x8xbf16>, vector<8x8xbf16>, vector<8x8xf32> -> vector<8x8xf32>
    %640 = arith.addf %639, %14 : vector<8x8xf32>
    %cst_239 = arith.constant dense<0xFF800000> : vector<8xf32>
    %641 = vector.multi_reduction <maximumf>, %640, %cst_239 [1] : vector<8x8xf32> to vector<8xf32>
    %642 = vector.shape_cast %641 : vector<8xf32> to vector<8x1xf32>
    %643 = vector.broadcast %642 : vector<8x1xf32> to vector<8x8xf32>
    %644 = arith.subf %640, %643 : vector<8x8xf32>
    %645 = math.exp %644 : vector<8x8xf32>
    %cst_240 = arith.constant dense<0.000000e+00> : vector<8xf32>
    %646 = vector.multi_reduction <add>, %645, %cst_240 [1] : vector<8x8xf32> to vector<8xf32>
    %647 = vector.shape_cast %646 : vector<8xf32> to vector<8x1xf32>
    %648 = tpu.reciprocal %647 {approx = true} : vector<8x1xf32> -> vector<8x1xf32>
    %649 = vector.broadcast %648 : vector<8x1xf32> to vector<8x8xf32>
    %650 = arith.mulf %645, %649 : vector<8x8xf32>
    %651 = arith.truncf %650 : vector<8x8xf32> to vector<8x8xbf16>
    %652 = vector.extract_strided_slice %632 {offsets = [0, 0], sizes = [8, 8], strides = [1, 1]} : vector<8x32xf32> to vector<8x8xf32>
    %653 = arith.truncf %652 : vector<8x8xf32> to vector<8x8xbf16>
    %cst_241 = arith.constant dense<0.000000e+00> : vector<8x8xf32>
    %654 = tpu.matmul %651, %653, %cst_241 {dimension_numbers = #tpu.dot_dimension_numbers<[1], [0], [0], [1], [0, 0, 1, 1], [], []>} : vector<8x8xbf16>, vector<8x8xbf16>, vector<8x8xf32> -> vector<8x8xf32>
    %655 = arith.truncf %654 : vector<8x8xf32> to vector<8x8xbf16>
    %656 = vector.extract_strided_slice %593 {offsets = [0, 0], sizes = [8, 32], strides = [1, 1]} : vector<32x32xbf16> to vector<8x32xbf16>
    %cst_242 = arith.constant dense<0.000000e+00> : vector<8x32xf32>
    %657 = tpu.matmul %655, %656, %cst_242 {dimension_numbers = #tpu.dot_dimension_numbers<[1], [0], [0], [1], [0, 0, 1, 1], [], []>} : vector<8x8xbf16>, vector<8x32xbf16>, vector<8x32xf32> -> vector<8x32xf32>
    %658 = vector.extract_strided_slice %634 {offsets = [0, 8], sizes = [8, 8], strides = [1, 1]} : vector<8x32xf32> to vector<8x8xf32>
    %659 = arith.truncf %658 : vector<8x8xf32> to vector<8x8xbf16>
    %660 = vector.extract_strided_slice %628 {offsets = [0, 8], sizes = [8, 8], strides = [1, 1]} : vector<8x32xf32> to vector<8x8xf32>
    %661 = arith.truncf %660 : vector<8x8xf32> to vector<8x8xbf16>
    %cst_243 = arith.constant dense<0.000000e+00> : vector<8x8xf32>
    %662 = tpu.matmul %659, %661, %cst_243 {dimension_numbers = #tpu.dot_dimension_numbers<[1], [1], [0], [0], [0, 0, 1, 0], [], []>} : vector<8x8xbf16>, vector<8x8xbf16>, vector<8x8xf32> -> vector<8x8xf32>
    %663 = arith.addf %662, %14 : vector<8x8xf32>
    %cst_244 = arith.constant dense<0xFF800000> : vector<8xf32>
    %664 = vector.multi_reduction <maximumf>, %663, %cst_244 [1] : vector<8x8xf32> to vector<8xf32>
    %665 = vector.shape_cast %664 : vector<8xf32> to vector<8x1xf32>
    %666 = vector.broadcast %665 : vector<8x1xf32> to vector<8x8xf32>
    %667 = arith.subf %663, %666 : vector<8x8xf32>
    %668 = math.exp %667 : vector<8x8xf32>
    %cst_245 = arith.constant dense<0.000000e+00> : vector<8xf32>
    %669 = vector.multi_reduction <add>, %668, %cst_245 [1] : vector<8x8xf32> to vector<8xf32>
    %670 = vector.shape_cast %669 : vector<8xf32> to vector<8x1xf32>
    %671 = tpu.reciprocal %670 {approx = true} : vector<8x1xf32> -> vector<8x1xf32>
    %672 = vector.broadcast %671 : vector<8x1xf32> to vector<8x8xf32>
    %673 = arith.mulf %668, %672 : vector<8x8xf32>
    %674 = arith.truncf %673 : vector<8x8xf32> to vector<8x8xbf16>
    %675 = vector.extract_strided_slice %632 {offsets = [0, 8], sizes = [8, 8], strides = [1, 1]} : vector<8x32xf32> to vector<8x8xf32>
    %676 = arith.truncf %675 : vector<8x8xf32> to vector<8x8xbf16>
    %cst_246 = arith.constant dense<0.000000e+00> : vector<8x8xf32>
    %677 = tpu.matmul %674, %676, %cst_246 {dimension_numbers = #tpu.dot_dimension_numbers<[1], [0], [0], [1], [0, 0, 1, 1], [], []>} : vector<8x8xbf16>, vector<8x8xbf16>, vector<8x8xf32> -> vector<8x8xf32>
    %678 = arith.truncf %677 : vector<8x8xf32> to vector<8x8xbf16>
    %679 = vector.extract_strided_slice %593 {offsets = [8, 0], sizes = [8, 32], strides = [1, 1]} : vector<32x32xbf16> to vector<8x32xbf16>
    %cst_247 = arith.constant dense<0.000000e+00> : vector<8x32xf32>
    %680 = tpu.matmul %678, %679, %cst_247 {dimension_numbers = #tpu.dot_dimension_numbers<[1], [0], [0], [1], [0, 0, 1, 1], [], []>} : vector<8x8xbf16>, vector<8x32xbf16>, vector<8x32xf32> -> vector<8x32xf32>
    %681 = arith.addf %657, %680 : vector<8x32xf32>
    %682 = vector.extract_strided_slice %634 {offsets = [0, 16], sizes = [8, 8], strides = [1, 1]} : vector<8x32xf32> to vector<8x8xf32>
    %683 = arith.truncf %682 : vector<8x8xf32> to vector<8x8xbf16>
    %684 = vector.extract_strided_slice %628 {offsets = [0, 16], sizes = [8, 8], strides = [1, 1]} : vector<8x32xf32> to vector<8x8xf32>
    %685 = arith.truncf %684 : vector<8x8xf32> to vector<8x8xbf16>
    %cst_248 = arith.constant dense<0.000000e+00> : vector<8x8xf32>
    %686 = tpu.matmul %683, %685, %cst_248 {dimension_numbers = #tpu.dot_dimension_numbers<[1], [1], [0], [0], [0, 0, 1, 0], [], []>} : vector<8x8xbf16>, vector<8x8xbf16>, vector<8x8xf32> -> vector<8x8xf32>
    %687 = arith.addf %686, %14 : vector<8x8xf32>
    %cst_249 = arith.constant dense<0xFF800000> : vector<8xf32>
    %688 = vector.multi_reduction <maximumf>, %687, %cst_249 [1] : vector<8x8xf32> to vector<8xf32>
    %689 = vector.shape_cast %688 : vector<8xf32> to vector<8x1xf32>
    %690 = vector.broadcast %689 : vector<8x1xf32> to vector<8x8xf32>
    %691 = arith.subf %687, %690 : vector<8x8xf32>
    %692 = math.exp %691 : vector<8x8xf32>
    %cst_250 = arith.constant dense<0.000000e+00> : vector<8xf32>
    %693 = vector.multi_reduction <add>, %692, %cst_250 [1] : vector<8x8xf32> to vector<8xf32>
    %694 = vector.shape_cast %693 : vector<8xf32> to vector<8x1xf32>
    %695 = tpu.reciprocal %694 {approx = true} : vector<8x1xf32> -> vector<8x1xf32>
    %696 = vector.broadcast %695 : vector<8x1xf32> to vector<8x8xf32>
    %697 = arith.mulf %692, %696 : vector<8x8xf32>
    %698 = arith.truncf %697 : vector<8x8xf32> to vector<8x8xbf16>
    %699 = vector.extract_strided_slice %632 {offsets = [0, 16], sizes = [8, 8], strides = [1, 1]} : vector<8x32xf32> to vector<8x8xf32>
    %700 = arith.truncf %699 : vector<8x8xf32> to vector<8x8xbf16>
    %cst_251 = arith.constant dense<0.000000e+00> : vector<8x8xf32>
    %701 = tpu.matmul %698, %700, %cst_251 {dimension_numbers = #tpu.dot_dimension_numbers<[1], [0], [0], [1], [0, 0, 1, 1], [], []>} : vector<8x8xbf16>, vector<8x8xbf16>, vector<8x8xf32> -> vector<8x8xf32>
    %702 = arith.truncf %701 : vector<8x8xf32> to vector<8x8xbf16>
    %703 = vector.extract_strided_slice %593 {offsets = [16, 0], sizes = [8, 32], strides = [1, 1]} : vector<32x32xbf16> to vector<8x32xbf16>
    %cst_252 = arith.constant dense<0.000000e+00> : vector<8x32xf32>
    %704 = tpu.matmul %702, %703, %cst_252 {dimension_numbers = #tpu.dot_dimension_numbers<[1], [0], [0], [1], [0, 0, 1, 1], [], []>} : vector<8x8xbf16>, vector<8x32xbf16>, vector<8x32xf32> -> vector<8x32xf32>
    %705 = arith.addf %681, %704 : vector<8x32xf32>
    %706 = vector.extract_strided_slice %634 {offsets = [0, 24], sizes = [8, 8], strides = [1, 1]} : vector<8x32xf32> to vector<8x8xf32>
    %707 = arith.truncf %706 : vector<8x8xf32> to vector<8x8xbf16>
    %708 = vector.extract_strided_slice %628 {offsets = [0, 24], sizes = [8, 8], strides = [1, 1]} : vector<8x32xf32> to vector<8x8xf32>
    %709 = arith.truncf %708 : vector<8x8xf32> to vector<8x8xbf16>
    %cst_253 = arith.constant dense<0.000000e+00> : vector<8x8xf32>
    %710 = tpu.matmul %707, %709, %cst_253 {dimension_numbers = #tpu.dot_dimension_numbers<[1], [1], [0], [0], [0, 0, 1, 0], [], []>} : vector<8x8xbf16>, vector<8x8xbf16>, vector<8x8xf32> -> vector<8x8xf32>
    %711 = arith.addf %710, %14 : vector<8x8xf32>
    %cst_254 = arith.constant dense<0xFF800000> : vector<8xf32>
    %712 = vector.multi_reduction <maximumf>, %711, %cst_254 [1] : vector<8x8xf32> to vector<8xf32>
    %713 = vector.shape_cast %712 : vector<8xf32> to vector<8x1xf32>
    %714 = vector.broadcast %713 : vector<8x1xf32> to vector<8x8xf32>
    %715 = arith.subf %711, %714 : vector<8x8xf32>
    %716 = math.exp %715 : vector<8x8xf32>
    %cst_255 = arith.constant dense<0.000000e+00> : vector<8xf32>
    %717 = vector.multi_reduction <add>, %716, %cst_255 [1] : vector<8x8xf32> to vector<8xf32>
    %718 = vector.shape_cast %717 : vector<8xf32> to vector<8x1xf32>
    %719 = tpu.reciprocal %718 {approx = true} : vector<8x1xf32> -> vector<8x1xf32>
    %720 = vector.broadcast %719 : vector<8x1xf32> to vector<8x8xf32>
    %721 = arith.mulf %716, %720 : vector<8x8xf32>
    %722 = arith.truncf %721 : vector<8x8xf32> to vector<8x8xbf16>
    %723 = vector.extract_strided_slice %632 {offsets = [0, 24], sizes = [8, 8], strides = [1, 1]} : vector<8x32xf32> to vector<8x8xf32>
    %724 = arith.truncf %723 : vector<8x8xf32> to vector<8x8xbf16>
    %cst_256 = arith.constant dense<0.000000e+00> : vector<8x8xf32>
    %725 = tpu.matmul %722, %724, %cst_256 {dimension_numbers = #tpu.dot_dimension_numbers<[1], [0], [0], [1], [0, 0, 1, 1], [], []>} : vector<8x8xbf16>, vector<8x8xbf16>, vector<8x8xf32> -> vector<8x8xf32>
    %726 = arith.truncf %725 : vector<8x8xf32> to vector<8x8xbf16>
    %727 = vector.extract_strided_slice %593 {offsets = [24, 0], sizes = [8, 32], strides = [1, 1]} : vector<32x32xbf16> to vector<8x32xbf16>
    %cst_257 = arith.constant dense<0.000000e+00> : vector<8x32xf32>
    %728 = tpu.matmul %726, %727, %cst_257 {dimension_numbers = #tpu.dot_dimension_numbers<[1], [0], [0], [1], [0, 0, 1, 1], [], []>} : vector<8x8xbf16>, vector<8x32xbf16>, vector<8x32xf32> -> vector<8x32xf32>
    %729 = arith.addf %705, %728 : vector<8x32xf32>
    %730 = arith.addf %575, %729 : vector<8x32xf32>
    %731 = vector.shape_cast %595 : vector<32xf32> to vector<1x32xf32>
    %732 = vector.broadcast %731 : vector<1x32xf32> to vector<8x32xf32>
    %733 = arith.addf %730, %732 : vector<8x32xf32>
    %c1_258 = arith.constant 1 : index
    %c0_259 = arith.constant 0 : index
    %734 = vector.load %arg18[%c1_258, %c0_259] : memref<2x32xf32, #tpu.memory_space<vmem>>, vector<1x32xf32>
    %735 = vector.shape_cast %734 : vector<1x32xf32> to vector<32xf32>
    %c1_260 = arith.constant 1 : index
    %c0_261 = arith.constant 0 : index
    %736 = vector.load %arg19[%c1_260, %c0_261] : memref<2x32xf32, #tpu.memory_space<vmem>>, vector<1x32xf32>
    %737 = vector.shape_cast %736 : vector<1x32xf32> to vector<32xf32>
    %c1_262 = arith.constant 1 : index
    %c0_263 = arith.constant 0 : index
    %c0_264 = arith.constant 0 : index
    %738 = vector.load %arg20[%c1_262, %c0_263, %c0_264] : memref<2x32x32xbf16, #tpu.memory_space<vmem>>, vector<1x32x32xbf16>
    %739 = vector.shape_cast %738 : vector<1x32x32xbf16> to vector<32x32xbf16>
    %c1_265 = arith.constant 1 : index
    %c0_266 = arith.constant 0 : index
    %740 = vector.load %arg21[%c1_265, %c0_266] : memref<2x32xf32, #tpu.memory_space<vmem>>, vector<1x32xf32>
    %741 = vector.shape_cast %740 : vector<1x32xf32> to vector<32xf32>
    %c1_267 = arith.constant 1 : index
    %c0_268 = arith.constant 0 : index
    %c0_269 = arith.constant 0 : index
    %742 = vector.load %arg22[%c1_267, %c0_268, %c0_269] : memref<2x32x32xbf16, #tpu.memory_space<vmem>>, vector<1x32x32xbf16>
    %743 = vector.shape_cast %742 : vector<1x32x32xbf16> to vector<32x32xbf16>
    %c1_270 = arith.constant 1 : index
    %c0_271 = arith.constant 0 : index
    %744 = vector.load %arg23[%c1_270, %c0_271] : memref<2x32xf32, #tpu.memory_space<vmem>>, vector<1x32xf32>
    %745 = vector.shape_cast %744 : vector<1x32xf32> to vector<32xf32>
    %c1_272 = arith.constant 1 : index
    %c0_273 = arith.constant 0 : index
    %c0_274 = arith.constant 0 : index
    %746 = vector.load %arg24[%c1_272, %c0_273, %c0_274] : memref<2x32x32xbf16, #tpu.memory_space<vmem>>, vector<1x32x32xbf16>
    %747 = vector.shape_cast %746 : vector<1x32x32xbf16> to vector<32x32xbf16>
    %c1_275 = arith.constant 1 : index
    %c0_276 = arith.constant 0 : index
    %748 = vector.load %arg25[%c1_275, %c0_276] : memref<2x32xf32, #tpu.memory_space<vmem>>, vector<1x32xf32>
    %749 = vector.shape_cast %748 : vector<1x32xf32> to vector<32xf32>
    %c1_277 = arith.constant 1 : index
    %c0_278 = arith.constant 0 : index
    %c0_279 = arith.constant 0 : index
    %750 = vector.load %arg26[%c1_277, %c0_278, %c0_279] : memref<2x32x32xbf16, #tpu.memory_space<vmem>>, vector<1x32x32xbf16>
    %751 = vector.shape_cast %750 : vector<1x32x32xbf16> to vector<32x32xbf16>
    %c1_280 = arith.constant 1 : index
    %c0_281 = arith.constant 0 : index
    %752 = vector.load %arg27[%c1_280, %c0_281] : memref<2x32xf32, #tpu.memory_space<vmem>>, vector<1x32xf32>
    %753 = vector.shape_cast %752 : vector<1x32xf32> to vector<32xf32>
    %cst_282 = arith.constant dense<0.000000e+00> : vector<8xf32>
    %754 = vector.multi_reduction <add>, %733, %cst_282 [1] : vector<8x32xf32> to vector<8xf32>
    %755 = vector.shape_cast %754 : vector<8xf32> to vector<8x1xf32>
    %cst_283 = arith.constant 3.200000e+01 : f32
    %756 = vector.broadcast %cst_283 : f32 to vector<8x1xf32>
    %757 = arith.divf %755, %756 : vector<8x1xf32>
    %758 = vector.broadcast %757 : vector<8x1xf32> to vector<8x32xf32>
    %759 = arith.subf %733, %758 : vector<8x32xf32>
    %760 = arith.mulf %759, %759 : vector<8x32xf32>
    %cst_284 = arith.constant dense<0.000000e+00> : vector<8xf32>
    %761 = vector.multi_reduction <add>, %760, %cst_284 [1] : vector<8x32xf32> to vector<8xf32>
    %762 = vector.shape_cast %761 : vector<8xf32> to vector<8x1xf32>
    %cst_285 = arith.constant 3.200000e+01 : f32
    %763 = vector.broadcast %cst_285 : f32 to vector<8x1xf32>
    %764 = arith.divf %762, %763 : vector<8x1xf32>
    %765 = vector.broadcast %757 : vector<8x1xf32> to vector<8x32xf32>
    %766 = arith.subf %733, %765 : vector<8x32xf32>
    %cst_286 = arith.constant 9.99999974E-6 : f32
    %767 = vector.broadcast %cst_286 : f32 to vector<8x1xf32>
    %768 = arith.addf %764, %767 : vector<8x1xf32>
    %769 = math.rsqrt %768 : vector<8x1xf32>
    %770 = vector.broadcast %769 : vector<8x1xf32> to vector<8x32xf32>
    %771 = arith.mulf %766, %770 : vector<8x32xf32>
    %772 = vector.shape_cast %735 : vector<32xf32> to vector<1x32xf32>
    %773 = vector.broadcast %772 : vector<1x32xf32> to vector<8x32xf32>
    %774 = arith.mulf %771, %773 : vector<8x32xf32>
    %775 = vector.shape_cast %737 : vector<32xf32> to vector<1x32xf32>
    %776 = vector.broadcast %775 : vector<1x32xf32> to vector<8x32xf32>
    %777 = arith.addf %774, %776 : vector<8x32xf32>
    %778 = arith.truncf %777 : vector<8x32xf32> to vector<8x32xbf16>
    %cst_287 = arith.constant dense<0.000000e+00> : vector<8x32xf32>
    %779 = tpu.matmul %778, %739, %cst_287 {dimension_numbers = #tpu.dot_dimension_numbers<[1], [0], [0], [1], [0, 0, 1, 1], [], []>} : vector<8x32xbf16>, vector<32x32xbf16>, vector<8x32xf32> -> vector<8x32xf32>
    %780 = vector.shape_cast %741 : vector<32xf32> to vector<1x32xf32>
    %781 = vector.broadcast %780 : vector<1x32xf32> to vector<8x32xf32>
    %782 = arith.addf %779, %781 : vector<8x32xf32>
    %cst_288 = arith.constant dense<0.000000e+00> : vector<16x32xf32>
    %783 = tpu.matmul %4, %743, %cst_288 {dimension_numbers = #tpu.dot_dimension_numbers<[1], [0], [0], [1], [0, 0, 1, 1], [], []>} : vector<16x32xbf16>, vector<32x32xbf16>, vector<16x32xf32> -> vector<16x32xf32>
    %784 = vector.shape_cast %745 : vector<32xf32> to vector<1x32xf32>
    %785 = vector.broadcast %784 : vector<1x32xf32> to vector<16x32xf32>
    %786 = arith.addf %783, %785 : vector<16x32xf32>
    %cst_289 = arith.constant dense<0.000000e+00> : vector<16x32xf32>
    %787 = tpu.matmul %4, %747, %cst_289 {dimension_numbers = #tpu.dot_dimension_numbers<[1], [0], [0], [1], [0, 0, 1, 1], [], []>} : vector<16x32xbf16>, vector<32x32xbf16>, vector<16x32xf32> -> vector<16x32xf32>
    %788 = vector.shape_cast %749 : vector<32xf32> to vector<1x32xf32>
    %789 = vector.broadcast %788 : vector<1x32xf32> to vector<16x32xf32>
    %790 = arith.addf %787, %789 : vector<16x32xf32>
    %cst_290 = arith.constant 0.353553385 : f32
    %791 = vector.broadcast %cst_290 : f32 to vector<8x32xf32>
    %792 = arith.mulf %782, %791 : vector<8x32xf32>
    %793 = vector.extract_strided_slice %792 {offsets = [0, 0], sizes = [8, 8], strides = [1, 1]} : vector<8x32xf32> to vector<8x8xf32>
    %794 = arith.truncf %793 : vector<8x8xf32> to vector<8x8xbf16>
    %795 = vector.extract_strided_slice %786 {offsets = [0, 0], sizes = [16, 8], strides = [1, 1]} : vector<16x32xf32> to vector<16x8xf32>
    %796 = arith.truncf %795 : vector<16x8xf32> to vector<16x8xbf16>
    %cst_291 = arith.constant dense<0.000000e+00> : vector<8x16xf32>
    %797 = tpu.matmul %794, %796, %cst_291 {dimension_numbers = #tpu.dot_dimension_numbers<[1], [1], [0], [0], [0, 0, 1, 0], [], []>} : vector<8x8xbf16>, vector<16x8xbf16>, vector<8x16xf32> -> vector<8x16xf32>
    %798 = vector.broadcast %21 : vector<1x16xf32> to vector<8x16xf32>
    %799 = arith.addf %797, %798 : vector<8x16xf32>
    %cst_292 = arith.constant dense<0xFF800000> : vector<8xf32>
    %800 = vector.multi_reduction <maximumf>, %799, %cst_292 [1] : vector<8x16xf32> to vector<8xf32>
    %801 = vector.shape_cast %800 : vector<8xf32> to vector<8x1xf32>
    %802 = vector.broadcast %801 : vector<8x1xf32> to vector<8x16xf32>
    %803 = arith.subf %799, %802 : vector<8x16xf32>
    %804 = math.exp %803 : vector<8x16xf32>
    %cst_293 = arith.constant dense<0.000000e+00> : vector<8xf32>
    %805 = vector.multi_reduction <add>, %804, %cst_293 [1] : vector<8x16xf32> to vector<8xf32>
    %806 = vector.shape_cast %805 : vector<8xf32> to vector<8x1xf32>
    %807 = tpu.reciprocal %806 {approx = true} : vector<8x1xf32> -> vector<8x1xf32>
    %808 = vector.broadcast %807 : vector<8x1xf32> to vector<8x16xf32>
    %809 = arith.mulf %804, %808 : vector<8x16xf32>
    %810 = arith.truncf %809 : vector<8x16xf32> to vector<8x16xbf16>
    %811 = vector.extract_strided_slice %790 {offsets = [0, 0], sizes = [16, 8], strides = [1, 1]} : vector<16x32xf32> to vector<16x8xf32>
    %812 = arith.truncf %811 : vector<16x8xf32> to vector<16x8xbf16>
    %cst_294 = arith.constant dense<0.000000e+00> : vector<8x8xf32>
    %813 = tpu.matmul %810, %812, %cst_294 {dimension_numbers = #tpu.dot_dimension_numbers<[1], [0], [0], [1], [0, 0, 1, 1], [], []>} : vector<8x16xbf16>, vector<16x8xbf16>, vector<8x8xf32> -> vector<8x8xf32>
    %814 = arith.truncf %813 : vector<8x8xf32> to vector<8x8xbf16>
    %815 = vector.extract_strided_slice %751 {offsets = [0, 0], sizes = [8, 32], strides = [1, 1]} : vector<32x32xbf16> to vector<8x32xbf16>
    %cst_295 = arith.constant dense<0.000000e+00> : vector<8x32xf32>
    %816 = tpu.matmul %814, %815, %cst_295 {dimension_numbers = #tpu.dot_dimension_numbers<[1], [0], [0], [1], [0, 0, 1, 1], [], []>} : vector<8x8xbf16>, vector<8x32xbf16>, vector<8x32xf32> -> vector<8x32xf32>
    %817 = vector.extract_strided_slice %792 {offsets = [0, 8], sizes = [8, 8], strides = [1, 1]} : vector<8x32xf32> to vector<8x8xf32>
    %818 = arith.truncf %817 : vector<8x8xf32> to vector<8x8xbf16>
    %819 = vector.extract_strided_slice %786 {offsets = [0, 8], sizes = [16, 8], strides = [1, 1]} : vector<16x32xf32> to vector<16x8xf32>
    %820 = arith.truncf %819 : vector<16x8xf32> to vector<16x8xbf16>
    %cst_296 = arith.constant dense<0.000000e+00> : vector<8x16xf32>
    %821 = tpu.matmul %818, %820, %cst_296 {dimension_numbers = #tpu.dot_dimension_numbers<[1], [1], [0], [0], [0, 0, 1, 0], [], []>} : vector<8x8xbf16>, vector<16x8xbf16>, vector<8x16xf32> -> vector<8x16xf32>
    %822 = vector.broadcast %21 : vector<1x16xf32> to vector<8x16xf32>
    %823 = arith.addf %821, %822 : vector<8x16xf32>
    %cst_297 = arith.constant dense<0xFF800000> : vector<8xf32>
    %824 = vector.multi_reduction <maximumf>, %823, %cst_297 [1] : vector<8x16xf32> to vector<8xf32>
    %825 = vector.shape_cast %824 : vector<8xf32> to vector<8x1xf32>
    %826 = vector.broadcast %825 : vector<8x1xf32> to vector<8x16xf32>
    %827 = arith.subf %823, %826 : vector<8x16xf32>
    %828 = math.exp %827 : vector<8x16xf32>
    %cst_298 = arith.constant dense<0.000000e+00> : vector<8xf32>
    %829 = vector.multi_reduction <add>, %828, %cst_298 [1] : vector<8x16xf32> to vector<8xf32>
    %830 = vector.shape_cast %829 : vector<8xf32> to vector<8x1xf32>
    %831 = tpu.reciprocal %830 {approx = true} : vector<8x1xf32> -> vector<8x1xf32>
    %832 = vector.broadcast %831 : vector<8x1xf32> to vector<8x16xf32>
    %833 = arith.mulf %828, %832 : vector<8x16xf32>
    %834 = arith.truncf %833 : vector<8x16xf32> to vector<8x16xbf16>
    %835 = vector.extract_strided_slice %790 {offsets = [0, 8], sizes = [16, 8], strides = [1, 1]} : vector<16x32xf32> to vector<16x8xf32>
    %836 = arith.truncf %835 : vector<16x8xf32> to vector<16x8xbf16>
    %cst_299 = arith.constant dense<0.000000e+00> : vector<8x8xf32>
    %837 = tpu.matmul %834, %836, %cst_299 {dimension_numbers = #tpu.dot_dimension_numbers<[1], [0], [0], [1], [0, 0, 1, 1], [], []>} : vector<8x16xbf16>, vector<16x8xbf16>, vector<8x8xf32> -> vector<8x8xf32>
    %838 = arith.truncf %837 : vector<8x8xf32> to vector<8x8xbf16>
    %839 = vector.extract_strided_slice %751 {offsets = [8, 0], sizes = [8, 32], strides = [1, 1]} : vector<32x32xbf16> to vector<8x32xbf16>
    %cst_300 = arith.constant dense<0.000000e+00> : vector<8x32xf32>
    %840 = tpu.matmul %838, %839, %cst_300 {dimension_numbers = #tpu.dot_dimension_numbers<[1], [0], [0], [1], [0, 0, 1, 1], [], []>} : vector<8x8xbf16>, vector<8x32xbf16>, vector<8x32xf32> -> vector<8x32xf32>
    %841 = arith.addf %816, %840 : vector<8x32xf32>
    %842 = vector.extract_strided_slice %792 {offsets = [0, 16], sizes = [8, 8], strides = [1, 1]} : vector<8x32xf32> to vector<8x8xf32>
    %843 = arith.truncf %842 : vector<8x8xf32> to vector<8x8xbf16>
    %844 = vector.extract_strided_slice %786 {offsets = [0, 16], sizes = [16, 8], strides = [1, 1]} : vector<16x32xf32> to vector<16x8xf32>
    %845 = arith.truncf %844 : vector<16x8xf32> to vector<16x8xbf16>
    %cst_301 = arith.constant dense<0.000000e+00> : vector<8x16xf32>
    %846 = tpu.matmul %843, %845, %cst_301 {dimension_numbers = #tpu.dot_dimension_numbers<[1], [1], [0], [0], [0, 0, 1, 0], [], []>} : vector<8x8xbf16>, vector<16x8xbf16>, vector<8x16xf32> -> vector<8x16xf32>
    %847 = vector.broadcast %21 : vector<1x16xf32> to vector<8x16xf32>
    %848 = arith.addf %846, %847 : vector<8x16xf32>
    %cst_302 = arith.constant dense<0xFF800000> : vector<8xf32>
    %849 = vector.multi_reduction <maximumf>, %848, %cst_302 [1] : vector<8x16xf32> to vector<8xf32>
    %850 = vector.shape_cast %849 : vector<8xf32> to vector<8x1xf32>
    %851 = vector.broadcast %850 : vector<8x1xf32> to vector<8x16xf32>
    %852 = arith.subf %848, %851 : vector<8x16xf32>
    %853 = math.exp %852 : vector<8x16xf32>
    %cst_303 = arith.constant dense<0.000000e+00> : vector<8xf32>
    %854 = vector.multi_reduction <add>, %853, %cst_303 [1] : vector<8x16xf32> to vector<8xf32>
    %855 = vector.shape_cast %854 : vector<8xf32> to vector<8x1xf32>
    %856 = tpu.reciprocal %855 {approx = true} : vector<8x1xf32> -> vector<8x1xf32>
    %857 = vector.broadcast %856 : vector<8x1xf32> to vector<8x16xf32>
    %858 = arith.mulf %853, %857 : vector<8x16xf32>
    %859 = arith.truncf %858 : vector<8x16xf32> to vector<8x16xbf16>
    %860 = vector.extract_strided_slice %790 {offsets = [0, 16], sizes = [16, 8], strides = [1, 1]} : vector<16x32xf32> to vector<16x8xf32>
    %861 = arith.truncf %860 : vector<16x8xf32> to vector<16x8xbf16>
    %cst_304 = arith.constant dense<0.000000e+00> : vector<8x8xf32>
    %862 = tpu.matmul %859, %861, %cst_304 {dimension_numbers = #tpu.dot_dimension_numbers<[1], [0], [0], [1], [0, 0, 1, 1], [], []>} : vector<8x16xbf16>, vector<16x8xbf16>, vector<8x8xf32> -> vector<8x8xf32>
    %863 = arith.truncf %862 : vector<8x8xf32> to vector<8x8xbf16>
    %864 = vector.extract_strided_slice %751 {offsets = [16, 0], sizes = [8, 32], strides = [1, 1]} : vector<32x32xbf16> to vector<8x32xbf16>
    %cst_305 = arith.constant dense<0.000000e+00> : vector<8x32xf32>
    %865 = tpu.matmul %863, %864, %cst_305 {dimension_numbers = #tpu.dot_dimension_numbers<[1], [0], [0], [1], [0, 0, 1, 1], [], []>} : vector<8x8xbf16>, vector<8x32xbf16>, vector<8x32xf32> -> vector<8x32xf32>
    %866 = arith.addf %841, %865 : vector<8x32xf32>
    %867 = vector.extract_strided_slice %792 {offsets = [0, 24], sizes = [8, 8], strides = [1, 1]} : vector<8x32xf32> to vector<8x8xf32>
    %868 = arith.truncf %867 : vector<8x8xf32> to vector<8x8xbf16>
    %869 = vector.extract_strided_slice %786 {offsets = [0, 24], sizes = [16, 8], strides = [1, 1]} : vector<16x32xf32> to vector<16x8xf32>
    %870 = arith.truncf %869 : vector<16x8xf32> to vector<16x8xbf16>
    %cst_306 = arith.constant dense<0.000000e+00> : vector<8x16xf32>
    %871 = tpu.matmul %868, %870, %cst_306 {dimension_numbers = #tpu.dot_dimension_numbers<[1], [1], [0], [0], [0, 0, 1, 0], [], []>} : vector<8x8xbf16>, vector<16x8xbf16>, vector<8x16xf32> -> vector<8x16xf32>
    %872 = vector.broadcast %21 : vector<1x16xf32> to vector<8x16xf32>
    %873 = arith.addf %871, %872 : vector<8x16xf32>
    %cst_307 = arith.constant dense<0xFF800000> : vector<8xf32>
    %874 = vector.multi_reduction <maximumf>, %873, %cst_307 [1] : vector<8x16xf32> to vector<8xf32>
    %875 = vector.shape_cast %874 : vector<8xf32> to vector<8x1xf32>
    %876 = vector.broadcast %875 : vector<8x1xf32> to vector<8x16xf32>
    %877 = arith.subf %873, %876 : vector<8x16xf32>
    %878 = math.exp %877 : vector<8x16xf32>
    %cst_308 = arith.constant dense<0.000000e+00> : vector<8xf32>
    %879 = vector.multi_reduction <add>, %878, %cst_308 [1] : vector<8x16xf32> to vector<8xf32>
    %880 = vector.shape_cast %879 : vector<8xf32> to vector<8x1xf32>
    %881 = tpu.reciprocal %880 {approx = true} : vector<8x1xf32> -> vector<8x1xf32>
    %882 = vector.broadcast %881 : vector<8x1xf32> to vector<8x16xf32>
    %883 = arith.mulf %878, %882 : vector<8x16xf32>
    %884 = arith.truncf %883 : vector<8x16xf32> to vector<8x16xbf16>
    %885 = vector.extract_strided_slice %790 {offsets = [0, 24], sizes = [16, 8], strides = [1, 1]} : vector<16x32xf32> to vector<16x8xf32>
    %886 = arith.truncf %885 : vector<16x8xf32> to vector<16x8xbf16>
    %cst_309 = arith.constant dense<0.000000e+00> : vector<8x8xf32>
    %887 = tpu.matmul %884, %886, %cst_309 {dimension_numbers = #tpu.dot_dimension_numbers<[1], [0], [0], [1], [0, 0, 1, 1], [], []>} : vector<8x16xbf16>, vector<16x8xbf16>, vector<8x8xf32> -> vector<8x8xf32>
    %888 = arith.truncf %887 : vector<8x8xf32> to vector<8x8xbf16>
    %889 = vector.extract_strided_slice %751 {offsets = [24, 0], sizes = [8, 32], strides = [1, 1]} : vector<32x32xbf16> to vector<8x32xbf16>
    %cst_310 = arith.constant dense<0.000000e+00> : vector<8x32xf32>
    %890 = tpu.matmul %888, %889, %cst_310 {dimension_numbers = #tpu.dot_dimension_numbers<[1], [0], [0], [1], [0, 0, 1, 1], [], []>} : vector<8x8xbf16>, vector<8x32xbf16>, vector<8x32xf32> -> vector<8x32xf32>
    %891 = arith.addf %866, %890 : vector<8x32xf32>
    %892 = arith.addf %733, %891 : vector<8x32xf32>
    %893 = vector.shape_cast %753 : vector<32xf32> to vector<1x32xf32>
    %894 = vector.broadcast %893 : vector<1x32xf32> to vector<8x32xf32>
    %895 = arith.addf %892, %894 : vector<8x32xf32>
    %c1_311 = arith.constant 1 : index
    %c0_312 = arith.constant 0 : index
    %896 = vector.load %arg28[%c1_311, %c0_312] : memref<2x32xf32, #tpu.memory_space<vmem>>, vector<1x32xf32>
    %897 = vector.shape_cast %896 : vector<1x32xf32> to vector<32xf32>
    %c1_313 = arith.constant 1 : index
    %c0_314 = arith.constant 0 : index
    %898 = vector.load %arg29[%c1_313, %c0_314] : memref<2x32xf32, #tpu.memory_space<vmem>>, vector<1x32xf32>
    %899 = vector.shape_cast %898 : vector<1x32xf32> to vector<32xf32>
    %c1_315 = arith.constant 1 : index
    %c0_316 = arith.constant 0 : index
    %c0_317 = arith.constant 0 : index
    %900 = vector.load %arg30[%c1_315, %c0_316, %c0_317] : memref<2x32x32xbf16, #tpu.memory_space<vmem>>, vector<1x32x32xbf16>
    %901 = vector.shape_cast %900 : vector<1x32x32xbf16> to vector<32x32xbf16>
    %c1_318 = arith.constant 1 : index
    %c0_319 = arith.constant 0 : index
    %902 = vector.load %arg31[%c1_318, %c0_319] : memref<2x32xf32, #tpu.memory_space<vmem>>, vector<1x32xf32>
    %903 = vector.shape_cast %902 : vector<1x32xf32> to vector<32xf32>
    %c1_320 = arith.constant 1 : index
    %c0_321 = arith.constant 0 : index
    %c0_322 = arith.constant 0 : index
    %904 = vector.load %arg32[%c1_320, %c0_321, %c0_322] : memref<2x32x32xbf16, #tpu.memory_space<vmem>>, vector<1x32x32xbf16>
    %905 = vector.shape_cast %904 : vector<1x32x32xbf16> to vector<32x32xbf16>
    %c1_323 = arith.constant 1 : index
    %c0_324 = arith.constant 0 : index
    %906 = vector.load %arg33[%c1_323, %c0_324] : memref<2x32xf32, #tpu.memory_space<vmem>>, vector<1x32xf32>
    %907 = vector.shape_cast %906 : vector<1x32xf32> to vector<32xf32>
    %c1_325 = arith.constant 1 : index
    %c0_326 = arith.constant 0 : index
    %c0_327 = arith.constant 0 : index
    %908 = vector.load %arg34[%c1_325, %c0_326, %c0_327] : memref<2x32x32xbf16, #tpu.memory_space<vmem>>, vector<1x32x32xbf16>
    %909 = vector.shape_cast %908 : vector<1x32x32xbf16> to vector<32x32xbf16>
    %c1_328 = arith.constant 1 : index
    %c0_329 = arith.constant 0 : index
    %910 = vector.load %arg35[%c1_328, %c0_329] : memref<2x32xf32, #tpu.memory_space<vmem>>, vector<1x32xf32>
    %911 = vector.shape_cast %910 : vector<1x32xf32> to vector<32xf32>
    %c1_330 = arith.constant 1 : index
    %c0_331 = arith.constant 0 : index
    %c0_332 = arith.constant 0 : index
    %912 = vector.load %arg36[%c1_330, %c0_331, %c0_332] : memref<2x32x32xbf16, #tpu.memory_space<vmem>>, vector<1x32x32xbf16>
    %913 = vector.shape_cast %912 : vector<1x32x32xbf16> to vector<32x32xbf16>
    %c1_333 = arith.constant 1 : index
    %c0_334 = arith.constant 0 : index
    %914 = vector.load %arg37[%c1_333, %c0_334] : memref<2x32xf32, #tpu.memory_space<vmem>>, vector<1x32xf32>
    %915 = vector.shape_cast %914 : vector<1x32xf32> to vector<32xf32>
    %cst_335 = arith.constant dense<0.000000e+00> : vector<8xf32>
    %916 = vector.multi_reduction <add>, %733, %cst_335 [1] : vector<8x32xf32> to vector<8xf32>
    %917 = vector.shape_cast %916 : vector<8xf32> to vector<8x1xf32>
    %cst_336 = arith.constant 3.200000e+01 : f32
    %918 = vector.broadcast %cst_336 : f32 to vector<8x1xf32>
    %919 = arith.divf %917, %918 : vector<8x1xf32>
    %920 = vector.broadcast %919 : vector<8x1xf32> to vector<8x32xf32>
    %921 = arith.subf %733, %920 : vector<8x32xf32>
    %922 = arith.mulf %921, %921 : vector<8x32xf32>
    %cst_337 = arith.constant dense<0.000000e+00> : vector<8xf32>
    %923 = vector.multi_reduction <add>, %922, %cst_337 [1] : vector<8x32xf32> to vector<8xf32>
    %924 = vector.shape_cast %923 : vector<8xf32> to vector<8x1xf32>
    %cst_338 = arith.constant 3.200000e+01 : f32
    %925 = vector.broadcast %cst_338 : f32 to vector<8x1xf32>
    %926 = arith.divf %924, %925 : vector<8x1xf32>
    %927 = vector.broadcast %919 : vector<8x1xf32> to vector<8x32xf32>
    %928 = arith.subf %733, %927 : vector<8x32xf32>
    %cst_339 = arith.constant 9.99999974E-6 : f32
    %929 = vector.broadcast %cst_339 : f32 to vector<8x1xf32>
    %930 = arith.addf %926, %929 : vector<8x1xf32>
    %931 = math.rsqrt %930 : vector<8x1xf32>
    %932 = vector.broadcast %931 : vector<8x1xf32> to vector<8x32xf32>
    %933 = arith.mulf %928, %932 : vector<8x32xf32>
    %934 = vector.shape_cast %897 : vector<32xf32> to vector<1x32xf32>
    %935 = vector.broadcast %934 : vector<1x32xf32> to vector<8x32xf32>
    %936 = arith.mulf %933, %935 : vector<8x32xf32>
    %937 = vector.shape_cast %899 : vector<32xf32> to vector<1x32xf32>
    %938 = vector.broadcast %937 : vector<1x32xf32> to vector<8x32xf32>
    %939 = arith.addf %936, %938 : vector<8x32xf32>
    %940 = arith.truncf %939 : vector<8x32xf32> to vector<8x32xbf16>
    %cst_340 = arith.constant dense<0.000000e+00> : vector<8x32xf32>
    %941 = tpu.matmul %940, %901, %cst_340 {dimension_numbers = #tpu.dot_dimension_numbers<[1], [0], [0], [1], [0, 0, 1, 1], [], []>} : vector<8x32xbf16>, vector<32x32xbf16>, vector<8x32xf32> -> vector<8x32xf32>
    %942 = vector.shape_cast %903 : vector<32xf32> to vector<1x32xf32>
    %943 = vector.broadcast %942 : vector<1x32xf32> to vector<8x32xf32>
    %944 = arith.addf %941, %943 : vector<8x32xf32>
    %cst_341 = arith.constant dense<0.000000e+00> : vector<24x32xf32>
    %945 = tpu.matmul %7, %905, %cst_341 {dimension_numbers = #tpu.dot_dimension_numbers<[1], [0], [0], [1], [0, 0, 1, 1], [], []>} : vector<24x32xbf16>, vector<32x32xbf16>, vector<24x32xf32> -> vector<24x32xf32>
    %946 = vector.shape_cast %907 : vector<32xf32> to vector<1x32xf32>
    %947 = vector.broadcast %946 : vector<1x32xf32> to vector<24x32xf32>
    %948 = arith.addf %945, %947 : vector<24x32xf32>
    %cst_342 = arith.constant dense<0.000000e+00> : vector<24x32xf32>
    %949 = tpu.matmul %7, %909, %cst_342 {dimension_numbers = #tpu.dot_dimension_numbers<[1], [0], [0], [1], [0, 0, 1, 1], [], []>} : vector<24x32xbf16>, vector<32x32xbf16>, vector<24x32xf32> -> vector<24x32xf32>
    %950 = vector.shape_cast %911 : vector<32xf32> to vector<1x32xf32>
    %951 = vector.broadcast %950 : vector<1x32xf32> to vector<24x32xf32>
    %952 = arith.addf %949, %951 : vector<24x32xf32>
    %cst_343 = arith.constant 0.353553385 : f32
    %953 = vector.broadcast %cst_343 : f32 to vector<8x32xf32>
    %954 = arith.mulf %944, %953 : vector<8x32xf32>
    %955 = vector.extract_strided_slice %954 {offsets = [0, 0], sizes = [8, 8], strides = [1, 1]} : vector<8x32xf32> to vector<8x8xf32>
    %956 = arith.truncf %955 : vector<8x8xf32> to vector<8x8xbf16>
    %957 = vector.extract_strided_slice %948 {offsets = [0, 0], sizes = [24, 8], strides = [1, 1]} : vector<24x32xf32> to vector<24x8xf32>
    %958 = arith.truncf %957 : vector<24x8xf32> to vector<24x8xbf16>
    %cst_344 = arith.constant dense<0.000000e+00> : vector<8x24xf32>
    %959 = tpu.matmul %956, %958, %cst_344 {dimension_numbers = #tpu.dot_dimension_numbers<[1], [1], [0], [0], [0, 0, 1, 0], [], []>} : vector<8x8xbf16>, vector<24x8xbf16>, vector<8x24xf32> -> vector<8x24xf32>
    %960 = vector.broadcast %28 : vector<1x24xf32> to vector<8x24xf32>
    %961 = arith.addf %959, %960 : vector<8x24xf32>
    %cst_345 = arith.constant dense<0xFF800000> : vector<8xf32>
    %962 = vector.multi_reduction <maximumf>, %961, %cst_345 [1] : vector<8x24xf32> to vector<8xf32>
    %963 = vector.shape_cast %962 : vector<8xf32> to vector<8x1xf32>
    %964 = vector.broadcast %963 : vector<8x1xf32> to vector<8x24xf32>
    %965 = arith.subf %961, %964 : vector<8x24xf32>
    %966 = math.exp %965 : vector<8x24xf32>
    %cst_346 = arith.constant dense<0.000000e+00> : vector<8xf32>
    %967 = vector.multi_reduction <add>, %966, %cst_346 [1] : vector<8x24xf32> to vector<8xf32>
    %968 = vector.shape_cast %967 : vector<8xf32> to vector<8x1xf32>
    %969 = tpu.reciprocal %968 {approx = true} : vector<8x1xf32> -> vector<8x1xf32>
    %970 = vector.broadcast %969 : vector<8x1xf32> to vector<8x24xf32>
    %971 = arith.mulf %966, %970 : vector<8x24xf32>
    %972 = arith.truncf %971 : vector<8x24xf32> to vector<8x24xbf16>
    %973 = vector.extract_strided_slice %952 {offsets = [0, 0], sizes = [24, 8], strides = [1, 1]} : vector<24x32xf32> to vector<24x8xf32>
    %974 = arith.truncf %973 : vector<24x8xf32> to vector<24x8xbf16>
    %cst_347 = arith.constant dense<0.000000e+00> : vector<8x8xf32>
    %975 = tpu.matmul %972, %974, %cst_347 {dimension_numbers = #tpu.dot_dimension_numbers<[1], [0], [0], [1], [0, 0, 1, 1], [], []>} : vector<8x24xbf16>, vector<24x8xbf16>, vector<8x8xf32> -> vector<8x8xf32>
    %976 = arith.truncf %975 : vector<8x8xf32> to vector<8x8xbf16>
    %977 = vector.extract_strided_slice %913 {offsets = [0, 0], sizes = [8, 32], strides = [1, 1]} : vector<32x32xbf16> to vector<8x32xbf16>
    %cst_348 = arith.constant dense<0.000000e+00> : vector<8x32xf32>
    %978 = tpu.matmul %976, %977, %cst_348 {dimension_numbers = #tpu.dot_dimension_numbers<[1], [0], [0], [1], [0, 0, 1, 1], [], []>} : vector<8x8xbf16>, vector<8x32xbf16>, vector<8x32xf32> -> vector<8x32xf32>
    %979 = vector.extract_strided_slice %954 {offsets = [0, 8], sizes = [8, 8], strides = [1, 1]} : vector<8x32xf32> to vector<8x8xf32>
    %980 = arith.truncf %979 : vector<8x8xf32> to vector<8x8xbf16>
    %981 = vector.extract_strided_slice %948 {offsets = [0, 8], sizes = [24, 8], strides = [1, 1]} : vector<24x32xf32> to vector<24x8xf32>
    %982 = arith.truncf %981 : vector<24x8xf32> to vector<24x8xbf16>
    %cst_349 = arith.constant dense<0.000000e+00> : vector<8x24xf32>
    %983 = tpu.matmul %980, %982, %cst_349 {dimension_numbers = #tpu.dot_dimension_numbers<[1], [1], [0], [0], [0, 0, 1, 0], [], []>} : vector<8x8xbf16>, vector<24x8xbf16>, vector<8x24xf32> -> vector<8x24xf32>
    %984 = vector.broadcast %28 : vector<1x24xf32> to vector<8x24xf32>
    %985 = arith.addf %983, %984 : vector<8x24xf32>
    %cst_350 = arith.constant dense<0xFF800000> : vector<8xf32>
    %986 = vector.multi_reduction <maximumf>, %985, %cst_350 [1] : vector<8x24xf32> to vector<8xf32>
    %987 = vector.shape_cast %986 : vector<8xf32> to vector<8x1xf32>
    %988 = vector.broadcast %987 : vector<8x1xf32> to vector<8x24xf32>
    %989 = arith.subf %985, %988 : vector<8x24xf32>
    %990 = math.exp %989 : vector<8x24xf32>
    %cst_351 = arith.constant dense<0.000000e+00> : vector<8xf32>
    %991 = vector.multi_reduction <add>, %990, %cst_351 [1] : vector<8x24xf32> to vector<8xf32>
    %992 = vector.shape_cast %991 : vector<8xf32> to vector<8x1xf32>
    %993 = tpu.reciprocal %992 {approx = true} : vector<8x1xf32> -> vector<8x1xf32>
    %994 = vector.broadcast %993 : vector<8x1xf32> to vector<8x24xf32>
    %995 = arith.mulf %990, %994 : vector<8x24xf32>
    %996 = arith.truncf %995 : vector<8x24xf32> to vector<8x24xbf16>
    %997 = vector.extract_strided_slice %952 {offsets = [0, 8], sizes = [24, 8], strides = [1, 1]} : vector<24x32xf32> to vector<24x8xf32>
    %998 = arith.truncf %997 : vector<24x8xf32> to vector<24x8xbf16>
    %cst_352 = arith.constant dense<0.000000e+00> : vector<8x8xf32>
    %999 = tpu.matmul %996, %998, %cst_352 {dimension_numbers = #tpu.dot_dimension_numbers<[1], [0], [0], [1], [0, 0, 1, 1], [], []>} : vector<8x24xbf16>, vector<24x8xbf16>, vector<8x8xf32> -> vector<8x8xf32>
    %1000 = arith.truncf %999 : vector<8x8xf32> to vector<8x8xbf16>
    %1001 = vector.extract_strided_slice %913 {offsets = [8, 0], sizes = [8, 32], strides = [1, 1]} : vector<32x32xbf16> to vector<8x32xbf16>
    %cst_353 = arith.constant dense<0.000000e+00> : vector<8x32xf32>
    %1002 = tpu.matmul %1000, %1001, %cst_353 {dimension_numbers = #tpu.dot_dimension_numbers<[1], [0], [0], [1], [0, 0, 1, 1], [], []>} : vector<8x8xbf16>, vector<8x32xbf16>, vector<8x32xf32> -> vector<8x32xf32>
    %1003 = arith.addf %978, %1002 : vector<8x32xf32>
    %1004 = vector.extract_strided_slice %954 {offsets = [0, 16], sizes = [8, 8], strides = [1, 1]} : vector<8x32xf32> to vector<8x8xf32>
    %1005 = arith.truncf %1004 : vector<8x8xf32> to vector<8x8xbf16>
    %1006 = vector.extract_strided_slice %948 {offsets = [0, 16], sizes = [24, 8], strides = [1, 1]} : vector<24x32xf32> to vector<24x8xf32>
    %1007 = arith.truncf %1006 : vector<24x8xf32> to vector<24x8xbf16>
    %cst_354 = arith.constant dense<0.000000e+00> : vector<8x24xf32>
    %1008 = tpu.matmul %1005, %1007, %cst_354 {dimension_numbers = #tpu.dot_dimension_numbers<[1], [1], [0], [0], [0, 0, 1, 0], [], []>} : vector<8x8xbf16>, vector<24x8xbf16>, vector<8x24xf32> -> vector<8x24xf32>
    %1009 = vector.broadcast %28 : vector<1x24xf32> to vector<8x24xf32>
    %1010 = arith.addf %1008, %1009 : vector<8x24xf32>
    %cst_355 = arith.constant dense<0xFF800000> : vector<8xf32>
    %1011 = vector.multi_reduction <maximumf>, %1010, %cst_355 [1] : vector<8x24xf32> to vector<8xf32>
    %1012 = vector.shape_cast %1011 : vector<8xf32> to vector<8x1xf32>
    %1013 = vector.broadcast %1012 : vector<8x1xf32> to vector<8x24xf32>
    %1014 = arith.subf %1010, %1013 : vector<8x24xf32>
    %1015 = math.exp %1014 : vector<8x24xf32>
    %cst_356 = arith.constant dense<0.000000e+00> : vector<8xf32>
    %1016 = vector.multi_reduction <add>, %1015, %cst_356 [1] : vector<8x24xf32> to vector<8xf32>
    %1017 = vector.shape_cast %1016 : vector<8xf32> to vector<8x1xf32>
    %1018 = tpu.reciprocal %1017 {approx = true} : vector<8x1xf32> -> vector<8x1xf32>
    %1019 = vector.broadcast %1018 : vector<8x1xf32> to vector<8x24xf32>
    %1020 = arith.mulf %1015, %1019 : vector<8x24xf32>
    %1021 = arith.truncf %1020 : vector<8x24xf32> to vector<8x24xbf16>
    %1022 = vector.extract_strided_slice %952 {offsets = [0, 16], sizes = [24, 8], strides = [1, 1]} : vector<24x32xf32> to vector<24x8xf32>
    %1023 = arith.truncf %1022 : vector<24x8xf32> to vector<24x8xbf16>
    %cst_357 = arith.constant dense<0.000000e+00> : vector<8x8xf32>
    %1024 = tpu.matmul %1021, %1023, %cst_357 {dimension_numbers = #tpu.dot_dimension_numbers<[1], [0], [0], [1], [0, 0, 1, 1], [], []>} : vector<8x24xbf16>, vector<24x8xbf16>, vector<8x8xf32> -> vector<8x8xf32>
    %1025 = arith.truncf %1024 : vector<8x8xf32> to vector<8x8xbf16>
    %1026 = vector.extract_strided_slice %913 {offsets = [16, 0], sizes = [8, 32], strides = [1, 1]} : vector<32x32xbf16> to vector<8x32xbf16>
    %cst_358 = arith.constant dense<0.000000e+00> : vector<8x32xf32>
    %1027 = tpu.matmul %1025, %1026, %cst_358 {dimension_numbers = #tpu.dot_dimension_numbers<[1], [0], [0], [1], [0, 0, 1, 1], [], []>} : vector<8x8xbf16>, vector<8x32xbf16>, vector<8x32xf32> -> vector<8x32xf32>
    %1028 = arith.addf %1003, %1027 : vector<8x32xf32>
    %1029 = vector.extract_strided_slice %954 {offsets = [0, 24], sizes = [8, 8], strides = [1, 1]} : vector<8x32xf32> to vector<8x8xf32>
    %1030 = arith.truncf %1029 : vector<8x8xf32> to vector<8x8xbf16>
    %1031 = vector.extract_strided_slice %948 {offsets = [0, 24], sizes = [24, 8], strides = [1, 1]} : vector<24x32xf32> to vector<24x8xf32>
    %1032 = arith.truncf %1031 : vector<24x8xf32> to vector<24x8xbf16>
    %cst_359 = arith.constant dense<0.000000e+00> : vector<8x24xf32>
    %1033 = tpu.matmul %1030, %1032, %cst_359 {dimension_numbers = #tpu.dot_dimension_numbers<[1], [1], [0], [0], [0, 0, 1, 0], [], []>} : vector<8x8xbf16>, vector<24x8xbf16>, vector<8x24xf32> -> vector<8x24xf32>
    %1034 = vector.broadcast %28 : vector<1x24xf32> to vector<8x24xf32>
    %1035 = arith.addf %1033, %1034 : vector<8x24xf32>
    %cst_360 = arith.constant dense<0xFF800000> : vector<8xf32>
    %1036 = vector.multi_reduction <maximumf>, %1035, %cst_360 [1] : vector<8x24xf32> to vector<8xf32>
    %1037 = vector.shape_cast %1036 : vector<8xf32> to vector<8x1xf32>
    %1038 = vector.broadcast %1037 : vector<8x1xf32> to vector<8x24xf32>
    %1039 = arith.subf %1035, %1038 : vector<8x24xf32>
    %1040 = math.exp %1039 : vector<8x24xf32>
    %cst_361 = arith.constant dense<0.000000e+00> : vector<8xf32>
    %1041 = vector.multi_reduction <add>, %1040, %cst_361 [1] : vector<8x24xf32> to vector<8xf32>
    %1042 = vector.shape_cast %1041 : vector<8xf32> to vector<8x1xf32>
    %1043 = tpu.reciprocal %1042 {approx = true} : vector<8x1xf32> -> vector<8x1xf32>
    %1044 = vector.broadcast %1043 : vector<8x1xf32> to vector<8x24xf32>
    %1045 = arith.mulf %1040, %1044 : vector<8x24xf32>
    %1046 = arith.truncf %1045 : vector<8x24xf32> to vector<8x24xbf16>
    %1047 = vector.extract_strided_slice %952 {offsets = [0, 24], sizes = [24, 8], strides = [1, 1]} : vector<24x32xf32> to vector<24x8xf32>
    %1048 = arith.truncf %1047 : vector<24x8xf32> to vector<24x8xbf16>
    %cst_362 = arith.constant dense<0.000000e+00> : vector<8x8xf32>
    %1049 = tpu.matmul %1046, %1048, %cst_362 {dimension_numbers = #tpu.dot_dimension_numbers<[1], [0], [0], [1], [0, 0, 1, 1], [], []>} : vector<8x24xbf16>, vector<24x8xbf16>, vector<8x8xf32> -> vector<8x8xf32>
    %1050 = arith.truncf %1049 : vector<8x8xf32> to vector<8x8xbf16>
    %1051 = vector.extract_strided_slice %913 {offsets = [24, 0], sizes = [8, 32], strides = [1, 1]} : vector<32x32xbf16> to vector<8x32xbf16>
    %cst_363 = arith.constant dense<0.000000e+00> : vector<8x32xf32>
    %1052 = tpu.matmul %1050, %1051, %cst_363 {dimension_numbers = #tpu.dot_dimension_numbers<[1], [0], [0], [1], [0, 0, 1, 1], [], []>} : vector<8x8xbf16>, vector<8x32xbf16>, vector<8x32xf32> -> vector<8x32xf32>
    %1053 = arith.addf %1028, %1052 : vector<8x32xf32>
    %1054 = arith.addf %733, %1053 : vector<8x32xf32>
    %1055 = vector.shape_cast %915 : vector<32xf32> to vector<1x32xf32>
    %1056 = vector.broadcast %1055 : vector<1x32xf32> to vector<8x32xf32>
    %1057 = arith.addf %1054, %1056 : vector<8x32xf32>
    %c1_364 = arith.constant 1 : index
    %c0_365 = arith.constant 0 : index
    %1058 = vector.load %arg38[%c1_364, %c0_365] : memref<2x32xf32, #tpu.memory_space<vmem>>, vector<1x32xf32>
    %1059 = vector.shape_cast %1058 : vector<1x32xf32> to vector<32xf32>
    %c1_366 = arith.constant 1 : index
    %c0_367 = arith.constant 0 : index
    %1060 = vector.load %arg39[%c1_366, %c0_367] : memref<2x32xf32, #tpu.memory_space<vmem>>, vector<1x32xf32>
    %1061 = vector.shape_cast %1060 : vector<1x32xf32> to vector<32xf32>
    %cst_368 = arith.constant dense<0.000000e+00> : vector<8xf32>
    %1062 = vector.multi_reduction <add>, %895, %cst_368 [1] : vector<8x32xf32> to vector<8xf32>
    %1063 = vector.shape_cast %1062 : vector<8xf32> to vector<8x1xf32>
    %cst_369 = arith.constant 3.200000e+01 : f32
    %1064 = vector.broadcast %cst_369 : f32 to vector<8x1xf32>
    %1065 = arith.divf %1063, %1064 : vector<8x1xf32>
    %1066 = vector.broadcast %1065 : vector<8x1xf32> to vector<8x32xf32>
    %1067 = arith.subf %895, %1066 : vector<8x32xf32>
    %1068 = arith.mulf %1067, %1067 : vector<8x32xf32>
    %cst_370 = arith.constant dense<0.000000e+00> : vector<8xf32>
    %1069 = vector.multi_reduction <add>, %1068, %cst_370 [1] : vector<8x32xf32> to vector<8xf32>
    %1070 = vector.shape_cast %1069 : vector<8xf32> to vector<8x1xf32>
    %cst_371 = arith.constant 3.200000e+01 : f32
    %1071 = vector.broadcast %cst_371 : f32 to vector<8x1xf32>
    %1072 = arith.divf %1070, %1071 : vector<8x1xf32>
    %1073 = vector.broadcast %1065 : vector<8x1xf32> to vector<8x32xf32>
    %1074 = arith.subf %895, %1073 : vector<8x32xf32>
    %cst_372 = arith.constant 9.99999974E-6 : f32
    %1075 = vector.broadcast %cst_372 : f32 to vector<8x1xf32>
    %1076 = arith.addf %1072, %1075 : vector<8x1xf32>
    %1077 = math.rsqrt %1076 : vector<8x1xf32>
    %1078 = vector.broadcast %1077 : vector<8x1xf32> to vector<8x32xf32>
    %1079 = arith.mulf %1074, %1078 : vector<8x32xf32>
    %1080 = vector.shape_cast %1059 : vector<32xf32> to vector<1x32xf32>
    %1081 = vector.broadcast %1080 : vector<1x32xf32> to vector<8x32xf32>
    %1082 = arith.mulf %1079, %1081 : vector<8x32xf32>
    %1083 = vector.shape_cast %1061 : vector<32xf32> to vector<1x32xf32>
    %1084 = vector.broadcast %1083 : vector<1x32xf32> to vector<8x32xf32>
    %1085 = arith.addf %1082, %1084 : vector<8x32xf32>
    %c1_373 = arith.constant 1 : index
    %c0_374 = arith.constant 0 : index
    %1086 = vector.load %arg40[%c1_373, %c0_374] : memref<2x32xf32, #tpu.memory_space<vmem>>, vector<1x32xf32>
    %1087 = vector.shape_cast %1086 : vector<1x32xf32> to vector<32xf32>
    %c1_375 = arith.constant 1 : index
    %c0_376 = arith.constant 0 : index
    %1088 = vector.load %arg41[%c1_375, %c0_376] : memref<2x32xf32, #tpu.memory_space<vmem>>, vector<1x32xf32>
    %1089 = vector.shape_cast %1088 : vector<1x32xf32> to vector<32xf32>
    %cst_377 = arith.constant dense<0.000000e+00> : vector<8xf32>
    %1090 = vector.multi_reduction <add>, %1057, %cst_377 [1] : vector<8x32xf32> to vector<8xf32>
    %1091 = vector.shape_cast %1090 : vector<8xf32> to vector<8x1xf32>
    %cst_378 = arith.constant 3.200000e+01 : f32
    %1092 = vector.broadcast %cst_378 : f32 to vector<8x1xf32>
    %1093 = arith.divf %1091, %1092 : vector<8x1xf32>
    %1094 = vector.broadcast %1093 : vector<8x1xf32> to vector<8x32xf32>
    %1095 = arith.subf %1057, %1094 : vector<8x32xf32>
    %1096 = arith.mulf %1095, %1095 : vector<8x32xf32>
    %cst_379 = arith.constant dense<0.000000e+00> : vector<8xf32>
    %1097 = vector.multi_reduction <add>, %1096, %cst_379 [1] : vector<8x32xf32> to vector<8xf32>
    %1098 = vector.shape_cast %1097 : vector<8xf32> to vector<8x1xf32>
    %cst_380 = arith.constant 3.200000e+01 : f32
    %1099 = vector.broadcast %cst_380 : f32 to vector<8x1xf32>
    %1100 = arith.divf %1098, %1099 : vector<8x1xf32>
    %1101 = vector.broadcast %1093 : vector<8x1xf32> to vector<8x32xf32>
    %1102 = arith.subf %1057, %1101 : vector<8x32xf32>
    %cst_381 = arith.constant 9.99999974E-6 : f32
    %1103 = vector.broadcast %cst_381 : f32 to vector<8x1xf32>
    %1104 = arith.addf %1100, %1103 : vector<8x1xf32>
    %1105 = math.rsqrt %1104 : vector<8x1xf32>
    %1106 = vector.broadcast %1105 : vector<8x1xf32> to vector<8x32xf32>
    %1107 = arith.mulf %1102, %1106 : vector<8x32xf32>
    %1108 = vector.shape_cast %1087 : vector<32xf32> to vector<1x32xf32>
    %1109 = vector.broadcast %1108 : vector<1x32xf32> to vector<8x32xf32>
    %1110 = arith.mulf %1107, %1109 : vector<8x32xf32>
    %1111 = vector.shape_cast %1089 : vector<32xf32> to vector<1x32xf32>
    %1112 = vector.broadcast %1111 : vector<1x32xf32> to vector<8x32xf32>
    %1113 = arith.addf %1110, %1112 : vector<8x32xf32>
    %c1_382 = arith.constant 1 : index
    %c0_383 = arith.constant 0 : index
    %c0_384 = arith.constant 0 : index
    %1114 = vector.load %arg7[%c1_382, %c0_383, %c0_384] : memref<2x1x1xf32, #tpu.memory_space<vmem>>, vector<1x1x1xf32>
    %1115 = vector.shape_cast %1114 : vector<1x1x1xf32> to vector<1x1xf32>
    %1116 = vector.broadcast %1115 : vector<1x1xf32> to vector<8x32xf32>
    %1117 = arith.mulf %1116, %1113 : vector<8x32xf32>
    %cst_385 = arith.constant 1.000000e+00 : f32
    %1118 = vector.broadcast %cst_385 : f32 to vector<1x1xf32>
    %1119 = arith.subf %1118, %1115 : vector<1x1xf32>
    %1120 = vector.broadcast %1119 : vector<1x1xf32> to vector<8x32xf32>
    %1121 = arith.mulf %1120, %1085 : vector<8x32xf32>
    %1122 = arith.addf %1117, %1121 : vector<8x32xf32>
    %c0_386 = arith.constant 0 : index
    %c0_387 = arith.constant 0 : index
    %c0_388 = arith.constant 0 : index
    %1123 = vector.load %arg42[%c0_386, %c0_387, %c0_388] : memref<1x8x32xf32, #tpu.memory_space<vmem>>, vector<1x8x32xf32>
    %1124 = vector.shape_cast %1123 : vector<1x8x32xf32> to vector<8x32xf32>
    %1125 = vector.shape_cast %1122 : vector<8x32xf32> to vector<1x8x32xf32>
    tpu.vector_store %arg42[%c0_386, %c0_387, %c0_388], %1125 {strides = array<i32>} : memref<1x8x32xf32, #tpu.memory_space<vmem>>, vector<1x8x32xf32>,
    return
  }
  func.func @transform_0(%arg0: i32) -> (i32, i32, i32) {
    %c0_i32 = arith.constant 0 : i32
    %c0_i32_0 = arith.constant 0 : i32
    %c0_i32_1 = arith.constant 0 : i32
    return %arg0, %c0_i32, %c0_i32_0 : i32, i32, i32
  }
  func.func @transform_1(%arg0: i32) -> (i32, i32, i32) {
    %c0_i32 = arith.constant 0 : i32
    %c0_i32_0 = arith.constant 0 : i32
    %c0_i32_1 = arith.constant 0 : i32
    return %arg0, %c0_i32, %c0_i32_0 : i32, i32, i32
  }
  func.func @transform_2(%arg0: i32) -> (i32, i32, i32) {
    %c0_i32 = arith.constant 0 : i32
    %c0_i32_0 = arith.constant 0 : i32
    %c0_i32_1 = arith.constant 0 : i32
    return %arg0, %c0_i32, %c0_i32_0 : i32, i32, i32
  }
  func.func @transform_3(%arg0: i32) -> (i32, i32, i32) {
    %c0_i32 = arith.constant 0 : i32
    %c0_i32_0 = arith.constant 0 : i32
    %c0_i32_1 = arith.constant 0 : i32
    return %arg0, %c0_i32, %c0_i32_0 : i32, i32, i32
  }
  func.func @transform_4(%arg0: i32) -> (i32, i32, i32) {
    %c0_i32 = arith.constant 0 : i32
    %c0_i32_0 = arith.constant 0 : i32
    %c0_i32_1 = arith.constant 0 : i32
    return %arg0, %c0_i32, %c0_i32_0 : i32, i32, i32
  }
  func.func @transform_5(%arg0: i32) -> (i32, i32, i32) {
    %c0_i32 = arith.constant 0 : i32
    %c0_i32_0 = arith.constant 0 : i32
    %c0_i32_1 = arith.constant 0 : i32
    return %arg0, %c0_i32, %c0_i32_0 : i32, i32, i32
  }
  func.func @transform_6(%arg0: i32) -> (i32, i32, i32) {
    %c0_i32 = arith.constant 0 : i32
    %c0_i32_0 = arith.constant 0 : i32
    %c0_i32_1 = arith.constant 0 : i32
    %c0_i32_2 = arith.constant 0 : i32
    return %c0_i32, %c0_i32_0, %c0_i32_1 : i32, i32, i32
  }
  func.func @transform_7(%arg0: i32) -> (i32, i32) {
    %c0_i32 = arith.constant 0 : i32
    %c0_i32_0 = arith.constant 0 : i32
    %c0_i32_1 = arith.constant 0 : i32
    return %c0_i32, %c0_i32_0 : i32, i32
  }
  func.func @transform_8(%arg0: i32) -> (i32, i32) {
    %c0_i32 = arith.constant 0 : i32
    %c0_i32_0 = arith.constant 0 : i32
    %c0_i32_1 = arith.constant 0 : i32
    return %c0_i32, %c0_i32_0 : i32, i32
  }
  func.func @transform_9(%arg0: i32) -> (i32, i32, i32) {
    %c0_i32 = arith.constant 0 : i32
    %c0_i32_0 = arith.constant 0 : i32
    %c0_i32_1 = arith.constant 0 : i32
    %c0_i32_2 = arith.constant 0 : i32
    return %c0_i32, %c0_i32_0, %c0_i32_1 : i32, i32, i32
  }
  func.func @transform_10(%arg0: i32) -> (i32, i32) {
    %c0_i32 = arith.constant 0 : i32
    %c0_i32_0 = arith.constant 0 : i32
    %c0_i32_1 = arith.constant 0 : i32
    return %c0_i32, %c0_i32_0 : i32, i32
  }
  func.func @transform_11(%arg0: i32) -> (i32, i32, i32) {
    %c0_i32 = arith.constant 0 : i32
    %c0_i32_0 = arith.constant 0 : i32
    %c0_i32_1 = arith.constant 0 : i32
    %c0_i32_2 = arith.constant 0 : i32
    return %c0_i32, %c0_i32_0, %c0_i32_1 : i32, i32, i32
  }
  func.func @transform_12(%arg0: i32) -> (i32, i32) {
    %c0_i32 = arith.constant 0 : i32
    %c0_i32_0 = arith.constant 0 : i32
    %c0_i32_1 = arith.constant 0 : i32
    return %c0_i32, %c0_i32_0 : i32, i32
  }
  func.func @transform_13(%arg0: i32) -> (i32, i32, i32) {
    %c0_i32 = arith.constant 0 : i32
    %c0_i32_0 = arith.constant 0 : i32
    %c0_i32_1 = arith.constant 0 : i32
    %c0_i32_2 = arith.constant 0 : i32
    return %c0_i32, %c0_i32_0, %c0_i32_1 : i32, i32, i32
  }
  func.func @transform_14(%arg0: i32) -> (i32, i32) {
    %c0_i32 = arith.constant 0 : i32
    %c0_i32_0 = arith.constant 0 : i32
    %c0_i32_1 = arith.constant 0 : i32
    return %c0_i32, %c0_i32_0 : i32, i32
  }
  func.func @transform_15(%arg0: i32) -> (i32, i32, i32) {
    %c0_i32 = arith.constant 0 : i32
    %c0_i32_0 = arith.constant 0 : i32
    %c0_i32_1 = arith.constant 0 : i32
    %c0_i32_2 = arith.constant 0 : i32
    return %c0_i32, %c0_i32_0, %c0_i32_1 : i32, i32, i32
  }
  func.func @transform_16(%arg0: i32) -> (i32, i32) {
    %c0_i32 = arith.constant 0 : i32
    %c0_i32_0 = arith.constant 0 : i32
    %c0_i32_1 = arith.constant 0 : i32
    return %c0_i32, %c0_i32_0 : i32, i32
  }
  func.func @transform_17(%arg0: i32) -> (i32, i32) {
    %c0_i32 = arith.constant 0 : i32
    %c0_i32_0 = arith.constant 0 : i32
    %c0_i32_1 = arith.constant 0 : i32
    return %c0_i32, %c0_i32_0 : i32, i32
  }
  func.func @transform_18(%arg0: i32) -> (i32, i32) {
    %c0_i32 = arith.constant 0 : i32
    %c0_i32_0 = arith.constant 0 : i32
    %c0_i32_1 = arith.constant 0 : i32
    return %c0_i32, %c0_i32_0 : i32, i32
  }
  func.func @transform_19(%arg0: i32) -> (i32, i32, i32) {
    %c0_i32 = arith.constant 0 : i32
    %c0_i32_0 = arith.constant 0 : i32
    %c0_i32_1 = arith.constant 0 : i32
    %c0_i32_2 = arith.constant 0 : i32
    return %c0_i32, %c0_i32_0, %c0_i32_1 : i32, i32, i32
  }
  func.func @transform_20(%arg0: i32) -> (i32, i32) {
    %c0_i32 = arith.constant 0 : i32
    %c0_i32_0 = arith.constant 0 : i32
    %c0_i32_1 = arith.constant 0 : i32
    return %c0_i32, %c0_i32_0 : i32, i32
  }
  func.func @transform_21(%arg0: i32) -> (i32, i32, i32) {
    %c0_i32 = arith.constant 0 : i32
    %c0_i32_0 = arith.constant 0 : i32
    %c0_i32_1 = arith.constant 0 : i32
    %c0_i32_2 = arith.constant 0 : i32
    return %c0_i32, %c0_i32_0, %c0_i32_1 : i32, i32, i32
  }
  func.func @transform_22(%arg0: i32) -> (i32, i32) {
    %c0_i32 = arith.constant 0 : i32
    %c0_i32_0 = arith.constant 0 : i32
    %c0_i32_1 = arith.constant 0 : i32
    return %c0_i32, %c0_i32_0 : i32, i32
  }
  func.func @transform_23(%arg0: i32) -> (i32, i32, i32) {
    %c0_i32 = arith.constant 0 : i32
    %c0_i32_0 = arith.constant 0 : i32
    %c0_i32_1 = arith.constant 0 : i32
    %c0_i32_2 = arith.constant 0 : i32
    return %c0_i32, %c0_i32_0, %c0_i32_1 : i32, i32, i32
  }
  func.func @transform_24(%arg0: i32) -> (i32, i32) {
    %c0_i32 = arith.constant 0 : i32
    %c0_i32_0 = arith.constant 0 : i32
    %c0_i32_1 = arith.constant 0 : i32
    return %c0_i32, %c0_i32_0 : i32, i32
  }
  func.func @transform_25(%arg0: i32) -> (i32, i32, i32) {
    %c0_i32 = arith.constant 0 : i32
    %c0_i32_0 = arith.constant 0 : i32
    %c0_i32_1 = arith.constant 0 : i32
    %c0_i32_2 = arith.constant 0 : i32
    return %c0_i32, %c0_i32_0, %c0_i32_1 : i32, i32, i32
  }
  func.func @transform_26(%arg0: i32) -> (i32, i32) {
    %c0_i32 = arith.constant 0 : i32
    %c0_i32_0 = arith.constant 0 : i32
    %c0_i32_1 = arith.constant 0 : i32
    return %c0_i32, %c0_i32_0 : i32, i32
  }
  func.func @transform_27(%arg0: i32) -> (i32, i32) {
    %c0_i32 = arith.constant 0 : i32
    %c0_i32_0 = arith.constant 0 : i32
    %c0_i32_1 = arith.constant 0 : i32
    return %c0_i32, %c0_i32_0 : i32, i32
  }
  func.func @transform_28(%arg0: i32) -> (i32, i32) {
    %c0_i32 = arith.constant 0 : i32
    %c0_i32_0 = arith.constant 0 : i32
    %c0_i32_1 = arith.constant 0 : i32
    return %c0_i32, %c0_i32_0 : i32, i32
  }
  func.func @transform_29(%arg0: i32) -> (i32, i32, i32) {
    %c0_i32 = arith.constant 0 : i32
    %c0_i32_0 = arith.constant 0 : i32
    %c0_i32_1 = arith.constant 0 : i32
    %c0_i32_2 = arith.constant 0 : i32
    return %c0_i32, %c0_i32_0, %c0_i32_1 : i32, i32, i32
  }
  func.func @transform_30(%arg0: i32) -> (i32, i32) {
    %c0_i32 = arith.constant 0 : i32
    %c0_i32_0 = arith.constant 0 : i32
    %c0_i32_1 = arith.constant 0 : i32
    return %c0_i32, %c0_i32_0 : i32, i32
  }
  func.func @transform_31(%arg0: i32) -> (i32, i32, i32) {
    %c0_i32 = arith.constant 0 : i32
    %c0_i32_0 = arith.constant 0 : i32
    %c0_i32_1 = arith.constant 0 : i32
    %c0_i32_2 = arith.constant 0 : i32
    return %c0_i32, %c0_i32_0, %c0_i32_1 : i32, i32, i32
  }
  func.func @transform_32(%arg0: i32) -> (i32, i32) {
    %c0_i32 = arith.constant 0 : i32
    %c0_i32_0 = arith.constant 0 : i32
    %c0_i32_1 = arith.constant 0 : i32
    return %c0_i32, %c0_i32_0 : i32, i32
  }
  func.func @transform_33(%arg0: i32) -> (i32, i32, i32) {
    %c0_i32 = arith.constant 0 : i32
    %c0_i32_0 = arith.constant 0 : i32
    %c0_i32_1 = arith.constant 0 : i32
    %c0_i32_2 = arith.constant 0 : i32
    return %c0_i32, %c0_i32_0, %c0_i32_1 : i32, i32, i32
  }
  func.func @transform_34(%arg0: i32) -> (i32, i32) {
    %c0_i32 = arith.constant 0 : i32
    %c0_i32_0 = arith.constant 0 : i32
    %c0_i32_1 = arith.constant 0 : i32
    return %c0_i32, %c0_i32_0 : i32, i32
  }
  func.func @transform_35(%arg0: i32) -> (i32, i32, i32) {
    %c0_i32 = arith.constant 0 : i32
    %c0_i32_0 = arith.constant 0 : i32
    %c0_i32_1 = arith.constant 0 : i32
    %c0_i32_2 = arith.constant 0 : i32
    return %c0_i32, %c0_i32_0, %c0_i32_1 : i32, i32, i32
  }
  func.func @transform_36(%arg0: i32) -> (i32, i32) {
    %c0_i32 = arith.constant 0 : i32
    %c0_i32_0 = arith.constant 0 : i32
    %c0_i32_1 = arith.constant 0 : i32
    return %c0_i32, %c0_i32_0 : i32, i32
  }
  func.func @transform_37(%arg0: i32) -> (i32, i32) {
    %c0_i32 = arith.constant 0 : i32
    %c0_i32_0 = arith.constant 0 : i32
    %c0_i32_1 = arith.constant 0 : i32
    return %c0_i32, %c0_i32_0 : i32, i32
  }
  func.func @transform_38(%arg0: i32) -> (i32, i32) {
    %c0_i32 = arith.constant 0 : i32
    %c0_i32_0 = arith.constant 0 : i32
    %c0_i32_1 = arith.constant 0 : i32
    return %c0_i32, %c0_i32_0 : i32, i32
  }
  func.func @transform_39(%arg0: i32) -> (i32, i32) {
    %c0_i32 = arith.constant 0 : i32
    %c0_i32_0 = arith.constant 0 : i32
    %c0_i32_1 = arith.constant 0 : i32
    return %c0_i32, %c0_i32_0 : i32, i32
  }
  func.func @transform_40(%arg0: i32) -> (i32, i32) {
    %c0_i32 = arith.constant 0 : i32
    %c0_i32_0 = arith.constant 0 : i32
    %c0_i32_1 = arith.constant 0 : i32
    return %c0_i32, %c0_i32_0 : i32, i32
  }
  func.func @transform_41(%arg0: i32) -> (i32, i32, i32) {
    %c0_i32 = arith.constant 0 : i32
    %c0_i32_0 = arith.constant 0 : i32
    %c0_i32_1 = arith.constant 0 : i32
    return %arg0, %c0_i32, %c0_i32_0 : i32, i32, i32
  }
}

</mosaic_0001>

<llo_original>
// kernel: tpu_custom_call.1
$region0: #{tpu_custom_call.1}
  #allocation0 [shape = 'u32[]', space=smem, size = 0x4, offset = 0x4, fixed_abs, tag = 'smem constant byte address 0x4 - core index']
  #allocation1 [shape = 'u32[144,128]{1,0:T(1,128)}', space=vmem, size = 0x12000, scoped, tag = 'internal scratch']
  %s0 = inlined_call_operand.smem [shape: u32[42], index: -1, kind: input, shape index: {}]
  %s1 = sld [smem:[%s0]]
  %s2 = scalar_lea.smem %s0, 1
  %s3 = sld [smem:[%s2]]
  %s4 = scalar_lea.smem %s0, 2
  %s5 = sld [smem:[%s4]]
  %s6 = scalar_lea.smem %s0, 3
  %s7 = sld [smem:[%s6]]
  %s8 = scalar_lea.smem %s0, 4
  %s9 = sld [smem:[%s8]]
  %s10 = scalar_lea.smem %s0, 5
  %s11 = sld [smem:[%s10]]
  %s12 = scalar_lea.smem %s0, 6
  %s13 = sld [smem:[%s12]]
  %s14 = scalar_lea.smem %s0, 7
  %s15 = sld [smem:[%s14]]
  %s16 = scalar_lea.smem %s0, 8
  %s17 = sld [smem:[%s16]]
  %s18 = scalar_lea.smem %s0, 9
  %s19 = sld [smem:[%s18]]
  %s20 = scalar_lea.smem %s0, 10
  %s21 = sld [smem:[%s20]]
  %s22 = scalar_lea.smem %s0, 11
  %s23 = sld [smem:[%s22]]
  %s24 = scalar_lea.smem %s0, 12
  %s25 = sld [smem:[%s24]]
  %s26 = scalar_lea.smem %s0, 13
  %s27 = sld [smem:[%s26]]
  %s28 = scalar_lea.smem %s0, 14
  %s29 = sld [smem:[%s28]]
  %s30 = scalar_lea.smem %s0, 15
  %s31 = sld [smem:[%s30]]
  %s32 = scalar_lea.smem %s0, 16
  %s33 = sld [smem:[%s32]]
  %s34 = scalar_lea.smem %s0, 17
  %s35 = sld [smem:[%s34]]
  %s36 = scalar_lea.smem %s0, 18
  %s37 = sld [smem:[%s36]]
  %s38 = scalar_lea.smem %s0, 19
  %s39 = sld [smem:[%s38]]
  %s40 = scalar_lea.smem %s0, 20
  %s41 = sld [smem:[%s40]]
  %s42 = scalar_lea.smem %s0, 21
  %s43 = sld [smem:[%s42]]
  %s44 = scalar_lea.smem %s0, 22
  %s45 = sld [smem:[%s44]]
  %s46 = scalar_lea.smem %s0, 23
  %s47 = sld [smem:[%s46]]
  %s48 = scalar_lea.smem %s0, 24
  %s49 = sld [smem:[%s48]]
  %s50 = scalar_lea.smem %s0, 25
  %s51 = sld [smem:[%s50]]
  %s52 = scalar_lea.smem %s0, 26
  %s53 = sld [smem:[%s52]]
  %s54 = scalar_lea.smem %s0, 27
  %s55 = sld [smem:[%s54]]
  %s56 = scalar_lea.smem %s0, 28
  %s57 = sld [smem:[%s56]]
  %s58 = scalar_lea.smem %s0, 29
  %s59 = sld [smem:[%s58]]
  %s60 = scalar_lea.smem %s0, 30
  %s61 = sld [smem:[%s60]]
  %s62 = scalar_lea.smem %s0, 31
  %s63 = sld [smem:[%s62]]
  %s64 = scalar_lea.smem %s0, 32
  %s65 = sld [smem:[%s64]]
  %s66 = scalar_lea.smem %s0, 33
  %s67 = sld [smem:[%s66]]
  %s68 = scalar_lea.smem %s0, 34
  %s69 = sld [smem:[%s68]]
  %s70 = scalar_lea.smem %s0, 35
  %s71 = sld [smem:[%s70]]
  %s72 = scalar_lea.smem %s0, 36
  %s73 = sld [smem:[%s72]]
  %s74 = scalar_lea.smem %s0, 37
  %s75 = sld [smem:[%s74]]
  %s76 = scalar_lea.smem %s0, 38
  %s77 = sld [smem:[%s76]]
  %s78 = scalar_lea.smem %s0, 39
  %s79 = sld [smem:[%s78]]
  %s80 = scalar_lea.smem %s0, 40
  %s81 = sld [smem:[%s80]]
  %s82 = scalar_lea.smem %s0, 41
  %s83 = sld [smem:[%s82]]
  %s84 = sld [smem:[#allocation0]]
  $region329: #{tpu_custom_call.1} parent=0
    _
  %s86 = ssub.s32 1, %s84
  %s87 = scalar_select 0, %s86, %s84
  $region1: #{tpu_custom_call.1} parent=0
    #allocation2 [shape = 'u8[8192]{0}', space=vmem, size = 0x2000, scoped, tag = 'input window, operand 0']
    #allocation3 [shape = 's32[2]{0}', space=sflag, size = 0x8, scoped, tag = 'scoped memory for tpu_custom_call.1']
    #allocation4 [shape = 's32[2]{0}', space=sflag, size = 0x8, scoped, tag = 'scoped memory for tpu_custom_call.1']
    #allocation5 [shape = 'u8[16384]{0}', space=vmem, size = 0x4000, scoped, tag = 'input window, operand 1']
    #allocation6 [shape = 's32[2]{0}', space=sflag, size = 0x8, scoped, tag = 'scoped memory for tpu_custom_call.1']
    #allocation7 [shape = 'u8[24576]{0}', space=vmem, size = 0x6000, scoped, tag = 'input window, operand 2']
    #allocation8 [shape = 'u8[8192]{0}', space=vmem, size = 0x2000, scoped, tag = 'input window, operand 3']
    #allocation9 [shape = 's32[2]{0}', space=sflag, size = 0x8, scoped, tag = 'scoped memory for tpu_custom_call.1']
    #allocation10 [shape = 'u8[1024]{0}', space=vmem, size = 0x400, scoped, tag = 'input window, operand 4']
    #allocation11 [shape = 'u8[1024]{0}', space=vmem, size = 0x400, scoped, tag = 'input window, operand 5']
    #allocation12 [shape = 's32[2]{0}', space=sflag, size = 0x8, scoped, tag = 'scoped memory for tpu_custom_call.1']
    #allocation13 [shape = 'u8[1024]{0}', space=vmem, size = 0x400, scoped, tag = 'input window, operand 7, single buffered']
    #allocation14 [shape = 'u8[1024]{0}', space=vmem, size = 0x400, scoped, tag = 'input window, operand 8, single buffered']
    #allocation15 [shape = 's32[1]{0}', space=sflag, size = 0x4, scoped, tag = 'scoped memory for tpu_custom_call.1']
    #allocation16 [shape = 'u8[16384]{0}', space=vmem, size = 0x4000, scoped, tag = 'input window, operand 9, single buffered']
    #allocation17 [shape = 'u8[1024]{0}', space=vmem, size = 0x400, scoped, tag = 'input window, operand 10, single buffered']
    #allocation18 [shape = 's32[1]{0}', space=sflag, size = 0x4, scoped, tag = 'scoped memory for tpu_custom_call.1']
    #allocation19 [shape = 'u8[16384]{0}', space=vmem, size = 0x4000, scoped, tag = 'input window, operand 11, single buffered']
    #allocation20 [shape = 'u8[1024]{0}', space=vmem, size = 0x400, scoped, tag = 'input window, operand 12, single buffered']
    #allocation21 [shape = 's32[1]{0}', space=sflag, size = 0x4, scoped, tag = 'scoped memory for tpu_custom_call.1']
    #allocation22 [shape = 'u8[16384]{0}', space=vmem, size = 0x4000, scoped, tag = 'input window, operand 13, single buffered']
    #allocation23 [shape = 'u8[1024]{0}', space=vmem, size = 0x400, scoped, tag = 'input window, operand 14, single buffered']
    #allocation24 [shape = 's32[1]{0}', space=sflag, size = 0x4, scoped, tag = 'scoped memory for tpu_custom_call.1']
    #allocation25 [shape = 'u8[16384]{0}', space=vmem, size = 0x4000, scoped, tag = 'input window, operand 15, single buffered']
    #allocation26 [shape = 'u8[1024]{0}', space=vmem, size = 0x400, scoped, tag = 'input window, operand 16, single buffered']
    #allocation27 [shape = 's32[1]{0}', space=sflag, size = 0x4, scoped, tag = 'scoped memory for tpu_custom_call.1']
    #allocation28 [shape = 'u8[1024]{0}', space=vmem, size = 0x400, scoped, tag = 'input window, operand 17, single buffered']
    #allocation29 [shape = 'u8[1024]{0}', space=vmem, size = 0x400, scoped, tag = 'input window, operand 18, single buffered']
    #allocation30 [shape = 's32[1]{0}', space=sflag, size = 0x4, scoped, tag = 'scoped memory for tpu_custom_call.1']
    #allocation31 [shape = 'u8[1024]{0}', space=vmem, size = 0x400, scoped, tag = 'input window, operand 20, single buffered']
    #allocation32 [shape = 'u8[16384]{0}', space=vmem, size = 0x4000, scoped, tag = 'input window, operand 21, single buffered']
    #allocation33 [shape = 's32[1]{0}', space=sflag, size = 0x4, scoped, tag = 'scoped memory for tpu_custom_call.1']
    #allocation34 [shape = 'u8[1024]{0}', space=vmem, size = 0x400, scoped, tag = 'input window, operand 22, single buffered']
    #allocation35 [shape = 'u8[16384]{0}', space=vmem, size = 0x4000, scoped, tag = 'input window, operand 23, single buffered']
    #allocation36 [shape = 's32[1]{0}', space=sflag, size = 0x4, scoped, tag = 'scoped memory for tpu_custom_call.1']
    #allocation37 [shape = 'u8[1024]{0}', space=vmem, size = 0x400, scoped, tag = 'input window, operand 24, single buffered']
    #allocation38 [shape = 'u8[16384]{0}', space=vmem, size = 0x4000, scoped, tag = 'input window, operand 25, single buffered']
    #allocation39 [shape = 's32[1]{0}', space=sflag, size = 0x4, scoped, tag = 'scoped memory for tpu_custom_call.1']
    #allocation40 [shape = 'u8[1024]{0}', space=vmem, size = 0x400, scoped, tag = 'input window, operand 26, single buffered']
    #allocation41 [shape = 'u8[1024]{0}', space=vmem, size = 0x400, scoped, tag = 'input window, operand 27, single buffered']
    #allocation42 [shape = 's32[1]{0}', space=sflag, size = 0x4, scoped, tag = 'scoped memory for tpu_custom_call.1']
    #allocation43 [shape = 'u8[1024]{0}', space=vmem, size = 0x400, scoped, tag = 'input window, operand 28, single buffered']
    #allocation44 [shape = 'u8[16384]{0}', space=vmem, size = 0x4000, scoped, tag = 'input window, operand 29, single buffered']
    #allocation45 [shape = 's32[1]{0}', space=sflag, size = 0x4, scoped, tag = 'scoped memory for tpu_custom_call.1']
    #allocation46 [shape = 'u8[1024]{0}', space=vmem, size = 0x400, scoped, tag = 'input window, operand 30, single buffered']
    #allocation47 [shape = 'u8[16384]{0}', space=vmem, size = 0x4000, scoped, tag = 'input window, operand 31, single buffered']
    #allocation48 [shape = 's32[1]{0}', space=sflag, size = 0x4, scoped, tag = 'scoped memory for tpu_custom_call.1']
    #allocation49 [shape = 'u8[1024]{0}', space=vmem, size = 0x400, scoped, tag = 'input window, operand 32, single buffered']
    #allocation50 [shape = 'u8[16384]{0}', space=vmem, size = 0x4000, scoped, tag = 'input window, operand 33, single buffered']
    #allocation51 [shape = 's32[1]{0}', space=sflag, size = 0x4, scoped, tag = 'scoped memory for tpu_custom_call.1']
    #allocation52 [shape = 'u8[1024]{0}', space=vmem, size = 0x400, scoped, tag = 'input window, operand 34, single buffered']
    #allocation53 [shape = 'u8[8192]{0}', space=vmem, size = 0x2000, scoped, tag = 'output window, operand 0']
    %88 = vsyncpa [#allocation3], 0
    %s89 = scalar_lea.sflag [#allocation3], 1
    %90 = vsyncpa %s89, 0
    %91 = vsyncpa [#allocation6], 0
    %s92 = scalar_lea.sflag [#allocation6], 1
    %93 = vsyncpa %s92, 0
    %94 = vsyncpa [#allocation9], 0
    %s95 = scalar_lea.sflag [#allocation9], 1
    %96 = vsyncpa %s95, 0
    %97 = vsyncpa [#allocation12], 0
    %s98 = scalar_lea.sflag [#allocation12], 1
    %99 = vsyncpa %s98, 0
    %100 = vsyncpa [#allocation15], 0
    %101 = vsyncpa [#allocation18], 0
    %102 = vsyncpa [#allocation21], 0
    %103 = vsyncpa [#allocation24], 0
    %104 = vsyncpa [#allocation27], 0
    %105 = vsyncpa [#allocation30], 0
    %106 = vsyncpa [#allocation33], 0
    %107 = vsyncpa [#allocation36], 0
    %108 = vsyncpa [#allocation39], 0
    %109 = vsyncpa [#allocation42], 0
    %110 = vsyncpa [#allocation45], 0
    %111 = vsyncpa [#allocation48], 0
    %112 = vsyncpa [#allocation51], 0
    %113 = vsyncpa [#allocation4], 0
    %s114 = scalar_lea.sflag [#allocation4], 1
    %115 = vsyncpa %s114, 0
    loop: start=0, step=1, limit=4
    $region2: #{tpu_custom_call.1} parent=1 // loop_pre_header
      _
    $region3: #{tpu_custom_call.1} parent=1 // loop_header
      %s117 = sphi 0, %s121
      %p118 = scmp.ge.s32.totalorder %s117, 4
      %s127 = sphi 0, %s129
      %s130 = sphi 0, %s127
      %s131 = sphi 0, %s130
      %s147 = sphi 0, %s131
      %s153 = sphi 0, %s155
      %s156 = sphi 0, %s153
      %s157 = sphi 0, %s156
      %s173 = sphi 0, %s157
      %s179 = sphi 0, %s181
      %s182 = sphi 0, %s179
      %s183 = sphi 0, %s182
      %s199 = sphi 0, %s183
      %s205 = sphi 0, %s207
      %s208 = sphi 0, %s205
      %s209 = sphi 0, %s208
      %s225 = sphi 0, %s209
      %s231 = sphi 0, %s233
      %s234 = sphi 0, %s231
      %s235 = sphi 0, %s234
      %s251 = sphi 0, %s235
      %s257 = sphi 0, %s259
      %s260 = sphi 0, %s257
      %s261 = sphi 0, %s260
      %s277 = sphi 0, %s261
      %s281 = sphi 0, %s281
      %s283 = sphi 0, %s281
      %s284 = sphi 0, %s283
      %s298 = sphi 0, %s284
      %s302 = sphi 0, %s302
      %s304 = sphi 0, %s302
      %s305 = sphi 0, %s304
      %s319 = sphi 0, %s305
      %s323 = sphi 0, %s323
      %s325 = sphi 0, %s323
      %s326 = sphi 0, %s325
      %s340 = sphi 0, %s326
      %s344 = sphi 0, %s344
      %s346 = sphi 0, %s344
      %s347 = sphi 0, %s346
      %s361 = sphi 0, %s347
      %s365 = sphi 0, %s365
      %s367 = sphi 0, %s365
      %s368 = sphi 0, %s367
      %s382 = sphi 0, %s368
      %s386 = sphi 0, %s386
      %s388 = sphi 0, %s386
      %s389 = sphi 0, %s388
      %s403 = sphi 0, %s389
      %s407 = sphi 0, %s407
      %s409 = sphi 0, %s407
      %s410 = sphi 0, %s409
      %s424 = sphi 0, %s410
      %s428 = sphi 0, %s428
      %s430 = sphi 0, %s428
      %s431 = sphi 0, %s430
      %s445 = sphi 0, %s431
      %s449 = sphi 0, %s449
      %s451 = sphi 0, %s449
      %s452 = sphi 0, %s451
      %s466 = sphi 0, %s452
      %s470 = sphi 0, %s470
      %s472 = sphi 0, %s470
      %s473 = sphi 0, %s472
      %s487 = sphi 0, %s473
      %s491 = sphi 0, %s491
      %s493 = sphi 0, %s491
      %s494 = sphi 0, %s493
      %s508 = sphi 0, %s494
      %s512 = sphi 0, %s512
      %s514 = sphi 0, %s512
      %s515 = sphi 0, %s514
      %s529 = sphi 0, %s515
      %s533 = sphi 0, %s533
      %s535 = sphi 0, %s533
      %s536 = sphi 0, %s535
      %s550 = sphi 0, %s536
      %s554 = sphi 0, %s554
      %s556 = sphi 0, %s554
      %s557 = sphi 0, %s556
      %s571 = sphi 0, %s557
      %s575 = sphi 0, %s575
      %s577 = sphi 0, %s575
      %s578 = sphi 0, %s577
      %s592 = sphi 0, %s578
      %s596 = sphi 0, %s596
      %s598 = sphi 0, %s596
      %s599 = sphi 0, %s598
      %s613 = sphi 0, %s599
      %s617 = sphi 0, %s617
      %s619 = sphi 0, %s617
      %s620 = sphi 0, %s619
      %s634 = sphi 0, %s620
      %s638 = sphi 0, %s638
      %s640 = sphi 0, %s638
      %s641 = sphi 0, %s640
      %s655 = sphi 0, %s641
      %s659 = sphi 0, %s659
      %s661 = sphi 0, %s659
      %s662 = sphi 0, %s661
      %s676 = sphi 0, %s662
      %s680 = sphi 0, %s680
      %s682 = sphi 0, %s680
      %s683 = sphi 0, %s682
      %s697 = sphi 0, %s683
      %s701 = sphi 0, %s701
      %s703 = sphi 0, %s701
      %s704 = sphi 0, %s703
      %s718 = sphi 0, %s704
      %s722 = sphi 0, %s722
      %s724 = sphi 0, %s722
      %s725 = sphi 0, %s724
      %s739 = sphi 0, %s725
      %s743 = sphi 0, %s743
      %s745 = sphi 0, %s743
      %s746 = sphi 0, %s745
      %s760 = sphi 0, %s746
      %s764 = sphi 0, %s764
      %s766 = sphi 0, %s764
      %s767 = sphi 0, %s766
      %s781 = sphi 0, %s767
      %s785 = sphi 0, %s785
      %s787 = sphi 0, %s785
      %s788 = sphi 0, %s787
      %s802 = sphi 0, %s788
      %s806 = sphi 0, %s806
      %s808 = sphi 0, %s806
      %s809 = sphi 0, %s808
      %s823 = sphi 0, %s809
      %s827 = sphi 0, %s827
      %s829 = sphi 0, %s827
      %s830 = sphi 0, %s829
      %s844 = sphi 0, %s830
      %s848 = sphi 0, %s848
      %s850 = sphi 0, %s848
      %s851 = sphi 0, %s850
      %s865 = sphi 0, %s851
      %s869 = sphi 0, %s869
      %s871 = sphi 0, %s869
      %s872 = sphi 0, %s871
      %s886 = sphi 0, %s872
      %s890 = sphi 0, %s890
      %s892 = sphi 0, %s890
      %s893 = sphi 0, %s892
      %s907 = sphi 0, %s893
      %s911 = sphi 0, %s911
      %s913 = sphi 0, %s911
      %s914 = sphi 0, %s913
      %s928 = sphi 0, %s914
      %s932 = sphi 0, %s932
      %s934 = sphi 0, %s932
      %s935 = sphi 0, %s934
      %s949 = sphi 0, %s935
      %s953 = sphi 0, %s953
      %s955 = sphi 0, %s953
      %s956 = sphi 0, %s955
      %s970 = sphi 0, %s956
      %s974 = sphi 0, %s974
      %s976 = sphi 0, %s974
      %s977 = sphi 0, %s976
      %s991 = sphi 0, %s977
      %s995 = sphi 0, %s995
      %s997 = sphi 0, %s995
      %s998 = sphi 0, %s997
      %s1012 = sphi 0, %s998
      %s1018 = sphi 0, %s1020
      %s1021 = sphi 0, %s1018
      %s1022 = sphi 0, %s1021
      %s1038 = sphi 0, %s1022
    $region4: #{tpu_custom_call.1} parent=1 // loop_header_branch
      %120 = sbr.rel (%p118) target = $region8
    $region5: #{tpu_custom_call.1} parent=1 // loop_body
      %s122 = ssub.s32 %s117, 1
      %s123 = ssub.s32 %s117, 2
      %s124 = sadd.s32 %s117, 1
      %s125 = ssub.s32 %s117, %s124
      %p126 = scmp.eq.s32.totalorder %s125, 0
      %s128 = sadd.s32 %s127, 1
      %s129 = scalar_select %p126, %s127, %s128
      %p132 = pneg %p126
      %p133 = scmp.eq.s32.totalorder %s117, 1
      %p134 = por %p132, %p133
      %p135 = scmp.ne.s32.totalorder %s127, %s130
      %p136 = scmp.eq.s32.totalorder %s117, 0
      %p137 = por %p135, %p136
      %p138 = scmp.ne.s32.totalorder %s127, %s130
      %p139 = scmp.eq.s32.totalorder %s122, 1
      %p140 = por %p138, %p139
      %p141 = scmp.ne.s32.totalorder %s130, %s131
      %p142 = scmp.eq.s32.totalorder %s122, 0
      %p143 = por %p141, %p142
      %p144 = scmp.ne.s32.totalorder %s130, %s131
      %p145 = scmp.eq.s32.totalorder %s123, 1
      %p146 = por %p144, %p145
      %p148 = scmp.ne.s32.totalorder %s131, %s147
      %p149 = scmp.eq.s32.totalorder %s123, 0
      %p150 = por %p148, %p149
      %s151 = ssub.s32 %s117, %s124
      %p152 = scmp.eq.s32.totalorder %s151, 0
      %s154 = sadd.s32 %s153, 1
      %s155 = scalar_select %p152, %s153, %s154
      %p158 = pneg %p152
      %p159 = scmp.eq.s32.totalorder %s117, 1
      %p160 = por %p158, %p159
      %p161 = scmp.ne.s32.totalorder %s153, %s156
      %p162 = scmp.eq.s32.totalorder %s117, 0
      %p163 = por %p161, %p162
      %p164 = scmp.ne.s32.totalorder %s153, %s156
      %p165 = scmp.eq.s32.totalorder %s122, 1
      %p166 = por %p164, %p165
      %p167 = scmp.ne.s32.totalorder %s156, %s157
      %p168 = scmp.eq.s32.totalorder %s122, 0
      %p169 = por %p167, %p168
      %p170 = scmp.ne.s32.totalorder %s156, %s157
      %p171 = scmp.eq.s32.totalorder %s123, 1
      %p172 = por %p170, %p171
      %p174 = scmp.ne.s32.totalorder %s157, %s173
      %p175 = scmp.eq.s32.totalorder %s123, 0
      %p176 = por %p174, %p175
      %s177 = ssub.s32 %s117, %s124
      %p178 = scmp.eq.s32.totalorder %s177, 0
      %s180 = sadd.s32 %s179, 1
      %s181 = scalar_select %p178, %s179, %s180
      %p184 = pneg %p178
      %p185 = scmp.eq.s32.totalorder %s117, 1
      %p186 = por %p184, %p185
      %p187 = scmp.ne.s32.totalorder %s179, %s182
      %p188 = scmp.eq.s32.totalorder %s117, 0
      %p189 = por %p187, %p188
      %p190 = scmp.ne.s32.totalorder %s179, %s182
      %p191 = scmp.eq.s32.totalorder %s122, 1
      %p192 = por %p190, %p191
      %p193 = scmp.ne.s32.totalorder %s182, %s183
      %p194 = scmp.eq.s32.totalorder %s122, 0
      %p195 = por %p193, %p194
      %p196 = scmp.ne.s32.totalorder %s182, %s183
      %p197 = scmp.eq.s32.totalorder %s123, 1
      %p198 = por %p196, %p197
      %p200 = scmp.ne.s32.totalorder %s183, %s199
      %p201 = scmp.eq.s32.totalorder %s123, 0
      %p202 = por %p200, %p201
      %s203 = ssub.s32 %s117, %s124
      %p204 = scmp.eq.s32.totalorder %s203, 0
      %s206 = sadd.s32 %s205, 1
      %s207 = scalar_select %p204, %s205, %s206
      %p210 = pneg %p204
      %p211 = scmp.eq.s32.totalorder %s117, 1
      %p212 = por %p210, %p211
      %p213 = scmp.ne.s32.totalorder %s205, %s208
      %p214 = scmp.eq.s32.totalorder %s117, 0
      %p215 = por %p213, %p214
      %p216 = scmp.ne.s32.totalorder %s205, %s208
      %p217 = scmp.eq.s32.totalorder %s122, 1
      %p218 = por %p216, %p217
      %p219 = scmp.ne.s32.totalorder %s208, %s209
      %p220 = scmp.eq.s32.totalorder %s122, 0
      %p221 = por %p219, %p220
      %p222 = scmp.ne.s32.totalorder %s208, %s209
      %p223 = scmp.eq.s32.totalorder %s123, 1
      %p224 = por %p222, %p223
      %p226 = scmp.ne.s32.totalorder %s209, %s225
      %p227 = scmp.eq.s32.totalorder %s123, 0
      %p228 = por %p226, %p227
      %s229 = ssub.s32 %s117, %s124
      %p230 = scmp.eq.s32.totalorder %s229, 0
      %s232 = sadd.s32 %s231, 1
      %s233 = scalar_select %p230, %s231, %s232
      %p236 = pneg %p230
      %p237 = scmp.eq.s32.totalorder %s117, 1
      %p238 = por %p236, %p237
      %p239 = scmp.ne.s32.totalorder %s231, %s234
      %p240 = scmp.eq.s32.totalorder %s117, 0
      %p241 = por %p239, %p240
      %p242 = scmp.ne.s32.totalorder %s231, %s234
      %p243 = scmp.eq.s32.totalorder %s122, 1
      %p244 = por %p242, %p243
      %p245 = scmp.ne.s32.totalorder %s234, %s235
      %p246 = scmp.eq.s32.totalorder %s122, 0
      %p247 = por %p245, %p246
      %p248 = scmp.ne.s32.totalorder %s234, %s235
      %p249 = scmp.eq.s32.totalorder %s123, 1
      %p250 = por %p248, %p249
      %p252 = scmp.ne.s32.totalorder %s235, %s251
      %p253 = scmp.eq.s32.totalorder %s123, 0
      %p254 = por %p252, %p253
      %s255 = ssub.s32 %s117, %s124
      %p256 = scmp.eq.s32.totalorder %s255, 0
      %s258 = sadd.s32 %s257, 1
      %s259 = scalar_select %p256, %s257, %s258
      %p262 = pneg %p256
      %p263 = scmp.eq.s32.totalorder %s117, 1
      %p264 = por %p262, %p263
      %p265 = scmp.ne.s32.totalorder %s257, %s260
      %p266 = scmp.eq.s32.totalorder %s117, 0
      %p267 = por %p265, %p266
      %p268 = scmp.ne.s32.totalorder %s257, %s260
      %p269 = scmp.eq.s32.totalorder %s122, 1
      %p270 = por %p268, %p269
      %p271 = scmp.ne.s32.totalorder %s260, %s261
      %p272 = scmp.eq.s32.totalorder %s122, 0
      %p273 = por %p271, %p272
      %p274 = scmp.ne.s32.totalorder %s260, %s261
      %p275 = scmp.eq.s32.totalorder %s123, 1
      %p276 = por %p274, %p275
      %p278 = scmp.ne.s32.totalorder %s261, %s277
      %p279 = scmp.eq.s32.totalorder %s123, 0
      %p280 = por %p278, %p279
      %s282 = sadd.s32 %s281, 1
      %p285 = scmp.eq.s32.totalorder %s117, 1
      %p286 = scmp.ne.s32.totalorder %s281, %s283
      %p287 = scmp.eq.s32.totalorder %s117, 0
      %p288 = por %p286, %p287
      %p289 = scmp.ne.s32.totalorder %s281, %s283
      %p290 = scmp.eq.s32.totalorder %s122, 1
      %p291 = por %p289, %p290
      %p292 = scmp.ne.s32.totalorder %s283, %s284
      %p293 = scmp.eq.s32.totalorder %s122, 0
      %p294 = por %p292, %p293
      %p295 = scmp.ne.s32.totalorder %s283, %s284
      %p296 = scmp.eq.s32.totalorder %s123, 1
      %p297 = por %p295, %p296
      %p299 = scmp.ne.s32.totalorder %s284, %s298
      %p300 = scmp.eq.s32.totalorder %s123, 0
      %p301 = por %p299, %p300
      %s303 = sadd.s32 %s302, 1
      %p306 = scmp.eq.s32.totalorder %s117, 1
      %p307 = scmp.ne.s32.totalorder %s302, %s304
      %p308 = scmp.eq.s32.totalorder %s117, 0
      %p309 = por %p307, %p308
      %p310 = scmp.ne.s32.totalorder %s302, %s304
      %p311 = scmp.eq.s32.totalorder %s122, 1
      %p312 = por %p310, %p311
      %p313 = scmp.ne.s32.totalorder %s304, %s305
      %p314 = scmp.eq.s32.totalorder %s122, 0
      %p315 = por %p313, %p314
      %p316 = scmp.ne.s32.totalorder %s304, %s305
      %p317 = scmp.eq.s32.totalorder %s123, 1
      %p318 = por %p316, %p317
      %p320 = scmp.ne.s32.totalorder %s305, %s319
      %p321 = scmp.eq.s32.totalorder %s123, 0
      %p322 = por %p320, %p321
      %s324 = sadd.s32 %s323, 1
      %p327 = scmp.eq.s32.totalorder %s117, 1
      %p328 = scmp.ne.s32.totalorder %s323, %s325
      %p329 = scmp.eq.s32.totalorder %s117, 0
      %p330 = por %p328, %p329
      %p331 = scmp.ne.s32.totalorder %s323, %s325
      %p332 = scmp.eq.s32.totalorder %s122, 1
      %p333 = por %p331, %p332
      %p334 = scmp.ne.s32.totalorder %s325, %s326
      %p335 = scmp.eq.s32.totalorder %s122, 0
      %p336 = por %p334, %p335
      %p337 = scmp.ne.s32.totalorder %s325, %s326
      %p338 = scmp.eq.s32.totalorder %s123, 1
      %p339 = por %p337, %p338
      %p341 = scmp.ne.s32.totalorder %s326, %s340
      %p342 = scmp.eq.s32.totalorder %s123, 0
      %p343 = por %p341, %p342
      %s345 = sadd.s32 %s344, 1
      %p348 = scmp.eq.s32.totalorder %s117, 1
      %p349 = scmp.ne.s32.totalorder %s344, %s346
      %p350 = scmp.eq.s32.totalorder %s117, 0
      %p351 = por %p349, %p350
      %p352 = scmp.ne.s32.totalorder %s344, %s346
      %p353 = scmp.eq.s32.totalorder %s122, 1
      %p354 = por %p352, %p353
      %p355 = scmp.ne.s32.totalorder %s346, %s347
      %p356 = scmp.eq.s32.totalorder %s122, 0
      %p357 = por %p355, %p356
      %p358 = scmp.ne.s32.totalorder %s346, %s347
      %p359 = scmp.eq.s32.totalorder %s123, 1
      %p360 = por %p358, %p359
      %p362 = scmp.ne.s32.totalorder %s347, %s361
      %p363 = scmp.eq.s32.totalorder %s123, 0
      %p364 = por %p362, %p363
      %s366 = sadd.s32 %s365, 1
      %p369 = scmp.eq.s32.totalorder %s117, 1
      %p370 = scmp.ne.s32.totalorder %s365, %s367
      %p371 = scmp.eq.s32.totalorder %s117, 0
      %p372 = por %p370, %p371
      %p373 = scmp.ne.s32.totalorder %s365, %s367
      %p374 = scmp.eq.s32.totalorder %s122, 1
      %p375 = por %p373, %p374
      %p376 = scmp.ne.s32.totalorder %s367, %s368
      %p377 = scmp.eq.s32.totalorder %s122, 0
      %p378 = por %p376, %p377
      %p379 = scmp.ne.s32.totalorder %s367, %s368
      %p380 = scmp.eq.s32.totalorder %s123, 1
      %p381 = por %p379, %p380
      %p383 = scmp.ne.s32.totalorder %s368, %s382
      %p384 = scmp.eq.s32.totalorder %s123, 0
      %p385 = por %p383, %p384
      %s387 = sadd.s32 %s386, 1
      %p390 = scmp.eq.s32.totalorder %s117, 1
      %p391 = scmp.ne.s32.totalorder %s386, %s388
      %p392 = scmp.eq.s32.totalorder %s117, 0
      %p393 = por %p391, %p392
      %p394 = scmp.ne.s32.totalorder %s386, %s388
      %p395 = scmp.eq.s32.totalorder %s122, 1
      %p396 = por %p394, %p395
      %p397 = scmp.ne.s32.totalorder %s388, %s389
      %p398 = scmp.eq.s32.totalorder %s122, 0
      %p399 = por %p397, %p398
      %p400 = scmp.ne.s32.totalorder %s388, %s389
      %p401 = scmp.eq.s32.totalorder %s123, 1
      %p402 = por %p400, %p401
      %p404 = scmp.ne.s32.totalorder %s389, %s403
      %p405 = scmp.eq.s32.totalorder %s123, 0
      %p406 = por %p404, %p405
      %s408 = sadd.s32 %s407, 1
      %p411 = scmp.eq.s32.totalorder %s117, 1
      %p412 = scmp.ne.s32.totalorder %s407, %s409
      %p413 = scmp.eq.s32.totalorder %s117, 0
      %p414 = por %p412, %p413
      %p415 = scmp.ne.s32.totalorder %s407, %s409
      %p416 = scmp.eq.s32.totalorder %s122, 1
      %p417 = por %p415, %p416
      %p418 = scmp.ne.s32.totalorder %s409, %s410
      %p419 = scmp.eq.s32.totalorder %s122, 0
      %p420 = por %p418, %p419
      %p421 = scmp.ne.s32.totalorder %s409, %s410
      %p422 = scmp.eq.s32.totalorder %s123, 1
      %p423 = por %p421, %p422
      %p425 = scmp.ne.s32.totalorder %s410, %s424
      %p426 = scmp.eq.s32.totalorder %s123, 0
      %p427 = por %p425, %p426
      %s429 = sadd.s32 %s428, 1
      %p432 = scmp.eq.s32.totalorder %s117, 1
      %p433 = scmp.ne.s32.totalorder %s428, %s430
      %p434 = scmp.eq.s32.totalorder %s117, 0
      %p435 = por %p433, %p434
      %p436 = scmp.ne.s32.totalorder %s428, %s430
      %p437 = scmp.eq.s32.totalorder %s122, 1
      %p438 = por %p436, %p437
      %p439 = scmp.ne.s32.totalorder %s430, %s431
      %p440 = scmp.eq.s32.totalorder %s122, 0
      %p441 = por %p439, %p440
      %p442 = scmp.ne.s32.totalorder %s430, %s431
      %p443 = scmp.eq.s32.totalorder %s123, 1
      %p444 = por %p442, %p443
      %p446 = scmp.ne.s32.totalorder %s431, %s445
      %p447 = scmp.eq.s32.totalorder %s123, 0
      %p448 = por %p446, %p447
      %s450 = sadd.s32 %s449, 1
      %p453 = scmp.eq.s32.totalorder %s117, 1
      %p454 = scmp.ne.s32.totalorder %s449, %s451
      %p455 = scmp.eq.s32.totalorder %s117, 0
      %p456 = por %p454, %p455
      %p457 = scmp.ne.s32.totalorder %s449, %s451
      %p458 = scmp.eq.s32.totalorder %s122, 1
      %p459 = por %p457, %p458
      %p460 = scmp.ne.s32.totalorder %s451, %s452
      %p461 = scmp.eq.s32.totalorder %s122, 0
      %p462 = por %p460, %p461
      %p463 = scmp.ne.s32.totalorder %s451, %s452
      %p464 = scmp.eq.s32.totalorder %s123, 1
      %p465 = por %p463, %p464
      %p467 = scmp.ne.s32.totalorder %s452, %s466
      %p468 = scmp.eq.s32.totalorder %s123, 0
      %p469 = por %p467, %p468
      %s471 = sadd.s32 %s470, 1
      %p474 = scmp.eq.s32.totalorder %s117, 1
      %p475 = scmp.ne.s32.totalorder %s470, %s472
      %p476 = scmp.eq.s32.totalorder %s117, 0
      %p477 = por %p475, %p476
      %p478 = scmp.ne.s32.totalorder %s470, %s472
      %p479 = scmp.eq.s32.totalorder %s122, 1
      %p480 = por %p478, %p479
      %p481 = scmp.ne.s32.totalorder %s472, %s473
      %p482 = scmp.eq.s32.totalorder %s122, 0
      %p483 = por %p481, %p482
      %p484 = scmp.ne.s32.totalorder %s472, %s473
      %p485 = scmp.eq.s32.totalorder %s123, 1
      %p486 = por %p484, %p485
      %p488 = scmp.ne.s32.totalorder %s473, %s487
      %p489 = scmp.eq.s32.totalorder %s123, 0
      %p490 = por %p488, %p489
      %s492 = sadd.s32 %s491, 1
      %p495 = scmp.eq.s32.totalorder %s117, 1
      %p496 = scmp.ne.s32.totalorder %s491, %s493
      %p497 = scmp.eq.s32.totalorder %s117, 0
      %p498 = por %p496, %p497
      %p499 = scmp.ne.s32.totalorder %s491, %s493
      %p500 = scmp.eq.s32.totalorder %s122, 1
      %p501 = por %p499, %p500
      %p502 = scmp.ne.s32.totalorder %s493, %s494
      %p503 = scmp.eq.s32.totalorder %s122, 0
      %p504 = por %p502, %p503
      %p505 = scmp.ne.s32.totalorder %s493, %s494
      %p506 = scmp.eq.s32.totalorder %s123, 1
      %p507 = por %p505, %p506
      %p509 = scmp.ne.s32.totalorder %s494, %s508
      %p510 = scmp.eq.s32.totalorder %s123, 0
      %p511 = por %p509, %p510
      %s513 = sadd.s32 %s512, 1
      %p516 = scmp.eq.s32.totalorder %s117, 1
      %p517 = scmp.ne.s32.totalorder %s512, %s514
      %p518 = scmp.eq.s32.totalorder %s117, 0
      %p519 = por %p517, %p518
      %p520 = scmp.ne.s32.totalorder %s512, %s514
      %p521 = scmp.eq.s32.totalorder %s122, 1
      %p522 = por %p520, %p521
      %p523 = scmp.ne.s32.totalorder %s514, %s515
      %p524 = scmp.eq.s32.totalorder %s122, 0
      %p525 = por %p523, %p524
      %p526 = scmp.ne.s32.totalorder %s514, %s515
      %p527 = scmp.eq.s32.totalorder %s123, 1
      %p528 = por %p526, %p527
      %p530 = scmp.ne.s32.totalorder %s515, %s529
      %p531 = scmp.eq.s32.totalorder %s123, 0
      %p532 = por %p530, %p531
      %s534 = sadd.s32 %s533, 1
      %p537 = scmp.eq.s32.totalorder %s117, 1
      %p538 = scmp.ne.s32.totalorder %s533, %s535
      %p539 = scmp.eq.s32.totalorder %s117, 0
      %p540 = por %p538, %p539
      %p541 = scmp.ne.s32.totalorder %s533, %s535
      %p542 = scmp.eq.s32.totalorder %s122, 1
      %p543 = por %p541, %p542
      %p544 = scmp.ne.s32.totalorder %s535, %s536
      %p545 = scmp.eq.s32.totalorder %s122, 0
      %p546 = por %p544, %p545
      %p547 = scmp.ne.s32.totalorder %s535, %s536
      %p548 = scmp.eq.s32.totalorder %s123, 1
      %p549 = por %p547, %p548
      %p551 = scmp.ne.s32.totalorder %s536, %s550
      %p552 = scmp.eq.s32.totalorder %s123, 0
      %p553 = por %p551, %p552
      %s555 = sadd.s32 %s554, 1
      %p558 = scmp.eq.s32.totalorder %s117, 1
      %p559 = scmp.ne.s32.totalorder %s554, %s556
      %p560 = scmp.eq.s32.totalorder %s117, 0
      %p561 = por %p559, %p560
      %p562 = scmp.ne.s32.totalorder %s554, %s556
      %p563 = scmp.eq.s32.totalorder %s122, 1
      %p564 = por %p562, %p563
      %p565 = scmp.ne.s32.totalorder %s556, %s557
      %p566 = scmp.eq.s32.totalorder %s122, 0
      %p567 = por %p565, %p566
      %p568 = scmp.ne.s32.totalorder %s556, %s557
      %p569 = scmp.eq.s32.totalorder %s123, 1
      %p570 = por %p568, %p569
      %p572 = scmp.ne.s32.totalorder %s557, %s571
      %p573 = scmp.eq.s32.totalorder %s123, 0
      %p574 = por %p572, %p573
      %s576 = sadd.s32 %s575, 1
      %p579 = scmp.eq.s32.totalorder %s117, 1
      %p580 = scmp.ne.s32.totalorder %s575, %s577
      %p581 = scmp.eq.s32.totalorder %s117, 0
      %p582 = por %p580, %p581
      %p583 = scmp.ne.s32.totalorder %s575, %s577
      %p584 = scmp.eq.s32.totalorder %s122, 1
      %p585 = por %p583, %p584
      %p586 = scmp.ne.s32.totalorder %s577, %s578
      %p587 = scmp.eq.s32.totalorder %s122, 0
      %p588 = por %p586, %p587
      %p589 = scmp.ne.s32.totalorder %s577, %s578
      %p590 = scmp.eq.s32.totalorder %s123, 1
      %p591 = por %p589, %p590
      %p593 = scmp.ne.s32.totalorder %s578, %s592
      %p594 = scmp.eq.s32.totalorder %s123, 0
      %p595 = por %p593, %p594
      %s597 = sadd.s32 %s596, 1
      %p600 = scmp.eq.s32.totalorder %s117, 1
      %p601 = scmp.ne.s32.totalorder %s596, %s598
      %p602 = scmp.eq.s32.totalorder %s117, 0
      %p603 = por %p601, %p602
      %p604 = scmp.ne.s32.totalorder %s596, %s598
      %p605 = scmp.eq.s32.totalorder %s122, 1
      %p606 = por %p604, %p605
      %p607 = scmp.ne.s32.totalorder %s598, %s599
      %p608 = scmp.eq.s32.totalorder %s122, 0
      %p609 = por %p607, %p608
      %p610 = scmp.ne.s32.totalorder %s598, %s599
      %p611 = scmp.eq.s32.totalorder %s123, 1
      %p612 = por %p610, %p611
      %p614 = scmp.ne.s32.totalorder %s599, %s613
      %p615 = scmp.eq.s32.totalorder %s123, 0
      %p616 = por %p614, %p615
      %s618 = sadd.s32 %s617, 1
      %p621 = scmp.eq.s32.totalorder %s117, 1
      %p622 = scmp.ne.s32.totalorder %s617, %s619
      %p623 = scmp.eq.s32.totalorder %s117, 0
      %p624 = por %p622, %p623
      %p625 = scmp.ne.s32.totalorder %s617, %s619
      %p626 = scmp.eq.s32.totalorder %s122, 1
      %p627 = por %p625, %p626
      %p628 = scmp.ne.s32.totalorder %s619, %s620
      %p629 = scmp.eq.s32.totalorder %s122, 0
      %p630 = por %p628, %p629
      %p631 = scmp.ne.s32.totalorder %s619, %s620
      %p632 = scmp.eq.s32.totalorder %s123, 1
      %p633 = por %p631, %p632
      %p635 = scmp.ne.s32.totalorder %s620, %s634
      %p636 = scmp.eq.s32.totalorder %s123, 0
      %p637 = por %p635, %p636
      %s639 = sadd.s32 %s638, 1
      %p642 = scmp.eq.s32.totalorder %s117, 1
      %p643 = scmp.ne.s32.totalorder %s638, %s640
      %p644 = scmp.eq.s32.totalorder %s117, 0
      %p645 = por %p643, %p644
      %p646 = scmp.ne.s32.totalorder %s638, %s640
      %p647 = scmp.eq.s32.totalorder %s122, 1
      %p648 = por %p646, %p647
      %p649 = scmp.ne.s32.totalorder %s640, %s641
      %p650 = scmp.eq.s32.totalorder %s122, 0
      %p651 = por %p649, %p650
      %p652 = scmp.ne.s32.totalorder %s640, %s641
      %p653 = scmp.eq.s32.totalorder %s123, 1
      %p654 = por %p652, %p653
      %p656 = scmp.ne.s32.totalorder %s641, %s655
      %p657 = scmp.eq.s32.totalorder %s123, 0
      %p658 = por %p656, %p657
      %s660 = sadd.s32 %s659, 1
      %p663 = scmp.eq.s32.totalorder %s117, 1
      %p664 = scmp.ne.s32.totalorder %s659, %s661
      %p665 = scmp.eq.s32.totalorder %s117, 0
      %p666 = por %p664, %p665
      %p667 = scmp.ne.s32.totalorder %s659, %s661
      %p668 = scmp.eq.s32.totalorder %s122, 1
      %p669 = por %p667, %p668
      %p670 = scmp.ne.s32.totalorder %s661, %s662
      %p671 = scmp.eq.s32.totalorder %s122, 0
      %p672 = por %p670, %p671
      %p673 = scmp.ne.s32.totalorder %s661, %s662
      %p674 = scmp.eq.s32.totalorder %s123, 1
      %p675 = por %p673, %p674
      %p677 = scmp.ne.s32.totalorder %s662, %s676
      %p678 = scmp.eq.s32.totalorder %s123, 0
      %p679 = por %p677, %p678
      %s681 = sadd.s32 %s680, 1
      %p684 = scmp.eq.s32.totalorder %s117, 1
      %p685 = scmp.ne.s32.totalorder %s680, %s682
      %p686 = scmp.eq.s32.totalorder %s117, 0
      %p687 = por %p685, %p686
      %p688 = scmp.ne.s32.totalorder %s680, %s682
      %p689 = scmp.eq.s32.totalorder %s122, 1
      %p690 = por %p688, %p689
      %p691 = scmp.ne.s32.totalorder %s682, %s683
      %p692 = scmp.eq.s32.totalorder %s122, 0
      %p693 = por %p691, %p692
      %p694 = scmp.ne.s32.totalorder %s682, %s683
      %p695 = scmp.eq.s32.totalorder %s123, 1
      %p696 = por %p694, %p695
      %p698 = scmp.ne.s32.totalorder %s683, %s697
      %p699 = scmp.eq.s32.totalorder %s123, 0
      %p700 = por %p698, %p699
      %s702 = sadd.s32 %s701, 1
      %p705 = scmp.eq.s32.totalorder %s117, 1
      %p706 = scmp.ne.s32.totalorder %s701, %s703
      %p707 = scmp.eq.s32.totalorder %s117, 0
      %p708 = por %p706, %p707
      %p709 = scmp.ne.s32.totalorder %s701, %s703
      %p710 = scmp.eq.s32.totalorder %s122, 1
      %p711 = por %p709, %p710
      %p712 = scmp.ne.s32.totalorder %s703, %s704
      %p713 = scmp.eq.s32.totalorder %s122, 0
      %p714 = por %p712, %p713
      %p715 = scmp.ne.s32.totalorder %s703, %s704
      %p716 = scmp.eq.s32.totalorder %s123, 1
      %p717 = por %p715, %p716
      %p719 = scmp.ne.s32.totalorder %s704, %s718
      %p720 = scmp.eq.s32.totalorder %s123, 0
      %p721 = por %p719, %p720
      %s723 = sadd.s32 %s722, 1
      %p726 = scmp.eq.s32.totalorder %s117, 1
      %p727 = scmp.ne.s32.totalorder %s722, %s724
      %p728 = scmp.eq.s32.totalorder %s117, 0
      %p729 = por %p727, %p728
      %p730 = scmp.ne.s32.totalorder %s722, %s724
      %p731 = scmp.eq.s32.totalorder %s122, 1
      %p732 = por %p730, %p731
      %p733 = scmp.ne.s32.totalorder %s724, %s725
      %p734 = scmp.eq.s32.totalorder %s122, 0
      %p735 = por %p733, %p734
      %p736 = scmp.ne.s32.totalorder %s724, %s725
      %p737 = scmp.eq.s32.totalorder %s123, 1
      %p738 = por %p736, %p737
      %p740 = scmp.ne.s32.totalorder %s725, %s739
      %p741 = scmp.eq.s32.totalorder %s123, 0
      %p742 = por %p740, %p741
      %s744 = sadd.s32 %s743, 1
      %p747 = scmp.eq.s32.totalorder %s117, 1
      %p748 = scmp.ne.s32.totalorder %s743, %s745
      %p749 = scmp.eq.s32.totalorder %s117, 0
      %p750 = por %p748, %p749
      %p751 = scmp.ne.s32.totalorder %s743, %s745
      %p752 = scmp.eq.s32.totalorder %s122, 1
      %p753 = por %p751, %p752
      %p754 = scmp.ne.s32.totalorder %s745, %s746
      %p755 = scmp.eq.s32.totalorder %s122, 0
      %p756 = por %p754, %p755
      %p757 = scmp.ne.s32.totalorder %s745, %s746
      %p758 = scmp.eq.s32.totalorder %s123, 1
      %p759 = por %p757, %p758
      %p761 = scmp.ne.s32.totalorder %s746, %s760
      %p762 = scmp.eq.s32.totalorder %s123, 0
      %p763 = por %p761, %p762
      %s765 = sadd.s32 %s764, 1
      %p768 = scmp.eq.s32.totalorder %s117, 1
      %p769 = scmp.ne.s32.totalorder %s764, %s766
      %p770 = scmp.eq.s32.totalorder %s117, 0
      %p771 = por %p769, %p770
      %p772 = scmp.ne.s32.totalorder %s764, %s766
      %p773 = scmp.eq.s32.totalorder %s122, 1
      %p774 = por %p772, %p773
      %p775 = scmp.ne.s32.totalorder %s766, %s767
      %p776 = scmp.eq.s32.totalorder %s122, 0
      %p777 = por %p775, %p776
      %p778 = scmp.ne.s32.totalorder %s766, %s767
      %p779 = scmp.eq.s32.totalorder %s123, 1
      %p780 = por %p778, %p779
      %p782 = scmp.ne.s32.totalorder %s767, %s781
      %p783 = scmp.eq.s32.totalorder %s123, 0
      %p784 = por %p782, %p783
      %s786 = sadd.s32 %s785, 1
      %p789 = scmp.eq.s32.totalorder %s117, 1
      %p790 = scmp.ne.s32.totalorder %s785, %s787
      %p791 = scmp.eq.s32.totalorder %s117, 0
      %p792 = por %p790, %p791
      %p793 = scmp.ne.s32.totalorder %s785, %s787
      %p794 = scmp.eq.s32.totalorder %s122, 1
      %p795 = por %p793, %p794
      %p796 = scmp.ne.s32.totalorder %s787, %s788
      %p797 = scmp.eq.s32.totalorder %s122, 0
      %p798 = por %p796, %p797
      %p799 = scmp.ne.s32.totalorder %s787, %s788
      %p800 = scmp.eq.s32.totalorder %s123, 1
      %p801 = por %p799, %p800
      %p803 = scmp.ne.s32.totalorder %s788, %s802
      %p804 = scmp.eq.s32.totalorder %s123, 0
      %p805 = por %p803, %p804
      %s807 = sadd.s32 %s806, 1
      %p810 = scmp.eq.s32.totalorder %s117, 1
      %p811 = scmp.ne.s32.totalorder %s806, %s808
      %p812 = scmp.eq.s32.totalorder %s117, 0
      %p813 = por %p811, %p812
      %p814 = scmp.ne.s32.totalorder %s806, %s808
      %p815 = scmp.eq.s32.totalorder %s122, 1
      %p816 = por %p814, %p815
      %p817 = scmp.ne.s32.totalorder %s808, %s809
      %p818 = scmp.eq.s32.totalorder %s122, 0
      %p819 = por %p817, %p818
      %p820 = scmp.ne.s32.totalorder %s808, %s809
      %p821 = scmp.eq.s32.totalorder %s123, 1
      %p822 = por %p820, %p821
      %p824 = scmp.ne.s32.totalorder %s809, %s823
      %p825 = scmp.eq.s32.totalorder %s123, 0
      %p826 = por %p824, %p825
      %s828 = sadd.s32 %s827, 1
      %p831 = scmp.eq.s32.totalorder %s117, 1
      %p832 = scmp.ne.s32.totalorder %s827, %s829
      %p833 = scmp.eq.s32.totalorder %s117, 0
      %p834 = por %p832, %p833
      %p835 = scmp.ne.s32.totalorder %s827, %s829
      %p836 = scmp.eq.s32.totalorder %s122, 1
      %p837 = por %p835, %p836
      %p838 = scmp.ne.s32.totalorder %s829, %s830
      %p839 = scmp.eq.s32.totalorder %s122, 0
      %p840 = por %p838, %p839
      %p841 = scmp.ne.s32.totalorder %s829, %s830
      %p842 = scmp.eq.s32.totalorder %s123, 1
      %p843 = por %p841, %p842
      %p845 = scmp.ne.s32.totalorder %s830, %s844
      %p846 = scmp.eq.s32.totalorder %s123, 0
      %p847 = por %p845, %p846
      %s849 = sadd.s32 %s848, 1
      %p852 = scmp.eq.s32.totalorder %s117, 1
      %p853 = scmp.ne.s32.totalorder %s848, %s850
      %p854 = scmp.eq.s32.totalorder %s117, 0
      %p855 = por %p853, %p854
      %p856 = scmp.ne.s32.totalorder %s848, %s850
      %p857 = scmp.eq.s32.totalorder %s122, 1
      %p858 = por %p856, %p857
      %p859 = scmp.ne.s32.totalorder %s850, %s851
      %p860 = scmp.eq.s32.totalorder %s122, 0
      %p861 = por %p859, %p860
      %p862 = scmp.ne.s32.totalorder %s850, %s851
      %p863 = scmp.eq.s32.totalorder %s123, 1
      %p864 = por %p862, %p863
      %p866 = scmp.ne.s32.totalorder %s851, %s865
      %p867 = scmp.eq.s32.totalorder %s123, 0
      %p868 = por %p866, %p867
      %s870 = sadd.s32 %s869, 1
      %p873 = scmp.eq.s32.totalorder %s117, 1
      %p874 = scmp.ne.s32.totalorder %s869, %s871
      %p875 = scmp.eq.s32.totalorder %s117, 0
      %p876 = por %p874, %p875
      %p877 = scmp.ne.s32.totalorder %s869, %s871
      %p878 = scmp.eq.s32.totalorder %s122, 1
      %p879 = por %p877, %p878
      %p880 = scmp.ne.s32.totalorder %s871, %s872
      %p881 = scmp.eq.s32.totalorder %s122, 0
      %p882 = por %p880, %p881
      %p883 = scmp.ne.s32.totalorder %s871, %s872
      %p884 = scmp.eq.s32.totalorder %s123, 1
      %p885 = por %p883, %p884
      %p887 = scmp.ne.s32.totalorder %s872, %s886
      %p888 = scmp.eq.s32.totalorder %s123, 0
      %p889 = por %p887, %p888
      %s891 = sadd.s32 %s890, 1
      %p894 = scmp.eq.s32.totalorder %s117, 1
      %p895 = scmp.ne.s32.totalorder %s890, %s892
      %p896 = scmp.eq.s32.totalorder %s117, 0
      %p897 = por %p895, %p896
      %p898 = scmp.ne.s32.totalorder %s890, %s892
      %p899 = scmp.eq.s32.totalorder %s122, 1
      %p900 = por %p898, %p899
      %p901 = scmp.ne.s32.totalorder %s892, %s893
      %p902 = scmp.eq.s32.totalorder %s122, 0
      %p903 = por %p901, %p902
      %p904 = scmp.ne.s32.totalorder %s892, %s893
      %p905 = scmp.eq.s32.totalorder %s123, 1
      %p906 = por %p904, %p905
      %p908 = scmp.ne.s32.totalorder %s893, %s907
      %p909 = scmp.eq.s32.totalorder %s123, 0
      %p910 = por %p908, %p909
      %s912 = sadd.s32 %s911, 1
      %p915 = scmp.eq.s32.totalorder %s117, 1
      %p916 = scmp.ne.s32.totalorder %s911, %s913
      %p917 = scmp.eq.s32.totalorder %s117, 0
      %p918 = por %p916, %p917
      %p919 = scmp.ne.s32.totalorder %s911, %s913
      %p920 = scmp.eq.s32.totalorder %s122, 1
      %p921 = por %p919, %p920
      %p922 = scmp.ne.s32.totalorder %s913, %s914
      %p923 = scmp.eq.s32.totalorder %s122, 0
      %p924 = por %p922, %p923
      %p925 = scmp.ne.s32.totalorder %s913, %s914
      %p926 = scmp.eq.s32.totalorder %s123, 1
      %p927 = por %p925, %p926
      %p929 = scmp.ne.s32.totalorder %s914, %s928
      %p930 = scmp.eq.s32.totalorder %s123, 0
      %p931 = por %p929, %p930
      %s933 = sadd.s32 %s932, 1
      %p936 = scmp.eq.s32.totalorder %s117, 1
      %p937 = scmp.ne.s32.totalorder %s932, %s934
      %p938 = scmp.eq.s32.totalorder %s117, 0
      %p939 = por %p937, %p938
      %p940 = scmp.ne.s32.totalorder %s932, %s934
      %p941 = scmp.eq.s32.totalorder %s122, 1
      %p942 = por %p940, %p941
      %p943 = scmp.ne.s32.totalorder %s934, %s935
      %p944 = scmp.eq.s32.totalorder %s122, 0
      %p945 = por %p943, %p944
      %p946 = scmp.ne.s32.totalorder %s934, %s935
      %p947 = scmp.eq.s32.totalorder %s123, 1
      %p948 = por %p946, %p947
      %p950 = scmp.ne.s32.totalorder %s935, %s949
      %p951 = scmp.eq.s32.totalorder %s123, 0
      %p952 = por %p950, %p951
      %s954 = sadd.s32 %s953, 1
      %p957 = scmp.eq.s32.totalorder %s117, 1
      %p958 = scmp.ne.s32.totalorder %s953, %s955
      %p959 = scmp.eq.s32.totalorder %s117, 0
      %p960 = por %p958, %p959
      %p961 = scmp.ne.s32.totalorder %s953, %s955
      %p962 = scmp.eq.s32.totalorder %s122, 1
      %p963 = por %p961, %p962
      %p964 = scmp.ne.s32.totalorder %s955, %s956
      %p965 = scmp.eq.s32.totalorder %s122, 0
      %p966 = por %p964, %p965
      %p967 = scmp.ne.s32.totalorder %s955, %s956
      %p968 = scmp.eq.s32.totalorder %s123, 1
      %p969 = por %p967, %p968
      %p971 = scmp.ne.s32.totalorder %s956, %s970
      %p972 = scmp.eq.s32.totalorder %s123, 0
      %p973 = por %p971, %p972
      %s975 = sadd.s32 %s974, 1
      %p978 = scmp.eq.s32.totalorder %s117, 1
      %p979 = scmp.ne.s32.totalorder %s974, %s976
      %p980 = scmp.eq.s32.totalorder %s117, 0
      %p981 = por %p979, %p980
      %p982 = scmp.ne.s32.totalorder %s974, %s976
      %p983 = scmp.eq.s32.totalorder %s122, 1
      %p984 = por %p982, %p983
      %p985 = scmp.ne.s32.totalorder %s976, %s977
      %p986 = scmp.eq.s32.totalorder %s122, 0
      %p987 = por %p985, %p986
      %p988 = scmp.ne.s32.totalorder %s976, %s977
      %p989 = scmp.eq.s32.totalorder %s123, 1
      %p990 = por %p988, %p989
      %p992 = scmp.ne.s32.totalorder %s977, %s991
      %p993 = scmp.eq.s32.totalorder %s123, 0
      %p994 = por %p992, %p993
      %s996 = sadd.s32 %s995, 1
      %p999 = scmp.eq.s32.totalorder %s117, 1
      %p1000 = scmp.ne.s32.totalorder %s995, %s997
      %p1001 = scmp.eq.s32.totalorder %s117, 0
      %p1002 = por %p1000, %p1001
      %p1003 = scmp.ne.s32.totalorder %s995, %s997
      %p1004 = scmp.eq.s32.totalorder %s122, 1
      %p1005 = por %p1003, %p1004
      %p1006 = scmp.ne.s32.totalorder %s997, %s998
      %p1007 = scmp.eq.s32.totalorder %s122, 0
      %p1008 = por %p1006, %p1007
      %p1009 = scmp.ne.s32.totalorder %s997, %s998
      %p1010 = scmp.eq.s32.totalorder %s123, 1
      %p1011 = por %p1009, %p1010
      %p1013 = scmp.ne.s32.totalorder %s998, %s1012
      %p1014 = scmp.eq.s32.totalorder %s123, 0
      %p1015 = por %p1013, %p1014
      %s1016 = ssub.s32 %s117, %s124
      %p1017 = scmp.eq.s32.totalorder %s1016, 0
      %s1019 = sadd.s32 %s1018, 1
      %s1020 = scalar_select %p1017, %s1018, %s1019
      %p1023 = pneg %p1017
      %p1024 = scmp.eq.s32.totalorder %s117, 1
      %p1025 = por %p1023, %p1024
      %p1026 = scmp.ne.s32.totalorder %s1018, %s1021
      %p1027 = scmp.eq.s32.totalorder %s117, 0
      %p1028 = por %p1026, %p1027
      %p1029 = scmp.ne.s32.totalorder %s1018, %s1021
      %p1030 = scmp.eq.s32.totalorder %s122, 1
      %p1031 = por %p1029, %p1030
      %p1032 = scmp.ne.s32.totalorder %s1021, %s1022
      %p1033 = scmp.eq.s32.totalorder %s122, 0
      %p1034 = por %p1032, %p1033
      %p1035 = scmp.ne.s32.totalorder %s1021, %s1022
      %p1036 = scmp.eq.s32.totalorder %s123, 1
      %p1037 = por %p1035, %p1036
      %p1039 = scmp.ne.s32.totalorder %s1022, %s1038
      %p1040 = scmp.eq.s32.totalorder %s123, 0
      %p1041 = por %p1039, %p1040
      %p1042 = scmp.le.s32.totalorder 1, %s117
      %p1043 = scmp.lt.s32.totalorder %s117, 3
      %p1044 = pnand %p1042, %p1043
      %p1045 = pneg %p1044
      // Predicated region
      $region9: #{tpu_custom_call.1} parent=5 // pred_check
        _
      $region10: #{tpu_custom_call.1} parent=5 // pred_check_branch
        %1047 = sbr.rel (%p1044) target = $region12
      $region11: #{tpu_custom_call.1} parent=5 // pred_region
        %s1048 = ssub.s32 %s117, 1
        // Predicated region
        $region13: #{tpu_custom_call.1} parent=11 // pred_check
          %p1049 = pneg %p294
        $region14: #{tpu_custom_call.1} parent=11 // pred_check_branch
          %1051 = sbr.rel (%p1049) target = $region16
        $region15: #{tpu_custom_call.1} parent=11 // pred_region
          _
        $region16: #{tpu_custom_call.1} parent=11 // pred_fallthru
          _
        // Predicated region
        $region17: #{tpu_custom_call.1} parent=11 // pred_check
          %p1052 = pneg %p315
        $region18: #{tpu_custom_call.1} parent=11 // pred_check_branch
          %1054 = sbr.rel (%p1052) target = $region20
        $region19: #{tpu_custom_call.1} parent=11 // pred_region
          %s1056 = ssub.s32 32, 32
          %1057 = vsyncadd [#allocation12], %s1056
          %s1059 = sshll.u32 [#allocation13], 4
          %s1060 = int_to_ptr.vmem [resolvable:$true] %s1059
          %1062 = dma.hbm_to_vmem [thread:$0]  %s15, 32, %s1060, [#allocation12]
        $region20: #{tpu_custom_call.1} parent=11 // pred_fallthru
          _
        // Predicated region
        $region21: #{tpu_custom_call.1} parent=11 // pred_check
          %p1063 = pneg %p336
        $region22: #{tpu_custom_call.1} parent=11 // pred_check_branch
          %1065 = sbr.rel (%p1063) target = $region24
        $region23: #{tpu_custom_call.1} parent=11 // pred_region
          %s1067 = ssub.s32 32, 32
          %1068 = vsyncadd [#allocation15], %s1067
          %s1070 = sshll.u32 [#allocation14], 4
          %s1071 = int_to_ptr.vmem [resolvable:$true] %s1070
          %1073 = dma.hbm_to_vmem [thread:$0]  %s17, 32, %s1071, [#allocation15]
        $region24: #{tpu_custom_call.1} parent=11 // pred_fallthru
          _
        // Predicated region
        $region25: #{tpu_custom_call.1} parent=11 // pred_check
          %p1074 = pneg %p357
        $region26: #{tpu_custom_call.1} parent=11 // pred_check_branch
          %1076 = sbr.rel (%p1074) target = $region28
        $region27: #{tpu_custom_call.1} parent=11 // pred_region
          %s1078 = ssub.s32 512, 512
          %1079 = vsyncadd [#allocation15], %s1078
          %s1080 = sshll.u32 [#allocation16], 4
          %s1081 = int_to_ptr.vmem [resolvable:$true] %s1080
          %1086 = dma.hbm_to_vmem [thread:$0]  %s19, 512, %s1081, [#allocation15], 64, 64, 4
        $region28: #{tpu_custom_call.1} parent=11 // pred_fallthru
          _
        // Predicated region
        $region29: #{tpu_custom_call.1} parent=11 // pred_check
          %p1087 = pneg %p378
        $region30: #{tpu_custom_call.1} parent=11 // pred_check_branch
          %1089 = sbr.rel (%p1087) target = $region32
        $region31: #{tpu_custom_call.1} parent=11 // pred_region
          %s1091 = ssub.s32 32, 32
          %1092 = vsyncadd [#allocation18], %s1091
          %s1094 = sshll.u32 [#allocation17], 4
          %s1095 = int_to_ptr.vmem [resolvable:$true] %s1094
          %1097 = dma.hbm_to_vmem [thread:$0]  %s21, 32, %s1095, [#allocation18]
        $region32: #{tpu_custom_call.1} parent=11 // pred_fallthru
          _
        // Predicated region
        $region33: #{tpu_custom_call.1} parent=11 // pred_check
          %p1098 = pneg %p399
        $region34: #{tpu_custom_call.1} parent=11 // pred_check_branch
          %1100 = sbr.rel (%p1098) target = $region36
        $region35: #{tpu_custom_call.1} parent=11 // pred_region
          %s1102 = ssub.s32 512, 512
          %1103 = vsyncadd [#allocation18], %s1102
          %s1104 = sshll.u32 [#allocation19], 4
          %s1105 = int_to_ptr.vmem [resolvable:$true] %s1104
          %1110 = dma.hbm_to_vmem [thread:$0]  %s23, 512, %s1105, [#allocation18], 64, 64, 4
        $region36: #{tpu_custom_call.1} parent=11 // pred_fallthru
          _
        // Predicated region
        $region37: #{tpu_custom_call.1} parent=11 // pred_check
          %p1111 = pneg %p420
        $region38: #{tpu_custom_call.1} parent=11 // pred_check_branch
          %1113 = sbr.rel (%p1111) target = $region40
        $region39: #{tpu_custom_call.1} parent=11 // pred_region
          %s1115 = ssub.s32 32, 32
          %1116 = vsyncadd [#allocation21], %s1115
          %s1118 = sshll.u32 [#allocation20], 4
          %s1119 = int_to_ptr.vmem [resolvable:$true] %s1118
          %1121 = dma.hbm_to_vmem [thread:$0]  %s25, 32, %s1119, [#allocation21]
        $region40: #{tpu_custom_call.1} parent=11 // pred_fallthru
          _
        // Predicated region
        $region41: #{tpu_custom_call.1} parent=11 // pred_check
          %p1122 = pneg %p441
        $region42: #{tpu_custom_call.1} parent=11 // pred_check_branch
          %1124 = sbr.rel (%p1122) target = $region44
        $region43: #{tpu_custom_call.1} parent=11 // pred_region
          %s1126 = ssub.s32 512, 512
          %1127 = vsyncadd [#allocation21], %s1126
          %s1128 = sshll.u32 [#allocation22], 4
          %s1129 = int_to_ptr.vmem [resolvable:$true] %s1128
          %1134 = dma.hbm_to_vmem [thread:$0]  %s27, 512, %s1129, [#allocation21], 64, 64, 4
        $region44: #{tpu_custom_call.1} parent=11 // pred_fallthru
          _
        // Predicated region
        $region45: #{tpu_custom_call.1} parent=11 // pred_check
          %p1135 = pneg %p462
        $region46: #{tpu_custom_call.1} parent=11 // pred_check_branch
          %1137 = sbr.rel (%p1135) target = $region48
        $region47: #{tpu_custom_call.1} parent=11 // pred_region
          %s1139 = ssub.s32 32, 32
          %1140 = vsyncadd [#allocation24], %s1139
          %s1142 = sshll.u32 [#allocation23], 4
          %s1143 = int_to_ptr.vmem [resolvable:$true] %s1142
          %1145 = dma.hbm_to_vmem [thread:$0]  %s29, 32, %s1143, [#allocation24]
        $region48: #{tpu_custom_call.1} parent=11 // pred_fallthru
          _
        // Predicated region
        $region49: #{tpu_custom_call.1} parent=11 // pred_check
          %p1146 = pneg %p483
        $region50: #{tpu_custom_call.1} parent=11 // pred_check_branch
          %1148 = sbr.rel (%p1146) target = $region52
        $region51: #{tpu_custom_call.1} parent=11 // pred_region
          %s1150 = ssub.s32 512, 512
          %1151 = vsyncadd [#allocation24], %s1150
          %s1152 = sshll.u32 [#allocation25], 4
          %s1153 = int_to_ptr.vmem [resolvable:$true] %s1152
          %1158 = dma.hbm_to_vmem [thread:$0]  %s31, 512, %s1153, [#allocation24], 64, 64, 4
        $region52: #{tpu_custom_call.1} parent=11 // pred_fallthru
          _
        // Predicated region
        $region53: #{tpu_custom_call.1} parent=11 // pred_check
          %p1159 = pneg %p504
        $region54: #{tpu_custom_call.1} parent=11 // pred_check_branch
          %1161 = sbr.rel (%p1159) target = $region56
        $region55: #{tpu_custom_call.1} parent=11 // pred_region
          %s1163 = ssub.s32 32, 32
          %1164 = vsyncadd [#allocation27], %s1163
          %s1166 = sshll.u32 [#allocation26], 4
          %s1167 = int_to_ptr.vmem [resolvable:$true] %s1166
          %1169 = dma.hbm_to_vmem [thread:$0]  %s33, 32, %s1167, [#allocation27]
        $region56: #{tpu_custom_call.1} parent=11 // pred_fallthru
          _
        // Predicated region
        $region57: #{tpu_custom_call.1} parent=11 // pred_check
          %p1170 = pneg %p525
        $region58: #{tpu_custom_call.1} parent=11 // pred_check_branch
          %1172 = sbr.rel (%p1170) target = $region60
        $region59: #{tpu_custom_call.1} parent=11 // pred_region
          %s1174 = ssub.s32 32, 32
          %1175 = vsyncadd [#allocation27], %s1174
          %s1177 = sshll.u32 [#allocation28], 4
          %s1178 = int_to_ptr.vmem [resolvable:$true] %s1177
          %1180 = dma.hbm_to_vmem [thread:$0]  %s35, 32, %s1178, [#allocation27]
        $region60: #{tpu_custom_call.1} parent=11 // pred_fallthru
          _
        // Predicated region
        $region61: #{tpu_custom_call.1} parent=11 // pred_check
          %p1181 = pneg %p546
        $region62: #{tpu_custom_call.1} parent=11 // pred_check_branch
          %1183 = sbr.rel (%p1181) target = $region64
        $region63: #{tpu_custom_call.1} parent=11 // pred_region
          %s1185 = ssub.s32 32, 32
          %1186 = vsyncadd [#allocation30], %s1185
          %s1188 = sshll.u32 [#allocation29], 4
          %s1189 = int_to_ptr.vmem [resolvable:$true] %s1188
          %1191 = dma.hbm_to_vmem [thread:$0]  %s37, 32, %s1189, [#allocation30]
        $region64: #{tpu_custom_call.1} parent=11 // pred_fallthru
          _
        // Predicated region
        $region65: #{tpu_custom_call.1} parent=11 // pred_check
          %p1192 = pneg %p567
        $region66: #{tpu_custom_call.1} parent=11 // pred_check_branch
          %1194 = sbr.rel (%p1192) target = $region68
        $region67: #{tpu_custom_call.1} parent=11 // pred_region
          _
        $region68: #{tpu_custom_call.1} parent=11 // pred_fallthru
          _
        // Predicated region
        $region69: #{tpu_custom_call.1} parent=11 // pred_check
          %p1195 = pneg %p588
        $region70: #{tpu_custom_call.1} parent=11 // pred_check_branch
          %1197 = sbr.rel (%p1195) target = $region72
        $region71: #{tpu_custom_call.1} parent=11 // pred_region
          %s1199 = ssub.s32 32, 32
          %1200 = vsyncadd [#allocation30], %s1199
          %s1202 = sshll.u32 [#allocation31], 4
          %s1203 = int_to_ptr.vmem [resolvable:$true] %s1202
          %1205 = dma.hbm_to_vmem [thread:$0]  %s41, 32, %s1203, [#allocation30]
        $region72: #{tpu_custom_call.1} parent=11 // pred_fallthru
          _
        // Predicated region
        $region73: #{tpu_custom_call.1} parent=11 // pred_check
          %p1206 = pneg %p609
        $region74: #{tpu_custom_call.1} parent=11 // pred_check_branch
          %1208 = sbr.rel (%p1206) target = $region76
        $region75: #{tpu_custom_call.1} parent=11 // pred_region
          %s1210 = ssub.s32 512, 512
          %1211 = vsyncadd [#allocation33], %s1210
          %s1212 = sshll.u32 [#allocation32], 4
          %s1213 = int_to_ptr.vmem [resolvable:$true] %s1212
          %1218 = dma.hbm_to_vmem [thread:$0]  %s43, 512, %s1213, [#allocation33], 64, 64, 4
        $region76: #{tpu_custom_call.1} parent=11 // pred_fallthru
          _
        // Predicated region
        $region77: #{tpu_custom_call.1} parent=11 // pred_check
          %p1219 = pneg %p630
        $region78: #{tpu_custom_call.1} parent=11 // pred_check_branch
          %1221 = sbr.rel (%p1219) target = $region80
        $region79: #{tpu_custom_call.1} parent=11 // pred_region
          %s1223 = ssub.s32 32, 32
          %1224 = vsyncadd [#allocation33], %s1223
          %s1226 = sshll.u32 [#allocation34], 4
          %s1227 = int_to_ptr.vmem [resolvable:$true] %s1226
          %1229 = dma.hbm_to_vmem [thread:$0]  %s45, 32, %s1227, [#allocation33]
        $region80: #{tpu_custom_call.1} parent=11 // pred_fallthru
          _
        // Predicated region
        $region81: #{tpu_custom_call.1} parent=11 // pred_check
          %p1230 = pneg %p651
        $region82: #{tpu_custom_call.1} parent=11 // pred_check_branch
          %1232 = sbr.rel (%p1230) target = $region84
        $region83: #{tpu_custom_call.1} parent=11 // pred_region
          %s1234 = ssub.s32 512, 512
          %1235 = vsyncadd [#allocation36], %s1234
          %s1236 = sshll.u32 [#allocation35], 4
          %s1237 = int_to_ptr.vmem [resolvable:$true] %s1236
          %1242 = dma.hbm_to_vmem [thread:$0]  %s47, 512, %s1237, [#allocation36], 64, 64, 4
        $region84: #{tpu_custom_call.1} parent=11 // pred_fallthru
          _
        // Predicated region
        $region85: #{tpu_custom_call.1} parent=11 // pred_check
          %p1243 = pneg %p672
        $region86: #{tpu_custom_call.1} parent=11 // pred_check_branch
          %1245 = sbr.rel (%p1243) target = $region88
        $region87: #{tpu_custom_call.1} parent=11 // pred_region
          %s1247 = ssub.s32 32, 32
          %1248 = vsyncadd [#allocation36], %s1247
          %s1250 = sshll.u32 [#allocation37], 4
          %s1251 = int_to_ptr.vmem [resolvable:$true] %s1250
          %1253 = dma.hbm_to_vmem [thread:$0]  %s49, 32, %s1251, [#allocation36]
        $region88: #{tpu_custom_call.1} parent=11 // pred_fallthru
          _
        // Predicated region
        $region89: #{tpu_custom_call.1} parent=11 // pred_check
          %p1254 = pneg %p693
        $region90: #{tpu_custom_call.1} parent=11 // pred_check_branch
          %1256 = sbr.rel (%p1254) target = $region92
        $region91: #{tpu_custom_call.1} parent=11 // pred_region
          %s1258 = ssub.s32 512, 512
          %1259 = vsyncadd [#allocation39], %s1258
          %s1260 = sshll.u32 [#allocation38], 4
          %s1261 = int_to_ptr.vmem [resolvable:$true] %s1260
          %1266 = dma.hbm_to_vmem [thread:$0]  %s51, 512, %s1261, [#allocation39], 64, 64, 4
        $region92: #{tpu_custom_call.1} parent=11 // pred_fallthru
          _
        // Predicated region
        $region93: #{tpu_custom_call.1} parent=11 // pred_check
          %p1267 = pneg %p714
        $region94: #{tpu_custom_call.1} parent=11 // pred_check_branch
          %1269 = sbr.rel (%p1267) target = $region96
        $region95: #{tpu_custom_call.1} parent=11 // pred_region
          %s1271 = ssub.s32 32, 32
          %1272 = vsyncadd [#allocation39], %s1271
          %s1274 = sshll.u32 [#allocation40], 4
          %s1275 = int_to_ptr.vmem [resolvable:$true] %s1274
          %1277 = dma.hbm_to_vmem [thread:$0]  %s53, 32, %s1275, [#allocation39]
        $region96: #{tpu_custom_call.1} parent=11 // pred_fallthru
          _
        // Predicated region
        $region97: #{tpu_custom_call.1} parent=11 // pred_check
          %p1278 = pneg %p735
        $region98: #{tpu_custom_call.1} parent=11 // pred_check_branch
          %1280 = sbr.rel (%p1278) target = $region100
        $region99: #{tpu_custom_call.1} parent=11 // pred_region
          %s1282 = ssub.s32 32, 32
          %1283 = vsyncadd [#allocation42], %s1282
          %s1285 = sshll.u32 [#allocation41], 4
          %s1286 = int_to_ptr.vmem [resolvable:$true] %s1285
          %1288 = dma.hbm_to_vmem [thread:$0]  %s55, 32, %s1286, [#allocation42]
        $region100: #{tpu_custom_call.1} parent=11 // pred_fallthru
          _
        // Predicated region
        $region101: #{tpu_custom_call.1} parent=11 // pred_check
          %p1289 = pneg %p756
        $region102: #{tpu_custom_call.1} parent=11 // pred_check_branch
          %1291 = sbr.rel (%p1289) target = $region104
        $region103: #{tpu_custom_call.1} parent=11 // pred_region
          %s1293 = ssub.s32 32, 32
          %1294 = vsyncadd [#allocation42], %s1293
          %s1296 = sshll.u32 [#allocation43], 4
          %s1297 = int_to_ptr.vmem [resolvable:$true] %s1296
          %1299 = dma.hbm_to_vmem [thread:$0]  %s57, 32, %s1297, [#allocation42]
        $region104: #{tpu_custom_call.1} parent=11 // pred_fallthru
          _
        // Predicated region
        $region105: #{tpu_custom_call.1} parent=11 // pred_check
          %p1300 = pneg %p777
        $region106: #{tpu_custom_call.1} parent=11 // pred_check_branch
          %1302 = sbr.rel (%p1300) target = $region108
        $region107: #{tpu_custom_call.1} parent=11 // pred_region
          %s1304 = ssub.s32 512, 512
          %1305 = vsyncadd [#allocation45], %s1304
          %s1306 = sshll.u32 [#allocation44], 4
          %s1307 = int_to_ptr.vmem [resolvable:$true] %s1306
          %1312 = dma.hbm_to_vmem [thread:$0]  %s59, 512, %s1307, [#allocation45], 64, 64, 4
        $region108: #{tpu_custom_call.1} parent=11 // pred_fallthru
          _
        // Predicated region
        $region109: #{tpu_custom_call.1} parent=11 // pred_check
          %p1313 = pneg %p798
        $region110: #{tpu_custom_call.1} parent=11 // pred_check_branch
          %1315 = sbr.rel (%p1313) target = $region112
        $region111: #{tpu_custom_call.1} parent=11 // pred_region
          %s1317 = ssub.s32 32, 32
          %1318 = vsyncadd [#allocation45], %s1317
          %s1320 = sshll.u32 [#allocation46], 4
          %s1321 = int_to_ptr.vmem [resolvable:$true] %s1320
          %1323 = dma.hbm_to_vmem [thread:$0]  %s61, 32, %s1321, [#allocation45]
        $region112: #{tpu_custom_call.1} parent=11 // pred_fallthru
          _
        // Predicated region
        $region113: #{tpu_custom_call.1} parent=11 // pred_check
          %p1324 = pneg %p819
        $region114: #{tpu_custom_call.1} parent=11 // pred_check_branch
          %1326 = sbr.rel (%p1324) target = $region116
        $region115: #{tpu_custom_call.1} parent=11 // pred_region
          %s1328 = ssub.s32 512, 512
          %1329 = vsyncadd [#allocation48], %s1328
          %s1330 = sshll.u32 [#allocation47], 4
          %s1331 = int_to_ptr.vmem [resolvable:$true] %s1330
          %1336 = dma.hbm_to_vmem [thread:$0]  %s63, 512, %s1331, [#allocation48], 64, 64, 4
        $region116: #{tpu_custom_call.1} parent=11 // pred_fallthru
          _
        // Predicated region
        $region117: #{tpu_custom_call.1} parent=11 // pred_check
          %p1337 = pneg %p840
        $region118: #{tpu_custom_call.1} parent=11 // pred_check_branch
          %1339 = sbr.rel (%p1337) target = $region120
        $region119: #{tpu_custom_call.1} parent=11 // pred_region
          %s1341 = ssub.s32 32, 32
          %1342 = vsyncadd [#allocation48], %s1341
          %s1344 = sshll.u32 [#allocation49], 4
          %s1345 = int_to_ptr.vmem [resolvable:$true] %s1344
          %1347 = dma.hbm_to_vmem [thread:$0]  %s65, 32, %s1345, [#allocation48]
        $region120: #{tpu_custom_call.1} parent=11 // pred_fallthru
          _
        // Predicated region
        $region121: #{tpu_custom_call.1} parent=11 // pred_check
          %p1348 = pneg %p861
        $region122: #{tpu_custom_call.1} parent=11 // pred_check_branch
          %1350 = sbr.rel (%p1348) target = $region124
        $region123: #{tpu_custom_call.1} parent=11 // pred_region
          %s1352 = ssub.s32 512, 512
          %1353 = vsyncadd [#allocation51], %s1352
          %s1354 = sshll.u32 [#allocation50], 4
          %s1355 = int_to_ptr.vmem [resolvable:$true] %s1354
          %1360 = dma.hbm_to_vmem [thread:$0]  %s67, 512, %s1355, [#allocation51], 64, 64, 4
        $region124: #{tpu_custom_call.1} parent=11 // pred_fallthru
          _
        // Predicated region
        $region125: #{tpu_custom_call.1} parent=11 // pred_check
          %p1361 = pneg %p882
        $region126: #{tpu_custom_call.1} parent=11 // pred_check_branch
          %1363 = sbr.rel (%p1361) target = $region128
        $region127: #{tpu_custom_call.1} parent=11 // pred_region
          %s1365 = ssub.s32 32, 32
          %1366 = vsyncadd [#allocation51], %s1365
          %s1368 = sshll.u32 [#allocation52], 4
          %s1369 = int_to_ptr.vmem [resolvable:$true] %s1368
          %1371 = dma.hbm_to_vmem [thread:$0]  %s69, 32, %s1369, [#allocation51]
        $region128: #{tpu_custom_call.1} parent=11 // pred_fallthru
          _
        // Predicated region
        $region129: #{tpu_custom_call.1} parent=11 // pred_check
          %p1372 = pneg %p903
        $region130: #{tpu_custom_call.1} parent=11 // pred_check_branch
          %1374 = sbr.rel (%p1372) target = $region132
        $region131: #{tpu_custom_call.1} parent=11 // pred_region
          _
        $region132: #{tpu_custom_call.1} parent=11 // pred_fallthru
          _
        // Predicated region
        $region133: #{tpu_custom_call.1} parent=11 // pred_check
          %p1375 = pneg %p924
        $region134: #{tpu_custom_call.1} parent=11 // pred_check_branch
          %1377 = sbr.rel (%p1375) target = $region136
        $region135: #{tpu_custom_call.1} parent=11 // pred_region
          _
        $region136: #{tpu_custom_call.1} parent=11 // pred_fallthru
          _
        // Predicated region
        $region137: #{tpu_custom_call.1} parent=11 // pred_check
          %p1378 = pneg %p945
        $region138: #{tpu_custom_call.1} parent=11 // pred_check_branch
          %1380 = sbr.rel (%p1378) target = $region140
        $region139: #{tpu_custom_call.1} parent=11 // pred_region
          _
        $region140: #{tpu_custom_call.1} parent=11 // pred_fallthru
          _
        // Predicated region
        $region141: #{tpu_custom_call.1} parent=11 // pred_check
          %p1381 = pneg %p966
        $region142: #{tpu_custom_call.1} parent=11 // pred_check_branch
          %1383 = sbr.rel (%p1381) target = $region144
        $region143: #{tpu_custom_call.1} parent=11 // pred_region
          _
        $region144: #{tpu_custom_call.1} parent=11 // pred_fallthru
          _
        // Predicated region
        $region145: #{tpu_custom_call.1} parent=11 // pred_check
          %p1384 = pneg %p987
        $region146: #{tpu_custom_call.1} parent=11 // pred_check_branch
          %1386 = sbr.rel (%p1384) target = $region148
        $region147: #{tpu_custom_call.1} parent=11 // pred_region
          _
        $region148: #{tpu_custom_call.1} parent=11 // pred_fallthru
          _
        // Predicated region
        $region149: #{tpu_custom_call.1} parent=11 // pred_check
          %p1387 = pneg %p1008
        $region150: #{tpu_custom_call.1} parent=11 // pred_check_branch
          %1389 = sbr.rel (%p1387) target = $region152
        $region151: #{tpu_custom_call.1} parent=11 // pred_region
          _
        $region152: #{tpu_custom_call.1} parent=11 // pred_fallthru
          _
      $region12: #{tpu_custom_call.1} parent=5 // pred_fallthru
        _
      %p1390 = scmp.lt.s32.totalorder %s117, 2
      // Predicated region
      $region153: #{tpu_custom_call.1} parent=5 // pred_check
        %p1391 = pneg %p1390
      $region154: #{tpu_custom_call.1} parent=5 // pred_check_branch
        %1393 = sbr.rel (%p1391) target = $region156
      $region155: #{tpu_custom_call.1} parent=5 // pred_region
        // Predicated region
        $region157: #{tpu_custom_call.1} parent=155 // pred_check
          %p1394 = pneg %p137
        $region158: #{tpu_custom_call.1} parent=155 // pred_check_branch
          %1396 = sbr.rel (%p1394) target = $region160
        $region159: #{tpu_custom_call.1} parent=155 // pred_region
          %s1397 = sand.u32 %s127, 1
          %s1398 = scalar_lea.sflag [#allocation3], %s1397
          %s1399 = sand.u32 %s127, 1
          %s1400 = smul.addr %s1399, 8
          %s1401 = scalar_lea.vmem [#allocation2], %s1400
          %s1403 = ssub.s32 128, 128
          %1404 = vsyncadd %s1398, %s1403
          %s1405 = smul.addr %s117, 128
          %s1406 = scalar_lea.hbm %s1, %s1405
          %s1408 = sshll.u32 %s1401, 4
          %s1409 = int_to_ptr.vmem [resolvable:$true] %s1408
          %1411 = dma.hbm_to_vmem [thread:$0]  %s1406, 128, %s1409, %s1398
        $region160: #{tpu_custom_call.1} parent=155 // pred_fallthru
          _
        // Predicated region
        $region161: #{tpu_custom_call.1} parent=155 // pred_check
          %p1412 = pneg %p163
        $region162: #{tpu_custom_call.1} parent=155 // pred_check_branch
          %1414 = sbr.rel (%p1412) target = $region164
        $region163: #{tpu_custom_call.1} parent=155 // pred_region
          %s1415 = sand.u32 %s117, 1
          %s1416 = scalar_lea.sflag [#allocation6], %s1415
          %s1417 = sand.u32 %s153, 1
          %s1418 = smul.addr %s1417, 16
          %s1419 = scalar_lea.vmem [#allocation5], %s1418
          %s1421 = ssub.s32 256, 256
          %1422 = vsyncadd %s1416, %s1421
          %s1423 = smul.addr %s117, 2
          %s1424 = smul.addr %s1423, 128
          %s1425 = scalar_lea.hbm %s3, %s1424
          %s1426 = sshll.u32 %s1419, 4
          %s1427 = int_to_ptr.vmem [resolvable:$true] %s1426
          %1432 = dma.hbm_to_vmem [thread:$0]  %s1425, 256, %s1427, %s1416, 128, 128, 8
        $region164: #{tpu_custom_call.1} parent=155 // pred_fallthru
          _
        // Predicated region
        $region165: #{tpu_custom_call.1} parent=155 // pred_check
          %p1433 = pneg %p189
        $region166: #{tpu_custom_call.1} parent=155 // pred_check_branch
          %1435 = sbr.rel (%p1433) target = $region168
        $region167: #{tpu_custom_call.1} parent=155 // pred_region
          %s1436 = sand.u32 %s117, 1
          %s1437 = scalar_lea.sflag [#allocation6], %s1436
          %s1438 = sand.u32 %s179, 1
          %s1439 = smul.addr %s1438, 24
          %s1440 = scalar_lea.vmem [#allocation7], %s1439
          %s1442 = ssub.s32 384, 384
          %1443 = vsyncadd %s1437, %s1442
          %s1444 = smul.addr %s117, 3
          %s1445 = smul.addr %s1444, 128
          %s1446 = scalar_lea.hbm %s5, %s1445
          %s1447 = sshll.u32 %s1440, 4
          %s1448 = int_to_ptr.vmem [resolvable:$true] %s1447
          %1453 = dma.hbm_to_vmem [thread:$0]  %s1446, 384, %s1448, %s1437, 128, 128, 8
        $region168: #{tpu_custom_call.1} parent=155 // pred_fallthru
          _
        // Predicated region
        $region169: #{tpu_custom_call.1} parent=155 // pred_check
          %p1454 = pneg %p215
        $region170: #{tpu_custom_call.1} parent=155 // pred_check_branch
          %1456 = sbr.rel (%p1454) target = $region172
        $region171: #{tpu_custom_call.1} parent=155 // pred_region
          %s1457 = sand.u32 %s117, 1
          %s1458 = scalar_lea.sflag [#allocation9], %s1457
          %s1459 = sand.u32 %s205, 1
          %s1460 = smul.addr %s1459, 8
          %s1461 = scalar_lea.vmem [#allocation8], %s1460
          %s1463 = ssub.s32 128, 128
          %1464 = vsyncadd %s1458, %s1463
          %s1465 = smul.addr %s117, 128
          %s1466 = scalar_lea.hbm %s7, %s1465
          %s1468 = sshll.u32 %s1461, 4
          %s1469 = int_to_ptr.vmem [resolvable:$true] %s1468
          %1471 = dma.hbm_to_vmem [thread:$0]  %s1466, 128, %s1469, %s1458
        $region172: #{tpu_custom_call.1} parent=155 // pred_fallthru
          _
        // Predicated region
        $region173: #{tpu_custom_call.1} parent=155 // pred_check
          %p1472 = pneg %p241
        $region174: #{tpu_custom_call.1} parent=155 // pred_check_branch
          %1474 = sbr.rel (%p1472) target = $region176
        $region175: #{tpu_custom_call.1} parent=155 // pred_region
          %s1475 = sand.u32 %s117, 1
          %s1476 = scalar_lea.sflag [#allocation9], %s1475
          %s1477 = sand.u32 %s231, 1
          %s1478 = scalar_lea.vmem [#allocation10], %s1477
          %s1480 = ssub.s32 16, 16
          %1481 = vsyncadd %s1476, %s1480
          %s1482 = smul.addr %s117, 16
          %s1483 = scalar_lea.hbm %s9, %s1482
          %s1485 = sshll.u32 %s1478, 4
          %s1486 = int_to_ptr.vmem [resolvable:$true] %s1485
          %1488 = dma.hbm_to_vmem [thread:$0]  %s1483, 16, %s1486, %s1476
        $region176: #{tpu_custom_call.1} parent=155 // pred_fallthru
          _
        // Predicated region
        $region177: #{tpu_custom_call.1} parent=155 // pred_check
          %p1489 = pneg %p267
        $region178: #{tpu_custom_call.1} parent=155 // pred_check_branch
          %1491 = sbr.rel (%p1489) target = $region180
        $region179: #{tpu_custom_call.1} parent=155 // pred_region
          %s1492 = sand.u32 %s117, 1
          %s1493 = scalar_lea.sflag [#allocation12], %s1492
          %s1494 = sand.u32 %s257, 1
          %s1495 = scalar_lea.vmem [#allocation11], %s1494
          %s1497 = ssub.s32 16, 16
          %1498 = vsyncadd %s1493, %s1497
          %s1499 = smul.addr %s117, 16
          %s1500 = scalar_lea.hbm %s11, %s1499
          %s1502 = sshll.u32 %s1495, 4
          %s1503 = int_to_ptr.vmem [resolvable:$true] %s1502
          %1505 = dma.hbm_to_vmem [thread:$0]  %s1500, 16, %s1503, %s1493
        $region180: #{tpu_custom_call.1} parent=155 // pred_fallthru
          _
      $region156: #{tpu_custom_call.1} parent=5 // pred_fallthru
        _
      %p1506 = scmp.le.s32.totalorder 1, %s117
      %p1507 = scmp.lt.s32.totalorder %s117, 3
      %p1508 = pnand %p1506, %p1507
      %p1509 = pneg %p1508
      // Predicated region
      $region181: #{tpu_custom_call.1} parent=5 // pred_check
        _
      $region182: #{tpu_custom_call.1} parent=5 // pred_check_branch
        %1511 = sbr.rel (%p1508) target = $region184
      $region183: #{tpu_custom_call.1} parent=5 // pred_region
        %s1512 = ssub.s32 %s117, 1
        %s1513 = sand.u32 %s130, 1
        %s1514 = scalar_lea.sflag [#allocation3], %s1513
        %s1515 = sand.u32 %s130, 1
        %s1516 = smul.addr %s1515, 8
        %s1517 = scalar_lea.vmem [#allocation2], %s1516
        // Predicated region
        $region185: #{tpu_custom_call.1} parent=183 // pred_check
          %p1518 = pneg %p143
        $region186: #{tpu_custom_call.1} parent=183 // pred_check_branch
          %1520 = sbr.rel (%p1518) target = $region188
        $region187: #{tpu_custom_call.1} parent=183 // pred_region
          %1521 = dma.done %s1514, 128
        $region188: #{tpu_custom_call.1} parent=183 // pred_fallthru
          _
        %s1522 = sand.u32 %s122, 1
        %s1523 = scalar_lea.sflag [#allocation6], %s1522
        %s1524 = sand.u32 %s156, 1
        %s1525 = smul.addr %s1524, 16
        %s1526 = scalar_lea.vmem [#allocation5], %s1525
        // Predicated region
        $region189: #{tpu_custom_call.1} parent=183 // pred_check
          %p1527 = pneg %p169
        $region190: #{tpu_custom_call.1} parent=183 // pred_check_branch
          %1529 = sbr.rel (%p1527) target = $region192
        $region191: #{tpu_custom_call.1} parent=183 // pred_region
          %1530 = dma.done %s1523, 256
        $region192: #{tpu_custom_call.1} parent=183 // pred_fallthru
          _
        %s1531 = sand.u32 %s122, 1
        %s1532 = scalar_lea.sflag [#allocation6], %s1531
        %s1533 = sand.u32 %s182, 1
        %s1534 = smul.addr %s1533, 24
        %s1535 = scalar_lea.vmem [#allocation7], %s1534
        // Predicated region
        $region193: #{tpu_custom_call.1} parent=183 // pred_check
          %p1536 = pneg %p195
        $region194: #{tpu_custom_call.1} parent=183 // pred_check_branch
          %1538 = sbr.rel (%p1536) target = $region196
        $region195: #{tpu_custom_call.1} parent=183 // pred_region
          %1539 = dma.done %s1532, 384
        $region196: #{tpu_custom_call.1} parent=183 // pred_fallthru
          _
        %s1540 = sand.u32 %s122, 1
        %s1541 = scalar_lea.sflag [#allocation9], %s1540
        %s1542 = sand.u32 %s208, 1
        %s1543 = smul.addr %s1542, 8
        %s1544 = scalar_lea.vmem [#allocation8], %s1543
        // Predicated region
        $region197: #{tpu_custom_call.1} parent=183 // pred_check
          %p1545 = pneg %p221
        $region198: #{tpu_custom_call.1} parent=183 // pred_check_branch
          %1547 = sbr.rel (%p1545) target = $region200
        $region199: #{tpu_custom_call.1} parent=183 // pred_region
          %1548 = dma.done %s1541, 128
        $region200: #{tpu_custom_call.1} parent=183 // pred_fallthru
          _
        %s1549 = sand.u32 %s122, 1
        %s1550 = scalar_lea.sflag [#allocation9], %s1549
        %s1551 = sand.u32 %s234, 1
        %s1552 = scalar_lea.vmem [#allocation10], %s1551
        // Predicated region
        $region201: #{tpu_custom_call.1} parent=183 // pred_check
          %p1553 = pneg %p247
        $region202: #{tpu_custom_call.1} parent=183 // pred_check_branch
          %1555 = sbr.rel (%p1553) target = $region204
        $region203: #{tpu_custom_call.1} parent=183 // pred_region
          %1556 = dma.done %s1550, 16
        $region204: #{tpu_custom_call.1} parent=183 // pred_fallthru
          _
        %s1557 = sand.u32 %s122, 1
        %s1558 = scalar_lea.sflag [#allocation12], %s1557
        %s1559 = sand.u32 %s260, 1
        %s1560 = scalar_lea.vmem [#allocation11], %s1559
        // Predicated region
        $region205: #{tpu_custom_call.1} parent=183 // pred_check
          %p1561 = pneg %p273
        $region206: #{tpu_custom_call.1} parent=183 // pred_check_branch
          %1563 = sbr.rel (%p1561) target = $region208
        $region207: #{tpu_custom_call.1} parent=183 // pred_region
          %1564 = dma.done %s1558, 16
        $region208: #{tpu_custom_call.1} parent=183 // pred_fallthru
          _
        // Predicated region
        $region209: #{tpu_custom_call.1} parent=183 // pred_check
          %p1565 = pneg %p315
        $region210: #{tpu_custom_call.1} parent=183 // pred_check_branch
          %1567 = sbr.rel (%p1565) target = $region212
        $region211: #{tpu_custom_call.1} parent=183 // pred_region
          %1568 = dma.done [#allocation12], 32
        $region212: #{tpu_custom_call.1} parent=183 // pred_fallthru
          _
        // Predicated region
        $region213: #{tpu_custom_call.1} parent=183 // pred_check
          %p1569 = pneg %p336
        $region214: #{tpu_custom_call.1} parent=183 // pred_check_branch
          %1571 = sbr.rel (%p1569) target = $region216
        $region215: #{tpu_custom_call.1} parent=183 // pred_region
          %1572 = dma.done [#allocation15], 32
        $region216: #{tpu_custom_call.1} parent=183 // pred_fallthru
          _
        // Predicated region
        $region217: #{tpu_custom_call.1} parent=183 // pred_check
          %p1573 = pneg %p357
        $region218: #{tpu_custom_call.1} parent=183 // pred_check_branch
          %1575 = sbr.rel (%p1573) target = $region220
        $region219: #{tpu_custom_call.1} parent=183 // pred_region
          %1576 = dma.done [#allocation15], 512
        $region220: #{tpu_custom_call.1} parent=183 // pred_fallthru
          _
        // Predicated region
        $region221: #{tpu_custom_call.1} parent=183 // pred_check
          %p1577 = pneg %p378
        $region222: #{tpu_custom_call.1} parent=183 // pred_check_branch
          %1579 = sbr.rel (%p1577) target = $region224
        $region223: #{tpu_custom_call.1} parent=183 // pred_region
          %1580 = dma.done [#allocation18], 32
        $region224: #{tpu_custom_call.1} parent=183 // pred_fallthru
          _
        // Predicated region
        $region225: #{tpu_custom_call.1} parent=183 // pred_check
          %p1581 = pneg %p399
        $region226: #{tpu_custom_call.1} parent=183 // pred_check_branch
          %1583 = sbr.rel (%p1581) target = $region228
        $region227: #{tpu_custom_call.1} parent=183 // pred_region
          %1584 = dma.done [#allocation18], 512
        $region228: #{tpu_custom_call.1} parent=183 // pred_fallthru
          _
        // Predicated region
        $region229: #{tpu_custom_call.1} parent=183 // pred_check
          %p1585 = pneg %p420
        $region230: #{tpu_custom_call.1} parent=183 // pred_check_branch
          %1587 = sbr.rel (%p1585) target = $region232
        $region231: #{tpu_custom_call.1} parent=183 // pred_region
          %1588 = dma.done [#allocation21], 32
        $region232: #{tpu_custom_call.1} parent=183 // pred_fallthru
          _
        // Predicated region
        $region233: #{tpu_custom_call.1} parent=183 // pred_check
          %p1589 = pneg %p441
        $region234: #{tpu_custom_call.1} parent=183 // pred_check_branch
          %1591 = sbr.rel (%p1589) target = $region236
        $region235: #{tpu_custom_call.1} parent=183 // pred_region
          %1592 = dma.done [#allocation21], 512
        $region236: #{tpu_custom_call.1} parent=183 // pred_fallthru
          _
        // Predicated region
        $region237: #{tpu_custom_call.1} parent=183 // pred_check
          %p1593 = pneg %p462
        $region238: #{tpu_custom_call.1} parent=183 // pred_check_branch
          %1595 = sbr.rel (%p1593) target = $region240
        $region239: #{tpu_custom_call.1} parent=183 // pred_region
          %1596 = dma.done [#allocation24], 32
        $region240: #{tpu_custom_call.1} parent=183 // pred_fallthru
          _
        // Predicated region
        $region241: #{tpu_custom_call.1} parent=183 // pred_check
          %p1597 = pneg %p483
        $region242: #{tpu_custom_call.1} parent=183 // pred_check_branch
          %1599 = sbr.rel (%p1597) target = $region244
        $region243: #{tpu_custom_call.1} parent=183 // pred_region
          %1600 = dma.done [#allocation24], 512
        $region244: #{tpu_custom_call.1} parent=183 // pred_fallthru
          _
        // Predicated region
        $region245: #{tpu_custom_call.1} parent=183 // pred_check
          %p1601 = pneg %p504
        $region246: #{tpu_custom_call.1} parent=183 // pred_check_branch
          %1603 = sbr.rel (%p1601) target = $region248
        $region247: #{tpu_custom_call.1} parent=183 // pred_region
          %1604 = dma.done [#allocation27], 32
        $region248: #{tpu_custom_call.1} parent=183 // pred_fallthru
          _
        // Predicated region
        $region249: #{tpu_custom_call.1} parent=183 // pred_check
          %p1605 = pneg %p525
        $region250: #{tpu_custom_call.1} parent=183 // pred_check_branch
          %1607 = sbr.rel (%p1605) target = $region252
        $region251: #{tpu_custom_call.1} parent=183 // pred_region
          %1608 = dma.done [#allocation27], 32
        $region252: #{tpu_custom_call.1} parent=183 // pred_fallthru
          _
        // Predicated region
        $region253: #{tpu_custom_call.1} parent=183 // pred_check
          %p1609 = pneg %p546
        $region254: #{tpu_custom_call.1} parent=183 // pred_check_branch
          %1611 = sbr.rel (%p1609) target = $region256
        $region255: #{tpu_custom_call.1} parent=183 // pred_region
          %1612 = dma.done [#allocation30], 32
        $region256: #{tpu_custom_call.1} parent=183 // pred_fallthru
          _
        // Predicated region
        $region257: #{tpu_custom_call.1} parent=183 // pred_check
          %p1613 = pneg %p588
        $region258: #{tpu_custom_call.1} parent=183 // pred_check_branch
          %1615 = sbr.rel (%p1613) target = $region260
        $region259: #{tpu_custom_call.1} parent=183 // pred_region
          %1616 = dma.done [#allocation30], 32
        $region260: #{tpu_custom_call.1} parent=183 // pred_fallthru
          _
        // Predicated region
        $region261: #{tpu_custom_call.1} parent=183 // pred_check
          %p1617 = pneg %p609
        $region262: #{tpu_custom_call.1} parent=183 // pred_check_branch
          %1619 = sbr.rel (%p1617) target = $region264
        $region263: #{tpu_custom_call.1} parent=183 // pred_region
          %1620 = dma.done [#allocation33], 512
        $region264: #{tpu_custom_call.1} parent=183 // pred_fallthru
          _
        // Predicated region
        $region265: #{tpu_custom_call.1} parent=183 // pred_check
          %p1621 = pneg %p630
        $region266: #{tpu_custom_call.1} parent=183 // pred_check_branch
          %1623 = sbr.rel (%p1621) target = $region268
        $region267: #{tpu_custom_call.1} parent=183 // pred_region
          %1624 = dma.done [#allocation33], 32
        $region268: #{tpu_custom_call.1} parent=183 // pred_fallthru
          _
        // Predicated region
        $region269: #{tpu_custom_call.1} parent=183 // pred_check
          %p1625 = pneg %p651
        $region270: #{tpu_custom_call.1} parent=183 // pred_check_branch
          %1627 = sbr.rel (%p1625) target = $region272
        $region271: #{tpu_custom_call.1} parent=183 // pred_region
          %1628 = dma.done [#allocation36], 512
        $region272: #{tpu_custom_call.1} parent=183 // pred_fallthru
          _
        // Predicated region
        $region273: #{tpu_custom_call.1} parent=183 // pred_check
          %p1629 = pneg %p672
        $region274: #{tpu_custom_call.1} parent=183 // pred_check_branch
          %1631 = sbr.rel (%p1629) target = $region276
        $region275: #{tpu_custom_call.1} parent=183 // pred_region
          %1632 = dma.done [#allocation36], 32
        $region276: #{tpu_custom_call.1} parent=183 // pred_fallthru
          _
        // Predicated region
        $region277: #{tpu_custom_call.1} parent=183 // pred_check
          %p1633 = pneg %p693
        $region278: #{tpu_custom_call.1} parent=183 // pred_check_branch
          %1635 = sbr.rel (%p1633) target = $region280
        $region279: #{tpu_custom_call.1} parent=183 // pred_region
          %1636 = dma.done [#allocation39], 512
        $region280: #{tpu_custom_call.1} parent=183 // pred_fallthru
          _
        // Predicated region
        $region281: #{tpu_custom_call.1} parent=183 // pred_check
          %p1637 = pneg %p714
        $region282: #{tpu_custom_call.1} parent=183 // pred_check_branch
          %1639 = sbr.rel (%p1637) target = $region284
        $region283: #{tpu_custom_call.1} parent=183 // pred_region
          %1640 = dma.done [#allocation39], 32
        $region284: #{tpu_custom_call.1} parent=183 // pred_fallthru
          _
        // Predicated region
        $region285: #{tpu_custom_call.1} parent=183 // pred_check
          %p1641 = pneg %p735
        $region286: #{tpu_custom_call.1} parent=183 // pred_check_branch
          %1643 = sbr.rel (%p1641) target = $region288
        $region287: #{tpu_custom_call.1} parent=183 // pred_region
          %1644 = dma.done [#allocation42], 32
        $region288: #{tpu_custom_call.1} parent=183 // pred_fallthru
          _
        // Predicated region
        $region289: #{tpu_custom_call.1} parent=183 // pred_check
          %p1645 = pneg %p756
        $region290: #{tpu_custom_call.1} parent=183 // pred_check_branch
          %1647 = sbr.rel (%p1645) target = $region292
        $region291: #{tpu_custom_call.1} parent=183 // pred_region
          %1648 = dma.done [#allocation42], 32
        $region292: #{tpu_custom_call.1} parent=183 // pred_fallthru
          _
        // Predicated region
        $region293: #{tpu_custom_call.1} parent=183 // pred_check
          %p1649 = pneg %p777
        $region294: #{tpu_custom_call.1} parent=183 // pred_check_branch
          %1651 = sbr.rel (%p1649) target = $region296
        $region295: #{tpu_custom_call.1} parent=183 // pred_region
          %1652 = dma.done [#allocation45], 512
        $region296: #{tpu_custom_call.1} parent=183 // pred_fallthru
          _
        // Predicated region
        $region297: #{tpu_custom_call.1} parent=183 // pred_check
          %p1653 = pneg %p798
        $region298: #{tpu_custom_call.1} parent=183 // pred_check_branch
          %1655 = sbr.rel (%p1653) target = $region300
        $region299: #{tpu_custom_call.1} parent=183 // pred_region
          %1656 = dma.done [#allocation45], 32
        $region300: #{tpu_custom_call.1} parent=183 // pred_fallthru
          _
        // Predicated region
        $region301: #{tpu_custom_call.1} parent=183 // pred_check
          %p1657 = pneg %p819
        $region302: #{tpu_custom_call.1} parent=183 // pred_check_branch
          %1659 = sbr.rel (%p1657) target = $region304
        $region303: #{tpu_custom_call.1} parent=183 // pred_region
          %1660 = dma.done [#allocation48], 512
        $region304: #{tpu_custom_call.1} parent=183 // pred_fallthru
          _
        // Predicated region
        $region305: #{tpu_custom_call.1} parent=183 // pred_check
          %p1661 = pneg %p840
        $region306: #{tpu_custom_call.1} parent=183 // pred_check_branch
          %1663 = sbr.rel (%p1661) target = $region308
        $region307: #{tpu_custom_call.1} parent=183 // pred_region
          %1664 = dma.done [#allocation48], 32
        $region308: #{tpu_custom_call.1} parent=183 // pred_fallthru
          _
        // Predicated region
        $region309: #{tpu_custom_call.1} parent=183 // pred_check
          %p1665 = pneg %p861
        $region310: #{tpu_custom_call.1} parent=183 // pred_check_branch
          %1667 = sbr.rel (%p1665) target = $region312
        $region311: #{tpu_custom_call.1} parent=183 // pred_region
          %1668 = dma.done [#allocation51], 512
        $region312: #{tpu_custom_call.1} parent=183 // pred_fallthru
          _
        // Predicated region
        $region313: #{tpu_custom_call.1} parent=183 // pred_check
          %p1669 = pneg %p882
        $region314: #{tpu_custom_call.1} parent=183 // pred_check_branch
          %1671 = sbr.rel (%p1669) target = $region316
        $region315: #{tpu_custom_call.1} parent=183 // pred_region
          %1672 = dma.done [#allocation51], 32
        $region316: #{tpu_custom_call.1} parent=183 // pred_fallthru
          _
        %s1673 = sand.u32 %s130, 1
        %s1674 = scalar_lea.sflag [#allocation3], %s1673
        %s1675 = sand.u32 %s130, 1
        %s1676 = smul.addr %s1675, 8
        %s1677 = scalar_lea.vmem [#allocation2], %s1676
        %p1678 = pneg %p143
        %p1679 = pneg %p140
        %s1680 = sand.u32 %s122, 1
        %s1681 = scalar_lea.sflag [#allocation6], %s1680
        %s1682 = sand.u32 %s156, 1
        %s1683 = smul.addr %s1682, 16
        %s1684 = scalar_lea.vmem [#allocation5], %s1683
        %p1685 = pneg %p169
        %p1686 = pneg %p166
        %s1687 = sand.u32 %s122, 1
        %s1688 = scalar_lea.sflag [#allocation6], %s1687
        %s1689 = sand.u32 %s182, 1
        %s1690 = smul.addr %s1689, 24
        %s1691 = scalar_lea.vmem [#allocation7], %s1690
        %p1692 = pneg %p195
        %p1693 = pneg %p192
        %s1694 = sand.u32 %s122, 1
        %s1695 = scalar_lea.sflag [#allocation9], %s1694
        %s1696 = sand.u32 %s208, 1
        %s1697 = smul.addr %s1696, 8
        %s1698 = scalar_lea.vmem [#allocation8], %s1697
        %p1699 = pneg %p221
        %p1700 = pneg %p218
        %s1701 = sand.u32 %s122, 1
        %s1702 = scalar_lea.sflag [#allocation9], %s1701
        %s1703 = sand.u32 %s234, 1
        %s1704 = scalar_lea.vmem [#allocation10], %s1703
        %p1705 = pneg %p247
        %p1706 = pneg %p244
        %s1707 = sand.u32 %s122, 1
        %s1708 = scalar_lea.sflag [#allocation12], %s1707
        %s1709 = sand.u32 %s260, 1
        %s1710 = scalar_lea.vmem [#allocation11], %s1709
        %p1711 = pneg %p273
        %p1712 = pneg %p270
        %p1713 = pneg %p294
        %p1714 = pneg %p291
        %p1715 = pneg %p315
        %p1716 = pneg %p312
        %p1717 = pneg %p336
        %p1718 = pneg %p333
        %p1719 = pneg %p357
        %p1720 = pneg %p354
        %p1721 = pneg %p378
        %p1722 = pneg %p375
        %p1723 = pneg %p399
        %p1724 = pneg %p396
        %p1725 = pneg %p420
        %p1726 = pneg %p417
        %p1727 = pneg %p441
        %p1728 = pneg %p438
        %p1729 = pneg %p462
        %p1730 = pneg %p459
        %p1731 = pneg %p483
        %p1732 = pneg %p480
        %p1733 = pneg %p504
        %p1734 = pneg %p501
        %p1735 = pneg %p525
        %p1736 = pneg %p522
        %p1737 = pneg %p546
        %p1738 = pneg %p543
        %p1739 = pneg %p567
        %p1740 = pneg %p564
        %p1741 = pneg %p588
        %p1742 = pneg %p585
        %p1743 = pneg %p609
        %p1744 = pneg %p606
        %p1745 = pneg %p630
        %p1746 = pneg %p627
        %p1747 = pneg %p651
        %p1748 = pneg %p648
        %p1749 = pneg %p672
        %p1750 = pneg %p669
        %p1751 = pneg %p693
        %p1752 = pneg %p690
        %p1753 = pneg %p714
        %p1754 = pneg %p711
        %p1755 = pneg %p735
        %p1756 = pneg %p732
        %p1757 = pneg %p756
        %p1758 = pneg %p753
        %p1759 = pneg %p777
        %p1760 = pneg %p774
        %p1761 = pneg %p798
        %p1762 = pneg %p795
        %p1763 = pneg %p819
        %p1764 = pneg %p816
        %p1765 = pneg %p840
        %p1766 = pneg %p837
        %p1767 = pneg %p861
        %p1768 = pneg %p858
        %p1769 = pneg %p882
        %p1770 = pneg %p879
        %p1771 = pneg %p903
        %p1772 = pneg %p900
        %p1773 = pneg %p924
        %p1774 = pneg %p921
        %p1775 = pneg %p945
        %p1776 = pneg %p942
        %p1777 = pneg %p966
        %p1778 = pneg %p963
        %p1779 = pneg %p987
        %p1780 = pneg %p984
        %p1781 = pneg %p1008
        %p1782 = pneg %p1005
        %p1783 = pneg %p1034
        %p1784 = pneg %p1031
        %s1785 = sand.u32 %s1021, 1
        %s1786 = scalar_lea.sflag [#allocation4], %s1785
        %s1787 = sand.u32 %s1021, 1
        %s1788 = smul.addr %s1787, 8
        %s1789 = scalar_lea.vmem [#allocation53], %s1788
        %v1791 = vld [vmem:[%s1517] sm:$0xff]
        %v1792 = vld [vmem:[%s1526] sm:$0xff]
        %v1793 = vld [vmem:[%s1526 + $0x8] sm:$0xff]
        %v1794 = vpack.c.bf16 %v1793, %v1792
        %v1795 = vld [vmem:[%s1535] sm:$0xff]
        %v1796 = vld [vmem:[%s1535 + $0x8] sm:$0xff]
        %v1797 = vld [vmem:[%s1535 + $0x10] sm:$0xff]
        %v1798 = vpack.c.bf16 %v1796, %v1795
        %v1799 = vpack.c.bf16 %v1797, %v1797
        %v1800 = vld [vmem:[%s1544] sm:$0xff]
        %vm1801 = vcmp.lt.f32.partialorder %v1800, 0.5
        %v1802 = vsel %vm1801, -1e+30, 0.0
        %v1803 = vld [vmem:[%s1552] sm:$0x1]
        %vm1804 = vcmp.lt.f32.partialorder %v1803, 0.5
        %v1805 = vsel %vm1804, -1e+30, 0.0
        %v1806 = vld [vmem:[%s1560] sm:$0x1]
        %vm1807 = vcmp.lt.f32.partialorder %v1806, 0.5
        %v1808 = vsel %vm1807, -1e+30, 0.0
        %v1809 = vld [vmem:[#allocation13] sm:$0x1]
        %v1810 = vld [vmem:[#allocation14] sm:$0x1]
        %v1811 = vld [vmem:[#allocation16] sm:$0xf]
        %v1812 = vld [vmem:[#allocation16 + $0x4] sm:$0xf]
        %v1813 = vld [vmem:[#allocation16 + $0x8] sm:$0xf]
        %v1814 = vld [vmem:[#allocation16 + $0xc] sm:$0xf]
        %v1815 = vld [vmem:[#allocation17] sm:$0x1]
        %v1816 = vld [vmem:[#allocation19] sm:$0xf]
        %v1817 = vld [vmem:[#allocation19 + $0x4] sm:$0xf]
        %v1818 = vld [vmem:[#allocation19 + $0x8] sm:$0xf]
        %v1819 = vld [vmem:[#allocation19 + $0xc] sm:$0xf]
        %v1820 = vld [vmem:[#allocation20] sm:$0x1]
        %v1821 = vld [vmem:[#allocation22] sm:$0xf]
        %v1822 = vld [vmem:[#allocation22 + $0x4] sm:$0xf]
        %v1823 = vld [vmem:[#allocation22 + $0x8] sm:$0xf]
        %v1824 = vld [vmem:[#allocation22 + $0xc] sm:$0xf]
        %v1825 = vld [vmem:[#allocation23] sm:$0x1]
        %v1826 = vld [vmem:[#allocation25] sm:$0xf]
        %v1827 = vld [vmem:[#allocation25 + $0x4] sm:$0xf]
        %v1828 = vld [vmem:[#allocation25 + $0x8] sm:$0xf]
        %v1829 = vld [vmem:[#allocation25 + $0xc] sm:$0xf]
        %v1830 = vld [vmem:[#allocation26] sm:$0x1]
        %vm1831 = vcmask 261120
        %v1832 = vsel %vm1831, %v1791, 0.0
        %1833 = vadd.xlane.f32.xlu0 %v1832
        %v1834 = vpop.xlane.xlu0 %1833
        %v1835 = vrcp.pop 32.0
        %v1836 = vmul.f32 %v1834, %v1835
        %v1837 = vsub.f32 %v1791, %v1836
        %v1838 = vmul.f32 %v1837, %v1837
        %v1839 = vsel %vm1831, %v1838, 0.0
        %1840 = vadd.xlane.f32.xlu0 %v1839
        %v1841 = vpop.xlane.xlu0 %1840
        %v1842 = vmul.f32 %v1841, %v1835
        %v1843 = vadd.f32 %v1842, 1e-05
        %v1844 = vrsqrt.pop %v1843
        %v1845 = vmul.f32 %v1837, %v1844
        %v1846 = vlaneseq
        %v1847 = vshrl.u32 %v1846, 7
        %v1848 = vsub.s32 0, %v1847
        %v1849 = vrot.slane %v1809, %v1848
        %v1850 = vmul.f32 %v1845, %v1849
        %v1851 = vlaneseq
        %v1852 = vshrl.u32 %v1851, 7
        %v1853 = vsub.s32 0, %v1852
        %v1854 = vrot.slane %v1810, %v1853
        %v1855 = vadd.f32 %v1850, %v1854
        %v1856 = vpack.c.bf16 %v1855, %v1855
        %v1857 = vlaneseq
        %v1858 = vshrl.u32 %v1857, 7
        %v1859 = vsub.s32 0, %v1858
        %v1860 = vrot.slane %v1815, %v1859
        %v1865 = vunpack.c.l.b16 %v1811
        %v1866 = vunpack.c.l.b16 %v1812
        %v1867 = vunpack.c.l.b16 %v1813
        %v1868 = vunpack.c.l.b16 %v1814
        %v1869 = vpack.c.b16 %v1866, %v1865
        %v1870 = vpack.c.b16 %v1868, %v1867
        %v1874 = vsel %vm1831, %v1856, 0
        %1876 = vmatprep.subr.bf16.mxu0 0
        %1877 = vmatpush1.bf16.msra.mxu0 0
        %1878 = vmatprep.subr.bf16.mxu0 0
        %1879 = vmatpush1.bf16.msra.mxu0 0
        %1880 = vmatprep.subr.bf16.mxu0 0
        %1881 = vmatpush1.bf16.msra.mxu0 0
        %1882 = vmatprep.subr.bf16.mxu0 0
        %1883 = vmatpush1.bf16.msra.mxu0 0
        %1884 = vmatprep.subr.bf16.mxu0 0
        %1885 = vmatpush1.bf16.msra.mxu0 0
        %1886 = vmatprep.subr.bf16.mxu0 0
        %1887 = vmatpush1.bf16.msra.mxu0 0
        %1888 = vmatprep.subr.bf16.mxu0 0
        %1889 = vmatpush1.bf16.msra.mxu0 %v1870
        %1890 = vmatprep.subr.bf16.mxu0 0
        %1891 = vmatpush1.bf16.msra.mxu0 %v1869
        %1892 = vmatprep.subr.bf16.mxu0 0
        %1893 = vmatpush2.bf16.msra.mxu0 0
        %1894 = vmatprep.subr.bf16.mxu0 0
        %1895 = vmatpush2.bf16.msra.mxu0 0
        %1896 = vmatprep.subr.bf16.mxu0 0
        %1897 = vmatpush2.bf16.msra.mxu0 0
        %1898 = vmatprep.subr.bf16.mxu0 0
        %1899 = vmatpush2.bf16.msra.mxu0 0
        %1900 = vmatprep.subr.bf16.mxu0 0
        %1901 = vmatpush2.bf16.msra.mxu0 0
        %1902 = vmatprep.subr.bf16.mxu0 0
        %1903 = vmatpush2.bf16.msra.mxu0 0
        %1904 = vmatprep.subr.bf16.mxu0 0
        %1905 = vmatpush2.bf16.msra.mxu0 0
        %1906 = vmatprep.subr.bf16.mxu0 0
        %1907 = vmatpush2.bf16.msra.mxu0 0
        %1908 = vmatprep.mubr.bf16.mxu0 0
        %1909 = vmatmul.mubr.bf16.gmra.mxu0 %v1874
        %v1910 = vpop.f32.mrf.mxu0
        %v1911 = vadd.f32 %v1860, %v1910
        %v1912 = vpop.f32.mrf.mxu0
        %v1913 = vpop.f32.mrf.mxu0
        %v1914 = vpop.f32.mrf.mxu0
        %1915 = vdwg.mxu0
        %v1916 = vlaneseq
        %v1917 = vshrl.u32 %v1916, 7
        %v1918 = vsub.s32 0, %v1917
        %v1919 = vrot.slane %v1820, %v1918
        %v1924 = vunpack.c.l.b16 %v1816
        %v1925 = vunpack.c.l.b16 %v1817
        %v1926 = vunpack.c.l.b16 %v1818
        %v1927 = vunpack.c.l.b16 %v1819
        %v1928 = vpack.c.b16 %v1925, %v1924
        %v1929 = vpack.c.b16 %v1927, %v1926
        %1932 = vmatprep.subr.bf16.mxu0 0
        %1933 = vmatpush1.bf16.msra.mxu0 0
        %1934 = vmatprep.subr.bf16.mxu0 0
        %1935 = vmatpush1.bf16.msra.mxu0 0
        %1936 = vmatprep.subr.bf16.mxu0 0
        %1937 = vmatpush1.bf16.msra.mxu0 0
        %1938 = vmatprep.subr.bf16.mxu0 0
        %1939 = vmatpush1.bf16.msra.mxu0 0
        %1940 = vmatprep.subr.bf16.mxu0 0
        %1941 = vmatpush1.bf16.msra.mxu0 0
        %1942 = vmatprep.subr.bf16.mxu0 0
        %1943 = vmatpush1.bf16.msra.mxu0 0
        %1944 = vmatprep.subr.bf16.mxu0 0
        %1945 = vmatpush1.bf16.msra.mxu0 %v1929
        %1946 = vmatprep.subr.bf16.mxu0 0
        %1947 = vmatpush1.bf16.msra.mxu0 %v1928
        %1948 = vmatprep.subr.bf16.mxu0 0
        %1949 = vmatpush2.bf16.msra.mxu0 0
        %1950 = vmatprep.subr.bf16.mxu0 0
        %1951 = vmatpush2.bf16.msra.mxu0 0
        %1952 = vmatprep.subr.bf16.mxu0 0
        %1953 = vmatpush2.bf16.msra.mxu0 0
        %1954 = vmatprep.subr.bf16.mxu0 0
        %1955 = vmatpush2.bf16.msra.mxu0 0
        %1956 = vmatprep.subr.bf16.mxu0 0
        %1957 = vmatpush2.bf16.msra.mxu0 0
        %1958 = vmatprep.subr.bf16.mxu0 0
        %1959 = vmatpush2.bf16.msra.mxu0 0
        %1960 = vmatprep.subr.bf16.mxu0 0
        %1961 = vmatpush2.bf16.msra.mxu0 0
        %1962 = vmatprep.subr.bf16.mxu0 0
        %1963 = vmatpush2.bf16.msra.mxu0 0
        %1964 = vmatprep.mubr.bf16.mxu0 0
        %1965 = vmatmul.mubr.bf16.gmra.mxu0 %v1874
        %v1966 = vpop.f32.mrf.mxu0
        %v1967 = vadd.f32 %v1919, %v1966
        %v1968 = vpop.f32.mrf.mxu0
        %v1969 = vpop.f32.mrf.mxu0
        %v1970 = vpop.f32.mrf.mxu0
        %1971 = vdwg.mxu0
        %v1972 = vlaneseq
        %v1973 = vshrl.u32 %v1972, 7
        %v1974 = vsub.s32 0, %v1973
        %v1975 = vrot.slane %v1825, %v1974
        %v1980 = vunpack.c.l.b16 %v1821
        %v1981 = vunpack.c.l.b16 %v1822
        %v1982 = vunpack.c.l.b16 %v1823
        %v1983 = vunpack.c.l.b16 %v1824
        %v1984 = vpack.c.b16 %v1981, %v1980
        %v1985 = vpack.c.b16 %v1983, %v1982
        %1988 = vmatprep.subr.bf16.mxu0 0
        %1989 = vmatpush1.bf16.msra.mxu0 0
        %1990 = vmatprep.subr.bf16.mxu0 0
        %1991 = vmatpush1.bf16.msra.mxu0 0
        %1992 = vmatprep.subr.bf16.mxu0 0
        %1993 = vmatpush1.bf16.msra.mxu0 0
        %1994 = vmatprep.subr.bf16.mxu0 0
        %1995 = vmatpush1.bf16.msra.mxu0 0
        %1996 = vmatprep.subr.bf16.mxu0 0
        %1997 = vmatpush1.bf16.msra.mxu0 0
        %1998 = vmatprep.subr.bf16.mxu0 0
        %1999 = vmatpush1.bf16.msra.mxu0 0
        %2000 = vmatprep.subr.bf16.mxu0 0
        %2001 = vmatpush1.bf16.msra.mxu0 %v1985
        %2002 = vmatprep.subr.bf16.mxu0 0
        %2003 = vmatpush1.bf16.msra.mxu0 %v1984
        %2004 = vmatprep.subr.bf16.mxu0 0
        %2005 = vmatpush2.bf16.msra.mxu0 0
        %2006 = vmatprep.subr.bf16.mxu0 0
        %2007 = vmatpush2.bf16.msra.mxu0 0
        %2008 = vmatprep.subr.bf16.mxu0 0
        %2009 = vmatpush2.bf16.msra.mxu0 0
        %2010 = vmatprep.subr.bf16.mxu0 0
        %2011 = vmatpush2.bf16.msra.mxu0 0
        %2012 = vmatprep.subr.bf16.mxu0 0
        %2013 = vmatpush2.bf16.msra.mxu0 0
        %2014 = vmatprep.subr.bf16.mxu0 0
        %2015 = vmatpush2.bf16.msra.mxu0 0
        %2016 = vmatprep.subr.bf16.mxu0 0
        %2017 = vmatpush2.bf16.msra.mxu0 0
        %2018 = vmatprep.subr.bf16.mxu0 0
        %2019 = vmatpush2.bf16.msra.mxu0 0
        %2020 = vmatprep.mubr.bf16.mxu0 0
        %2021 = vmatmul.mubr.bf16.gmra.mxu0 %v1874
        %v2022 = vpop.f32.mrf.mxu0
        %v2023 = vadd.f32 %v1975, %v2022
        %v2024 = vpop.f32.mrf.mxu0
        %v2025 = vpop.f32.mrf.mxu0
        %v2026 = vpop.f32.mrf.mxu0
        %2027 = vdwg.mxu0
        %v2028 = vmul.f32 %v1911, 0.35355338
        %v2029 = vpack.c.bf16 %v2028, %v2028
        %v2030 = vpack.c.bf16 %v1967, %v1967
        %vm2031 = vcmask 64512
        %v2033 = vsel %vm2031, %v2029, 0
        %v2036 = vsel %vm2031, %v2030, 0
        %2038 = vmatprep.subr.bf16.mxu0 0
        %2039 = vmatpush1.bf16.xpose.msra.mxu0 0
        %2040 = vmatprep.subr.bf16.mxu0 0
        %2041 = vmatpush1.bf16.xpose.msra.mxu0 0
        %2042 = vmatprep.subr.bf16.mxu0 0
        %2043 = vmatpush1.bf16.xpose.msra.mxu0 0
        %2044 = vmatprep.subr.bf16.mxu0 0
        %2045 = vmatpush1.bf16.xpose.msra.mxu0 0
        %2046 = vmatprep.subr.bf16.mxu0 0
        %2047 = vmatpush1.bf16.xpose.msra.mxu0 0
        %2048 = vmatprep.subr.bf16.mxu0 0
        %2049 = vmatpush1.bf16.xpose.msra.mxu0 0
        %2050 = vmatprep.subr.bf16.mxu0 0
        %2051 = vmatpush1.bf16.xpose.msra.mxu0 0
        %2052 = vmatprep.subr.bf16.mxu0 0
        %2053 = vmatpush1.bf16.xpose.msra.mxu0 %v2036
        %2054 = vmatprep.subr.bf16.mxu0 0
        %2055 = vmatpush2.bf16.xpose.msra.mxu0 0
        %2056 = vmatprep.subr.bf16.mxu0 0
        %2057 = vmatpush2.bf16.xpose.msra.mxu0 0
        %2058 = vmatprep.subr.bf16.mxu0 0
        %2059 = vmatpush2.bf16.xpose.msra.mxu0 0
        %2060 = vmatprep.subr.bf16.mxu0 0
        %2061 = vmatpush2.bf16.xpose.msra.mxu0 0
        %2062 = vmatprep.subr.bf16.mxu0 0
        %2063 = vmatpush2.bf16.xpose.msra.mxu0 0
        %2064 = vmatprep.subr.bf16.mxu0 0
        %2065 = vmatpush2.bf16.xpose.msra.mxu0 0
        %2066 = vmatprep.subr.bf16.mxu0 0
        %2067 = vmatpush2.bf16.xpose.msra.mxu0 0
        %2068 = vmatprep.subr.bf16.mxu0 0
        %2069 = vmatpush2.bf16.xpose.msra.mxu0 0
        %2070 = vmatprep.mubr.bf16.mxu0 0
        %2071 = vmatmul.mubr.bf16.gmra.mxu0 %v2033
        %v2072 = vpop.f32.mrf.mxu0
        %v2073 = vadd.f32 %v1802, %v2072
        %v2074 = vpop.f32.mrf.mxu0
        %v2075 = vpop.f32.mrf.mxu0
        %v2076 = vpop.f32.mrf.mxu0
        %2077 = vdwg.mxu0
        %v2078 = vsel %vm2031, %v2073, -inf
        %2079 = vmax.xlane.f32.xlu0 %v2078
        %v2080 = vpop.xlane.xlu0 %2079
        %v2081 = vsub.f32 %v2073, %v2080
        %v2082 = vmul.f32 %v2081, 1.442695
        %v2083 = vpow.pop %v2082
        %v2084 = vsel %vm2031, %v2083, 0.0
        %2085 = vadd.xlane.f32.xlu0 %v2084
        %v2086 = vpop.xlane.xlu0 %2085
        %v2087 = vrcp.pop %v2086
        %v2088 = vmul.f32 %v2083, %v2087
        %v2089 = vpack.c.bf16 %v2088, %v2088
        %v2090 = vpack.c.bf16 %v2023, %v2023
        %v2092 = vsel %vm2031, %v2089, 0
        %vm2094 = vcmask 1043456
        %v2096 = vsel %vm2094, %v2090, 0
        %2098 = vmatprep.subr.bf16.mxu0 0
        %2099 = vmatpush1.bf16.msra.mxu0 0
        %2100 = vmatprep.subr.bf16.mxu0 0
        %2101 = vmatpush1.bf16.msra.mxu0 0
        %2102 = vmatprep.subr.bf16.mxu0 0
        %2103 = vmatpush1.bf16.msra.mxu0 0
        %2104 = vmatprep.subr.bf16.mxu0 0
        %2105 = vmatpush1.bf16.msra.mxu0 0
        %2106 = vmatprep.subr.bf16.mxu0 0
        %2107 = vmatpush1.bf16.msra.mxu0 0
        %2108 = vmatprep.subr.bf16.mxu0 0
        %2109 = vmatpush1.bf16.msra.mxu0 0
        %2110 = vmatprep.subr.bf16.mxu0 0
        %2111 = vmatpush1.bf16.msra.mxu0 0
        %2112 = vmatprep.subr.bf16.mxu0 0
        %2113 = vmatpush1.bf16.msra.mxu0 %v2096
        %2114 = vmatprep.subr.bf16.mxu0 0
        %2115 = vmatpush2.bf16.msra.mxu0 0
        %2116 = vmatprep.subr.bf16.mxu0 0
        %2117 = vmatpush2.bf16.msra.mxu0 0
        %2118 = vmatprep.subr.bf16.mxu0 0
        %2119 = vmatpush2.bf16.msra.mxu0 0
        %2120 = vmatprep.subr.bf16.mxu0 0
        %2121 = vmatpush2.bf16.msra.mxu0 0
        %2122 = vmatprep.subr.bf16.mxu0 0
        %2123 = vmatpush2.bf16.msra.mxu0 0
        %2124 = vmatprep.subr.bf16.mxu0 0
        %2125 = vmatpush2.bf16.msra.mxu0 0
        %2126 = vmatprep.subr.bf16.mxu0 0
        %2127 = vmatpush2.bf16.msra.mxu0 0
        %2128 = vmatprep.subr.bf16.mxu0 0
        %2129 = vmatpush2.bf16.msra.mxu0 0
        %2130 = vmatprep.mubr.bf16.mxu0 0
        %2131 = vmatmul.mubr.bf16.gmra.mxu0 %v2092
        %v2132 = vpop.f32.mrf.mxu0
        %v2133 = vadd.f32 0.0, %v2132
        %v2134 = vpop.f32.mrf.mxu0
        %v2135 = vpop.f32.mrf.mxu0
        %v2136 = vpop.f32.mrf.mxu0
        %2137 = vdwg.mxu0
        %v2138 = vpack.c.bf16 %v2133, %v2133
        %2140 = vrot.lane.b32.xlu0 %v2029, 120
        %v2141 = vpop.permute.xlu0 %2140
        %2143 = vrot.lane.b32.xlu0 %v2030, 120
        %v2144 = vpop.permute.xlu0 %2143
        %v2146 = vsel %vm2031, %v2141, 0
        %v2149 = vsel %vm2031, %v2144, 0
        %2151 = vmatprep.subr.bf16.mxu0 0
        %2152 = vmatpush1.bf16.xpose.msra.mxu0 0
        %2153 = vmatprep.subr.bf16.mxu0 0
        %2154 = vmatpush1.bf16.xpose.msra.mxu0 0
        %2155 = vmatprep.subr.bf16.mxu0 0
        %2156 = vmatpush1.bf16.xpose.msra.mxu0 0
        %2157 = vmatprep.subr.bf16.mxu0 0
        %2158 = vmatpush1.bf16.xpose.msra.mxu0 0
        %2159 = vmatprep.subr.bf16.mxu0 0
        %2160 = vmatpush1.bf16.xpose.msra.mxu0 0
        %2161 = vmatprep.subr.bf16.mxu0 0
        %2162 = vmatpush1.bf16.xpose.msra.mxu0 0
        %2163 = vmatprep.subr.bf16.mxu0 0
        %2164 = vmatpush1.bf16.xpose.msra.mxu0 0
        %2165 = vmatprep.subr.bf16.mxu0 0
        %2166 = vmatpush1.bf16.xpose.msra.mxu0 %v2149
        %2167 = vmatprep.subr.bf16.mxu0 0
        %2168 = vmatpush2.bf16.xpose.msra.mxu0 0
        %2169 = vmatprep.subr.bf16.mxu0 0
        %2170 = vmatpush2.bf16.xpose.msra.mxu0 0
        %2171 = vmatprep.subr.bf16.mxu0 0
        %2172 = vmatpush2.bf16.xpose.msra.mxu0 0
        %2173 = vmatprep.subr.bf16.mxu0 0
        %2174 = vmatpush2.bf16.xpose.msra.mxu0 0
        %2175 = vmatprep.subr.bf16.mxu0 0
        %2176 = vmatpush2.bf16.xpose.msra.mxu0 0
        %2177 = vmatprep.subr.bf16.mxu0 0
        %2178 = vmatpush2.bf16.xpose.msra.mxu0 0
        %2179 = vmatprep.subr.bf16.mxu0 0
        %2180 = vmatpush2.bf16.xpose.msra.mxu0 0
        %2181 = vmatprep.subr.bf16.mxu0 0
        %2182 = vmatpush2.bf16.xpose.msra.mxu0 0
        %2183 = vmatprep.mubr.bf16.mxu0 0
        %2184 = vmatmul.mubr.bf16.gmra.mxu0 %v2146
        %v2185 = vpop.f32.mrf.mxu0
        %v2186 = vadd.f32 %v1802, %v2185
        %v2187 = vpop.f32.mrf.mxu0
        %v2188 = vpop.f32.mrf.mxu0
        %v2189 = vpop.f32.mrf.mxu0
        %2190 = vdwg.mxu0
        %v2191 = vsel %vm2031, %v2186, -inf
        %2192 = vmax.xlane.f32.xlu0 %v2191
        %v2193 = vpop.xlane.xlu0 %2192
        %v2194 = vsub.f32 %v2186, %v2193
        %v2195 = vmul.f32 %v2194, 1.442695
        %v2196 = vpow.pop %v2195
        %v2197 = vsel %vm2031, %v2196, 0.0
        %2198 = vadd.xlane.f32.xlu0 %v2197
        %v2199 = vpop.xlane.xlu0 %2198
        %v2200 = vrcp.pop %v2199
        %v2201 = vmul.f32 %v2196, %v2200
        %v2202 = vpack.c.bf16 %v2201, %v2201
        %2204 = vrot.lane.b32.xlu0 %v2090, 120
        %v2205 = vpop.permute.xlu0 %2204
        %v2207 = vsel %vm2031, %v2202, 0
        %v2210 = vsel %vm2094, %v2205, 0
        %2212 = vmatprep.subr.bf16.mxu0 0
        %2213 = vmatpush1.bf16.msra.mxu0 0
        %2214 = vmatprep.subr.bf16.mxu0 0
        %2215 = vmatpush1.bf16.msra.mxu0 0
        %2216 = vmatprep.subr.bf16.mxu0 0
        %2217 = vmatpush1.bf16.msra.mxu0 0
        %2218 = vmatprep.subr.bf16.mxu0 0
        %2219 = vmatpush1.bf16.msra.mxu0 0
        %2220 = vmatprep.subr.bf16.mxu0 0
        %2221 = vmatpush1.bf16.msra.mxu0 0
        %2222 = vmatprep.subr.bf16.mxu0 0
        %2223 = vmatpush1.bf16.msra.mxu0 0
        %2224 = vmatprep.subr.bf16.mxu0 0
        %2225 = vmatpush1.bf16.msra.mxu0 0
        %2226 = vmatprep.subr.bf16.mxu0 0
        %2227 = vmatpush1.bf16.msra.mxu0 %v2210
        %2228 = vmatprep.subr.bf16.mxu0 0
        %2229 = vmatpush2.bf16.msra.mxu0 0
        %2230 = vmatprep.subr.bf16.mxu0 0
        %2231 = vmatpush2.bf16.msra.mxu0 0
        %2232 = vmatprep.subr.bf16.mxu0 0
        %2233 = vmatpush2.bf16.msra.mxu0 0
        %2234 = vmatprep.subr.bf16.mxu0 0
        %2235 = vmatpush2.bf16.msra.mxu0 0
        %2236 = vmatprep.subr.bf16.mxu0 0
        %2237 = vmatpush2.bf16.msra.mxu0 0
        %2238 = vmatprep.subr.bf16.mxu0 0
        %2239 = vmatpush2.bf16.msra.mxu0 0
        %2240 = vmatprep.subr.bf16.mxu0 0
        %2241 = vmatpush2.bf16.msra.mxu0 0
        %2242 = vmatprep.subr.bf16.mxu0 0
        %2243 = vmatpush2.bf16.msra.mxu0 0
        %2244 = vmatprep.mubr.bf16.mxu0 0
        %2245 = vmatmul.mubr.bf16.gmra.mxu0 %v2207
        %v2246 = vpop.f32.mrf.mxu0
        %v2247 = vadd.f32 0.0, %v2246
        %v2248 = vpop.f32.mrf.mxu0
        %v2249 = vpop.f32.mrf.mxu0
        %v2250 = vpop.f32.mrf.mxu0
        %2251 = vdwg.mxu0
        %v2252 = vpack.c.bf16 %v2247, %v2247
        %v2254 = vsel %vm2031, %v2252, 0
        %v2257 = vsel %vm2094, %v1827, 0
        %2259 = vmatprep.subr.bf16.mxu0 0
        %2260 = vmatpush1.bf16.msra.mxu0 0
        %2261 = vmatprep.subr.bf16.mxu0 0
        %2262 = vmatpush1.bf16.msra.mxu0 0
        %2263 = vmatprep.subr.bf16.mxu0 0
        %2264 = vmatpush1.bf16.msra.mxu0 0
        %2265 = vmatprep.subr.bf16.mxu0 0
        %2266 = vmatpush1.bf16.msra.mxu0 0
        %2267 = vmatprep.subr.bf16.mxu0 0
        %2268 = vmatpush1.bf16.msra.mxu0 0
        %2269 = vmatprep.subr.bf16.mxu0 0
        %2270 = vmatpush1.bf16.msra.mxu0 0
        %2271 = vmatprep.subr.bf16.mxu0 0
        %2272 = vmatpush1.bf16.msra.mxu0 0
        %2273 = vmatprep.subr.bf16.mxu0 0
        %2274 = vmatpush1.bf16.msra.mxu0 %v2257
        %2275 = vmatprep.subr.bf16.mxu0 0
        %2276 = vmatpush2.bf16.msra.mxu0 0
        %2277 = vmatprep.subr.bf16.mxu0 0
        %2278 = vmatpush2.bf16.msra.mxu0 0
        %2279 = vmatprep.subr.bf16.mxu0 0
        %2280 = vmatpush2.bf16.msra.mxu0 0
        %2281 = vmatprep.subr.bf16.mxu0 0
        %2282 = vmatpush2.bf16.msra.mxu0 0
        %2283 = vmatprep.subr.bf16.mxu0 0
        %2284 = vmatpush2.bf16.msra.mxu0 0
        %2285 = vmatprep.subr.bf16.mxu0 0
        %2286 = vmatpush2.bf16.msra.mxu0 0
        %2287 = vmatprep.subr.bf16.mxu0 0
        %2288 = vmatpush2.bf16.msra.mxu0 0
        %2289 = vmatprep.subr.bf16.mxu0 0
        %2290 = vmatpush2.bf16.msra.mxu0 0
        %2291 = vmatprep.mubr.bf16.mxu0 0
        %2292 = vmatmul.mubr.bf16.gmra.mxu0 %v2254
        %v2293 = vpop.f32.mrf.mxu0
        %v2294 = vadd.f32 0.0, %v2293
        %v2295 = vpop.f32.mrf.mxu0
        %v2296 = vpop.f32.mrf.mxu0
        %v2297 = vpop.f32.mrf.mxu0
        %2298 = vdwg.mxu0
        %v2300 = vsel %vm2031, %v2138, 0
        %v2303 = vsel %vm2094, %v1826, 0
        %2305 = vmatprep.subr.bf16.mxu0 0
        %2306 = vmatpush1.bf16.msra.mxu0 0
        %2307 = vmatprep.subr.bf16.mxu0 0
        %2308 = vmatpush1.bf16.msra.mxu0 0
        %2309 = vmatprep.subr.bf16.mxu0 0
        %2310 = vmatpush1.bf16.msra.mxu0 0
        %2311 = vmatprep.subr.bf16.mxu0 0
        %2312 = vmatpush1.bf16.msra.mxu0 0
        %2313 = vmatprep.subr.bf16.mxu0 0
        %2314 = vmatpush1.bf16.msra.mxu0 0
        %2315 = vmatprep.subr.bf16.mxu0 0
        %2316 = vmatpush1.bf16.msra.mxu0 0
        %2317 = vmatprep.subr.bf16.mxu0 0
        %2318 = vmatpush1.bf16.msra.mxu0 0
        %2319 = vmatprep.subr.bf16.mxu0 0
        %2320 = vmatpush1.bf16.msra.mxu0 %v2303
        %2321 = vmatprep.subr.bf16.mxu0 0
        %2322 = vmatpush2.bf16.msra.mxu0 0
        %2323 = vmatprep.subr.bf16.mxu0 0
        %2324 = vmatpush2.bf16.msra.mxu0 0
        %2325 = vmatprep.subr.bf16.mxu0 0
        %2326 = vmatpush2.bf16.msra.mxu0 0
        %2327 = vmatprep.subr.bf16.mxu0 0
        %2328 = vmatpush2.bf16.msra.mxu0 0
        %2329 = vmatprep.subr.bf16.mxu0 0
        %2330 = vmatpush2.bf16.msra.mxu0 0
        %2331 = vmatprep.subr.bf16.mxu0 0
        %2332 = vmatpush2.bf16.msra.mxu0 0
        %2333 = vmatprep.subr.bf16.mxu0 0
        %2334 = vmatpush2.bf16.msra.mxu0 0
        %2335 = vmatprep.subr.bf16.mxu0 0
        %2336 = vmatpush2.bf16.msra.mxu0 0
        %2337 = vmatprep.mubr.bf16.mxu0 0
        %2338 = vmatmul.mubr.bf16.gmra.mxu0 %v2300
        %v2339 = vpop.f32.mrf.mxu0
        %v2340 = vadd.f32 %v2294, %v2339
        %v2341 = vpop.f32.mrf.mxu0
        %v2342 = vpop.f32.mrf.mxu0
        %v2343 = vpop.f32.mrf.mxu0
        %2344 = vdwg.mxu0
        %2345 = vrot.lane.b32.xlu0 %v2029, 112
        %v2346 = vpop.permute.xlu0 %2345
        %2347 = vrot.lane.b32.xlu0 %v2030, 112
        %v2348 = vpop.permute.xlu0 %2347
        %v2350 = vsel %vm2031, %v2346, 0
        %v2353 = vsel %vm2031, %v2348, 0
        %2355 = vmatprep.subr.bf16.mxu0 0
        %2356 = vmatpush1.bf16.xpose.msra.mxu0 0
        %2357 = vmatprep.subr.bf16.mxu0 0
        %2358 = vmatpush1.bf16.xpose.msra.mxu0 0
        %2359 = vmatprep.subr.bf16.mxu0 0
        %2360 = vmatpush1.bf16.xpose.msra.mxu0 0
        %2361 = vmatprep.subr.bf16.mxu0 0
        %2362 = vmatpush1.bf16.xpose.msra.mxu0 0
        %2363 = vmatprep.subr.bf16.mxu0 0
        %2364 = vmatpush1.bf16.xpose.msra.mxu0 0
        %2365 = vmatprep.subr.bf16.mxu0 0
        %2366 = vmatpush1.bf16.xpose.msra.mxu0 0
        %2367 = vmatprep.subr.bf16.mxu0 0
        %2368 = vmatpush1.bf16.xpose.msra.mxu0 0
        %2369 = vmatprep.subr.bf16.mxu0 0
        %2370 = vmatpush1.bf16.xpose.msra.mxu0 %v2353
        %2371 = vmatprep.subr.bf16.mxu0 0
        %2372 = vmatpush2.bf16.xpose.msra.mxu0 0
        %2373 = vmatprep.subr.bf16.mxu0 0
        %2374 = vmatpush2.bf16.xpose.msra.mxu0 0
        %2375 = vmatprep.subr.bf16.mxu0 0
        %2376 = vmatpush2.bf16.xpose.msra.mxu0 0
        %2377 = vmatprep.subr.bf16.mxu0 0
        %2378 = vmatpush2.bf16.xpose.msra.mxu0 0
        %2379 = vmatprep.subr.bf16.mxu0 0
        %2380 = vmatpush2.bf16.xpose.msra.mxu0 0
        %2381 = vmatprep.subr.bf16.mxu0 0
        %2382 = vmatpush2.bf16.xpose.msra.mxu0 0
        %2383 = vmatprep.subr.bf16.mxu0 0
        %2384 = vmatpush2.bf16.xpose.msra.mxu0 0
        %2385 = vmatprep.subr.bf16.mxu0 0
        %2386 = vmatpush2.bf16.xpose.msra.mxu0 0
        %2387 = vmatprep.mubr.bf16.mxu0 0
        %2388 = vmatmul.mubr.bf16.gmra.mxu0 %v2350
        %v2389 = vpop.f32.mrf.mxu0
        %v2390 = vadd.f32 %v1802, %v2389
        %v2391 = vpop.f32.mrf.mxu0
        %v2392 = vpop.f32.mrf.mxu0
        %v2393 = vpop.f32.mrf.mxu0
        %2394 = vdwg.mxu0
        %v2395 = vsel %vm2031, %v2390, -inf
        %2396 = vmax.xlane.f32.xlu0 %v2395
        %v2397 = vpop.xlane.xlu0 %2396
        %v2398 = vsub.f32 %v2390, %v2397
        %v2399 = vmul.f32 %v2398, 1.442695
        %v2400 = vpow.pop %v2399
        %v2401 = vsel %vm2031, %v2400, 0.0
        %2402 = vadd.xlane.f32.xlu0 %v2401
        %v2403 = vpop.xlane.xlu0 %2402
        %v2404 = vrcp.pop %v2403
        %v2405 = vmul.f32 %v2400, %v2404
        %v2406 = vpack.c.bf16 %v2405, %v2405
        %2407 = vrot.lane.b32.xlu0 %v2090, 112
        %v2408 = vpop.permute.xlu0 %2407
        %v2410 = vsel %vm2031, %v2406, 0
        %v2413 = vsel %vm2094, %v2408, 0
        %2415 = vmatprep.subr.bf16.mxu0 0
        %2416 = vmatpush1.bf16.msra.mxu0 0
        %2417 = vmatprep.subr.bf16.mxu0 0
        %2418 = vmatpush1.bf16.msra.mxu0 0
        %2419 = vmatprep.subr.bf16.mxu0 0
        %2420 = vmatpush1.bf16.msra.mxu0 0
        %2421 = vmatprep.subr.bf16.mxu0 0
        %2422 = vmatpush1.bf16.msra.mxu0 0
        %2423 = vmatprep.subr.bf16.mxu0 0
        %2424 = vmatpush1.bf16.msra.mxu0 0
        %2425 = vmatprep.subr.bf16.mxu0 0
        %2426 = vmatpush1.bf16.msra.mxu0 0
        %2427 = vmatprep.subr.bf16.mxu0 0
        %2428 = vmatpush1.bf16.msra.mxu0 0
        %2429 = vmatprep.subr.bf16.mxu0 0
        %2430 = vmatpush1.bf16.msra.mxu0 %v2413
        %2431 = vmatprep.subr.bf16.mxu0 0
        %2432 = vmatpush2.bf16.msra.mxu0 0
        %2433 = vmatprep.subr.bf16.mxu0 0
        %2434 = vmatpush2.bf16.msra.mxu0 0
        %2435 = vmatprep.subr.bf16.mxu0 0
        %2436 = vmatpush2.bf16.msra.mxu0 0
        %2437 = vmatprep.subr.bf16.mxu0 0
        %2438 = vmatpush2.bf16.msra.mxu0 0
        %2439 = vmatprep.subr.bf16.mxu0 0
        %2440 = vmatpush2.bf16.msra.mxu0 0
        %2441 = vmatprep.subr.bf16.mxu0 0
        %2442 = vmatpush2.bf16.msra.mxu0 0
        %2443 = vmatprep.subr.bf16.mxu0 0
        %2444 = vmatpush2.bf16.msra.mxu0 0
        %2445 = vmatprep.subr.bf16.mxu0 0
        %2446 = vmatpush2.bf16.msra.mxu0 0
        %2447 = vmatprep.mubr.bf16.mxu0 0
        %2448 = vmatmul.mubr.bf16.gmra.mxu0 %v2410
        %v2449 = vpop.f32.mrf.mxu0
        %v2450 = vadd.f32 0.0, %v2449
        %v2451 = vpop.f32.mrf.mxu0
        %v2452 = vpop.f32.mrf.mxu0
        %v2453 = vpop.f32.mrf.mxu0
        %2454 = vdwg.mxu0
        %v2455 = vpack.c.bf16 %v2450, %v2450
        %v2457 = vsel %vm2031, %v2455, 0
        %v2460 = vsel %vm2094, %v1828, 0
        %2462 = vmatprep.subr.bf16.mxu0 0
        %2463 = vmatpush1.bf16.msra.mxu0 0
        %2464 = vmatprep.subr.bf16.mxu0 0
        %2465 = vmatpush1.bf16.msra.mxu0 0
        %2466 = vmatprep.subr.bf16.mxu0 0
        %2467 = vmatpush1.bf16.msra.mxu0 0
        %2468 = vmatprep.subr.bf16.mxu0 0
        %2469 = vmatpush1.bf16.msra.mxu0 0
        %2470 = vmatprep.subr.bf16.mxu0 0
        %2471 = vmatpush1.bf16.msra.mxu0 0
        %2472 = vmatprep.subr.bf16.mxu0 0
        %2473 = vmatpush1.bf16.msra.mxu0 0
        %2474 = vmatprep.subr.bf16.mxu0 0
        %2475 = vmatpush1.bf16.msra.mxu0 0
        %2476 = vmatprep.subr.bf16.mxu0 0
        %2477 = vmatpush1.bf16.msra.mxu0 %v2460
        %2478 = vmatprep.subr.bf16.mxu0 0
        %2479 = vmatpush2.bf16.msra.mxu0 0
        %2480 = vmatprep.subr.bf16.mxu0 0
        %2481 = vmatpush2.bf16.msra.mxu0 0
        %2482 = vmatprep.subr.bf16.mxu0 0
        %2483 = vmatpush2.bf16.msra.mxu0 0
        %2484 = vmatprep.subr.bf16.mxu0 0
        %2485 = vmatpush2.bf16.msra.mxu0 0
        %2486 = vmatprep.subr.bf16.mxu0 0
        %2487 = vmatpush2.bf16.msra.mxu0 0
        %2488 = vmatprep.subr.bf16.mxu0 0
        %2489 = vmatpush2.bf16.msra.mxu0 0
        %2490 = vmatprep.subr.bf16.mxu0 0
        %2491 = vmatpush2.bf16.msra.mxu0 0
        %2492 = vmatprep.subr.bf16.mxu0 0
        %2493 = vmatpush2.bf16.msra.mxu0 0
        %2494 = vmatprep.mubr.bf16.mxu0 0
        %2495 = vmatmul.mubr.bf16.gmra.mxu0 %v2457
        %v2496 = vpop.f32.mrf.mxu0
        %v2497 = vadd.f32 0.0, %v2496
        %v2498 = vpop.f32.mrf.mxu0
        %v2499 = vpop.f32.mrf.mxu0
        %v2500 = vpop.f32.mrf.mxu0
        %2501 = vdwg.mxu0
        %v2502 = vadd.f32 %v2340, %v2497
        %2503 = vrot.lane.b32.xlu0 %v2029, 104
        %v2504 = vpop.permute.xlu0 %2503
        %2505 = vrot.lane.b32.xlu0 %v2030, 104
        %v2506 = vpop.permute.xlu0 %2505
        %v2508 = vsel %vm2031, %v2504, 0
        %v2511 = vsel %vm2031, %v2506, 0
        %2513 = vmatprep.subr.bf16.mxu0 0
        %2514 = vmatpush1.bf16.xpose.msra.mxu0 0
        %2515 = vmatprep.subr.bf16.mxu0 0
        %2516 = vmatpush1.bf16.xpose.msra.mxu0 0
        %2517 = vmatprep.subr.bf16.mxu0 0
        %2518 = vmatpush1.bf16.xpose.msra.mxu0 0
        %2519 = vmatprep.subr.bf16.mxu0 0
        %2520 = vmatpush1.bf16.xpose.msra.mxu0 0
        %2521 = vmatprep.subr.bf16.mxu0 0
        %2522 = vmatpush1.bf16.xpose.msra.mxu0 0
        %2523 = vmatprep.subr.bf16.mxu0 0
        %2524 = vmatpush1.bf16.xpose.msra.mxu0 0
        %2525 = vmatprep.subr.bf16.mxu0 0
        %2526 = vmatpush1.bf16.xpose.msra.mxu0 0
        %2527 = vmatprep.subr.bf16.mxu0 0
        %2528 = vmatpush1.bf16.xpose.msra.mxu0 %v2511
        %2529 = vmatprep.subr.bf16.mxu0 0
        %2530 = vmatpush2.bf16.xpose.msra.mxu0 0
        %2531 = vmatprep.subr.bf16.mxu0 0
        %2532 = vmatpush2.bf16.xpose.msra.mxu0 0
        %2533 = vmatprep.subr.bf16.mxu0 0
        %2534 = vmatpush2.bf16.xpose.msra.mxu0 0
        %2535 = vmatprep.subr.bf16.mxu0 0
        %2536 = vmatpush2.bf16.xpose.msra.mxu0 0
        %2537 = vmatprep.subr.bf16.mxu0 0
        %2538 = vmatpush2.bf16.xpose.msra.mxu0 0
        %2539 = vmatprep.subr.bf16.mxu0 0
        %2540 = vmatpush2.bf16.xpose.msra.mxu0 0
        %2541 = vmatprep.subr.bf16.mxu0 0
        %2542 = vmatpush2.bf16.xpose.msra.mxu0 0
        %2543 = vmatprep.subr.bf16.mxu0 0
        %2544 = vmatpush2.bf16.xpose.msra.mxu0 0
        %2545 = vmatprep.mubr.bf16.mxu0 0
        %2546 = vmatmul.mubr.bf16.gmra.mxu0 %v2508
        %v2547 = vpop.f32.mrf.mxu0
        %v2548 = vadd.f32 %v1802, %v2547
        %v2549 = vpop.f32.mrf.mxu0
        %v2550 = vpop.f32.mrf.mxu0
        %v2551 = vpop.f32.mrf.mxu0
        %2552 = vdwg.mxu0
        %v2553 = vsel %vm2031, %v2548, -inf
        %2554 = vmax.xlane.f32.xlu0 %v2553
        %v2555 = vpop.xlane.xlu0 %2554
        %v2556 = vsub.f32 %v2548, %v2555
        %v2557 = vmul.f32 %v2556, 1.442695
        %v2558 = vpow.pop %v2557
        %v2559 = vsel %vm2031, %v2558, 0.0
        %2560 = vadd.xlane.f32.xlu0 %v2559
        %v2561 = vpop.xlane.xlu0 %2560
        %v2562 = vrcp.pop %v2561
        %v2563 = vmul.f32 %v2558, %v2562
        %v2564 = vpack.c.bf16 %v2563, %v2563
        %2565 = vrot.lane.b32.xlu0 %v2090, 104
        %v2566 = vpop.permute.xlu0 %2565
        %v2568 = vsel %vm2031, %v2564, 0
        %v2571 = vsel %vm2094, %v2566, 0
        %2573 = vmatprep.subr.bf16.mxu0 0
        %2574 = vmatpush1.bf16.msra.mxu0 0
        %2575 = vmatprep.subr.bf16.mxu0 0
        %2576 = vmatpush1.bf16.msra.mxu0 0
        %2577 = vmatprep.subr.bf16.mxu0 0
        %2578 = vmatpush1.bf16.msra.mxu0 0
        %2579 = vmatprep.subr.bf16.mxu0 0
        %2580 = vmatpush1.bf16.msra.mxu0 0
        %2581 = vmatprep.subr.bf16.mxu0 0
        %2582 = vmatpush1.bf16.msra.mxu0 0
        %2583 = vmatprep.subr.bf16.mxu0 0
        %2584 = vmatpush1.bf16.msra.mxu0 0
        %2585 = vmatprep.subr.bf16.mxu0 0
        %2586 = vmatpush1.bf16.msra.mxu0 0
        %2587 = vmatprep.subr.bf16.mxu0 0
        %2588 = vmatpush1.bf16.msra.mxu0 %v2571
        %2589 = vmatprep.subr.bf16.mxu0 0
        %2590 = vmatpush2.bf16.msra.mxu0 0
        %2591 = vmatprep.subr.bf16.mxu0 0
        %2592 = vmatpush2.bf16.msra.mxu0 0
        %2593 = vmatprep.subr.bf16.mxu0 0
        %2594 = vmatpush2.bf16.msra.mxu0 0
        %2595 = vmatprep.subr.bf16.mxu0 0
        %2596 = vmatpush2.bf16.msra.mxu0 0
        %2597 = vmatprep.subr.bf16.mxu0 0
        %2598 = vmatpush2.bf16.msra.mxu0 0
        %2599 = vmatprep.subr.bf16.mxu0 0
        %2600 = vmatpush2.bf16.msra.mxu0 0
        %2601 = vmatprep.subr.bf16.mxu0 0
        %2602 = vmatpush2.bf16.msra.mxu0 0
        %2603 = vmatprep.subr.bf16.mxu0 0
        %2604 = vmatpush2.bf16.msra.mxu0 0
        %2605 = vmatprep.mubr.bf16.mxu0 0
        %2606 = vmatmul.mubr.bf16.gmra.mxu0 %v2568
        %v2607 = vpop.f32.mrf.mxu0
        %v2608 = vadd.f32 0.0, %v2607
        %v2609 = vpop.f32.mrf.mxu0
        %v2610 = vpop.f32.mrf.mxu0
        %v2611 = vpop.f32.mrf.mxu0
        %2612 = vdwg.mxu0
        %v2613 = vpack.c.bf16 %v2608, %v2608
        %v2615 = vsel %vm2031, %v2613, 0
        %v2618 = vsel %vm2094, %v1829, 0
        %2620 = vmatprep.subr.bf16.mxu0 0
        %2621 = vmatpush1.bf16.msra.mxu0 0
        %2622 = vmatprep.subr.bf16.mxu0 0
        %2623 = vmatpush1.bf16.msra.mxu0 0
        %2624 = vmatprep.subr.bf16.mxu0 0
        %2625 = vmatpush1.bf16.msra.mxu0 0
        %2626 = vmatprep.subr.bf16.mxu0 0
        %2627 = vmatpush1.bf16.msra.mxu0 0
        %2628 = vmatprep.subr.bf16.mxu0 0
        %2629 = vmatpush1.bf16.msra.mxu0 0
        %2630 = vmatprep.subr.bf16.mxu0 0
        %2631 = vmatpush1.bf16.msra.mxu0 0
        %2632 = vmatprep.subr.bf16.mxu0 0
        %2633 = vmatpush1.bf16.msra.mxu0 0
        %2634 = vmatprep.subr.bf16.mxu0 0
        %2635 = vmatpush1.bf16.msra.mxu0 %v2618
        %2636 = vmatprep.subr.bf16.mxu0 0
        %2637 = vmatpush2.bf16.msra.mxu0 0
        %2638 = vmatprep.subr.bf16.mxu0 0
        %2639 = vmatpush2.bf16.msra.mxu0 0
        %2640 = vmatprep.subr.bf16.mxu0 0
        %2641 = vmatpush2.bf16.msra.mxu0 0
        %2642 = vmatprep.subr.bf16.mxu0 0
        %2643 = vmatpush2.bf16.msra.mxu0 0
        %2644 = vmatprep.subr.bf16.mxu0 0
        %2645 = vmatpush2.bf16.msra.mxu0 0
        %2646 = vmatprep.subr.bf16.mxu0 0
        %2647 = vmatpush2.bf16.msra.mxu0 0
        %2648 = vmatprep.subr.bf16.mxu0 0
        %2649 = vmatpush2.bf16.msra.mxu0 0
        %2650 = vmatprep.subr.bf16.mxu0 0
        %2651 = vmatpush2.bf16.msra.mxu0 0
        %2652 = vmatprep.mubr.bf16.mxu0 0
        %2653 = vmatmul.mubr.bf16.gmra.mxu0 %v2615
        %v2654 = vpop.f32.mrf.mxu0
        %v2655 = vadd.f32 0.0, %v2654
        %v2656 = vpop.f32.mrf.mxu0
        %v2657 = vpop.f32.mrf.mxu0
        %v2658 = vpop.f32.mrf.mxu0
        %2659 = vdwg.mxu0
        %v2660 = vadd.f32 %v2502, %v2655
        %v2661 = vadd.f32 %v1791, %v2660
        %v2662 = vlaneseq
        %v2663 = vshrl.u32 %v2662, 7
        %v2664 = vsub.s32 0, %v2663
        %v2665 = vrot.slane %v1830, %v2664
        %v2666 = vadd.f32 %v2661, %v2665
        %v2667 = vld [vmem:[#allocation28] sm:$0x1]
        %v2668 = vld [vmem:[#allocation29] sm:$0x1]
        %v2669 = vld [vmem:[%s39] sm:$0xf]
        %v2670 = vld [vmem:[%s39 + $0x4] sm:$0xf]
        %v2671 = vld [vmem:[%s39 + $0x8] sm:$0xf]
        %v2672 = vld [vmem:[%s39 + $0xc] sm:$0xf]
        %v2673 = vld [vmem:[#allocation31] sm:$0x1]
        %v2674 = vld [vmem:[#allocation32] sm:$0xf]
        %v2675 = vld [vmem:[#allocation32 + $0x4] sm:$0xf]
        %v2676 = vld [vmem:[#allocation32 + $0x8] sm:$0xf]
        %v2677 = vld [vmem:[#allocation32 + $0xc] sm:$0xf]
        %v2678 = vld [vmem:[#allocation34] sm:$0x1]
        %v2679 = vld [vmem:[#allocation35] sm:$0xf]
        %v2680 = vld [vmem:[#allocation35 + $0x4] sm:$0xf]
        %v2681 = vld [vmem:[#allocation35 + $0x8] sm:$0xf]
        %v2682 = vld [vmem:[#allocation35 + $0xc] sm:$0xf]
        %v2683 = vld [vmem:[#allocation37] sm:$0x1]
        %v2684 = vld [vmem:[#allocation38] sm:$0xf]
        %v2685 = vld [vmem:[#allocation38 + $0x4] sm:$0xf]
        %v2686 = vld [vmem:[#allocation38 + $0x8] sm:$0xf]
        %v2687 = vld [vmem:[#allocation38 + $0xc] sm:$0xf]
        %v2688 = vld [vmem:[#allocation40] sm:$0x1]
        %v2689 = vsel %vm1831, %v2666, 0.0
        %2690 = vadd.xlane.f32.xlu0 %v2689
        %v2691 = vpop.xlane.xlu0 %2690
        %v2692 = vmul.f32 %v2691, %v1835
        %v2693 = vsub.f32 %v2666, %v2692
        %v2694 = vmul.f32 %v2693, %v2693
        %v2695 = vsel %vm1831, %v2694, 0.0
        %2696 = vadd.xlane.f32.xlu0 %v2695
        %v2697 = vpop.xlane.xlu0 %2696
        %v2698 = vmul.f32 %v2697, %v1835
        %v2699 = vadd.f32 %v2698, 1e-05
        %v2700 = vrsqrt.pop %v2699
        %v2701 = vmul.f32 %v2693, %v2700
        %v2702 = vlaneseq
        %v2703 = vshrl.u32 %v2702, 7
        %v2704 = vsub.s32 0, %v2703
        %v2705 = vrot.slane %v2667, %v2704
        %v2706 = vmul.f32 %v2701, %v2705
        %v2707 = vlaneseq
        %v2708 = vshrl.u32 %v2707, 7
        %v2709 = vsub.s32 0, %v2708
        %v2710 = vrot.slane %v2668, %v2709
        %v2711 = vadd.f32 %v2706, %v2710
        %v2712 = vpack.c.bf16 %v2711, %v2711
        %v2713 = vlaneseq
        %v2714 = vshrl.u32 %v2713, 7
        %v2715 = vsub.s32 0, %v2714
        %v2716 = vrot.slane %v2673, %v2715
        %v2721 = vunpack.c.l.b16 %v2669
        %v2722 = vunpack.c.l.b16 %v2670
        %v2723 = vunpack.c.l.b16 %v2671
        %v2724 = vunpack.c.l.b16 %v2672
        %v2725 = vpack.c.b16 %v2722, %v2721
        %v2726 = vpack.c.b16 %v2724, %v2723
        %v2730 = vsel %vm1831, %v2712, 0
        %2732 = vmatprep.subr.bf16.mxu0 0
        %2733 = vmatpush1.bf16.msra.mxu0 0
        %2734 = vmatprep.subr.bf16.mxu0 0
        %2735 = vmatpush1.bf16.msra.mxu0 0
        %2736 = vmatprep.subr.bf16.mxu0 0
        %2737 = vmatpush1.bf16.msra.mxu0 0
        %2738 = vmatprep.subr.bf16.mxu0 0
        %2739 = vmatpush1.bf16.msra.mxu0 0
        %2740 = vmatprep.subr.bf16.mxu0 0
        %2741 = vmatpush1.bf16.msra.mxu0 0
        %2742 = vmatprep.subr.bf16.mxu0 0
        %2743 = vmatpush1.bf16.msra.mxu0 0
        %2744 = vmatprep.subr.bf16.mxu0 0
        %2745 = vmatpush1.bf16.msra.mxu0 %v2726
        %2746 = vmatprep.subr.bf16.mxu0 0
        %2747 = vmatpush1.bf16.msra.mxu0 %v2725
        %2748 = vmatprep.subr.bf16.mxu0 0
        %2749 = vmatpush2.bf16.msra.mxu0 0
        %2750 = vmatprep.subr.bf16.mxu0 0
        %2751 = vmatpush2.bf16.msra.mxu0 0
        %2752 = vmatprep.subr.bf16.mxu0 0
        %2753 = vmatpush2.bf16.msra.mxu0 0
        %2754 = vmatprep.subr.bf16.mxu0 0
        %2755 = vmatpush2.bf16.msra.mxu0 0
        %2756 = vmatprep.subr.bf16.mxu0 0
        %2757 = vmatpush2.bf16.msra.mxu0 0
        %2758 = vmatprep.subr.bf16.mxu0 0
        %2759 = vmatpush2.bf16.msra.mxu0 0
        %2760 = vmatprep.subr.bf16.mxu0 0
        %2761 = vmatpush2.bf16.msra.mxu0 0
        %2762 = vmatprep.subr.bf16.mxu0 0
        %2763 = vmatpush2.bf16.msra.mxu0 0
        %2764 = vmatprep.mubr.bf16.mxu0 0
        %2765 = vmatmul.mubr.bf16.gmra.mxu0 %v2730
        %v2766 = vpop.f32.mrf.mxu0
        %v2767 = vadd.f32 %v2716, %v2766
        %v2768 = vpop.f32.mrf.mxu0
        %v2769 = vpop.f32.mrf.mxu0
        %v2770 = vpop.f32.mrf.mxu0
        %2771 = vdwg.mxu0
        %v2772 = vlaneseq
        %v2773 = vshrl.u32 %v2772, 7
        %v2774 = vsub.s32 0, %v2773
        %v2775 = vrot.slane %v2678, %v2774
        %v2780 = vunpack.c.l.b16 %v2674
        %v2781 = vunpack.c.l.b16 %v2675
        %v2782 = vunpack.c.l.b16 %v2676
        %v2783 = vunpack.c.l.b16 %v2677
        %v2784 = vpack.c.b16 %v2781, %v2780
        %v2785 = vpack.c.b16 %v2783, %v2782
        %v2789 = vsel %vm1831, %v1794, 0
        %2791 = vmatprep.subr.bf16.mxu0 0
        %2792 = vmatpush1.bf16.msra.mxu0 0
        %2793 = vmatprep.subr.bf16.mxu0 0
        %2794 = vmatpush1.bf16.msra.mxu0 0
        %2795 = vmatprep.subr.bf16.mxu0 0
        %2796 = vmatpush1.bf16.msra.mxu0 0
        %2797 = vmatprep.subr.bf16.mxu0 0
        %2798 = vmatpush1.bf16.msra.mxu0 0
        %2799 = vmatprep.subr.bf16.mxu0 0
        %2800 = vmatpush1.bf16.msra.mxu0 0
        %2801 = vmatprep.subr.bf16.mxu0 0
        %2802 = vmatpush1.bf16.msra.mxu0 0
        %2803 = vmatprep.subr.bf16.mxu0 0
        %2804 = vmatpush1.bf16.msra.mxu0 %v2785
        %2805 = vmatprep.subr.bf16.mxu0 0
        %2806 = vmatpush1.bf16.msra.mxu0 %v2784
        %2807 = vmatprep.subr.bf16.mxu0 0
        %2808 = vmatpush2.bf16.msra.mxu0 0
        %2809 = vmatprep.subr.bf16.mxu0 0
        %2810 = vmatpush2.bf16.msra.mxu0 0
        %2811 = vmatprep.subr.bf16.mxu0 0
        %2812 = vmatpush2.bf16.msra.mxu0 0
        %2813 = vmatprep.subr.bf16.mxu0 0
        %2814 = vmatpush2.bf16.msra.mxu0 0
        %2815 = vmatprep.subr.bf16.mxu0 0
        %2816 = vmatpush2.bf16.msra.mxu0 0
        %2817 = vmatprep.subr.bf16.mxu0 0
        %2818 = vmatpush2.bf16.msra.mxu0 0
        %2819 = vmatprep.subr.bf16.mxu0 0
        %2820 = vmatpush2.bf16.msra.mxu0 0
        %2821 = vmatprep.subr.bf16.mxu0 0
        %2822 = vmatpush2.bf16.msra.mxu0 0
        %2823 = vmatprep.mubr.bf16.mxu0 0
        %2824 = vmatmul.mubr.bf16.gmra.mxu0 %v2789
        %v2825 = vpop.f32.mrf.mxu0
        %v2826 = vadd.f32 %v2775, %v2825
        %v2827 = vpop.f32.mrf.mxu0
        %v2828 = vpop.f32.mrf.mxu0
        %v2829 = vadd.f32 %v2775, %v2828
        %v2830 = vpop.f32.mrf.mxu0
        %2831 = vdwg.mxu0
        %v2832 = vlaneseq
        %v2833 = vshrl.u32 %v2832, 7
        %v2834 = vsub.s32 0, %v2833
        %v2835 = vrot.slane %v2683, %v2834
        %v2840 = vunpack.c.l.b16 %v2679
        %v2841 = vunpack.c.l.b16 %v2680
        %v2842 = vunpack.c.l.b16 %v2681
        %v2843 = vunpack.c.l.b16 %v2682
        %v2844 = vpack.c.b16 %v2841, %v2840
        %v2845 = vpack.c.b16 %v2843, %v2842
        %2848 = vmatprep.subr.bf16.mxu0 0
        %2849 = vmatpush1.bf16.msra.mxu0 0
        %2850 = vmatprep.subr.bf16.mxu0 0
        %2851 = vmatpush1.bf16.msra.mxu0 0
        %2852 = vmatprep.subr.bf16.mxu0 0
        %2853 = vmatpush1.bf16.msra.mxu0 0
        %2854 = vmatprep.subr.bf16.mxu0 0
        %2855 = vmatpush1.bf16.msra.mxu0 0
        %2856 = vmatprep.subr.bf16.mxu0 0
        %2857 = vmatpush1.bf16.msra.mxu0 0
        %2858 = vmatprep.subr.bf16.mxu0 0
        %2859 = vmatpush1.bf16.msra.mxu0 0
        %2860 = vmatprep.subr.bf16.mxu0 0
        %2861 = vmatpush1.bf16.msra.mxu0 %v2845
        %2862 = vmatprep.subr.bf16.mxu0 0
        %2863 = vmatpush1.bf16.msra.mxu0 %v2844
        %2864 = vmatprep.subr.bf16.mxu0 0
        %2865 = vmatpush2.bf16.msra.mxu0 0
        %2866 = vmatprep.subr.bf16.mxu0 0
        %2867 = vmatpush2.bf16.msra.mxu0 0
        %2868 = vmatprep.subr.bf16.mxu0 0
        %2869 = vmatpush2.bf16.msra.mxu0 0
        %2870 = vmatprep.subr.bf16.mxu0 0
        %2871 = vmatpush2.bf16.msra.mxu0 0
        %2872 = vmatprep.subr.bf16.mxu0 0
        %2873 = vmatpush2.bf16.msra.mxu0 0
        %2874 = vmatprep.subr.bf16.mxu0 0
        %2875 = vmatpush2.bf16.msra.mxu0 0
        %2876 = vmatprep.subr.bf16.mxu0 0
        %2877 = vmatpush2.bf16.msra.mxu0 0
        %2878 = vmatprep.subr.bf16.mxu0 0
        %2879 = vmatpush2.bf16.msra.mxu0 0
        %2880 = vmatprep.mubr.bf16.mxu0 0
        %2881 = vmatmul.mubr.bf16.gmra.mxu0 %v2789
        %v2882 = vpop.f32.mrf.mxu0
        %v2883 = vadd.f32 %v2835, %v2882
        %v2884 = vpop.f32.mrf.mxu0
        %v2885 = vpop.f32.mrf.mxu0
        %v2886 = vadd.f32 %v2835, %v2885
        %v2887 = vpop.f32.mrf.mxu0
        %2888 = vdwg.mxu0
        %v2889 = vmul.f32 %v2767, 0.35355338
        %v2890 = vpack.c.bf16 %v2889, %v2889
        %v2891 = vpack.c.bf16 %v2829, %v2826
        %v2893 = vlaneseq
        %v2894 = vshrl.u32 %v2893, 7
        %v2895 = vsub.s32 0, %v2894
        %v2896 = vrot.slane %v1805, %v2895
        %v2899 = vsel %vm2031, %v2890, 0
        %v2902 = vsel %vm2031, %v2891, 0
        %2904 = vmatprep.subr.bf16.mxu0 0
        %2905 = vmatpush1.bf16.xpose.msra.mxu0 0
        %2906 = vmatprep.subr.bf16.mxu0 0
        %2907 = vmatpush1.bf16.xpose.msra.mxu0 0
        %2908 = vmatprep.subr.bf16.mxu0 0
        %2909 = vmatpush1.bf16.xpose.msra.mxu0 0
        %2910 = vmatprep.subr.bf16.mxu0 0
        %2911 = vmatpush1.bf16.xpose.msra.mxu0 0
        %2912 = vmatprep.subr.bf16.mxu0 0
        %2913 = vmatpush1.bf16.xpose.msra.mxu0 0
        %2914 = vmatprep.subr.bf16.mxu0 0
        %2915 = vmatpush1.bf16.xpose.msra.mxu0 0
        %2916 = vmatprep.subr.bf16.mxu0 0
        %2917 = vmatpush1.bf16.xpose.msra.mxu0 0
        %2918 = vmatprep.subr.bf16.mxu0 0
        %2919 = vmatpush1.bf16.xpose.msra.mxu0 %v2902
        %2920 = vmatprep.subr.bf16.mxu0 0
        %2921 = vmatpush2.bf16.xpose.msra.mxu0 0
        %2922 = vmatprep.subr.bf16.mxu0 0
        %2923 = vmatpush2.bf16.xpose.msra.mxu0 0
        %2924 = vmatprep.subr.bf16.mxu0 0
        %2925 = vmatpush2.bf16.xpose.msra.mxu0 0
        %2926 = vmatprep.subr.bf16.mxu0 0
        %2927 = vmatpush2.bf16.xpose.msra.mxu0 0
        %2928 = vmatprep.subr.bf16.mxu0 0
        %2929 = vmatpush2.bf16.xpose.msra.mxu0 0
        %2930 = vmatprep.subr.bf16.mxu0 0
        %2931 = vmatpush2.bf16.xpose.msra.mxu0 0
        %2932 = vmatprep.subr.bf16.mxu0 0
        %2933 = vmatpush2.bf16.xpose.msra.mxu0 0
        %2934 = vmatprep.subr.bf16.mxu0 0
        %2935 = vmatpush2.bf16.xpose.msra.mxu0 0
        %2936 = vmatprep.mubr.bf16.mxu0 0
        %2937 = vmatmul.mubr.bf16.gmra.mxu0 %v2899
        %v2938 = vpop.f32.mrf.mxu0
        %v2939 = vadd.f32 %v2896, %v2938
        %v2940 = vpop.f32.mrf.mxu0
        %v2941 = vpop.f32.mrf.mxu0
        %v2942 = vpop.f32.mrf.mxu0
        %2943 = vdwg.mxu0
        %vm2944 = vcmask 130048
        %v2945 = vsel %vm2944, %v2939, -inf
        %2946 = vmax.xlane.f32.xlu0 %v2945
        %v2947 = vpop.xlane.xlu0 %2946
        %v2948 = vsub.f32 %v2939, %v2947
        %v2949 = vmul.f32 %v2948, 1.442695
        %v2950 = vpow.pop %v2949
        %v2951 = vsel %vm2944, %v2950, 0.0
        %2952 = vadd.xlane.f32.xlu0 %v2951
        %v2953 = vpop.xlane.xlu0 %2952
        %v2954 = vrcp.pop %v2953
        %v2955 = vmul.f32 %v2950, %v2954
        %v2956 = vpack.c.bf16 %v2955, %v2955
        %v2957 = vpack.c.bf16 %v2886, %v2883
        %v2959 = vsel %vm2944, %v2956, 0
        %2961 = vmatprep.subr.bf16.mxu0 0
        %2962 = vmatpush1.bf16.msra.mxu0 0
        %2963 = vmatprep.subr.bf16.mxu0 0
        %2964 = vmatpush1.bf16.msra.mxu0 0
        %2965 = vmatprep.subr.bf16.mxu0 0
        %2966 = vmatpush1.bf16.msra.mxu0 0
        %2967 = vmatprep.subr.bf16.mxu0 0
        %2968 = vmatpush1.bf16.msra.mxu0 0
        %2969 = vmatprep.subr.bf16.mxu0 0
        %2970 = vmatpush1.bf16.msra.mxu0 0
        %2971 = vmatprep.subr.bf16.mxu0 0
        %2972 = vmatpush1.bf16.msra.mxu0 0
        %2973 = vmatprep.subr.bf16.mxu0 0
        %2974 = vmatpush1.bf16.msra.mxu0 0
        %2975 = vmatprep.subr.bf16.mxu0 0
        %2976 = vmatpush1.bf16.msra.mxu0 %v2957
        %2977 = vmatprep.subr.bf16.mxu0 0
        %2978 = vmatpush2.bf16.msra.mxu0 0
        %2979 = vmatprep.subr.bf16.mxu0 0
        %2980 = vmatpush2.bf16.msra.mxu0 0
        %2981 = vmatprep.subr.bf16.mxu0 0
        %2982 = vmatpush2.bf16.msra.mxu0 0
        %2983 = vmatprep.subr.bf16.mxu0 0
        %2984 = vmatpush2.bf16.msra.mxu0 0
        %2985 = vmatprep.subr.bf16.mxu0 0
        %2986 = vmatpush2.bf16.msra.mxu0 0
        %2987 = vmatprep.subr.bf16.mxu0 0
        %2988 = vmatpush2.bf16.msra.mxu0 0
        %2989 = vmatprep.subr.bf16.mxu0 0
        %2990 = vmatpush2.bf16.msra.mxu0 0
        %2991 = vmatprep.subr.bf16.mxu0 0
        %2992 = vmatpush2.bf16.msra.mxu0 0
        %2993 = vmatprep.mubr.bf16.mxu0 0
        %2994 = vmatmul.mubr.bf16.gmra.mxu0 %v2959
        %v2995 = vpop.f32.mrf.mxu0
        %v2996 = vadd.f32 0.0, %v2995
        %v2997 = vpop.f32.mrf.mxu0
        %v2998 = vpop.f32.mrf.mxu0
        %v2999 = vpop.f32.mrf.mxu0
        %3000 = vdwg.mxu0
        %v3001 = vpack.c.bf16 %v2996, %v2996
        %3003 = vrot.lane.b32.xlu0 %v2890, 120
        %v3004 = vpop.permute.xlu0 %3003
        %3006 = vrot.lane.b32.xlu0 %v2891, 120
        %v3007 = vpop.permute.xlu0 %3006
        %v3009 = vsel %vm2031, %v3004, 0
        %v3012 = vsel %vm2031, %v3007, 0
        %3014 = vmatprep.subr.bf16.mxu0 0
        %3015 = vmatpush1.bf16.xpose.msra.mxu0 0
        %3016 = vmatprep.subr.bf16.mxu0 0
        %3017 = vmatpush1.bf16.xpose.msra.mxu0 0
        %3018 = vmatprep.subr.bf16.mxu0 0
        %3019 = vmatpush1.bf16.xpose.msra.mxu0 0
        %3020 = vmatprep.subr.bf16.mxu0 0
        %3021 = vmatpush1.bf16.xpose.msra.mxu0 0
        %3022 = vmatprep.subr.bf16.mxu0 0
        %3023 = vmatpush1.bf16.xpose.msra.mxu0 0
        %3024 = vmatprep.subr.bf16.mxu0 0
        %3025 = vmatpush1.bf16.xpose.msra.mxu0 0
        %3026 = vmatprep.subr.bf16.mxu0 0
        %3027 = vmatpush1.bf16.xpose.msra.mxu0 0
        %3028 = vmatprep.subr.bf16.mxu0 0
        %3029 = vmatpush1.bf16.xpose.msra.mxu0 %v3012
        %3030 = vmatprep.subr.bf16.mxu0 0
        %3031 = vmatpush2.bf16.xpose.msra.mxu0 0
        %3032 = vmatprep.subr.bf16.mxu0 0
        %3033 = vmatpush2.bf16.xpose.msra.mxu0 0
        %3034 = vmatprep.subr.bf16.mxu0 0
        %3035 = vmatpush2.bf16.xpose.msra.mxu0 0
        %3036 = vmatprep.subr.bf16.mxu0 0
        %3037 = vmatpush2.bf16.xpose.msra.mxu0 0
        %3038 = vmatprep.subr.bf16.mxu0 0
        %3039 = vmatpush2.bf16.xpose.msra.mxu0 0
        %3040 = vmatprep.subr.bf16.mxu0 0
        %3041 = vmatpush2.bf16.xpose.msra.mxu0 0
        %3042 = vmatprep.subr.bf16.mxu0 0
        %3043 = vmatpush2.bf16.xpose.msra.mxu0 0
        %3044 = vmatprep.subr.bf16.mxu0 0
        %3045 = vmatpush2.bf16.xpose.msra.mxu0 0
        %3046 = vmatprep.mubr.bf16.mxu0 0
        %3047 = vmatmul.mubr.bf16.gmra.mxu0 %v3009
        %v3048 = vpop.f32.mrf.mxu0
        %v3049 = vadd.f32 %v2896, %v3048
        %v3050 = vpop.f32.mrf.mxu0
        %v3051 = vpop.f32.mrf.mxu0
        %v3052 = vpop.f32.mrf.mxu0
        %3053 = vdwg.mxu0
        %v3054 = vsel %vm2944, %v3049, -inf
        %3055 = vmax.xlane.f32.xlu0 %v3054
        %v3056 = vpop.xlane.xlu0 %3055
        %v3057 = vsub.f32 %v3049, %v3056
        %v3058 = vmul.f32 %v3057, 1.442695
        %v3059 = vpow.pop %v3058
        %v3060 = vsel %vm2944, %v3059, 0.0
        %3061 = vadd.xlane.f32.xlu0 %v3060
        %v3062 = vpop.xlane.xlu0 %3061
        %v3063 = vrcp.pop %v3062
        %v3064 = vmul.f32 %v3059, %v3063
        %v3065 = vpack.c.bf16 %v3064, %v3064
        %3067 = vrot.lane.b32.xlu0 %v2957, 120
        %v3068 = vpop.permute.xlu0 %3067
        %v3071 = vsel %vm2944, %v3065, 0
        %3073 = vmatprep.subr.bf16.mxu0 0
        %3074 = vmatpush1.bf16.msra.mxu0 0
        %3075 = vmatprep.subr.bf16.mxu0 0
        %3076 = vmatpush1.bf16.msra.mxu0 0
        %3077 = vmatprep.subr.bf16.mxu0 0
        %3078 = vmatpush1.bf16.msra.mxu0 0
        %3079 = vmatprep.subr.bf16.mxu0 0
        %3080 = vmatpush1.bf16.msra.mxu0 0
        %3081 = vmatprep.subr.bf16.mxu0 0
        %3082 = vmatpush1.bf16.msra.mxu0 0
        %3083 = vmatprep.subr.bf16.mxu0 0
        %3084 = vmatpush1.bf16.msra.mxu0 0
        %3085 = vmatprep.subr.bf16.mxu0 0
        %3086 = vmatpush1.bf16.msra.mxu0 0
        %3087 = vmatprep.subr.bf16.mxu0 0
        %3088 = vmatpush1.bf16.msra.mxu0 %v3068
        %3089 = vmatprep.subr.bf16.mxu0 0
        %3090 = vmatpush2.bf16.msra.mxu0 0
        %3091 = vmatprep.subr.bf16.mxu0 0
        %3092 = vmatpush2.bf16.msra.mxu0 0
        %3093 = vmatprep.subr.bf16.mxu0 0
        %3094 = vmatpush2.bf16.msra.mxu0 0
        %3095 = vmatprep.subr.bf16.mxu0 0
        %3096 = vmatpush2.bf16.msra.mxu0 0
        %3097 = vmatprep.subr.bf16.mxu0 0
        %3098 = vmatpush2.bf16.msra.mxu0 0
        %3099 = vmatprep.subr.bf16.mxu0 0
        %3100 = vmatpush2.bf16.msra.mxu0 0
        %3101 = vmatprep.subr.bf16.mxu0 0
        %3102 = vmatpush2.bf16.msra.mxu0 0
        %3103 = vmatprep.subr.bf16.mxu0 0
        %3104 = vmatpush2.bf16.msra.mxu0 0
        %3105 = vmatprep.mubr.bf16.mxu0 0
        %3106 = vmatmul.mubr.bf16.gmra.mxu0 %v3071
        %v3107 = vpop.f32.mrf.mxu0
        %v3108 = vadd.f32 0.0, %v3107
        %v3109 = vpop.f32.mrf.mxu0
        %v3110 = vpop.f32.mrf.mxu0
        %v3111 = vpop.f32.mrf.mxu0
        %3112 = vdwg.mxu0
        %v3113 = vpack.c.bf16 %v3108, %v3108
        %v3115 = vsel %vm2031, %v3113, 0
        %v3118 = vsel %vm2094, %v2685, 0
        %3120 = vmatprep.subr.bf16.mxu0 0
        %3121 = vmatpush1.bf16.msra.mxu0 0
        %3122 = vmatprep.subr.bf16.mxu0 0
        %3123 = vmatpush1.bf16.msra.mxu0 0
        %3124 = vmatprep.subr.bf16.mxu0 0
        %3125 = vmatpush1.bf16.msra.mxu0 0
        %3126 = vmatprep.subr.bf16.mxu0 0
        %3127 = vmatpush1.bf16.msra.mxu0 0
        %3128 = vmatprep.subr.bf16.mxu0 0
        %3129 = vmatpush1.bf16.msra.mxu0 0
        %3130 = vmatprep.subr.bf16.mxu0 0
        %3131 = vmatpush1.bf16.msra.mxu0 0
        %3132 = vmatprep.subr.bf16.mxu0 0
        %3133 = vmatpush1.bf16.msra.mxu0 0
        %3134 = vmatprep.subr.bf16.mxu0 0
        %3135 = vmatpush1.bf16.msra.mxu0 %v3118
        %3136 = vmatprep.subr.bf16.mxu0 0
        %3137 = vmatpush2.bf16.msra.mxu0 0
        %3138 = vmatprep.subr.bf16.mxu0 0
        %3139 = vmatpush2.bf16.msra.mxu0 0
        %3140 = vmatprep.subr.bf16.mxu0 0
        %3141 = vmatpush2.bf16.msra.mxu0 0
        %3142 = vmatprep.subr.bf16.mxu0 0
        %3143 = vmatpush2.bf16.msra.mxu0 0
        %3144 = vmatprep.subr.bf16.mxu0 0
        %3145 = vmatpush2.bf16.msra.mxu0 0
        %3146 = vmatprep.subr.bf16.mxu0 0
        %3147 = vmatpush2.bf16.msra.mxu0 0
        %3148 = vmatprep.subr.bf16.mxu0 0
        %3149 = vmatpush2.bf16.msra.mxu0 0
        %3150 = vmatprep.subr.bf16.mxu0 0
        %3151 = vmatpush2.bf16.msra.mxu0 0
        %3152 = vmatprep.mubr.bf16.mxu0 0
        %3153 = vmatmul.mubr.bf16.gmra.mxu0 %v3115
        %v3154 = vpop.f32.mrf.mxu0
        %v3155 = vadd.f32 0.0, %v3154
        %v3156 = vpop.f32.mrf.mxu0
        %v3157 = vpop.f32.mrf.mxu0
        %v3158 = vpop.f32.mrf.mxu0
        %3159 = vdwg.mxu0
        %v3161 = vsel %vm2031, %v3001, 0
        %v3164 = vsel %vm2094, %v2684, 0
        %3166 = vmatprep.subr.bf16.mxu0 0
        %3167 = vmatpush1.bf16.msra.mxu0 0
        %3168 = vmatprep.subr.bf16.mxu0 0
        %3169 = vmatpush1.bf16.msra.mxu0 0
        %3170 = vmatprep.subr.bf16.mxu0 0
        %3171 = vmatpush1.bf16.msra.mxu0 0
        %3172 = vmatprep.subr.bf16.mxu0 0
        %3173 = vmatpush1.bf16.msra.mxu0 0
        %3174 = vmatprep.subr.bf16.mxu0 0
        %3175 = vmatpush1.bf16.msra.mxu0 0
        %3176 = vmatprep.subr.bf16.mxu0 0
        %3177 = vmatpush1.bf16.msra.mxu0 0
        %3178 = vmatprep.subr.bf16.mxu0 0
        %3179 = vmatpush1.bf16.msra.mxu0 0
        %3180 = vmatprep.subr.bf16.mxu0 0
        %3181 = vmatpush1.bf16.msra.mxu0 %v3164
        %3182 = vmatprep.subr.bf16.mxu0 0
        %3183 = vmatpush2.bf16.msra.mxu0 0
        %3184 = vmatprep.subr.bf16.mxu0 0
        %3185 = vmatpush2.bf16.msra.mxu0 0
        %3186 = vmatprep.subr.bf16.mxu0 0
        %3187 = vmatpush2.bf16.msra.mxu0 0
        %3188 = vmatprep.subr.bf16.mxu0 0
        %3189 = vmatpush2.bf16.msra.mxu0 0
        %3190 = vmatprep.subr.bf16.mxu0 0
        %3191 = vmatpush2.bf16.msra.mxu0 0
        %3192 = vmatprep.subr.bf16.mxu0 0
        %3193 = vmatpush2.bf16.msra.mxu0 0
        %3194 = vmatprep.subr.bf16.mxu0 0
        %3195 = vmatpush2.bf16.msra.mxu0 0
        %3196 = vmatprep.subr.bf16.mxu0 0
        %3197 = vmatpush2.bf16.msra.mxu0 0
        %3198 = vmatprep.mubr.bf16.mxu0 0
        %3199 = vmatmul.mubr.bf16.gmra.mxu0 %v3161
        %v3200 = vpop.f32.mrf.mxu0
        %v3201 = vadd.f32 %v3155, %v3200
        %v3202 = vpop.f32.mrf.mxu0
        %v3203 = vpop.f32.mrf.mxu0
        %v3204 = vpop.f32.mrf.mxu0
        %3205 = vdwg.mxu0
        %3206 = vrot.lane.b32.xlu0 %v2890, 112
        %v3207 = vpop.permute.xlu0 %3206
        %3208 = vrot.lane.b32.xlu0 %v2891, 112
        %v3209 = vpop.permute.xlu0 %3208
        %v3211 = vsel %vm2031, %v3207, 0
        %v3214 = vsel %vm2031, %v3209, 0
        %3216 = vmatprep.subr.bf16.mxu0 0
        %3217 = vmatpush1.bf16.xpose.msra.mxu0 0
        %3218 = vmatprep.subr.bf16.mxu0 0
        %3219 = vmatpush1.bf16.xpose.msra.mxu0 0
        %3220 = vmatprep.subr.bf16.mxu0 0
        %3221 = vmatpush1.bf16.xpose.msra.mxu0 0
        %3222 = vmatprep.subr.bf16.mxu0 0
        %3223 = vmatpush1.bf16.xpose.msra.mxu0 0
        %3224 = vmatprep.subr.bf16.mxu0 0
        %3225 = vmatpush1.bf16.xpose.msra.mxu0 0
        %3226 = vmatprep.subr.bf16.mxu0 0
        %3227 = vmatpush1.bf16.xpose.msra.mxu0 0
        %3228 = vmatprep.subr.bf16.mxu0 0
        %3229 = vmatpush1.bf16.xpose.msra.mxu0 0
        %3230 = vmatprep.subr.bf16.mxu0 0
        %3231 = vmatpush1.bf16.xpose.msra.mxu0 %v3214
        %3232 = vmatprep.subr.bf16.mxu0 0
        %3233 = vmatpush2.bf16.xpose.msra.mxu0 0
        %3234 = vmatprep.subr.bf16.mxu0 0
        %3235 = vmatpush2.bf16.xpose.msra.mxu0 0
        %3236 = vmatprep.subr.bf16.mxu0 0
        %3237 = vmatpush2.bf16.xpose.msra.mxu0 0
        %3238 = vmatprep.subr.bf16.mxu0 0
        %3239 = vmatpush2.bf16.xpose.msra.mxu0 0
        %3240 = vmatprep.subr.bf16.mxu0 0
        %3241 = vmatpush2.bf16.xpose.msra.mxu0 0
        %3242 = vmatprep.subr.bf16.mxu0 0
        %3243 = vmatpush2.bf16.xpose.msra.mxu0 0
        %3244 = vmatprep.subr.bf16.mxu0 0
        %3245 = vmatpush2.bf16.xpose.msra.mxu0 0
        %3246 = vmatprep.subr.bf16.mxu0 0
        %3247 = vmatpush2.bf16.xpose.msra.mxu0 0
        %3248 = vmatprep.mubr.bf16.mxu0 0
        %3249 = vmatmul.mubr.bf16.gmra.mxu0 %v3211
        %v3250 = vpop.f32.mrf.mxu0
        %v3251 = vadd.f32 %v2896, %v3250
        %v3252 = vpop.f32.mrf.mxu0
        %v3253 = vpop.f32.mrf.mxu0
        %v3254 = vpop.f32.mrf.mxu0
        %3255 = vdwg.mxu0
        %v3256 = vsel %vm2944, %v3251, -inf
        %3257 = vmax.xlane.f32.xlu0 %v3256
        %v3258 = vpop.xlane.xlu0 %3257
        %v3259 = vsub.f32 %v3251, %v3258
        %v3260 = vmul.f32 %v3259, 1.442695
        %v3261 = vpow.pop %v3260
        %v3262 = vsel %vm2944, %v3261, 0.0
        %3263 = vadd.xlane.f32.xlu0 %v3262
        %v3264 = vpop.xlane.xlu0 %3263
        %v3265 = vrcp.pop %v3264
        %v3266 = vmul.f32 %v3261, %v3265
        %v3267 = vpack.c.bf16 %v3266, %v3266
        %3268 = vrot.lane.b32.xlu0 %v2957, 112
        %v3269 = vpop.permute.xlu0 %3268
        %v3272 = vsel %vm2944, %v3267, 0
        %3274 = vmatprep.subr.bf16.mxu0 0
        %3275 = vmatpush1.bf16.msra.mxu0 0
        %3276 = vmatprep.subr.bf16.mxu0 0
        %3277 = vmatpush1.bf16.msra.mxu0 0
        %3278 = vmatprep.subr.bf16.mxu0 0
        %3279 = vmatpush1.bf16.msra.mxu0 0
        %3280 = vmatprep.subr.bf16.mxu0 0
        %3281 = vmatpush1.bf16.msra.mxu0 0
        %3282 = vmatprep.subr.bf16.mxu0 0
        %3283 = vmatpush1.bf16.msra.mxu0 0
        %3284 = vmatprep.subr.bf16.mxu0 0
        %3285 = vmatpush1.bf16.msra.mxu0 0
        %3286 = vmatprep.subr.bf16.mxu0 0
        %3287 = vmatpush1.bf16.msra.mxu0 0
        %3288 = vmatprep.subr.bf16.mxu0 0
        %3289 = vmatpush1.bf16.msra.mxu0 %v3269
        %3290 = vmatprep.subr.bf16.mxu0 0
        %3291 = vmatpush2.bf16.msra.mxu0 0
        %3292 = vmatprep.subr.bf16.mxu0 0
        %3293 = vmatpush2.bf16.msra.mxu0 0
        %3294 = vmatprep.subr.bf16.mxu0 0
        %3295 = vmatpush2.bf16.msra.mxu0 0
        %3296 = vmatprep.subr.bf16.mxu0 0
        %3297 = vmatpush2.bf16.msra.mxu0 0
        %3298 = vmatprep.subr.bf16.mxu0 0
        %3299 = vmatpush2.bf16.msra.mxu0 0
        %3300 = vmatprep.subr.bf16.mxu0 0
        %3301 = vmatpush2.bf16.msra.mxu0 0
        %3302 = vmatprep.subr.bf16.mxu0 0
        %3303 = vmatpush2.bf16.msra.mxu0 0
        %3304 = vmatprep.subr.bf16.mxu0 0
        %3305 = vmatpush2.bf16.msra.mxu0 0
        %3306 = vmatprep.mubr.bf16.mxu0 0
        %3307 = vmatmul.mubr.bf16.gmra.mxu0 %v3272
        %v3308 = vpop.f32.mrf.mxu0
        %v3309 = vadd.f32 0.0, %v3308
        %v3310 = vpop.f32.mrf.mxu0
        %v3311 = vpop.f32.mrf.mxu0
        %v3312 = vpop.f32.mrf.mxu0
        %3313 = vdwg.mxu0
        %v3314 = vpack.c.bf16 %v3309, %v3309
        %v3316 = vsel %vm2031, %v3314, 0
        %v3319 = vsel %vm2094, %v2686, 0
        %3321 = vmatprep.subr.bf16.mxu0 0
        %3322 = vmatpush1.bf16.msra.mxu0 0
        %3323 = vmatprep.subr.bf16.mxu0 0
        %3324 = vmatpush1.bf16.msra.mxu0 0
        %3325 = vmatprep.subr.bf16.mxu0 0
        %3326 = vmatpush1.bf16.msra.mxu0 0
        %3327 = vmatprep.subr.bf16.mxu0 0
        %3328 = vmatpush1.bf16.msra.mxu0 0
        %3329 = vmatprep.subr.bf16.mxu0 0
        %3330 = vmatpush1.bf16.msra.mxu0 0
        %3331 = vmatprep.subr.bf16.mxu0 0
        %3332 = vmatpush1.bf16.msra.mxu0 0
        %3333 = vmatprep.subr.bf16.mxu0 0
        %3334 = vmatpush1.bf16.msra.mxu0 0
        %3335 = vmatprep.subr.bf16.mxu0 0
        %3336 = vmatpush1.bf16.msra.mxu0 %v3319
        %3337 = vmatprep.subr.bf16.mxu0 0
        %3338 = vmatpush2.bf16.msra.mxu0 0
        %3339 = vmatprep.subr.bf16.mxu0 0
        %3340 = vmatpush2.bf16.msra.mxu0 0
        %3341 = vmatprep.subr.bf16.mxu0 0
        %3342 = vmatpush2.bf16.msra.mxu0 0
        %3343 = vmatprep.subr.bf16.mxu0 0
        %3344 = vmatpush2.bf16.msra.mxu0 0
        %3345 = vmatprep.subr.bf16.mxu0 0
        %3346 = vmatpush2.bf16.msra.mxu0 0
        %3347 = vmatprep.subr.bf16.mxu0 0
        %3348 = vmatpush2.bf16.msra.mxu0 0
        %3349 = vmatprep.subr.bf16.mxu0 0
        %3350 = vmatpush2.bf16.msra.mxu0 0
        %3351 = vmatprep.subr.bf16.mxu0 0
        %3352 = vmatpush2.bf16.msra.mxu0 0
        %3353 = vmatprep.mubr.bf16.mxu0 0
        %3354 = vmatmul.mubr.bf16.gmra.mxu0 %v3316
        %v3355 = vpop.f32.mrf.mxu0
        %v3356 = vadd.f32 0.0, %v3355
        %v3357 = vpop.f32.mrf.mxu0
        %v3358 = vpop.f32.mrf.mxu0
        %v3359 = vpop.f32.mrf.mxu0
        %3360 = vdwg.mxu0
        %v3361 = vadd.f32 %v3201, %v3356
        %3362 = vrot.lane.b32.xlu0 %v2890, 104
        %v3363 = vpop.permute.xlu0 %3362
        %3364 = vrot.lane.b32.xlu0 %v2891, 104
        %v3365 = vpop.permute.xlu0 %3364
        %v3367 = vsel %vm2031, %v3363, 0
        %v3370 = vsel %vm2031, %v3365, 0
        %3372 = vmatprep.subr.bf16.mxu0 0
        %3373 = vmatpush1.bf16.xpose.msra.mxu0 0
        %3374 = vmatprep.subr.bf16.mxu0 0
        %3375 = vmatpush1.bf16.xpose.msra.mxu0 0
        %3376 = vmatprep.subr.bf16.mxu0 0
        %3377 = vmatpush1.bf16.xpose.msra.mxu0 0
        %3378 = vmatprep.subr.bf16.mxu0 0
        %3379 = vmatpush1.bf16.xpose.msra.mxu0 0
        %3380 = vmatprep.subr.bf16.mxu0 0
        %3381 = vmatpush1.bf16.xpose.msra.mxu0 0
        %3382 = vmatprep.subr.bf16.mxu0 0
        %3383 = vmatpush1.bf16.xpose.msra.mxu0 0
        %3384 = vmatprep.subr.bf16.mxu0 0
        %3385 = vmatpush1.bf16.xpose.msra.mxu0 0
        %3386 = vmatprep.subr.bf16.mxu0 0
        %3387 = vmatpush1.bf16.xpose.msra.mxu0 %v3370
        %3388 = vmatprep.subr.bf16.mxu0 0
        %3389 = vmatpush2.bf16.xpose.msra.mxu0 0
        %3390 = vmatprep.subr.bf16.mxu0 0
        %3391 = vmatpush2.bf16.xpose.msra.mxu0 0
        %3392 = vmatprep.subr.bf16.mxu0 0
        %3393 = vmatpush2.bf16.xpose.msra.mxu0 0
        %3394 = vmatprep.subr.bf16.mxu0 0
        %3395 = vmatpush2.bf16.xpose.msra.mxu0 0
        %3396 = vmatprep.subr.bf16.mxu0 0
        %3397 = vmatpush2.bf16.xpose.msra.mxu0 0
        %3398 = vmatprep.subr.bf16.mxu0 0
        %3399 = vmatpush2.bf16.xpose.msra.mxu0 0
        %3400 = vmatprep.subr.bf16.mxu0 0
        %3401 = vmatpush2.bf16.xpose.msra.mxu0 0
        %3402 = vmatprep.subr.bf16.mxu0 0
        %3403 = vmatpush2.bf16.xpose.msra.mxu0 0
        %3404 = vmatprep.mubr.bf16.mxu0 0
        %3405 = vmatmul.mubr.bf16.gmra.mxu0 %v3367
        %v3406 = vpop.f32.mrf.mxu0
        %v3407 = vadd.f32 %v2896, %v3406
        %v3408 = vpop.f32.mrf.mxu0
        %v3409 = vpop.f32.mrf.mxu0
        %v3410 = vpop.f32.mrf.mxu0
        %3411 = vdwg.mxu0
        %v3412 = vsel %vm2944, %v3407, -inf
        %3413 = vmax.xlane.f32.xlu0 %v3412
        %v3414 = vpop.xlane.xlu0 %3413
        %v3415 = vsub.f32 %v3407, %v3414
        %v3416 = vmul.f32 %v3415, 1.442695
        %v3417 = vpow.pop %v3416
        %v3418 = vsel %vm2944, %v3417, 0.0
        %3419 = vadd.xlane.f32.xlu0 %v3418
        %v3420 = vpop.xlane.xlu0 %3419
        %v3421 = vrcp.pop %v3420
        %v3422 = vmul.f32 %v3417, %v3421
        %v3423 = vpack.c.bf16 %v3422, %v3422
        %3424 = vrot.lane.b32.xlu0 %v2957, 104
        %v3425 = vpop.permute.xlu0 %3424
        %v3428 = vsel %vm2944, %v3423, 0
        %3430 = vmatprep.subr.bf16.mxu0 0
        %3431 = vmatpush1.bf16.msra.mxu0 0
        %3432 = vmatprep.subr.bf16.mxu0 0
        %3433 = vmatpush1.bf16.msra.mxu0 0
        %3434 = vmatprep.subr.bf16.mxu0 0
        %3435 = vmatpush1.bf16.msra.mxu0 0
        %3436 = vmatprep.subr.bf16.mxu0 0
        %3437 = vmatpush1.bf16.msra.mxu0 0
        %3438 = vmatprep.subr.bf16.mxu0 0
        %3439 = vmatpush1.bf16.msra.mxu0 0
        %3440 = vmatprep.subr.bf16.mxu0 0
        %3441 = vmatpush1.bf16.msra.mxu0 0
        %3442 = vmatprep.subr.bf16.mxu0 0
        %3443 = vmatpush1.bf16.msra.mxu0 0
        %3444 = vmatprep.subr.bf16.mxu0 0
        %3445 = vmatpush1.bf16.msra.mxu0 %v3425
        %3446 = vmatprep.subr.bf16.mxu0 0
        %3447 = vmatpush2.bf16.msra.mxu0 0
        %3448 = vmatprep.subr.bf16.mxu0 0
        %3449 = vmatpush2.bf16.msra.mxu0 0
        %3450 = vmatprep.subr.bf16.mxu0 0
        %3451 = vmatpush2.bf16.msra.mxu0 0
        %3452 = vmatprep.subr.bf16.mxu0 0
        %3453 = vmatpush2.bf16.msra.mxu0 0
        %3454 = vmatprep.subr.bf16.mxu0 0
        %3455 = vmatpush2.bf16.msra.mxu0 0
        %3456 = vmatprep.subr.bf16.mxu0 0
        %3457 = vmatpush2.bf16.msra.mxu0 0
        %3458 = vmatprep.subr.bf16.mxu0 0
        %3459 = vmatpush2.bf16.msra.mxu0 0
        %3460 = vmatprep.subr.bf16.mxu0 0
        %3461 = vmatpush2.bf16.msra.mxu0 0
        %3462 = vmatprep.mubr.bf16.mxu0 0
        %3463 = vmatmul.mubr.bf16.gmra.mxu0 %v3428
        %v3464 = vpop.f32.mrf.mxu0
        %v3465 = vadd.f32 0.0, %v3464
        %v3466 = vpop.f32.mrf.mxu0
        %v3467 = vpop.f32.mrf.mxu0
        %v3468 = vpop.f32.mrf.mxu0
        %3469 = vdwg.mxu0
        %v3470 = vpack.c.bf16 %v3465, %v3465
        %v3472 = vsel %vm2031, %v3470, 0
        %v3475 = vsel %vm2094, %v2687, 0
        %3477 = vmatprep.subr.bf16.mxu0 0
        %3478 = vmatpush1.bf16.msra.mxu0 0
        %3479 = vmatprep.subr.bf16.mxu0 0
        %3480 = vmatpush1.bf16.msra.mxu0 0
        %3481 = vmatprep.subr.bf16.mxu0 0
        %3482 = vmatpush1.bf16.msra.mxu0 0
        %3483 = vmatprep.subr.bf16.mxu0 0
        %3484 = vmatpush1.bf16.msra.mxu0 0
        %3485 = vmatprep.subr.bf16.mxu0 0
        %3486 = vmatpush1.bf16.msra.mxu0 0
        %3487 = vmatprep.subr.bf16.mxu0 0
        %3488 = vmatpush1.bf16.msra.mxu0 0
        %3489 = vmatprep.subr.bf16.mxu0 0
        %3490 = vmatpush1.bf16.msra.mxu0 0
        %3491 = vmatprep.subr.bf16.mxu0 0
        %3492 = vmatpush1.bf16.msra.mxu0 %v3475
        %3493 = vmatprep.subr.bf16.mxu0 0
        %3494 = vmatpush2.bf16.msra.mxu0 0
        %3495 = vmatprep.subr.bf16.mxu0 0
        %3496 = vmatpush2.bf16.msra.mxu0 0
        %3497 = vmatprep.subr.bf16.mxu0 0
        %3498 = vmatpush2.bf16.msra.mxu0 0
        %3499 = vmatprep.subr.bf16.mxu0 0
        %3500 = vmatpush2.bf16.msra.mxu0 0
        %3501 = vmatprep.subr.bf16.mxu0 0
        %3502 = vmatpush2.bf16.msra.mxu0 0
        %3503 = vmatprep.subr.bf16.mxu0 0
        %3504 = vmatpush2.bf16.msra.mxu0 0
        %3505 = vmatprep.subr.bf16.mxu0 0
        %3506 = vmatpush2.bf16.msra.mxu0 0
        %3507 = vmatprep.subr.bf16.mxu0 0
        %3508 = vmatpush2.bf16.msra.mxu0 0
        %3509 = vmatprep.mubr.bf16.mxu0 0
        %3510 = vmatmul.mubr.bf16.gmra.mxu0 %v3472
        %v3511 = vpop.f32.mrf.mxu0
        %v3512 = vadd.f32 0.0, %v3511
        %v3513 = vpop.f32.mrf.mxu0
        %v3514 = vpop.f32.mrf.mxu0
        %v3515 = vpop.f32.mrf.mxu0
        %3516 = vdwg.mxu0
        %v3517 = vadd.f32 %v3361, %v3512
        %v3518 = vadd.f32 %v2666, %v3517
        %v3519 = vlaneseq
        %v3520 = vshrl.u32 %v3519, 7
        %v3521 = vsub.s32 0, %v3520
        %v3522 = vrot.slane %v2688, %v3521
        %v3523 = vadd.f32 %v3518, %v3522
        %v3524 = vld [vmem:[#allocation41] sm:$0x1]
        %v3525 = vld [vmem:[#allocation43] sm:$0x1]
        %v3526 = vld [vmem:[#allocation44] sm:$0xf]
        %v3527 = vld [vmem:[#allocation44 + $0x4] sm:$0xf]
        %v3528 = vld [vmem:[#allocation44 + $0x8] sm:$0xf]
        %v3529 = vld [vmem:[#allocation44 + $0xc] sm:$0xf]
        %v3530 = vld [vmem:[#allocation46] sm:$0x1]
        %v3531 = vld [vmem:[#allocation47] sm:$0xf]
        %v3532 = vld [vmem:[#allocation47 + $0x4] sm:$0xf]
        %v3533 = vld [vmem:[#allocation47 + $0x8] sm:$0xf]
        %v3534 = vld [vmem:[#allocation47 + $0xc] sm:$0xf]
        %v3535 = vld [vmem:[#allocation49] sm:$0x1]
        %v3536 = vld [vmem:[#allocation50] sm:$0xf]
        %v3537 = vld [vmem:[#allocation50 + $0x4] sm:$0xf]
        %v3538 = vld [vmem:[#allocation50 + $0x8] sm:$0xf]
        %v3539 = vld [vmem:[#allocation50 + $0xc] sm:$0xf]
        %v3540 = vld [vmem:[#allocation52] sm:$0x1]
        %v3541 = vld [vmem:[%s71] sm:$0xf]
        %v3542 = vld [vmem:[%s71 + $0x4] sm:$0xf]
        %v3543 = vld [vmem:[%s71 + $0x8] sm:$0xf]
        %v3544 = vld [vmem:[%s71 + $0xc] sm:$0xf]
        %v3545 = vld [vmem:[%s73] sm:$0x1]
        %v3546 = vlaneseq
        %v3547 = vshrl.u32 %v3546, 7
        %v3548 = vsub.s32 0, %v3547
        %v3549 = vrot.slane %v3524, %v3548
        %v3550 = vmul.f32 %v2701, %v3549
        %v3551 = vlaneseq
        %v3552 = vshrl.u32 %v3551, 7
        %v3553 = vsub.s32 0, %v3552
        %v3554 = vrot.slane %v3525, %v3553
        %v3555 = vadd.f32 %v3550, %v3554
        %v3556 = vpack.c.bf16 %v3555, %v3555
        %v3557 = vlaneseq
        %v3558 = vshrl.u32 %v3557, 7
        %v3559 = vsub.s32 0, %v3558
        %v3560 = vrot.slane %v3530, %v3559
        %v3565 = vunpack.c.l.b16 %v3526
        %v3566 = vunpack.c.l.b16 %v3527
        %v3567 = vunpack.c.l.b16 %v3528
        %v3568 = vunpack.c.l.b16 %v3529
        %v3569 = vpack.c.b16 %v3566, %v3565
        %v3570 = vpack.c.b16 %v3568, %v3567
        %v3574 = vsel %vm1831, %v3556, 0
        %3576 = vmatprep.subr.bf16.mxu0 0
        %3577 = vmatpush1.bf16.msra.mxu0 0
        %3578 = vmatprep.subr.bf16.mxu0 0
        %3579 = vmatpush1.bf16.msra.mxu0 0
        %3580 = vmatprep.subr.bf16.mxu0 0
        %3581 = vmatpush1.bf16.msra.mxu0 0
        %3582 = vmatprep.subr.bf16.mxu0 0
        %3583 = vmatpush1.bf16.msra.mxu0 0
        %3584 = vmatprep.subr.bf16.mxu0 0
        %3585 = vmatpush1.bf16.msra.mxu0 0
        %3586 = vmatprep.subr.bf16.mxu0 0
        %3587 = vmatpush1.bf16.msra.mxu0 0
        %3588 = vmatprep.subr.bf16.mxu0 0
        %3589 = vmatpush1.bf16.msra.mxu0 %v3570
        %3590 = vmatprep.subr.bf16.mxu0 0
        %3591 = vmatpush1.bf16.msra.mxu0 %v3569
        %3592 = vmatprep.subr.bf16.mxu0 0
        %3593 = vmatpush2.bf16.msra.mxu0 0
        %3594 = vmatprep.subr.bf16.mxu0 0
        %3595 = vmatpush2.bf16.msra.mxu0 0
        %3596 = vmatprep.subr.bf16.mxu0 0
        %3597 = vmatpush2.bf16.msra.mxu0 0
        %3598 = vmatprep.subr.bf16.mxu0 0
        %3599 = vmatpush2.bf16.msra.mxu0 0
        %3600 = vmatprep.subr.bf16.mxu0 0
        %3601 = vmatpush2.bf16.msra.mxu0 0
        %3602 = vmatprep.subr.bf16.mxu0 0
        %3603 = vmatpush2.bf16.msra.mxu0 0
        %3604 = vmatprep.subr.bf16.mxu0 0
        %3605 = vmatpush2.bf16.msra.mxu0 0
        %3606 = vmatprep.subr.bf16.mxu0 0
        %3607 = vmatpush2.bf16.msra.mxu0 0
        %3608 = vmatprep.mubr.bf16.mxu0 0
        %3609 = vmatmul.mubr.bf16.gmra.mxu0 %v3574
        %v3610 = vpop.f32.mrf.mxu0
        %v3611 = vadd.f32 %v3560, %v3610
        %v3612 = vpop.f32.mrf.mxu0
        %v3613 = vpop.f32.mrf.mxu0
        %v3614 = vpop.f32.mrf.mxu0
        %3615 = vdwg.mxu0
        %v3616 = vlaneseq
        %v3617 = vshrl.u32 %v3616, 7
        %v3618 = vsub.s32 0, %v3617
        %v3619 = vrot.slane %v3535, %v3618
        %v3624 = vunpack.c.l.b16 %v3531
        %v3625 = vunpack.c.l.b16 %v3532
        %v3626 = vunpack.c.l.b16 %v3533
        %v3627 = vunpack.c.l.b16 %v3534
        %v3628 = vpack.c.b16 %v3625, %v3624
        %v3629 = vpack.c.b16 %v3627, %v3626
        %v3633 = vsel %vm1831, %v1798, 0
        %v3636 = vsel %vm1831, %v1799, 0
        %3638 = vmatprep.subr.bf16.mxu0 0
        %3639 = vmatpush1.bf16.msra.mxu0 0
        %3640 = vmatprep.subr.bf16.mxu0 0
        %3641 = vmatpush1.bf16.msra.mxu0 0
        %3642 = vmatprep.subr.bf16.mxu0 0
        %3643 = vmatpush1.bf16.msra.mxu0 0
        %3644 = vmatprep.subr.bf16.mxu0 0
        %3645 = vmatpush1.bf16.msra.mxu0 0
        %3646 = vmatprep.subr.bf16.mxu0 0
        %3647 = vmatpush1.bf16.msra.mxu0 0
        %3648 = vmatprep.subr.bf16.mxu0 0
        %3649 = vmatpush1.bf16.msra.mxu0 0
        %3650 = vmatprep.subr.bf16.mxu0 0
        %3651 = vmatpush1.bf16.msra.mxu0 %v3629
        %3652 = vmatprep.subr.bf16.mxu0 0
        %3653 = vmatpush1.bf16.msra.mxu0 %v3628
        %3654 = vmatprep.subr.bf16.mxu0 0
        %3655 = vmatpush2.bf16.msra.mxu0 0
        %3656 = vmatprep.subr.bf16.mxu0 0
        %3657 = vmatpush2.bf16.msra.mxu0 0
        %3658 = vmatprep.subr.bf16.mxu0 0
        %3659 = vmatpush2.bf16.msra.mxu0 0
        %3660 = vmatprep.subr.bf16.mxu0 0
        %3661 = vmatpush2.bf16.msra.mxu0 0
        %3662 = vmatprep.subr.bf16.mxu0 0
        %3663 = vmatpush2.bf16.msra.mxu0 0
        %3664 = vmatprep.subr.bf16.mxu0 0
        %3665 = vmatpush2.bf16.msra.mxu0 0
        %3666 = vmatprep.subr.bf16.mxu0 0
        %3667 = vmatpush2.bf16.msra.mxu0 0
        %3668 = vmatprep.subr.bf16.mxu0 0
        %3669 = vmatpush2.bf16.msra.mxu0 0
        %3670 = vmatprep.mubr.bf16.mxu0 0
        %3671 = vmatmul.mubr.bf16.gmra.mxu0 %v3633
        %v3672 = vpop.f32.mrf.mxu0
        %v3673 = vadd.f32 %v3619, %v3672
        %v3674 = vpop.f32.mrf.mxu0
        %v3675 = vpop.f32.mrf.mxu0
        %v3676 = vadd.f32 %v3619, %v3675
        %v3677 = vpop.f32.mrf.mxu0
        %3678 = vmatprep.mubr.bf16.mxu0 0
        %3679 = vmatmul.mubr.bf16.gmra.mxu0 %v3636
        %v3680 = vpop.f32.mrf.mxu0
        %v3681 = vadd.f32 %v3619, %v3680
        %v3682 = vpop.f32.mrf.mxu0
        %v3683 = vpop.f32.mrf.mxu0
        %v3684 = vpop.f32.mrf.mxu0
        %3685 = vdwg.mxu0
        %v3686 = vlaneseq
        %v3687 = vshrl.u32 %v3686, 7
        %v3688 = vsub.s32 0, %v3687
        %v3689 = vrot.slane %v3540, %v3688
        %v3694 = vunpack.c.l.b16 %v3536
        %v3695 = vunpack.c.l.b16 %v3537
        %v3696 = vunpack.c.l.b16 %v3538
        %v3697 = vunpack.c.l.b16 %v3539
        %v3698 = vpack.c.b16 %v3695, %v3694
        %v3699 = vpack.c.b16 %v3697, %v3696
        %3702 = vmatprep.subr.bf16.mxu0 0
        %3703 = vmatpush1.bf16.msra.mxu0 0
        %3704 = vmatprep.subr.bf16.mxu0 0
        %3705 = vmatpush1.bf16.msra.mxu0 0
        %3706 = vmatprep.subr.bf16.mxu0 0
        %3707 = vmatpush1.bf16.msra.mxu0 0
        %3708 = vmatprep.subr.bf16.mxu0 0
        %3709 = vmatpush1.bf16.msra.mxu0 0
        %3710 = vmatprep.subr.bf16.mxu0 0
        %3711 = vmatpush1.bf16.msra.mxu0 0
        %3712 = vmatprep.subr.bf16.mxu0 0
        %3713 = vmatpush1.bf16.msra.mxu0 0
        %3714 = vmatprep.subr.bf16.mxu0 0
        %3715 = vmatpush1.bf16.msra.mxu0 %v3699
        %3716 = vmatprep.subr.bf16.mxu0 0
        %3717 = vmatpush1.bf16.msra.mxu0 %v3698
        %3718 = vmatprep.subr.bf16.mxu0 0
        %3719 = vmatpush2.bf16.msra.mxu0 0
        %3720 = vmatprep.subr.bf16.mxu0 0
        %3721 = vmatpush2.bf16.msra.mxu0 0
        %3722 = vmatprep.subr.bf16.mxu0 0
        %3723 = vmatpush2.bf16.msra.mxu0 0
        %3724 = vmatprep.subr.bf16.mxu0 0
        %3725 = vmatpush2.bf16.msra.mxu0 0
        %3726 = vmatprep.subr.bf16.mxu0 0
        %3727 = vmatpush2.bf16.msra.mxu0 0
        %3728 = vmatprep.subr.bf16.mxu0 0
        %3729 = vmatpush2.bf16.msra.mxu0 0
        %3730 = vmatprep.subr.bf16.mxu0 0
        %3731 = vmatpush2.bf16.msra.mxu0 0
        %3732 = vmatprep.subr.bf16.mxu0 0
        %3733 = vmatpush2.bf16.msra.mxu0 0
        %3734 = vmatprep.mubr.bf16.mxu0 0
        %3735 = vmatmul.mubr.bf16.gmra.mxu0 %v3633
        %v3736 = vpop.f32.mrf.mxu0
        %v3737 = vadd.f32 %v3689, %v3736
        %v3738 = vpop.f32.mrf.mxu0
        %v3739 = vpop.f32.mrf.mxu0
        %v3740 = vadd.f32 %v3689, %v3739
        %v3741 = vpop.f32.mrf.mxu0
        %3742 = vmatprep.mubr.bf16.mxu0 0
        %3743 = vmatmul.mubr.bf16.gmra.mxu0 %v3636
        %v3744 = vpop.f32.mrf.mxu0
        %v3745 = vadd.f32 %v3689, %v3744
        %v3746 = vpop.f32.mrf.mxu0
        %v3747 = vpop.f32.mrf.mxu0
        %v3748 = vpop.f32.mrf.mxu0
        %3749 = vdwg.mxu0
        %v3750 = vmul.f32 %v3611, 0.35355338
        %v3751 = vpack.c.bf16 %v3750, %v3750
        %v3752 = vpack.c.bf16 %v3676, %v3673
        %v3753 = vpack.c.bf16 %v3681, %v3681
        %v3755 = vlaneseq
        %v3756 = vshrl.u32 %v3755, 7
        %v3757 = vsub.s32 0, %v3756
        %v3758 = vrot.slane %v1808, %v3757
        %v3761 = vsel %vm2031, %v3751, 0
        %v3764 = vsel %vm2031, %v3752, 0
        %v3767 = vsel %vm2031, %v3753, 0
        %3769 = vmatprep.subr.bf16.mxu0 0
        %3770 = vmatpush1.bf16.xpose.msra.mxu0 0
        %3771 = vmatprep.subr.bf16.mxu0 0
        %3772 = vmatpush1.bf16.xpose.msra.mxu0 0
        %3773 = vmatprep.subr.bf16.mxu0 0
        %3774 = vmatpush1.bf16.xpose.msra.mxu0 0
        %3775 = vmatprep.subr.bf16.mxu0 0
        %3776 = vmatpush1.bf16.xpose.msra.mxu0 0
        %3777 = vmatprep.subr.bf16.mxu0 0
        %3778 = vmatpush1.bf16.xpose.msra.mxu0 0
        %3779 = vmatprep.subr.bf16.mxu0 0
        %3780 = vmatpush1.bf16.xpose.msra.mxu0 0
        %3781 = vmatprep.subr.bf16.mxu0 0
        %3782 = vmatpush1.bf16.xpose.msra.mxu0 %v3767
        %3783 = vmatprep.subr.bf16.mxu0 0
        %3784 = vmatpush1.bf16.xpose.msra.mxu0 %v3764
        %3785 = vmatprep.subr.bf16.mxu0 0
        %3786 = vmatpush2.bf16.xpose.msra.mxu0 0
        %3787 = vmatprep.subr.bf16.mxu0 0
        %3788 = vmatpush2.bf16.xpose.msra.mxu0 0
        %3789 = vmatprep.subr.bf16.mxu0 0
        %3790 = vmatpush2.bf16.xpose.msra.mxu0 0
        %3791 = vmatprep.subr.bf16.mxu0 0
        %3792 = vmatpush2.bf16.xpose.msra.mxu0 0
        %3793 = vmatprep.subr.bf16.mxu0 0
        %3794 = vmatpush2.bf16.xpose.msra.mxu0 0
        %3795 = vmatprep.subr.bf16.mxu0 0
        %3796 = vmatpush2.bf16.xpose.msra.mxu0 0
        %3797 = vmatprep.subr.bf16.mxu0 0
        %3798 = vmatpush2.bf16.xpose.msra.mxu0 0
        %3799 = vmatprep.subr.bf16.mxu0 0
        %3800 = vmatpush2.bf16.xpose.msra.mxu0 0
        %3801 = vmatprep.mubr.bf16.mxu0 0
        %3802 = vmatmul.mubr.bf16.gmra.mxu0 %v3761
        %v3803 = vpop.f32.mrf.mxu0
        %v3804 = vadd.f32 %v3758, %v3803
        %v3805 = vpop.f32.mrf.mxu0
        %v3806 = vpop.f32.mrf.mxu0
        %v3807 = vpop.f32.mrf.mxu0
        %3808 = vdwg.mxu0
        %vm3809 = vcmask 195584
        %v3810 = vsel %vm3809, %v3804, -inf
        %3811 = vmax.xlane.f32.xlu0 %v3810
        %v3812 = vpop.xlane.xlu0 %3811
        %v3813 = vsub.f32 %v3804, %v3812
        %v3814 = vmul.f32 %v3813, 1.442695
        %v3815 = vpow.pop %v3814
        %v3816 = vsel %vm3809, %v3815, 0.0
        %3817 = vadd.xlane.f32.xlu0 %v3816
        %v3818 = vpop.xlane.xlu0 %3817
        %v3819 = vrcp.pop %v3818
        %v3820 = vmul.f32 %v3815, %v3819
        %v3821 = vpack.c.bf16 %v3820, %v3820
        %v3822 = vpack.c.bf16 %v3740, %v3737
        %v3823 = vpack.c.bf16 %v3745, %v3745
        %v3825 = vsel %vm3809, %v3821, 0
        %v3828 = vsel %vm2094, %v3823, 0
        %3830 = vmatprep.subr.bf16.mxu0 0
        %3831 = vmatpush1.bf16.msra.mxu0 0
        %3832 = vmatprep.subr.bf16.mxu0 0
        %3833 = vmatpush1.bf16.msra.mxu0 0
        %3834 = vmatprep.subr.bf16.mxu0 0
        %3835 = vmatpush1.bf16.msra.mxu0 0
        %3836 = vmatprep.subr.bf16.mxu0 0
        %3837 = vmatpush1.bf16.msra.mxu0 0
        %3838 = vmatprep.subr.bf16.mxu0 0
        %3839 = vmatpush1.bf16.msra.mxu0 0
        %3840 = vmatprep.subr.bf16.mxu0 0
        %3841 = vmatpush1.bf16.msra.mxu0 0
        %3842 = vmatprep.subr.bf16.mxu0 0
        %3843 = vmatpush1.bf16.msra.mxu0 %v3828
        %3844 = vmatprep.subr.bf16.mxu0 0
        %3845 = vmatpush1.bf16.msra.mxu0 %v3822
        %3846 = vmatprep.subr.bf16.mxu0 0
        %3847 = vmatpush2.bf16.msra.mxu0 0
        %3848 = vmatprep.subr.bf16.mxu0 0
        %3849 = vmatpush2.bf16.msra.mxu0 0
        %3850 = vmatprep.subr.bf16.mxu0 0
        %3851 = vmatpush2.bf16.msra.mxu0 0
        %3852 = vmatprep.subr.bf16.mxu0 0
        %3853 = vmatpush2.bf16.msra.mxu0 0
        %3854 = vmatprep.subr.bf16.mxu0 0
        %3855 = vmatpush2.bf16.msra.mxu0 0
        %3856 = vmatprep.subr.bf16.mxu0 0
        %3857 = vmatpush2.bf16.msra.mxu0 0
        %3858 = vmatprep.subr.bf16.mxu0 0
        %3859 = vmatpush2.bf16.msra.mxu0 0
        %3860 = vmatprep.subr.bf16.mxu0 0
        %3861 = vmatpush2.bf16.msra.mxu0 0
        %3862 = vmatprep.mubr.bf16.mxu0 0
        %3863 = vmatmul.mubr.bf16.gmra.mxu0 %v3825
        %v3864 = vpop.f32.mrf.mxu0
        %v3865 = vadd.f32 0.0, %v3864
        %v3866 = vpop.f32.mrf.mxu0
        %v3867 = vpop.f32.mrf.mxu0
        %v3868 = vpop.f32.mrf.mxu0
        %3869 = vdwg.mxu0
        %v3870 = vpack.c.bf16 %v3865, %v3865
        %3872 = vrot.lane.b32.xlu0 %v3751, 120
        %v3873 = vpop.permute.xlu0 %3872
        %3876 = vrot.lane.b32.xlu0 %v3752, 120
        %v3877 = vpop.permute.xlu0 %3876
        %3878 = vrot.lane.b32.xlu0 %v3753, 120
        %v3879 = vpop.permute.xlu0 %3878
        %v3881 = vsel %vm2031, %v3873, 0
        %v3884 = vsel %vm2031, %v3877, 0
        %v3887 = vsel %vm2031, %v3879, 0
        %3889 = vmatprep.subr.bf16.mxu0 0
        %3890 = vmatpush1.bf16.xpose.msra.mxu0 0
        %3891 = vmatprep.subr.bf16.mxu0 0
        %3892 = vmatpush1.bf16.xpose.msra.mxu0 0
        %3893 = vmatprep.subr.bf16.mxu0 0
        %3894 = vmatpush1.bf16.xpose.msra.mxu0 0
        %3895 = vmatprep.subr.bf16.mxu0 0
        %3896 = vmatpush1.bf16.xpose.msra.mxu0 0
        %3897 = vmatprep.subr.bf16.mxu0 0
        %3898 = vmatpush1.bf16.xpose.msra.mxu0 0
        %3899 = vmatprep.subr.bf16.mxu0 0
        %3900 = vmatpush1.bf16.xpose.msra.mxu0 0
        %3901 = vmatprep.subr.bf16.mxu0 0
        %3902 = vmatpush1.bf16.xpose.msra.mxu0 %v3887
        %3903 = vmatprep.subr.bf16.mxu0 0
        %3904 = vmatpush1.bf16.xpose.msra.mxu0 %v3884
        %3905 = vmatprep.subr.bf16.mxu0 0
        %3906 = vmatpush2.bf16.xpose.msra.mxu0 0
        %3907 = vmatprep.subr.bf16.mxu0 0
        %3908 = vmatpush2.bf16.xpose.msra.mxu0 0
        %3909 = vmatprep.subr.bf16.mxu0 0
        %3910 = vmatpush2.bf16.xpose.msra.mxu0 0
        %3911 = vmatprep.subr.bf16.mxu0 0
        %3912 = vmatpush2.bf16.xpose.msra.mxu0 0
        %3913 = vmatprep.subr.bf16.mxu0 0
        %3914 = vmatpush2.bf16.xpose.msra.mxu0 0
        %3915 = vmatprep.subr.bf16.mxu0 0
        %3916 = vmatpush2.bf16.xpose.msra.mxu0 0
        %3917 = vmatprep.subr.bf16.mxu0 0
        %3918 = vmatpush2.bf16.xpose.msra.mxu0 0
        %3919 = vmatprep.subr.bf16.mxu0 0
        %3920 = vmatpush2.bf16.xpose.msra.mxu0 0
        %3921 = vmatprep.mubr.bf16.mxu0 0
        %3922 = vmatmul.mubr.bf16.gmra.mxu0 %v3881
        %v3923 = vpop.f32.mrf.mxu0
        %v3924 = vadd.f32 %v3758, %v3923
        %v3925 = vpop.f32.mrf.mxu0
        %v3926 = vpop.f32.mrf.mxu0
        %v3927 = vpop.f32.mrf.mxu0
        %3928 = vdwg.mxu0
        %v3929 = vsel %vm3809, %v3924, -inf
        %3930 = vmax.xlane.f32.xlu0 %v3929
        %v3931 = vpop.xlane.xlu0 %3930
        %v3932 = vsub.f32 %v3924, %v3931
        %v3933 = vmul.f32 %v3932, 1.442695
        %v3934 = vpow.pop %v3933
        %v3935 = vsel %vm3809, %v3934, 0.0
        %3936 = vadd.xlane.f32.xlu0 %v3935
        %v3937 = vpop.xlane.xlu0 %3936
        %v3938 = vrcp.pop %v3937
        %v3939 = vmul.f32 %v3934, %v3938
        %v3940 = vpack.c.bf16 %v3939, %v3939
        %3943 = vrot.lane.b32.xlu0 %v3822, 120
        %v3944 = vpop.permute.xlu0 %3943
        %3945 = vrot.lane.b32.xlu0 %v3823, 120
        %v3946 = vpop.permute.xlu0 %3945
        %v3949 = vsel %vm3809, %v3940, 0
        %v3952 = vsel %vm2094, %v3946, 0
        %3954 = vmatprep.subr.bf16.mxu0 0
        %3955 = vmatpush1.bf16.msra.mxu0 0
        %3956 = vmatprep.subr.bf16.mxu0 0
        %3957 = vmatpush1.bf16.msra.mxu0 0
        %3958 = vmatprep.subr.bf16.mxu0 0
        %3959 = vmatpush1.bf16.msra.mxu0 0
        %3960 = vmatprep.subr.bf16.mxu0 0
        %3961 = vmatpush1.bf16.msra.mxu0 0
        %3962 = vmatprep.subr.bf16.mxu0 0
        %3963 = vmatpush1.bf16.msra.mxu0 0
        %3964 = vmatprep.subr.bf16.mxu0 0
        %3965 = vmatpush1.bf16.msra.mxu0 0
        %3966 = vmatprep.subr.bf16.mxu0 0
        %3967 = vmatpush1.bf16.msra.mxu0 %v3952
        %3968 = vmatprep.subr.bf16.mxu0 0
        %3969 = vmatpush1.bf16.msra.mxu0 %v3944
        %3970 = vmatprep.subr.bf16.mxu0 0
        %3971 = vmatpush2.bf16.msra.mxu0 0
        %3972 = vmatprep.subr.bf16.mxu0 0
        %3973 = vmatpush2.bf16.msra.mxu0 0
        %3974 = vmatprep.subr.bf16.mxu0 0
        %3975 = vmatpush2.bf16.msra.mxu0 0
        %3976 = vmatprep.subr.bf16.mxu0 0
        %3977 = vmatpush2.bf16.msra.mxu0 0
        %3978 = vmatprep.subr.bf16.mxu0 0
        %3979 = vmatpush2.bf16.msra.mxu0 0
        %3980 = vmatprep.subr.bf16.mxu0 0
        %3981 = vmatpush2.bf16.msra.mxu0 0
        %3982 = vmatprep.subr.bf16.mxu0 0
        %3983 = vmatpush2.bf16.msra.mxu0 0
        %3984 = vmatprep.subr.bf16.mxu0 0
        %3985 = vmatpush2.bf16.msra.mxu0 0
        %3986 = vmatprep.mubr.bf16.mxu0 0
        %3987 = vmatmul.mubr.bf16.gmra.mxu0 %v3949
        %v3988 = vpop.f32.mrf.mxu0
        %v3989 = vadd.f32 0.0, %v3988
        %v3990 = vpop.f32.mrf.mxu0
        %v3991 = vpop.f32.mrf.mxu0
        %v3992 = vpop.f32.mrf.mxu0
        %3993 = vdwg.mxu0
        %v3994 = vpack.c.bf16 %v3989, %v3989
        %v3996 = vsel %vm2031, %v3994, 0
        %v3999 = vsel %vm2094, %v3542, 0
        %4001 = vmatprep.subr.bf16.mxu0 0
        %4002 = vmatpush1.bf16.msra.mxu0 0
        %4003 = vmatprep.subr.bf16.mxu0 0
        %4004 = vmatpush1.bf16.msra.mxu0 0
        %4005 = vmatprep.subr.bf16.mxu0 0
        %4006 = vmatpush1.bf16.msra.mxu0 0
        %4007 = vmatprep.subr.bf16.mxu0 0
        %4008 = vmatpush1.bf16.msra.mxu0 0
        %4009 = vmatprep.subr.bf16.mxu0 0
        %4010 = vmatpush1.bf16.msra.mxu0 0
        %4011 = vmatprep.subr.bf16.mxu0 0
        %4012 = vmatpush1.bf16.msra.mxu0 0
        %4013 = vmatprep.subr.bf16.mxu0 0
        %4014 = vmatpush1.bf16.msra.mxu0 0
        %4015 = vmatprep.subr.bf16.mxu0 0
        %4016 = vmatpush1.bf16.msra.mxu0 %v3999
        %4017 = vmatprep.subr.bf16.mxu0 0
        %4018 = vmatpush2.bf16.msra.mxu0 0
        %4019 = vmatprep.subr.bf16.mxu0 0
        %4020 = vmatpush2.bf16.msra.mxu0 0
        %4021 = vmatprep.subr.bf16.mxu0 0
        %4022 = vmatpush2.bf16.msra.mxu0 0
        %4023 = vmatprep.subr.bf16.mxu0 0
        %4024 = vmatpush2.bf16.msra.mxu0 0
        %4025 = vmatprep.subr.bf16.mxu0 0
        %4026 = vmatpush2.bf16.msra.mxu0 0
        %4027 = vmatprep.subr.bf16.mxu0 0
        %4028 = vmatpush2.bf16.msra.mxu0 0
        %4029 = vmatprep.subr.bf16.mxu0 0
        %4030 = vmatpush2.bf16.msra.mxu0 0
        %4031 = vmatprep.subr.bf16.mxu0 0
        %4032 = vmatpush2.bf16.msra.mxu0 0
        %4033 = vmatprep.mubr.bf16.mxu0 0
        %4034 = vmatmul.mubr.bf16.gmra.mxu0 %v3996
        %v4035 = vpop.f32.mrf.mxu0
        %v4036 = vadd.f32 0.0, %v4035
        %v4037 = vpop.f32.mrf.mxu0
        %v4038 = vpop.f32.mrf.mxu0
        %v4039 = vpop.f32.mrf.mxu0
        %4040 = vdwg.mxu0
        %v4042 = vsel %vm2031, %v3870, 0
        %v4045 = vsel %vm2094, %v3541, 0
        %4047 = vmatprep.subr.bf16.mxu0 0
        %4048 = vmatpush1.bf16.msra.mxu0 0
        %4049 = vmatprep.subr.bf16.mxu0 0
        %4050 = vmatpush1.bf16.msra.mxu0 0
        %4051 = vmatprep.subr.bf16.mxu0 0
        %4052 = vmatpush1.bf16.msra.mxu0 0
        %4053 = vmatprep.subr.bf16.mxu0 0
        %4054 = vmatpush1.bf16.msra.mxu0 0
        %4055 = vmatprep.subr.bf16.mxu0 0
        %4056 = vmatpush1.bf16.msra.mxu0 0
        %4057 = vmatprep.subr.bf16.mxu0 0
        %4058 = vmatpush1.bf16.msra.mxu0 0
        %4059 = vmatprep.subr.bf16.mxu0 0
        %4060 = vmatpush1.bf16.msra.mxu0 0
        %4061 = vmatprep.subr.bf16.mxu0 0
        %4062 = vmatpush1.bf16.msra.mxu0 %v4045
        %4063 = vmatprep.subr.bf16.mxu0 0
        %4064 = vmatpush2.bf16.msra.mxu0 0
        %4065 = vmatprep.subr.bf16.mxu0 0
        %4066 = vmatpush2.bf16.msra.mxu0 0
        %4067 = vmatprep.subr.bf16.mxu0 0
        %4068 = vmatpush2.bf16.msra.mxu0 0
        %4069 = vmatprep.subr.bf16.mxu0 0
        %4070 = vmatpush2.bf16.msra.mxu0 0
        %4071 = vmatprep.subr.bf16.mxu0 0
        %4072 = vmatpush2.bf16.msra.mxu0 0
        %4073 = vmatprep.subr.bf16.mxu0 0
        %4074 = vmatpush2.bf16.msra.mxu0 0
        %4075 = vmatprep.subr.bf16.mxu0 0
        %4076 = vmatpush2.bf16.msra.mxu0 0
        %4077 = vmatprep.subr.bf16.mxu0 0
        %4078 = vmatpush2.bf16.msra.mxu0 0
        %4079 = vmatprep.mubr.bf16.mxu0 0
        %4080 = vmatmul.mubr.bf16.gmra.mxu0 %v4042
        %v4081 = vpop.f32.mrf.mxu0
        %v4082 = vadd.f32 %v4036, %v4081
        %v4083 = vpop.f32.mrf.mxu0
        %v4084 = vpop.f32.mrf.mxu0
        %v4085 = vpop.f32.mrf.mxu0
        %4086 = vdwg.mxu0
        %4087 = vrot.lane.b32.xlu0 %v3751, 112
        %v4088 = vpop.permute.xlu0 %4087
        %4089 = vrot.lane.b32.xlu0 %v3752, 112
        %v4090 = vpop.permute.xlu0 %4089
        %4091 = vrot.lane.b32.xlu0 %v3753, 112
        %v4092 = vpop.permute.xlu0 %4091
        %v4094 = vsel %vm2031, %v4088, 0
        %v4097 = vsel %vm2031, %v4090, 0
        %v4100 = vsel %vm2031, %v4092, 0
        %4102 = vmatprep.subr.bf16.mxu0 0
        %4103 = vmatpush1.bf16.xpose.msra.mxu0 0
        %4104 = vmatprep.subr.bf16.mxu0 0
        %4105 = vmatpush1.bf16.xpose.msra.mxu0 0
        %4106 = vmatprep.subr.bf16.mxu0 0
        %4107 = vmatpush1.bf16.xpose.msra.mxu0 0
        %4108 = vmatprep.subr.bf16.mxu0 0
        %4109 = vmatpush1.bf16.xpose.msra.mxu0 0
        %4110 = vmatprep.subr.bf16.mxu0 0
        %4111 = vmatpush1.bf16.xpose.msra.mxu0 0
        %4112 = vmatprep.subr.bf16.mxu0 0
        %4113 = vmatpush1.bf16.xpose.msra.mxu0 0
        %4114 = vmatprep.subr.bf16.mxu0 0
        %4115 = vmatpush1.bf16.xpose.msra.mxu0 %v4100
        %4116 = vmatprep.subr.bf16.mxu0 0
        %4117 = vmatpush1.bf16.xpose.msra.mxu0 %v4097
        %4118 = vmatprep.subr.bf16.mxu0 0
        %4119 = vmatpush2.bf16.xpose.msra.mxu0 0
        %4120 = vmatprep.subr.bf16.mxu0 0
        %4121 = vmatpush2.bf16.xpose.msra.mxu0 0
        %4122 = vmatprep.subr.bf16.mxu0 0
        %4123 = vmatpush2.bf16.xpose.msra.mxu0 0
        %4124 = vmatprep.subr.bf16.mxu0 0
        %4125 = vmatpush2.bf16.xpose.msra.mxu0 0
        %4126 = vmatprep.subr.bf16.mxu0 0
        %4127 = vmatpush2.bf16.xpose.msra.mxu0 0
        %4128 = vmatprep.subr.bf16.mxu0 0
        %4129 = vmatpush2.bf16.xpose.msra.mxu0 0
        %4130 = vmatprep.subr.bf16.mxu0 0
        %4131 = vmatpush2.bf16.xpose.msra.mxu0 0
        %4132 = vmatprep.subr.bf16.mxu0 0
        %4133 = vmatpush2.bf16.xpose.msra.mxu0 0
        %4134 = vmatprep.mubr.bf16.mxu0 0
        %4135 = vmatmul.mubr.bf16.gmra.mxu0 %v4094
        %v4136 = vpop.f32.mrf.mxu0
        %v4137 = vadd.f32 %v3758, %v4136
        %v4138 = vpop.f32.mrf.mxu0
        %v4139 = vpop.f32.mrf.mxu0
        %v4140 = vpop.f32.mrf.mxu0
        %4141 = vdwg.mxu0
        %v4142 = vsel %vm3809, %v4137, -inf
        %4143 = vmax.xlane.f32.xlu0 %v4142
        %v4144 = vpop.xlane.xlu0 %4143
        %v4145 = vsub.f32 %v4137, %v4144
        %v4146 = vmul.f32 %v4145, 1.442695
        %v4147 = vpow.pop %v4146
        %v4148 = vsel %vm3809, %v4147, 0.0
        %4149 = vadd.xlane.f32.xlu0 %v4148
        %v4150 = vpop.xlane.xlu0 %4149
        %v4151 = vrcp.pop %v4150
        %v4152 = vmul.f32 %v4147, %v4151
        %v4153 = vpack.c.bf16 %v4152, %v4152
        %4154 = vrot.lane.b32.xlu0 %v3822, 112
        %v4155 = vpop.permute.xlu0 %4154
        %4156 = vrot.lane.b32.xlu0 %v3823, 112
        %v4157 = vpop.permute.xlu0 %4156
        %v4160 = vsel %vm3809, %v4153, 0
        %v4163 = vsel %vm2094, %v4157, 0
        %4165 = vmatprep.subr.bf16.mxu0 0
        %4166 = vmatpush1.bf16.msra.mxu0 0
        %4167 = vmatprep.subr.bf16.mxu0 0
        %4168 = vmatpush1.bf16.msra.mxu0 0
        %4169 = vmatprep.subr.bf16.mxu0 0
        %4170 = vmatpush1.bf16.msra.mxu0 0
        %4171 = vmatprep.subr.bf16.mxu0 0
        %4172 = vmatpush1.bf16.msra.mxu0 0
        %4173 = vmatprep.subr.bf16.mxu0 0
        %4174 = vmatpush1.bf16.msra.mxu0 0
        %4175 = vmatprep.subr.bf16.mxu0 0
        %4176 = vmatpush1.bf16.msra.mxu0 0
        %4177 = vmatprep.subr.bf16.mxu0 0
        %4178 = vmatpush1.bf16.msra.mxu0 %v4163
        %4179 = vmatprep.subr.bf16.mxu0 0
        %4180 = vmatpush1.bf16.msra.mxu0 %v4155
        %4181 = vmatprep.subr.bf16.mxu0 0
        %4182 = vmatpush2.bf16.msra.mxu0 0
        %4183 = vmatprep.subr.bf16.mxu0 0
        %4184 = vmatpush2.bf16.msra.mxu0 0
        %4185 = vmatprep.subr.bf16.mxu0 0
        %4186 = vmatpush2.bf16.msra.mxu0 0
        %4187 = vmatprep.subr.bf16.mxu0 0
        %4188 = vmatpush2.bf16.msra.mxu0 0
        %4189 = vmatprep.subr.bf16.mxu0 0
        %4190 = vmatpush2.bf16.msra.mxu0 0
        %4191 = vmatprep.subr.bf16.mxu0 0
        %4192 = vmatpush2.bf16.msra.mxu0 0
        %4193 = vmatprep.subr.bf16.mxu0 0
        %4194 = vmatpush2.bf16.msra.mxu0 0
        %4195 = vmatprep.subr.bf16.mxu0 0
        %4196 = vmatpush2.bf16.msra.mxu0 0
        %4197 = vmatprep.mubr.bf16.mxu0 0
        %4198 = vmatmul.mubr.bf16.gmra.mxu0 %v4160
        %v4199 = vpop.f32.mrf.mxu0
        %v4200 = vadd.f32 0.0, %v4199
        %v4201 = vpop.f32.mrf.mxu0
        %v4202 = vpop.f32.mrf.mxu0
        %v4203 = vpop.f32.mrf.mxu0
        %4204 = vdwg.mxu0
        %v4205 = vpack.c.bf16 %v4200, %v4200
        %v4207 = vsel %vm2031, %v4205, 0
        %v4210 = vsel %vm2094, %v3543, 0
        %4212 = vmatprep.subr.bf16.mxu0 0
        %4213 = vmatpush1.bf16.msra.mxu0 0
        %4214 = vmatprep.subr.bf16.mxu0 0
        %4215 = vmatpush1.bf16.msra.mxu0 0
        %4216 = vmatprep.subr.bf16.mxu0 0
        %4217 = vmatpush1.bf16.msra.mxu0 0
        %4218 = vmatprep.subr.bf16.mxu0 0
        %4219 = vmatpush1.bf16.msra.mxu0 0
        %4220 = vmatprep.subr.bf16.mxu0 0
        %4221 = vmatpush1.bf16.msra.mxu0 0
        %4222 = vmatprep.subr.bf16.mxu0 0
        %4223 = vmatpush1.bf16.msra.mxu0 0
        %4224 = vmatprep.subr.bf16.mxu0 0
        %4225 = vmatpush1.bf16.msra.mxu0 0
        %4226 = vmatprep.subr.bf16.mxu0 0
        %4227 = vmatpush1.bf16.msra.mxu0 %v4210
        %4228 = vmatprep.subr.bf16.mxu0 0
        %4229 = vmatpush2.bf16.msra.mxu0 0
        %4230 = vmatprep.subr.bf16.mxu0 0
        %4231 = vmatpush2.bf16.msra.mxu0 0
        %4232 = vmatprep.subr.bf16.mxu0 0
        %4233 = vmatpush2.bf16.msra.mxu0 0
        %4234 = vmatprep.subr.bf16.mxu0 0
        %4235 = vmatpush2.bf16.msra.mxu0 0
        %4236 = vmatprep.subr.bf16.mxu0 0
        %4237 = vmatpush2.bf16.msra.mxu0 0
        %4238 = vmatprep.subr.bf16.mxu0 0
        %4239 = vmatpush2.bf16.msra.mxu0 0
        %4240 = vmatprep.subr.bf16.mxu0 0
        %4241 = vmatpush2.bf16.msra.mxu0 0
        %4242 = vmatprep.subr.bf16.mxu0 0
        %4243 = vmatpush2.bf16.msra.mxu0 0
        %4244 = vmatprep.mubr.bf16.mxu0 0
        %4245 = vmatmul.mubr.bf16.gmra.mxu0 %v4207
        %v4246 = vpop.f32.mrf.mxu0
        %v4247 = vadd.f32 0.0, %v4246
        %v4248 = vpop.f32.mrf.mxu0
        %v4249 = vpop.f32.mrf.mxu0
        %v4250 = vpop.f32.mrf.mxu0
        %4251 = vdwg.mxu0
        %v4252 = vadd.f32 %v4082, %v4247
        %4253 = vrot.lane.b32.xlu0 %v3751, 104
        %v4254 = vpop.permute.xlu0 %4253
        %4255 = vrot.lane.b32.xlu0 %v3752, 104
        %v4256 = vpop.permute.xlu0 %4255
        %4257 = vrot.lane.b32.xlu0 %v3753, 104
        %v4258 = vpop.permute.xlu0 %4257
        %v4260 = vsel %vm2031, %v4254, 0
        %v4263 = vsel %vm2031, %v4256, 0
        %v4266 = vsel %vm2031, %v4258, 0
        %4268 = vmatprep.subr.bf16.mxu0 0
        %4269 = vmatpush1.bf16.xpose.msra.mxu0 0
        %4270 = vmatprep.subr.bf16.mxu0 0
        %4271 = vmatpush1.bf16.xpose.msra.mxu0 0
        %4272 = vmatprep.subr.bf16.mxu0 0
        %4273 = vmatpush1.bf16.xpose.msra.mxu0 0
        %4274 = vmatprep.subr.bf16.mxu0 0
        %4275 = vmatpush1.bf16.xpose.msra.mxu0 0
        %4276 = vmatprep.subr.bf16.mxu0 0
        %4277 = vmatpush1.bf16.xpose.msra.mxu0 0
        %4278 = vmatprep.subr.bf16.mxu0 0
        %4279 = vmatpush1.bf16.xpose.msra.mxu0 0
        %4280 = vmatprep.subr.bf16.mxu0 0
        %4281 = vmatpush1.bf16.xpose.msra.mxu0 %v4266
        %4282 = vmatprep.subr.bf16.mxu0 0
        %4283 = vmatpush1.bf16.xpose.msra.mxu0 %v4263
        %4284 = vmatprep.subr.bf16.mxu0 0
        %4285 = vmatpush2.bf16.xpose.msra.mxu0 0
        %4286 = vmatprep.subr.bf16.mxu0 0
        %4287 = vmatpush2.bf16.xpose.msra.mxu0 0
        %4288 = vmatprep.subr.bf16.mxu0 0
        %4289 = vmatpush2.bf16.xpose.msra.mxu0 0
        %4290 = vmatprep.subr.bf16.mxu0 0
        %4291 = vmatpush2.bf16.xpose.msra.mxu0 0
        %4292 = vmatprep.subr.bf16.mxu0 0
        %4293 = vmatpush2.bf16.xpose.msra.mxu0 0
        %4294 = vmatprep.subr.bf16.mxu0 0
        %4295 = vmatpush2.bf16.xpose.msra.mxu0 0
        %4296 = vmatprep.subr.bf16.mxu0 0
        %4297 = vmatpush2.bf16.xpose.msra.mxu0 0
        %4298 = vmatprep.subr.bf16.mxu0 0
        %4299 = vmatpush2.bf16.xpose.msra.mxu0 0
        %4300 = vmatprep.mubr.bf16.mxu0 0
        %4301 = vmatmul.mubr.bf16.gmra.mxu0 %v4260
        %v4302 = vpop.f32.mrf.mxu0
        %v4303 = vadd.f32 %v3758, %v4302
        %v4304 = vpop.f32.mrf.mxu0
        %v4305 = vpop.f32.mrf.mxu0
        %v4306 = vpop.f32.mrf.mxu0
        %4307 = vdwg.mxu0
        %v4308 = vsel %vm3809, %v4303, -inf
        %4309 = vmax.xlane.f32.xlu0 %v4308
        %v4310 = vpop.xlane.xlu0 %4309
        %v4311 = vsub.f32 %v4303, %v4310
        %v4312 = vmul.f32 %v4311, 1.442695
        %v4313 = vpow.pop %v4312
        %v4314 = vsel %vm3809, %v4313, 0.0
        %4315 = vadd.xlane.f32.xlu0 %v4314
        %v4316 = vpop.xlane.xlu0 %4315
        %v4317 = vrcp.pop %v4316
        %v4318 = vmul.f32 %v4313, %v4317
        %v4319 = vpack.c.bf16 %v4318, %v4318
        %4320 = vrot.lane.b32.xlu0 %v3822, 104
        %v4321 = vpop.permute.xlu0 %4320
        %4322 = vrot.lane.b32.xlu0 %v3823, 104
        %v4323 = vpop.permute.xlu0 %4322
        %v4326 = vsel %vm3809, %v4319, 0
        %v4329 = vsel %vm2094, %v4323, 0
        %4331 = vmatprep.subr.bf16.mxu0 0
        %4332 = vmatpush1.bf16.msra.mxu0 0
        %4333 = vmatprep.subr.bf16.mxu0 0
        %4334 = vmatpush1.bf16.msra.mxu0 0
        %4335 = vmatprep.subr.bf16.mxu0 0
        %4336 = vmatpush1.bf16.msra.mxu0 0
        %4337 = vmatprep.subr.bf16.mxu0 0
        %4338 = vmatpush1.bf16.msra.mxu0 0
        %4339 = vmatprep.subr.bf16.mxu0 0
        %4340 = vmatpush1.bf16.msra.mxu0 0
        %4341 = vmatprep.subr.bf16.mxu0 0
        %4342 = vmatpush1.bf16.msra.mxu0 0
        %4343 = vmatprep.subr.bf16.mxu0 0
        %4344 = vmatpush1.bf16.msra.mxu0 %v4329
        %4345 = vmatprep.subr.bf16.mxu0 0
        %4346 = vmatpush1.bf16.msra.mxu0 %v4321
        %4347 = vmatprep.subr.bf16.mxu0 0
        %4348 = vmatpush2.bf16.msra.mxu0 0
        %4349 = vmatprep.subr.bf16.mxu0 0
        %4350 = vmatpush2.bf16.msra.mxu0 0
        %4351 = vmatprep.subr.bf16.mxu0 0
        %4352 = vmatpush2.bf16.msra.mxu0 0
        %4353 = vmatprep.subr.bf16.mxu0 0
        %4354 = vmatpush2.bf16.msra.mxu0 0
        %4355 = vmatprep.subr.bf16.mxu0 0
        %4356 = vmatpush2.bf16.msra.mxu0 0
        %4357 = vmatprep.subr.bf16.mxu0 0
        %4358 = vmatpush2.bf16.msra.mxu0 0
        %4359 = vmatprep.subr.bf16.mxu0 0
        %4360 = vmatpush2.bf16.msra.mxu0 0
        %4361 = vmatprep.subr.bf16.mxu0 0
        %4362 = vmatpush2.bf16.msra.mxu0 0
        %4363 = vmatprep.mubr.bf16.mxu0 0
        %4364 = vmatmul.mubr.bf16.gmra.mxu0 %v4326
        %v4365 = vpop.f32.mrf.mxu0
        %v4366 = vadd.f32 0.0, %v4365
        %v4367 = vpop.f32.mrf.mxu0
        %v4368 = vpop.f32.mrf.mxu0
        %v4369 = vpop.f32.mrf.mxu0
        %4370 = vdwg.mxu0
        %v4371 = vpack.c.bf16 %v4366, %v4366
        %v4373 = vsel %vm2031, %v4371, 0
        %v4376 = vsel %vm2094, %v3544, 0
        %4378 = vmatprep.subr.bf16.mxu0 0
        %4379 = vmatpush1.bf16.msra.mxu0 0
        %4380 = vmatprep.subr.bf16.mxu0 0
        %4381 = vmatpush1.bf16.msra.mxu0 0
        %4382 = vmatprep.subr.bf16.mxu0 0
        %4383 = vmatpush1.bf16.msra.mxu0 0
        %4384 = vmatprep.subr.bf16.mxu0 0
        %4385 = vmatpush1.bf16.msra.mxu0 0
        %4386 = vmatprep.subr.bf16.mxu0 0
        %4387 = vmatpush1.bf16.msra.mxu0 0
        %4388 = vmatprep.subr.bf16.mxu0 0
        %4389 = vmatpush1.bf16.msra.mxu0 0
        %4390 = vmatprep.subr.bf16.mxu0 0
        %4391 = vmatpush1.bf16.msra.mxu0 0
        %4392 = vmatprep.subr.bf16.mxu0 0
        %4393 = vmatpush1.bf16.msra.mxu0 %v4376
        %4394 = vmatprep.subr.bf16.mxu0 0
        %4395 = vmatpush2.bf16.msra.mxu0 0
        %4396 = vmatprep.subr.bf16.mxu0 0
        %4397 = vmatpush2.bf16.msra.mxu0 0
        %4398 = vmatprep.subr.bf16.mxu0 0
        %4399 = vmatpush2.bf16.msra.mxu0 0
        %4400 = vmatprep.subr.bf16.mxu0 0
        %4401 = vmatpush2.bf16.msra.mxu0 0
        %4402 = vmatprep.subr.bf16.mxu0 0
        %4403 = vmatpush2.bf16.msra.mxu0 0
        %4404 = vmatprep.subr.bf16.mxu0 0
        %4405 = vmatpush2.bf16.msra.mxu0 0
        %4406 = vmatprep.subr.bf16.mxu0 0
        %4407 = vmatpush2.bf16.msra.mxu0 0
        %4408 = vmatprep.subr.bf16.mxu0 0
        %4409 = vmatpush2.bf16.msra.mxu0 0
        %4410 = vmatprep.mubr.bf16.mxu0 0
        %4411 = vmatmul.mubr.bf16.gmra.mxu0 %v4373
        %v4412 = vpop.f32.mrf.mxu0
        %v4413 = vadd.f32 0.0, %v4412
        %v4414 = vpop.f32.mrf.mxu0
        %v4415 = vpop.f32.mrf.mxu0
        %v4416 = vpop.f32.mrf.mxu0
        %4417 = vdwg.mxu0
        %v4418 = vadd.f32 %v4252, %v4413
        %v4419 = vadd.f32 %v2666, %v4418
        %v4420 = vlaneseq
        %v4421 = vshrl.u32 %v4420, 7
        %v4422 = vsub.s32 0, %v4421
        %v4423 = vrot.slane %v3545, %v4422
        %v4424 = vadd.f32 %v4419, %v4423
        %v4425 = vld [vmem:[%s75] sm:$0x1]
        %v4426 = vld [vmem:[%s77] sm:$0x1]
        %v4427 = vsel %vm1831, %v3523, 0.0
        %4428 = vadd.xlane.f32.xlu0 %v4427
        %v4429 = vpop.xlane.xlu0 %4428
        %v4430 = vmul.f32 %v4429, %v1835
        %v4431 = vsub.f32 %v3523, %v4430
        %v4432 = vmul.f32 %v4431, %v4431
        %v4433 = vsel %vm1831, %v4432, 0.0
        %4434 = vadd.xlane.f32.xlu0 %v4433
        %v4435 = vpop.xlane.xlu0 %4434
        %v4436 = vmul.f32 %v4435, %v1835
        %v4437 = vadd.f32 %v4436, 1e-05
        %v4438 = vrsqrt.pop %v4437
        %v4439 = vmul.f32 %v4431, %v4438
        %v4440 = vlaneseq
        %v4441 = vshrl.u32 %v4440, 7
        %v4442 = vsub.s32 0, %v4441
        %v4443 = vrot.slane %v4425, %v4442
        %v4444 = vmul.f32 %v4439, %v4443
        %v4445 = vlaneseq
        %v4446 = vshrl.u32 %v4445, 7
        %v4447 = vsub.s32 0, %v4446
        %v4448 = vrot.slane %v4426, %v4447
        %v4449 = vadd.f32 %v4444, %v4448
        %v4450 = vld [vmem:[%s79] sm:$0x1]
        %v4451 = vld [vmem:[%s81] sm:$0x1]
        %v4452 = vsel %vm1831, %v4424, 0.0
        %4453 = vadd.xlane.f32.xlu0 %v4452
        %v4454 = vpop.xlane.xlu0 %4453
        %v4455 = vmul.f32 %v4454, %v1835
        %v4456 = vsub.f32 %v4424, %v4455
        %v4457 = vmul.f32 %v4456, %v4456
        %v4458 = vsel %vm1831, %v4457, 0.0
        %4459 = vadd.xlane.f32.xlu0 %v4458
        %v4460 = vpop.xlane.xlu0 %4459
        %v4461 = vmul.f32 %v4460, %v1835
        %v4462 = vadd.f32 %v4461, 1e-05
        %v4463 = vrsqrt.pop %v4462
        %v4464 = vmul.f32 %v4456, %v4463
        %v4465 = vlaneseq
        %v4466 = vshrl.u32 %v4465, 7
        %v4467 = vsub.s32 0, %v4466
        %v4468 = vrot.slane %v4450, %v4467
        %v4469 = vmul.f32 %v4464, %v4468
        %v4470 = vlaneseq
        %v4471 = vshrl.u32 %v4470, 7
        %v4472 = vsub.s32 0, %v4471
        %v4473 = vrot.slane %v4451, %v4472
        %v4474 = vadd.f32 %v4469, %v4473
        %v4475 = vld [vmem:[%s13] sm:$0x1]
        %v4477 = vlaneseq
        %v4478 = vshrl.u32 %v4477, 7
        %v4479 = vsub.s32 0, %v4478
        %v4480 = vrot.slane %v4475, %v4479
        %4481 = vset.pattern.permute.xlu0 0
        %4482 = vperm.xlu0 %4481, %v4480
        %v4483 = vpop.permute.xlu0 %4482
        %v4485 = vmul.f32 %v4483, %v4474
        %v4486 = vsub.f32 1.0, %v4475
        %v4488 = vlaneseq
        %v4489 = vshrl.u32 %v4488, 7
        %v4490 = vsub.s32 0, %v4489
        %v4491 = vrot.slane %v4486, %v4490
        %4492 = vset.pattern.permute.xlu0 0
        %4493 = vperm.xlu0 %4492, %v4491
        %v4494 = vpop.permute.xlu0 %4493
        %v4496 = vmul.f32 %v4494, %v4449
        %v4497 = vadd.f32 %v4485, %v4496
        %v4498 = vld [vmem:[#allocation13 + $0x1] sm:$0x1]
        %v4499 = vld [vmem:[#allocation14 + $0x1] sm:$0x1]
        %s4500 = scalar_lea.vmem [#allocation16], 16
        %v4501 = vld [vmem:[%s4500] sm:$0xf]
        %v4502 = vld [vmem:[%s4500 + $0x4] sm:$0xf]
        %v4503 = vld [vmem:[%s4500 + $0x8] sm:$0xf]
        %v4504 = vld [vmem:[%s4500 + $0xc] sm:$0xf]
        %v4505 = vld [vmem:[#allocation17 + $0x1] sm:$0x1]
        %s4506 = scalar_lea.vmem [#allocation19], 16
        %v4507 = vld [vmem:[%s4506] sm:$0xf]
        %v4508 = vld [vmem:[%s4506 + $0x4] sm:$0xf]
        %v4509 = vld [vmem:[%s4506 + $0x8] sm:$0xf]
        %v4510 = vld [vmem:[%s4506 + $0xc] sm:$0xf]
        %v4511 = vld [vmem:[#allocation20 + $0x1] sm:$0x1]
        %s4512 = scalar_lea.vmem [#allocation22], 16
        %v4513 = vld [vmem:[%s4512] sm:$0xf]
        %v4514 = vld [vmem:[%s4512 + $0x4] sm:$0xf]
        %v4515 = vld [vmem:[%s4512 + $0x8] sm:$0xf]
        %v4516 = vld [vmem:[%s4512 + $0xc] sm:$0xf]
        %v4517 = vld [vmem:[#allocation23 + $0x1] sm:$0x1]
        %s4518 = scalar_lea.vmem [#allocation25], 16
        %v4519 = vld [vmem:[%s4518] sm:$0xf]
        %v4520 = vld [vmem:[%s4518 + $0x4] sm:$0xf]
        %v4521 = vld [vmem:[%s4518 + $0x8] sm:$0xf]
        %v4522 = vld [vmem:[%s4518 + $0xc] sm:$0xf]
        %v4523 = vld [vmem:[#allocation26 + $0x1] sm:$0x1]
        %v4524 = vsel %vm1831, %v4497, 0.0
        %4525 = vadd.xlane.f32.xlu0 %v4524
        %v4526 = vpop.xlane.xlu0 %4525
        %v4527 = vmul.f32 %v4526, %v1835
        %v4528 = vsub.f32 %v4497, %v4527
        %v4529 = vmul.f32 %v4528, %v4528
        %v4530 = vsel %vm1831, %v4529, 0.0
        %4531 = vadd.xlane.f32.xlu0 %v4530
        %v4532 = vpop.xlane.xlu0 %4531
        %v4533 = vmul.f32 %v4532, %v1835
        %v4534 = vadd.f32 %v4533, 1e-05
        %v4535 = vrsqrt.pop %v4534
        %v4536 = vmul.f32 %v4528, %v4535
        %v4537 = vlaneseq
        %v4538 = vshrl.u32 %v4537, 7
        %v4539 = vsub.s32 0, %v4538
        %v4540 = vrot.slane %v4498, %v4539
        %v4541 = vmul.f32 %v4536, %v4540
        %v4542 = vlaneseq
        %v4543 = vshrl.u32 %v4542, 7
        %v4544 = vsub.s32 0, %v4543
        %v4545 = vrot.slane %v4499, %v4544
        %v4546 = vadd.f32 %v4541, %v4545
        %v4547 = vpack.c.bf16 %v4546, %v4546
        %v4548 = vlaneseq
        %v4549 = vshrl.u32 %v4548, 7
        %v4550 = vsub.s32 0, %v4549
        %v4551 = vrot.slane %v4505, %v4550
        %v4556 = vunpack.c.l.b16 %v4501
        %v4557 = vunpack.c.l.b16 %v4502
        %v4558 = vunpack.c.l.b16 %v4503
        %v4559 = vunpack.c.l.b16 %v4504
        %v4560 = vpack.c.b16 %v4557, %v4556
        %v4561 = vpack.c.b16 %v4559, %v4558
        %v4565 = vsel %vm1831, %v4547, 0
        %4567 = vmatprep.subr.bf16.mxu0 0
        %4568 = vmatpush1.bf16.msra.mxu0 0
        %4569 = vmatprep.subr.bf16.mxu0 0
        %4570 = vmatpush1.bf16.msra.mxu0 0
        %4571 = vmatprep.subr.bf16.mxu0 0
        %4572 = vmatpush1.bf16.msra.mxu0 0
        %4573 = vmatprep.subr.bf16.mxu0 0
        %4574 = vmatpush1.bf16.msra.mxu0 0
        %4575 = vmatprep.subr.bf16.mxu0 0
        %4576 = vmatpush1.bf16.msra.mxu0 0
        %4577 = vmatprep.subr.bf16.mxu0 0
        %4578 = vmatpush1.bf16.msra.mxu0 0
        %4579 = vmatprep.subr.bf16.mxu0 0
        %4580 = vmatpush1.bf16.msra.mxu0 %v4561
        %4581 = vmatprep.subr.bf16.mxu0 0
        %4582 = vmatpush1.bf16.msra.mxu0 %v4560
        %4583 = vmatprep.subr.bf16.mxu0 0
        %4584 = vmatpush2.bf16.msra.mxu0 0
        %4585 = vmatprep.subr.bf16.mxu0 0
        %4586 = vmatpush2.bf16.msra.mxu0 0
        %4587 = vmatprep.subr.bf16.mxu0 0
        %4588 = vmatpush2.bf16.msra.mxu0 0
        %4589 = vmatprep.subr.bf16.mxu0 0
        %4590 = vmatpush2.bf16.msra.mxu0 0
        %4591 = vmatprep.subr.bf16.mxu0 0
        %4592 = vmatpush2.bf16.msra.mxu0 0
        %4593 = vmatprep.subr.bf16.mxu0 0
        %4594 = vmatpush2.bf16.msra.mxu0 0
        %4595 = vmatprep.subr.bf16.mxu0 0
        %4596 = vmatpush2.bf16.msra.mxu0 0
        %4597 = vmatprep.subr.bf16.mxu0 0
        %4598 = vmatpush2.bf16.msra.mxu0 0
        %4599 = vmatprep.mubr.bf16.mxu0 0
        %4600 = vmatmul.mubr.bf16.gmra.mxu0 %v4565
        %v4601 = vpop.f32.mrf.mxu0
        %v4602 = vadd.f32 %v4551, %v4601
        %v4603 = vpop.f32.mrf.mxu0
        %v4604 = vpop.f32.mrf.mxu0
        %v4605 = vpop.f32.mrf.mxu0
        %4606 = vdwg.mxu0
        %v4607 = vlaneseq
        %v4608 = vshrl.u32 %v4607, 7
        %v4609 = vsub.s32 0, %v4608
        %v4610 = vrot.slane %v4511, %v4609
        %v4615 = vunpack.c.l.b16 %v4507
        %v4616 = vunpack.c.l.b16 %v4508
        %v4617 = vunpack.c.l.b16 %v4509
        %v4618 = vunpack.c.l.b16 %v4510
        %v4619 = vpack.c.b16 %v4616, %v4615
        %v4620 = vpack.c.b16 %v4618, %v4617
        %4623 = vmatprep.subr.bf16.mxu0 0
        %4624 = vmatpush1.bf16.msra.mxu0 0
        %4625 = vmatprep.subr.bf16.mxu0 0
        %4626 = vmatpush1.bf16.msra.mxu0 0
        %4627 = vmatprep.subr.bf16.mxu0 0
        %4628 = vmatpush1.bf16.msra.mxu0 0
        %4629 = vmatprep.subr.bf16.mxu0 0
        %4630 = vmatpush1.bf16.msra.mxu0 0
        %4631 = vmatprep.subr.bf16.mxu0 0
        %4632 = vmatpush1.bf16.msra.mxu0 0
        %4633 = vmatprep.subr.bf16.mxu0 0
        %4634 = vmatpush1.bf16.msra.mxu0 0
        %4635 = vmatprep.subr.bf16.mxu0 0
        %4636 = vmatpush1.bf16.msra.mxu0 %v4620
        %4637 = vmatprep.subr.bf16.mxu0 0
        %4638 = vmatpush1.bf16.msra.mxu0 %v4619
        %4639 = vmatprep.subr.bf16.mxu0 0
        %4640 = vmatpush2.bf16.msra.mxu0 0
        %4641 = vmatprep.subr.bf16.mxu0 0
        %4642 = vmatpush2.bf16.msra.mxu0 0
        %4643 = vmatprep.subr.bf16.mxu0 0
        %4644 = vmatpush2.bf16.msra.mxu0 0
        %4645 = vmatprep.subr.bf16.mxu0 0
        %4646 = vmatpush2.bf16.msra.mxu0 0
        %4647 = vmatprep.subr.bf16.mxu0 0
        %4648 = vmatpush2.bf16.msra.mxu0 0
        %4649 = vmatprep.subr.bf16.mxu0 0
        %4650 = vmatpush2.bf16.msra.mxu0 0
        %4651 = vmatprep.subr.bf16.mxu0 0
        %4652 = vmatpush2.bf16.msra.mxu0 0
        %4653 = vmatprep.subr.bf16.mxu0 0
        %4654 = vmatpush2.bf16.msra.mxu0 0
        %4655 = vmatprep.mubr.bf16.mxu0 0
        %4656 = vmatmul.mubr.bf16.gmra.mxu0 %v4565
        %v4657 = vpop.f32.mrf.mxu0
        %v4658 = vadd.f32 %v4610, %v4657
        %v4659 = vpop.f32.mrf.mxu0
        %v4660 = vpop.f32.mrf.mxu0
        %v4661 = vpop.f32.mrf.mxu0
        %4662 = vdwg.mxu0
        %v4663 = vlaneseq
        %v4664 = vshrl.u32 %v4663, 7
        %v4665 = vsub.s32 0, %v4664
        %v4666 = vrot.slane %v4517, %v4665
        %v4671 = vunpack.c.l.b16 %v4513
        %v4672 = vunpack.c.l.b16 %v4514
        %v4673 = vunpack.c.l.b16 %v4515
        %v4674 = vunpack.c.l.b16 %v4516
        %v4675 = vpack.c.b16 %v4672, %v4671
        %v4676 = vpack.c.b16 %v4674, %v4673
        %4679 = vmatprep.subr.bf16.mxu0 0
        %4680 = vmatpush1.bf16.msra.mxu0 0
        %4681 = vmatprep.subr.bf16.mxu0 0
        %4682 = vmatpush1.bf16.msra.mxu0 0
        %4683 = vmatprep.subr.bf16.mxu0 0
        %4684 = vmatpush1.bf16.msra.mxu0 0
        %4685 = vmatprep.subr.bf16.mxu0 0
        %4686 = vmatpush1.bf16.msra.mxu0 0
        %4687 = vmatprep.subr.bf16.mxu0 0
        %4688 = vmatpush1.bf16.msra.mxu0 0
        %4689 = vmatprep.subr.bf16.mxu0 0
        %4690 = vmatpush1.bf16.msra.mxu0 0
        %4691 = vmatprep.subr.bf16.mxu0 0
        %4692 = vmatpush1.bf16.msra.mxu0 %v4676
        %4693 = vmatprep.subr.bf16.mxu0 0
        %4694 = vmatpush1.bf16.msra.mxu0 %v4675
        %4695 = vmatprep.subr.bf16.mxu0 0
        %4696 = vmatpush2.bf16.msra.mxu0 0
        %4697 = vmatprep.subr.bf16.mxu0 0
        %4698 = vmatpush2.bf16.msra.mxu0 0
        %4699 = vmatprep.subr.bf16.mxu0 0
        %4700 = vmatpush2.bf16.msra.mxu0 0
        %4701 = vmatprep.subr.bf16.mxu0 0
        %4702 = vmatpush2.bf16.msra.mxu0 0
        %4703 = vmatprep.subr.bf16.mxu0 0
        %4704 = vmatpush2.bf16.msra.mxu0 0
        %4705 = vmatprep.subr.bf16.mxu0 0
        %4706 = vmatpush2.bf16.msra.mxu0 0
        %4707 = vmatprep.subr.bf16.mxu0 0
        %4708 = vmatpush2.bf16.msra.mxu0 0
        %4709 = vmatprep.subr.bf16.mxu0 0
        %4710 = vmatpush2.bf16.msra.mxu0 0
        %4711 = vmatprep.mubr.bf16.mxu0 0
        %4712 = vmatmul.mubr.bf16.gmra.mxu0 %v4565
        %v4713 = vpop.f32.mrf.mxu0
        %v4714 = vadd.f32 %v4666, %v4713
        %v4715 = vpop.f32.mrf.mxu0
        %v4716 = vpop.f32.mrf.mxu0
        %v4717 = vpop.f32.mrf.mxu0
        %4718 = vdwg.mxu0
        %v4719 = vmul.f32 %v4602, 0.35355338
        %v4720 = vpack.c.bf16 %v4719, %v4719
        %v4721 = vpack.c.bf16 %v4658, %v4658
        %v4723 = vsel %vm2031, %v4720, 0
        %v4726 = vsel %vm2031, %v4721, 0
        %4728 = vmatprep.subr.bf16.mxu0 0
        %4729 = vmatpush1.bf16.xpose.msra.mxu0 0
        %4730 = vmatprep.subr.bf16.mxu0 0
        %4731 = vmatpush1.bf16.xpose.msra.mxu0 0
        %4732 = vmatprep.subr.bf16.mxu0 0
        %4733 = vmatpush1.bf16.xpose.msra.mxu0 0
        %4734 = vmatprep.subr.bf16.mxu0 0
        %4735 = vmatpush1.bf16.xpose.msra.mxu0 0
        %4736 = vmatprep.subr.bf16.mxu0 0
        %4737 = vmatpush1.bf16.xpose.msra.mxu0 0
        %4738 = vmatprep.subr.bf16.mxu0 0
        %4739 = vmatpush1.bf16.xpose.msra.mxu0 0
        %4740 = vmatprep.subr.bf16.mxu0 0
        %4741 = vmatpush1.bf16.xpose.msra.mxu0 0
        %4742 = vmatprep.subr.bf16.mxu0 0
        %4743 = vmatpush1.bf16.xpose.msra.mxu0 %v4726
        %4744 = vmatprep.subr.bf16.mxu0 0
        %4745 = vmatpush2.bf16.xpose.msra.mxu0 0
        %4746 = vmatprep.subr.bf16.mxu0 0
        %4747 = vmatpush2.bf16.xpose.msra.mxu0 0
        %4748 = vmatprep.subr.bf16.mxu0 0
        %4749 = vmatpush2.bf16.xpose.msra.mxu0 0
        %4750 = vmatprep.subr.bf16.mxu0 0
        %4751 = vmatpush2.bf16.xpose.msra.mxu0 0
        %4752 = vmatprep.subr.bf16.mxu0 0
        %4753 = vmatpush2.bf16.xpose.msra.mxu0 0
        %4754 = vmatprep.subr.bf16.mxu0 0
        %4755 = vmatpush2.bf16.xpose.msra.mxu0 0
        %4756 = vmatprep.subr.bf16.mxu0 0
        %4757 = vmatpush2.bf16.xpose.msra.mxu0 0
        %4758 = vmatprep.subr.bf16.mxu0 0
        %4759 = vmatpush2.bf16.xpose.msra.mxu0 0
        %4760 = vmatprep.mubr.bf16.mxu0 0
        %4761 = vmatmul.mubr.bf16.gmra.mxu0 %v4723
        %v4762 = vpop.f32.mrf.mxu0
        %v4763 = vadd.f32 %v1802, %v4762
        %v4764 = vpop.f32.mrf.mxu0
        %v4765 = vpop.f32.mrf.mxu0
        %v4766 = vpop.f32.mrf.mxu0
        %4767 = vdwg.mxu0
        %v4768 = vsel %vm2031, %v4763, -inf
        %4769 = vmax.xlane.f32.xlu0 %v4768
        %v4770 = vpop.xlane.xlu0 %4769
        %v4771 = vsub.f32 %v4763, %v4770
        %v4772 = vmul.f32 %v4771, 1.442695
        %v4773 = vpow.pop %v4772
        %v4774 = vsel %vm2031, %v4773, 0.0
        %4775 = vadd.xlane.f32.xlu0 %v4774
        %v4776 = vpop.xlane.xlu0 %4775
        %v4777 = vrcp.pop %v4776
        %v4778 = vmul.f32 %v4773, %v4777
        %v4779 = vpack.c.bf16 %v4778, %v4778
        %v4780 = vpack.c.bf16 %v4714, %v4714
        %v4782 = vsel %vm2031, %v4779, 0
        %v4785 = vsel %vm2094, %v4780, 0
        %4787 = vmatprep.subr.bf16.mxu0 0
        %4788 = vmatpush1.bf16.msra.mxu0 0
        %4789 = vmatprep.subr.bf16.mxu0 0
        %4790 = vmatpush1.bf16.msra.mxu0 0
        %4791 = vmatprep.subr.bf16.mxu0 0
        %4792 = vmatpush1.bf16.msra.mxu0 0
        %4793 = vmatprep.subr.bf16.mxu0 0
        %4794 = vmatpush1.bf16.msra.mxu0 0
        %4795 = vmatprep.subr.bf16.mxu0 0
        %4796 = vmatpush1.bf16.msra.mxu0 0
        %4797 = vmatprep.subr.bf16.mxu0 0
        %4798 = vmatpush1.bf16.msra.mxu0 0
        %4799 = vmatprep.subr.bf16.mxu0 0
        %4800 = vmatpush1.bf16.msra.mxu0 0
        %4801 = vmatprep.subr.bf16.mxu0 0
        %4802 = vmatpush1.bf16.msra.mxu0 %v4785
        %4803 = vmatprep.subr.bf16.mxu0 0
        %4804 = vmatpush2.bf16.msra.mxu0 0
        %4805 = vmatprep.subr.bf16.mxu0 0
        %4806 = vmatpush2.bf16.msra.mxu0 0
        %4807 = vmatprep.subr.bf16.mxu0 0
        %4808 = vmatpush2.bf16.msra.mxu0 0
        %4809 = vmatprep.subr.bf16.mxu0 0
        %4810 = vmatpush2.bf16.msra.mxu0 0
        %4811 = vmatprep.subr.bf16.mxu0 0
        %4812 = vmatpush2.bf16.msra.mxu0 0
        %4813 = vmatprep.subr.bf16.mxu0 0
        %4814 = vmatpush2.bf16.msra.mxu0 0
        %4815 = vmatprep.subr.bf16.mxu0 0
        %4816 = vmatpush2.bf16.msra.mxu0 0
        %4817 = vmatprep.subr.bf16.mxu0 0
        %4818 = vmatpush2.bf16.msra.mxu0 0
        %4819 = vmatprep.mubr.bf16.mxu0 0
        %4820 = vmatmul.mubr.bf16.gmra.mxu0 %v4782
        %v4821 = vpop.f32.mrf.mxu0
        %v4822 = vadd.f32 0.0, %v4821
        %v4823 = vpop.f32.mrf.mxu0
        %v4824 = vpop.f32.mrf.mxu0
        %v4825 = vpop.f32.mrf.mxu0
        %4826 = vdwg.mxu0
        %v4827 = vpack.c.bf16 %v4822, %v4822
        %4829 = vrot.lane.b32.xlu0 %v4720, 120
        %v4830 = vpop.permute.xlu0 %4829
        %4832 = vrot.lane.b32.xlu0 %v4721, 120
        %v4833 = vpop.permute.xlu0 %4832
        %v4835 = vsel %vm2031, %v4830, 0
        %v4838 = vsel %vm2031, %v4833, 0
        %4840 = vmatprep.subr.bf16.mxu0 0
        %4841 = vmatpush1.bf16.xpose.msra.mxu0 0
        %4842 = vmatprep.subr.bf16.mxu0 0
        %4843 = vmatpush1.bf16.xpose.msra.mxu0 0
        %4844 = vmatprep.subr.bf16.mxu0 0
        %4845 = vmatpush1.bf16.xpose.msra.mxu0 0
        %4846 = vmatprep.subr.bf16.mxu0 0
        %4847 = vmatpush1.bf16.xpose.msra.mxu0 0
        %4848 = vmatprep.subr.bf16.mxu0 0
        %4849 = vmatpush1.bf16.xpose.msra.mxu0 0
        %4850 = vmatprep.subr.bf16.mxu0 0
        %4851 = vmatpush1.bf16.xpose.msra.mxu0 0
        %4852 = vmatprep.subr.bf16.mxu0 0
        %4853 = vmatpush1.bf16.xpose.msra.mxu0 0
        %4854 = vmatprep.subr.bf16.mxu0 0
        %4855 = vmatpush1.bf16.xpose.msra.mxu0 %v4838
        %4856 = vmatprep.subr.bf16.mxu0 0
        %4857 = vmatpush2.bf16.xpose.msra.mxu0 0
        %4858 = vmatprep.subr.bf16.mxu0 0
        %4859 = vmatpush2.bf16.xpose.msra.mxu0 0
        %4860 = vmatprep.subr.bf16.mxu0 0
        %4861 = vmatpush2.bf16.xpose.msra.mxu0 0
        %4862 = vmatprep.subr.bf16.mxu0 0
        %4863 = vmatpush2.bf16.xpose.msra.mxu0 0
        %4864 = vmatprep.subr.bf16.mxu0 0
        %4865 = vmatpush2.bf16.xpose.msra.mxu0 0
        %4866 = vmatprep.subr.bf16.mxu0 0
        %4867 = vmatpush2.bf16.xpose.msra.mxu0 0
        %4868 = vmatprep.subr.bf16.mxu0 0
        %4869 = vmatpush2.bf16.xpose.msra.mxu0 0
        %4870 = vmatprep.subr.bf16.mxu0 0
        %4871 = vmatpush2.bf16.xpose.msra.mxu0 0
        %4872 = vmatprep.mubr.bf16.mxu0 0
        %4873 = vmatmul.mubr.bf16.gmra.mxu0 %v4835
        %v4874 = vpop.f32.mrf.mxu0
        %v4875 = vadd.f32 %v1802, %v4874
        %v4876 = vpop.f32.mrf.mxu0
        %v4877 = vpop.f32.mrf.mxu0
        %v4878 = vpop.f32.mrf.mxu0
        %4879 = vdwg.mxu0
        %v4880 = vsel %vm2031, %v4875, -inf
        %4881 = vmax.xlane.f32.xlu0 %v4880
        %v4882 = vpop.xlane.xlu0 %4881
        %v4883 = vsub.f32 %v4875, %v4882
        %v4884 = vmul.f32 %v4883, 1.442695
        %v4885 = vpow.pop %v4884
        %v4886 = vsel %vm2031, %v4885, 0.0
        %4887 = vadd.xlane.f32.xlu0 %v4886
        %v4888 = vpop.xlane.xlu0 %4887
        %v4889 = vrcp.pop %v4888
        %v4890 = vmul.f32 %v4885, %v4889
        %v4891 = vpack.c.bf16 %v4890, %v4890
        %4893 = vrot.lane.b32.xlu0 %v4780, 120
        %v4894 = vpop.permute.xlu0 %4893
        %v4896 = vsel %vm2031, %v4891, 0
        %v4899 = vsel %vm2094, %v4894, 0
        %4901 = vmatprep.subr.bf16.mxu0 0
        %4902 = vmatpush1.bf16.msra.mxu0 0
        %4903 = vmatprep.subr.bf16.mxu0 0
        %4904 = vmatpush1.bf16.msra.mxu0 0
        %4905 = vmatprep.subr.bf16.mxu0 0
        %4906 = vmatpush1.bf16.msra.mxu0 0
        %4907 = vmatprep.subr.bf16.mxu0 0
        %4908 = vmatpush1.bf16.msra.mxu0 0
        %4909 = vmatprep.subr.bf16.mxu0 0
        %4910 = vmatpush1.bf16.msra.mxu0 0
        %4911 = vmatprep.subr.bf16.mxu0 0
        %4912 = vmatpush1.bf16.msra.mxu0 0
        %4913 = vmatprep.subr.bf16.mxu0 0
        %4914 = vmatpush1.bf16.msra.mxu0 0
        %4915 = vmatprep.subr.bf16.mxu0 0
        %4916 = vmatpush1.bf16.msra.mxu0 %v4899
        %4917 = vmatprep.subr.bf16.mxu0 0
        %4918 = vmatpush2.bf16.msra.mxu0 0
        %4919 = vmatprep.subr.bf16.mxu0 0
        %4920 = vmatpush2.bf16.msra.mxu0 0
        %4921 = vmatprep.subr.bf16.mxu0 0
        %4922 = vmatpush2.bf16.msra.mxu0 0
        %4923 = vmatprep.subr.bf16.mxu0 0
        %4924 = vmatpush2.bf16.msra.mxu0 0
        %4925 = vmatprep.subr.bf16.mxu0 0
        %4926 = vmatpush2.bf16.msra.mxu0 0
        %4927 = vmatprep.subr.bf16.mxu0 0
        %4928 = vmatpush2.bf16.msra.mxu0 0
        %4929 = vmatprep.subr.bf16.mxu0 0
        %4930 = vmatpush2.bf16.msra.mxu0 0
        %4931 = vmatprep.subr.bf16.mxu0 0
        %4932 = vmatpush2.bf16.msra.mxu0 0
        %4933 = vmatprep.mubr.bf16.mxu0 0
        %4934 = vmatmul.mubr.bf16.gmra.mxu0 %v4896
        %v4935 = vpop.f32.mrf.mxu0
        %v4936 = vadd.f32 0.0, %v4935
        %v4937 = vpop.f32.mrf.mxu0
        %v4938 = vpop.f32.mrf.mxu0
        %v4939 = vpop.f32.mrf.mxu0
        %4940 = vdwg.mxu0
        %v4941 = vpack.c.bf16 %v4936, %v4936
        %v4943 = vsel %vm2031, %v4941, 0
        %v4946 = vsel %vm2094, %v4520, 0
        %4948 = vmatprep.subr.bf16.mxu0 0
        %4949 = vmatpush1.bf16.msra.mxu0 0
        %4950 = vmatprep.subr.bf16.mxu0 0
        %4951 = vmatpush1.bf16.msra.mxu0 0
        %4952 = vmatprep.subr.bf16.mxu0 0
        %4953 = vmatpush1.bf16.msra.mxu0 0
        %4954 = vmatprep.subr.bf16.mxu0 0
        %4955 = vmatpush1.bf16.msra.mxu0 0
        %4956 = vmatprep.subr.bf16.mxu0 0
        %4957 = vmatpush1.bf16.msra.mxu0 0
        %4958 = vmatprep.subr.bf16.mxu0 0
        %4959 = vmatpush1.bf16.msra.mxu0 0
        %4960 = vmatprep.subr.bf16.mxu0 0
        %4961 = vmatpush1.bf16.msra.mxu0 0
        %4962 = vmatprep.subr.bf16.mxu0 0
        %4963 = vmatpush1.bf16.msra.mxu0 %v4946
        %4964 = vmatprep.subr.bf16.mxu0 0
        %4965 = vmatpush2.bf16.msra.mxu0 0
        %4966 = vmatprep.subr.bf16.mxu0 0
        %4967 = vmatpush2.bf16.msra.mxu0 0
        %4968 = vmatprep.subr.bf16.mxu0 0
        %4969 = vmatpush2.bf16.msra.mxu0 0
        %4970 = vmatprep.subr.bf16.mxu0 0
        %4971 = vmatpush2.bf16.msra.mxu0 0
        %4972 = vmatprep.subr.bf16.mxu0 0
        %4973 = vmatpush2.bf16.msra.mxu0 0
        %4974 = vmatprep.subr.bf16.mxu0 0
        %4975 = vmatpush2.bf16.msra.mxu0 0
        %4976 = vmatprep.subr.bf16.mxu0 0
        %4977 = vmatpush2.bf16.msra.mxu0 0
        %4978 = vmatprep.subr.bf16.mxu0 0
        %4979 = vmatpush2.bf16.msra.mxu0 0
        %4980 = vmatprep.mubr.bf16.mxu0 0
        %4981 = vmatmul.mubr.bf16.gmra.mxu0 %v4943
        %v4982 = vpop.f32.mrf.mxu0
        %v4983 = vadd.f32 0.0, %v4982
        %v4984 = vpop.f32.mrf.mxu0
        %v4985 = vpop.f32.mrf.mxu0
        %v4986 = vpop.f32.mrf.mxu0
        %4987 = vdwg.mxu0
        %v4989 = vsel %vm2031, %v4827, 0
        %v4992 = vsel %vm2094, %v4519, 0
        %4994 = vmatprep.subr.bf16.mxu0 0
        %4995 = vmatpush1.bf16.msra.mxu0 0
        %4996 = vmatprep.subr.bf16.mxu0 0
        %4997 = vmatpush1.bf16.msra.mxu0 0
        %4998 = vmatprep.subr.bf16.mxu0 0
        %4999 = vmatpush1.bf16.msra.mxu0 0
        %5000 = vmatprep.subr.bf16.mxu0 0
        %5001 = vmatpush1.bf16.msra.mxu0 0
        %5002 = vmatprep.subr.bf16.mxu0 0
        %5003 = vmatpush1.bf16.msra.mxu0 0
        %5004 = vmatprep.subr.bf16.mxu0 0
        %5005 = vmatpush1.bf16.msra.mxu0 0
        %5006 = vmatprep.subr.bf16.mxu0 0
        %5007 = vmatpush1.bf16.msra.mxu0 0
        %5008 = vmatprep.subr.bf16.mxu0 0
        %5009 = vmatpush1.bf16.msra.mxu0 %v4992
        %5010 = vmatprep.subr.bf16.mxu0 0
        %5011 = vmatpush2.bf16.msra.mxu0 0
        %5012 = vmatprep.subr.bf16.mxu0 0
        %5013 = vmatpush2.bf16.msra.mxu0 0
        %5014 = vmatprep.subr.bf16.mxu0 0
        %5015 = vmatpush2.bf16.msra.mxu0 0
        %5016 = vmatprep.subr.bf16.mxu0 0
        %5017 = vmatpush2.bf16.msra.mxu0 0
        %5018 = vmatprep.subr.bf16.mxu0 0
        %5019 = vmatpush2.bf16.msra.mxu0 0
        %5020 = vmatprep.subr.bf16.mxu0 0
        %5021 = vmatpush2.bf16.msra.mxu0 0
        %5022 = vmatprep.subr.bf16.mxu0 0
        %5023 = vmatpush2.bf16.msra.mxu0 0
        %5024 = vmatprep.subr.bf16.mxu0 0
        %5025 = vmatpush2.bf16.msra.mxu0 0
        %5026 = vmatprep.mubr.bf16.mxu0 0
        %5027 = vmatmul.mubr.bf16.gmra.mxu0 %v4989
        %v5028 = vpop.f32.mrf.mxu0
        %v5029 = vadd.f32 %v4983, %v5028
        %v5030 = vpop.f32.mrf.mxu0
        %v5031 = vpop.f32.mrf.mxu0
        %v5032 = vpop.f32.mrf.mxu0
        %5033 = vdwg.mxu0
        %5034 = vrot.lane.b32.xlu0 %v4720, 112
        %v5035 = vpop.permute.xlu0 %5034
        %5036 = vrot.lane.b32.xlu0 %v4721, 112
        %v5037 = vpop.permute.xlu0 %5036
        %v5039 = vsel %vm2031, %v5035, 0
        %v5042 = vsel %vm2031, %v5037, 0
        %5044 = vmatprep.subr.bf16.mxu0 0
        %5045 = vmatpush1.bf16.xpose.msra.mxu0 0
        %5046 = vmatprep.subr.bf16.mxu0 0
        %5047 = vmatpush1.bf16.xpose.msra.mxu0 0
        %5048 = vmatprep.subr.bf16.mxu0 0
        %5049 = vmatpush1.bf16.xpose.msra.mxu0 0
        %5050 = vmatprep.subr.bf16.mxu0 0
        %5051 = vmatpush1.bf16.xpose.msra.mxu0 0
        %5052 = vmatprep.subr.bf16.mxu0 0
        %5053 = vmatpush1.bf16.xpose.msra.mxu0 0
        %5054 = vmatprep.subr.bf16.mxu0 0
        %5055 = vmatpush1.bf16.xpose.msra.mxu0 0
        %5056 = vmatprep.subr.bf16.mxu0 0
        %5057 = vmatpush1.bf16.xpose.msra.mxu0 0
        %5058 = vmatprep.subr.bf16.mxu0 0
        %5059 = vmatpush1.bf16.xpose.msra.mxu0 %v5042
        %5060 = vmatprep.subr.bf16.mxu0 0
        %5061 = vmatpush2.bf16.xpose.msra.mxu0 0
        %5062 = vmatprep.subr.bf16.mxu0 0
        %5063 = vmatpush2.bf16.xpose.msra.mxu0 0
        %5064 = vmatprep.subr.bf16.mxu0 0
        %5065 = vmatpush2.bf16.xpose.msra.mxu0 0
        %5066 = vmatprep.subr.bf16.mxu0 0
        %5067 = vmatpush2.bf16.xpose.msra.mxu0 0
        %5068 = vmatprep.subr.bf16.mxu0 0
        %5069 = vmatpush2.bf16.xpose.msra.mxu0 0
        %5070 = vmatprep.subr.bf16.mxu0 0
        %5071 = vmatpush2.bf16.xpose.msra.mxu0 0
        %5072 = vmatprep.subr.bf16.mxu0 0
        %5073 = vmatpush2.bf16.xpose.msra.mxu0 0
        %5074 = vmatprep.subr.bf16.mxu0 0
        %5075 = vmatpush2.bf16.xpose.msra.mxu0 0
        %5076 = vmatprep.mubr.bf16.mxu0 0
        %5077 = vmatmul.mubr.bf16.gmra.mxu0 %v5039
        %v5078 = vpop.f32.mrf.mxu0
        %v5079 = vadd.f32 %v1802, %v5078
        %v5080 = vpop.f32.mrf.mxu0
        %v5081 = vpop.f32.mrf.mxu0
        %v5082 = vpop.f32.mrf.mxu0
        %5083 = vdwg.mxu0
        %v5084 = vsel %vm2031, %v5079, -inf
        %5085 = vmax.xlane.f32.xlu0 %v5084
        %v5086 = vpop.xlane.xlu0 %5085
        %v5087 = vsub.f32 %v5079, %v5086
        %v5088 = vmul.f32 %v5087, 1.442695
        %v5089 = vpow.pop %v5088
        %v5090 = vsel %vm2031, %v5089, 0.0
        %5091 = vadd.xlane.f32.xlu0 %v5090
        %v5092 = vpop.xlane.xlu0 %5091
        %v5093 = vrcp.pop %v5092
        %v5094 = vmul.f32 %v5089, %v5093
        %v5095 = vpack.c.bf16 %v5094, %v5094
        %5096 = vrot.lane.b32.xlu0 %v4780, 112
        %v5097 = vpop.permute.xlu0 %5096
        %v5099 = vsel %vm2031, %v5095, 0
        %v5102 = vsel %vm2094, %v5097, 0
        %5104 = vmatprep.subr.bf16.mxu0 0
        %5105 = vmatpush1.bf16.msra.mxu0 0
        %5106 = vmatprep.subr.bf16.mxu0 0
        %5107 = vmatpush1.bf16.msra.mxu0 0
        %5108 = vmatprep.subr.bf16.mxu0 0
        %5109 = vmatpush1.bf16.msra.mxu0 0
        %5110 = vmatprep.subr.bf16.mxu0 0
        %5111 = vmatpush1.bf16.msra.mxu0 0
        %5112 = vmatprep.subr.bf16.mxu0 0
        %5113 = vmatpush1.bf16.msra.mxu0 0
        %5114 = vmatprep.subr.bf16.mxu0 0
        %5115 = vmatpush1.bf16.msra.mxu0 0
        %5116 = vmatprep.subr.bf16.mxu0 0
        %5117 = vmatpush1.bf16.msra.mxu0 0
        %5118 = vmatprep.subr.bf16.mxu0 0
        %5119 = vmatpush1.bf16.msra.mxu0 %v5102
        %5120 = vmatprep.subr.bf16.mxu0 0
        %5121 = vmatpush2.bf16.msra.mxu0 0
        %5122 = vmatprep.subr.bf16.mxu0 0
        %5123 = vmatpush2.bf16.msra.mxu0 0
        %5124 = vmatprep.subr.bf16.mxu0 0
        %5125 = vmatpush2.bf16.msra.mxu0 0
        %5126 = vmatprep.subr.bf16.mxu0 0
        %5127 = vmatpush2.bf16.msra.mxu0 0
        %5128 = vmatprep.subr.bf16.mxu0 0
        %5129 = vmatpush2.bf16.msra.mxu0 0
        %5130 = vmatprep.subr.bf16.mxu0 0
        %5131 = vmatpush2.bf16.msra.mxu0 0
        %5132 = vmatprep.subr.bf16.mxu0 0
        %5133 = vmatpush2.bf16.msra.mxu0 0
        %5134 = vmatprep.subr.bf16.mxu0 0
        %5135 = vmatpush2.bf16.msra.mxu0 0
        %5136 = vmatprep.mubr.bf16.mxu0 0
        %5137 = vmatmul.mubr.bf16.gmra.mxu0 %v5099
        %v5138 = vpop.f32.mrf.mxu0
        %v5139 = vadd.f32 0.0, %v5138
        %v5140 = vpop.f32.mrf.mxu0
        %v5141 = vpop.f32.mrf.mxu0
        %v5142 = vpop.f32.mrf.mxu0
        %5143 = vdwg.mxu0
        %v5144 = vpack.c.bf16 %v5139, %v5139
        %v5146 = vsel %vm2031, %v5144, 0
        %v5149 = vsel %vm2094, %v4521, 0
        %5151 = vmatprep.subr.bf16.mxu0 0
        %5152 = vmatpush1.bf16.msra.mxu0 0
        %5153 = vmatprep.subr.bf16.mxu0 0
        %5154 = vmatpush1.bf16.msra.mxu0 0
        %5155 = vmatprep.subr.bf16.mxu0 0
        %5156 = vmatpush1.bf16.msra.mxu0 0
        %5157 = vmatprep.subr.bf16.mxu0 0
        %5158 = vmatpush1.bf16.msra.mxu0 0
        %5159 = vmatprep.subr.bf16.mxu0 0
        %5160 = vmatpush1.bf16.msra.mxu0 0
        %5161 = vmatprep.subr.bf16.mxu0 0
        %5162 = vmatpush1.bf16.msra.mxu0 0
        %5163 = vmatprep.subr.bf16.mxu0 0
        %5164 = vmatpush1.bf16.msra.mxu0 0
        %5165 = vmatprep.subr.bf16.mxu0 0
        %5166 = vmatpush1.bf16.msra.mxu0 %v5149
        %5167 = vmatprep.subr.bf16.mxu0 0
        %5168 = vmatpush2.bf16.msra.mxu0 0
        %5169 = vmatprep.subr.bf16.mxu0 0
        %5170 = vmatpush2.bf16.msra.mxu0 0
        %5171 = vmatprep.subr.bf16.mxu0 0
        %5172 = vmatpush2.bf16.msra.mxu0 0
        %5173 = vmatprep.subr.bf16.mxu0 0
        %5174 = vmatpush2.bf16.msra.mxu0 0
        %5175 = vmatprep.subr.bf16.mxu0 0
        %5176 = vmatpush2.bf16.msra.mxu0 0
        %5177 = vmatprep.subr.bf16.mxu0 0
        %5178 = vmatpush2.bf16.msra.mxu0 0
        %5179 = vmatprep.subr.bf16.mxu0 0
        %5180 = vmatpush2.bf16.msra.mxu0 0
        %5181 = vmatprep.subr.bf16.mxu0 0
        %5182 = vmatpush2.bf16.msra.mxu0 0
        %5183 = vmatprep.mubr.bf16.mxu0 0
        %5184 = vmatmul.mubr.bf16.gmra.mxu0 %v5146
        %v5185 = vpop.f32.mrf.mxu0
        %v5186 = vadd.f32 0.0, %v5185
        %v5187 = vpop.f32.mrf.mxu0
        %v5188 = vpop.f32.mrf.mxu0
        %v5189 = vpop.f32.mrf.mxu0
        %5190 = vdwg.mxu0
        %v5191 = vadd.f32 %v5029, %v5186
        %5192 = vrot.lane.b32.xlu0 %v4720, 104
        %v5193 = vpop.permute.xlu0 %5192
        %5194 = vrot.lane.b32.xlu0 %v4721, 104
        %v5195 = vpop.permute.xlu0 %5194
        %v5197 = vsel %vm2031, %v5193, 0
        %v5200 = vsel %vm2031, %v5195, 0
        %5202 = vmatprep.subr.bf16.mxu0 0
        %5203 = vmatpush1.bf16.xpose.msra.mxu0 0
        %5204 = vmatprep.subr.bf16.mxu0 0
        %5205 = vmatpush1.bf16.xpose.msra.mxu0 0
        %5206 = vmatprep.subr.bf16.mxu0 0
        %5207 = vmatpush1.bf16.xpose.msra.mxu0 0
        %5208 = vmatprep.subr.bf16.mxu0 0
        %5209 = vmatpush1.bf16.xpose.msra.mxu0 0
        %5210 = vmatprep.subr.bf16.mxu0 0
        %5211 = vmatpush1.bf16.xpose.msra.mxu0 0
        %5212 = vmatprep.subr.bf16.mxu0 0
        %5213 = vmatpush1.bf16.xpose.msra.mxu0 0
        %5214 = vmatprep.subr.bf16.mxu0 0
        %5215 = vmatpush1.bf16.xpose.msra.mxu0 0
        %5216 = vmatprep.subr.bf16.mxu0 0
        %5217 = vmatpush1.bf16.xpose.msra.mxu0 %v5200
        %5218 = vmatprep.subr.bf16.mxu0 0
        %5219 = vmatpush2.bf16.xpose.msra.mxu0 0
        %5220 = vmatprep.subr.bf16.mxu0 0
        %5221 = vmatpush2.bf16.xpose.msra.mxu0 0
        %5222 = vmatprep.subr.bf16.mxu0 0
        %5223 = vmatpush2.bf16.xpose.msra.mxu0 0
        %5224 = vmatprep.subr.bf16.mxu0 0
        %5225 = vmatpush2.bf16.xpose.msra.mxu0 0
        %5226 = vmatprep.subr.bf16.mxu0 0
        %5227 = vmatpush2.bf16.xpose.msra.mxu0 0
        %5228 = vmatprep.subr.bf16.mxu0 0
        %5229 = vmatpush2.bf16.xpose.msra.mxu0 0
        %5230 = vmatprep.subr.bf16.mxu0 0
        %5231 = vmatpush2.bf16.xpose.msra.mxu0 0
        %5232 = vmatprep.subr.bf16.mxu0 0
        %5233 = vmatpush2.bf16.xpose.msra.mxu0 0
        %5234 = vmatprep.mubr.bf16.mxu0 0
        %5235 = vmatmul.mubr.bf16.gmra.mxu0 %v5197
        %v5236 = vpop.f32.mrf.mxu0
        %v5237 = vadd.f32 %v1802, %v5236
        %v5238 = vpop.f32.mrf.mxu0
        %v5239 = vpop.f32.mrf.mxu0
        %v5240 = vpop.f32.mrf.mxu0
        %5241 = vdwg.mxu0
        %v5242 = vsel %vm2031, %v5237, -inf
        %5243 = vmax.xlane.f32.xlu0 %v5242
        %v5244 = vpop.xlane.xlu0 %5243
        %v5245 = vsub.f32 %v5237, %v5244
        %v5246 = vmul.f32 %v5245, 1.442695
        %v5247 = vpow.pop %v5246
        %v5248 = vsel %vm2031, %v5247, 0.0
        %5249 = vadd.xlane.f32.xlu0 %v5248
        %v5250 = vpop.xlane.xlu0 %5249
        %v5251 = vrcp.pop %v5250
        %v5252 = vmul.f32 %v5247, %v5251
        %v5253 = vpack.c.bf16 %v5252, %v5252
        %5254 = vrot.lane.b32.xlu0 %v4780, 104
        %v5255 = vpop.permute.xlu0 %5254
        %v5257 = vsel %vm2031, %v5253, 0
        %v5260 = vsel %vm2094, %v5255, 0
        %5262 = vmatprep.subr.bf16.mxu0 0
        %5263 = vmatpush1.bf16.msra.mxu0 0
        %5264 = vmatprep.subr.bf16.mxu0 0
        %5265 = vmatpush1.bf16.msra.mxu0 0
        %5266 = vmatprep.subr.bf16.mxu0 0
        %5267 = vmatpush1.bf16.msra.mxu0 0
        %5268 = vmatprep.subr.bf16.mxu0 0
        %5269 = vmatpush1.bf16.msra.mxu0 0
        %5270 = vmatprep.subr.bf16.mxu0 0
        %5271 = vmatpush1.bf16.msra.mxu0 0
        %5272 = vmatprep.subr.bf16.mxu0 0
        %5273 = vmatpush1.bf16.msra.mxu0 0
        %5274 = vmatprep.subr.bf16.mxu0 0
        %5275 = vmatpush1.bf16.msra.mxu0 0
        %5276 = vmatprep.subr.bf16.mxu0 0
        %5277 = vmatpush1.bf16.msra.mxu0 %v5260
        %5278 = vmatprep.subr.bf16.mxu0 0
        %5279 = vmatpush2.bf16.msra.mxu0 0
        %5280 = vmatprep.subr.bf16.mxu0 0
        %5281 = vmatpush2.bf16.msra.mxu0 0
        %5282 = vmatprep.subr.bf16.mxu0 0
        %5283 = vmatpush2.bf16.msra.mxu0 0
        %5284 = vmatprep.subr.bf16.mxu0 0
        %5285 = vmatpush2.bf16.msra.mxu0 0
        %5286 = vmatprep.subr.bf16.mxu0 0
        %5287 = vmatpush2.bf16.msra.mxu0 0
        %5288 = vmatprep.subr.bf16.mxu0 0
        %5289 = vmatpush2.bf16.msra.mxu0 0
        %5290 = vmatprep.subr.bf16.mxu0 0
        %5291 = vmatpush2.bf16.msra.mxu0 0
        %5292 = vmatprep.subr.bf16.mxu0 0
        %5293 = vmatpush2.bf16.msra.mxu0 0
        %5294 = vmatprep.mubr.bf16.mxu0 0
        %5295 = vmatmul.mubr.bf16.gmra.mxu0 %v5257
        %v5296 = vpop.f32.mrf.mxu0
        %v5297 = vadd.f32 0.0, %v5296
        %v5298 = vpop.f32.mrf.mxu0
        %v5299 = vpop.f32.mrf.mxu0
        %v5300 = vpop.f32.mrf.mxu0
        %5301 = vdwg.mxu0
        %v5302 = vpack.c.bf16 %v5297, %v5297
        %v5304 = vsel %vm2031, %v5302, 0
        %v5307 = vsel %vm2094, %v4522, 0
        %5309 = vmatprep.subr.bf16.mxu0 0
        %5310 = vmatpush1.bf16.msra.mxu0 0
        %5311 = vmatprep.subr.bf16.mxu0 0
        %5312 = vmatpush1.bf16.msra.mxu0 0
        %5313 = vmatprep.subr.bf16.mxu0 0
        %5314 = vmatpush1.bf16.msra.mxu0 0
        %5315 = vmatprep.subr.bf16.mxu0 0
        %5316 = vmatpush1.bf16.msra.mxu0 0
        %5317 = vmatprep.subr.bf16.mxu0 0
        %5318 = vmatpush1.bf16.msra.mxu0 0
        %5319 = vmatprep.subr.bf16.mxu0 0
        %5320 = vmatpush1.bf16.msra.mxu0 0
        %5321 = vmatprep.subr.bf16.mxu0 0
        %5322 = vmatpush1.bf16.msra.mxu0 0
        %5323 = vmatprep.subr.bf16.mxu0 0
        %5324 = vmatpush1.bf16.msra.mxu0 %v5307
        %5325 = vmatprep.subr.bf16.mxu0 0
        %5326 = vmatpush2.bf16.msra.mxu0 0
        %5327 = vmatprep.subr.bf16.mxu0 0
        %5328 = vmatpush2.bf16.msra.mxu0 0
        %5329 = vmatprep.subr.bf16.mxu0 0
        %5330 = vmatpush2.bf16.msra.mxu0 0
        %5331 = vmatprep.subr.bf16.mxu0 0
        %5332 = vmatpush2.bf16.msra.mxu0 0
        %5333 = vmatprep.subr.bf16.mxu0 0
        %5334 = vmatpush2.bf16.msra.mxu0 0
        %5335 = vmatprep.subr.bf16.mxu0 0
        %5336 = vmatpush2.bf16.msra.mxu0 0
        %5337 = vmatprep.subr.bf16.mxu0 0
        %5338 = vmatpush2.bf16.msra.mxu0 0
        %5339 = vmatprep.subr.bf16.mxu0 0
        %5340 = vmatpush2.bf16.msra.mxu0 0
        %5341 = vmatprep.mubr.bf16.mxu0 0
        %5342 = vmatmul.mubr.bf16.gmra.mxu0 %v5304
        %v5343 = vpop.f32.mrf.mxu0
        %v5344 = vadd.f32 0.0, %v5343
        %v5345 = vpop.f32.mrf.mxu0
        %v5346 = vpop.f32.mrf.mxu0
        %v5347 = vpop.f32.mrf.mxu0
        %5348 = vdwg.mxu0
        %v5349 = vadd.f32 %v5191, %v5344
        %v5350 = vadd.f32 %v4497, %v5349
        %v5351 = vlaneseq
        %v5352 = vshrl.u32 %v5351, 7
        %v5353 = vsub.s32 0, %v5352
        %v5354 = vrot.slane %v4523, %v5353
        %v5355 = vadd.f32 %v5350, %v5354
        %v5356 = vld [vmem:[#allocation28 + $0x1] sm:$0x1]
        %v5357 = vld [vmem:[#allocation29 + $0x1] sm:$0x1]
        %s5358 = scalar_lea.vmem %s39, 16
        %v5359 = vld [vmem:[%s5358] sm:$0xf]
        %v5360 = vld [vmem:[%s5358 + $0x4] sm:$0xf]
        %v5361 = vld [vmem:[%s5358 + $0x8] sm:$0xf]
        %v5362 = vld [vmem:[%s5358 + $0xc] sm:$0xf]
        %v5363 = vld [vmem:[#allocation31 + $0x1] sm:$0x1]
        %s5364 = scalar_lea.vmem [#allocation32], 16
        %v5365 = vld [vmem:[%s5364] sm:$0xf]
        %v5366 = vld [vmem:[%s5364 + $0x4] sm:$0xf]
        %v5367 = vld [vmem:[%s5364 + $0x8] sm:$0xf]
        %v5368 = vld [vmem:[%s5364 + $0xc] sm:$0xf]
        %v5369 = vld [vmem:[#allocation34 + $0x1] sm:$0x1]
        %s5370 = scalar_lea.vmem [#allocation35], 16
        %v5371 = vld [vmem:[%s5370] sm:$0xf]
        %v5372 = vld [vmem:[%s5370 + $0x4] sm:$0xf]
        %v5373 = vld [vmem:[%s5370 + $0x8] sm:$0xf]
        %v5374 = vld [vmem:[%s5370 + $0xc] sm:$0xf]
        %v5375 = vld [vmem:[#allocation37 + $0x1] sm:$0x1]
        %s5376 = scalar_lea.vmem [#allocation38], 16
        %v5377 = vld [vmem:[%s5376] sm:$0xf]
        %v5378 = vld [vmem:[%s5376 + $0x4] sm:$0xf]
        %v5379 = vld [vmem:[%s5376 + $0x8] sm:$0xf]
        %v5380 = vld [vmem:[%s5376 + $0xc] sm:$0xf]
        %v5381 = vld [vmem:[#allocation40 + $0x1] sm:$0x1]
        %v5382 = vsel %vm1831, %v5355, 0.0
        %5383 = vadd.xlane.f32.xlu0 %v5382
        %v5384 = vpop.xlane.xlu0 %5383
        %v5385 = vmul.f32 %v5384, %v1835
        %v5386 = vsub.f32 %v5355, %v5385
        %v5387 = vmul.f32 %v5386, %v5386
        %v5388 = vsel %vm1831, %v5387, 0.0
        %5389 = vadd.xlane.f32.xlu0 %v5388
        %v5390 = vpop.xlane.xlu0 %5389
        %v5391 = vmul.f32 %v5390, %v1835
        %v5392 = vadd.f32 %v5391, 1e-05
        %v5393 = vrsqrt.pop %v5392
        %v5394 = vmul.f32 %v5386, %v5393
        %v5395 = vlaneseq
        %v5396 = vshrl.u32 %v5395, 7
        %v5397 = vsub.s32 0, %v5396
        %v5398 = vrot.slane %v5356, %v5397
        %v5399 = vmul.f32 %v5394, %v5398
        %v5400 = vlaneseq
        %v5401 = vshrl.u32 %v5400, 7
        %v5402 = vsub.s32 0, %v5401
        %v5403 = vrot.slane %v5357, %v5402
        %v5404 = vadd.f32 %v5399, %v5403
        %v5405 = vpack.c.bf16 %v5404, %v5404
        %v5406 = vlaneseq
        %v5407 = vshrl.u32 %v5406, 7
        %v5408 = vsub.s32 0, %v5407
        %v5409 = vrot.slane %v5363, %v5408
        %v5414 = vunpack.c.l.b16 %v5359
        %v5415 = vunpack.c.l.b16 %v5360
        %v5416 = vunpack.c.l.b16 %v5361
        %v5417 = vunpack.c.l.b16 %v5362
        %v5418 = vpack.c.b16 %v5415, %v5414
        %v5419 = vpack.c.b16 %v5417, %v5416
        %v5423 = vsel %vm1831, %v5405, 0
        %5425 = vmatprep.subr.bf16.mxu0 0
        %5426 = vmatpush1.bf16.msra.mxu0 0
        %5427 = vmatprep.subr.bf16.mxu0 0
        %5428 = vmatpush1.bf16.msra.mxu0 0
        %5429 = vmatprep.subr.bf16.mxu0 0
        %5430 = vmatpush1.bf16.msra.mxu0 0
        %5431 = vmatprep.subr.bf16.mxu0 0
        %5432 = vmatpush1.bf16.msra.mxu0 0
        %5433 = vmatprep.subr.bf16.mxu0 0
        %5434 = vmatpush1.bf16.msra.mxu0 0
        %5435 = vmatprep.subr.bf16.mxu0 0
        %5436 = vmatpush1.bf16.msra.mxu0 0
        %5437 = vmatprep.subr.bf16.mxu0 0
        %5438 = vmatpush1.bf16.msra.mxu0 %v5419
        %5439 = vmatprep.subr.bf16.mxu0 0
        %5440 = vmatpush1.bf16.msra.mxu0 %v5418
        %5441 = vmatprep.subr.bf16.mxu0 0
        %5442 = vmatpush2.bf16.msra.mxu0 0
        %5443 = vmatprep.subr.bf16.mxu0 0
        %5444 = vmatpush2.bf16.msra.mxu0 0
        %5445 = vmatprep.subr.bf16.mxu0 0
        %5446 = vmatpush2.bf16.msra.mxu0 0
        %5447 = vmatprep.subr.bf16.mxu0 0
        %5448 = vmatpush2.bf16.msra.mxu0 0
        %5449 = vmatprep.subr.bf16.mxu0 0
        %5450 = vmatpush2.bf16.msra.mxu0 0
        %5451 = vmatprep.subr.bf16.mxu0 0
        %5452 = vmatpush2.bf16.msra.mxu0 0
        %5453 = vmatprep.subr.bf16.mxu0 0
        %5454 = vmatpush2.bf16.msra.mxu0 0
        %5455 = vmatprep.subr.bf16.mxu0 0
        %5456 = vmatpush2.bf16.msra.mxu0 0
        %5457 = vmatprep.mubr.bf16.mxu0 0
        %5458 = vmatmul.mubr.bf16.gmra.mxu0 %v5423
        %v5459 = vpop.f32.mrf.mxu0
        %v5460 = vadd.f32 %v5409, %v5459
        %v5461 = vpop.f32.mrf.mxu0
        %v5462 = vpop.f32.mrf.mxu0
        %v5463 = vpop.f32.mrf.mxu0
        %5464 = vdwg.mxu0
        %v5465 = vlaneseq
        %v5466 = vshrl.u32 %v5465, 7
        %v5467 = vsub.s32 0, %v5466
        %v5468 = vrot.slane %v5369, %v5467
        %v5473 = vunpack.c.l.b16 %v5365
        %v5474 = vunpack.c.l.b16 %v5366
        %v5475 = vunpack.c.l.b16 %v5367
        %v5476 = vunpack.c.l.b16 %v5368
        %v5477 = vpack.c.b16 %v5474, %v5473
        %v5478 = vpack.c.b16 %v5476, %v5475
        %5481 = vmatprep.subr.bf16.mxu0 0
        %5482 = vmatpush1.bf16.msra.mxu0 0
        %5483 = vmatprep.subr.bf16.mxu0 0
        %5484 = vmatpush1.bf16.msra.mxu0 0
        %5485 = vmatprep.subr.bf16.mxu0 0
        %5486 = vmatpush1.bf16.msra.mxu0 0
        %5487 = vmatprep.subr.bf16.mxu0 0
        %5488 = vmatpush1.bf16.msra.mxu0 0
        %5489 = vmatprep.subr.bf16.mxu0 0
        %5490 = vmatpush1.bf16.msra.mxu0 0
        %5491 = vmatprep.subr.bf16.mxu0 0
        %5492 = vmatpush1.bf16.msra.mxu0 0
        %5493 = vmatprep.subr.bf16.mxu0 0
        %5494 = vmatpush1.bf16.msra.mxu0 %v5478
        %5495 = vmatprep.subr.bf16.mxu0 0
        %5496 = vmatpush1.bf16.msra.mxu0 %v5477
        %5497 = vmatprep.subr.bf16.mxu0 0
        %5498 = vmatpush2.bf16.msra.mxu0 0
        %5499 = vmatprep.subr.bf16.mxu0 0
        %5500 = vmatpush2.bf16.msra.mxu0 0
        %5501 = vmatprep.subr.bf16.mxu0 0
        %5502 = vmatpush2.bf16.msra.mxu0 0
        %5503 = vmatprep.subr.bf16.mxu0 0
        %5504 = vmatpush2.bf16.msra.mxu0 0
        %5505 = vmatprep.subr.bf16.mxu0 0
        %5506 = vmatpush2.bf16.msra.mxu0 0
        %5507 = vmatprep.subr.bf16.mxu0 0
        %5508 = vmatpush2.bf16.msra.mxu0 0
        %5509 = vmatprep.subr.bf16.mxu0 0
        %5510 = vmatpush2.bf16.msra.mxu0 0
        %5511 = vmatprep.subr.bf16.mxu0 0
        %5512 = vmatpush2.bf16.msra.mxu0 0
        %5513 = vmatprep.mubr.bf16.mxu0 0
        %5514 = vmatmul.mubr.bf16.gmra.mxu0 %v2789
        %v5515 = vpop.f32.mrf.mxu0
        %v5516 = vadd.f32 %v5468, %v5515
        %v5517 = vpop.f32.mrf.mxu0
        %v5518 = vpop.f32.mrf.mxu0
        %v5519 = vadd.f32 %v5468, %v5518
        %v5520 = vpop.f32.mrf.mxu0
        %5521 = vdwg.mxu0
        %v5522 = vlaneseq
        %v5523 = vshrl.u32 %v5522, 7
        %v5524 = vsub.s32 0, %v5523
        %v5525 = vrot.slane %v5375, %v5524
        %v5530 = vunpack.c.l.b16 %v5371
        %v5531 = vunpack.c.l.b16 %v5372
        %v5532 = vunpack.c.l.b16 %v5373
        %v5533 = vunpack.c.l.b16 %v5374
        %v5534 = vpack.c.b16 %v5531, %v5530
        %v5535 = vpack.c.b16 %v5533, %v5532
        %5538 = vmatprep.subr.bf16.mxu0 0
        %5539 = vmatpush1.bf16.msra.mxu0 0
        %5540 = vmatprep.subr.bf16.mxu0 0
        %5541 = vmatpush1.bf16.msra.mxu0 0
        %5542 = vmatprep.subr.bf16.mxu0 0
        %5543 = vmatpush1.bf16.msra.mxu0 0
        %5544 = vmatprep.subr.bf16.mxu0 0
        %5545 = vmatpush1.bf16.msra.mxu0 0
        %5546 = vmatprep.subr.bf16.mxu0 0
        %5547 = vmatpush1.bf16.msra.mxu0 0
        %5548 = vmatprep.subr.bf16.mxu0 0
        %5549 = vmatpush1.bf16.msra.mxu0 0
        %5550 = vmatprep.subr.bf16.mxu0 0
        %5551 = vmatpush1.bf16.msra.mxu0 %v5535
        %5552 = vmatprep.subr.bf16.mxu0 0
        %5553 = vmatpush1.bf16.msra.mxu0 %v5534
        %5554 = vmatprep.subr.bf16.mxu0 0
        %5555 = vmatpush2.bf16.msra.mxu0 0
        %5556 = vmatprep.subr.bf16.mxu0 0
        %5557 = vmatpush2.bf16.msra.mxu0 0
        %5558 = vmatprep.subr.bf16.mxu0 0
        %5559 = vmatpush2.bf16.msra.mxu0 0
        %5560 = vmatprep.subr.bf16.mxu0 0
        %5561 = vmatpush2.bf16.msra.mxu0 0
        %5562 = vmatprep.subr.bf16.mxu0 0
        %5563 = vmatpush2.bf16.msra.mxu0 0
        %5564 = vmatprep.subr.bf16.mxu0 0
        %5565 = vmatpush2.bf16.msra.mxu0 0
        %5566 = vmatprep.subr.bf16.mxu0 0
        %5567 = vmatpush2.bf16.msra.mxu0 0
        %5568 = vmatprep.subr.bf16.mxu0 0
        %5569 = vmatpush2.bf16.msra.mxu0 0
        %5570 = vmatprep.mubr.bf16.mxu0 0
        %5571 = vmatmul.mubr.bf16.gmra.mxu0 %v2789
        %v5572 = vpop.f32.mrf.mxu0
        %v5573 = vadd.f32 %v5525, %v5572
        %v5574 = vpop.f32.mrf.mxu0
        %v5575 = vpop.f32.mrf.mxu0
        %v5576 = vadd.f32 %v5525, %v5575
        %v5577 = vpop.f32.mrf.mxu0
        %5578 = vdwg.mxu0
        %v5579 = vmul.f32 %v5460, 0.35355338
        %v5580 = vpack.c.bf16 %v5579, %v5579
        %v5581 = vpack.c.bf16 %v5519, %v5516
        %v5583 = vsel %vm2031, %v5580, 0
        %v5586 = vsel %vm2031, %v5581, 0
        %5588 = vmatprep.subr.bf16.mxu0 0
        %5589 = vmatpush1.bf16.xpose.msra.mxu0 0
        %5590 = vmatprep.subr.bf16.mxu0 0
        %5591 = vmatpush1.bf16.xpose.msra.mxu0 0
        %5592 = vmatprep.subr.bf16.mxu0 0
        %5593 = vmatpush1.bf16.xpose.msra.mxu0 0
        %5594 = vmatprep.subr.bf16.mxu0 0
        %5595 = vmatpush1.bf16.xpose.msra.mxu0 0
        %5596 = vmatprep.subr.bf16.mxu0 0
        %5597 = vmatpush1.bf16.xpose.msra.mxu0 0
        %5598 = vmatprep.subr.bf16.mxu0 0
        %5599 = vmatpush1.bf16.xpose.msra.mxu0 0
        %5600 = vmatprep.subr.bf16.mxu0 0
        %5601 = vmatpush1.bf16.xpose.msra.mxu0 0
        %5602 = vmatprep.subr.bf16.mxu0 0
        %5603 = vmatpush1.bf16.xpose.msra.mxu0 %v5586
        %5604 = vmatprep.subr.bf16.mxu0 0
        %5605 = vmatpush2.bf16.xpose.msra.mxu0 0
        %5606 = vmatprep.subr.bf16.mxu0 0
        %5607 = vmatpush2.bf16.xpose.msra.mxu0 0
        %5608 = vmatprep.subr.bf16.mxu0 0
        %5609 = vmatpush2.bf16.xpose.msra.mxu0 0
        %5610 = vmatprep.subr.bf16.mxu0 0
        %5611 = vmatpush2.bf16.xpose.msra.mxu0 0
        %5612 = vmatprep.subr.bf16.mxu0 0
        %5613 = vmatpush2.bf16.xpose.msra.mxu0 0
        %5614 = vmatprep.subr.bf16.mxu0 0
        %5615 = vmatpush2.bf16.xpose.msra.mxu0 0
        %5616 = vmatprep.subr.bf16.mxu0 0
        %5617 = vmatpush2.bf16.xpose.msra.mxu0 0
        %5618 = vmatprep.subr.bf16.mxu0 0
        %5619 = vmatpush2.bf16.xpose.msra.mxu0 0
        %5620 = vmatprep.mubr.bf16.mxu0 0
        %5621 = vmatmul.mubr.bf16.gmra.mxu0 %v5583
        %v5622 = vpop.f32.mrf.mxu0
        %v5623 = vadd.f32 %v2896, %v5622
        %v5624 = vpop.f32.mrf.mxu0
        %v5625 = vpop.f32.mrf.mxu0
        %v5626 = vpop.f32.mrf.mxu0
        %5627 = vdwg.mxu0
        %v5628 = vsel %vm2944, %v5623, -inf
        %5629 = vmax.xlane.f32.xlu0 %v5628
        %v5630 = vpop.xlane.xlu0 %5629
        %v5631 = vsub.f32 %v5623, %v5630
        %v5632 = vmul.f32 %v5631, 1.442695
        %v5633 = vpow.pop %v5632
        %v5634 = vsel %vm2944, %v5633, 0.0
        %5635 = vadd.xlane.f32.xlu0 %v5634
        %v5636 = vpop.xlane.xlu0 %5635
        %v5637 = vrcp.pop %v5636
        %v5638 = vmul.f32 %v5633, %v5637
        %v5639 = vpack.c.bf16 %v5638, %v5638
        %v5640 = vpack.c.bf16 %v5576, %v5573
        %v5642 = vsel %vm2944, %v5639, 0
        %5644 = vmatprep.subr.bf16.mxu0 0
        %5645 = vmatpush1.bf16.msra.mxu0 0
        %5646 = vmatprep.subr.bf16.mxu0 0
        %5647 = vmatpush1.bf16.msra.mxu0 0
        %5648 = vmatprep.subr.bf16.mxu0 0
        %5649 = vmatpush1.bf16.msra.mxu0 0
        %5650 = vmatprep.subr.bf16.mxu0 0
        %5651 = vmatpush1.bf16.msra.mxu0 0
        %5652 = vmatprep.subr.bf16.mxu0 0
        %5653 = vmatpush1.bf16.msra.mxu0 0
        %5654 = vmatprep.subr.bf16.mxu0 0
        %5655 = vmatpush1.bf16.msra.mxu0 0
        %5656 = vmatprep.subr.bf16.mxu0 0
        %5657 = vmatpush1.bf16.msra.mxu0 0
        %5658 = vmatprep.subr.bf16.mxu0 0
        %5659 = vmatpush1.bf16.msra.mxu0 %v5640
        %5660 = vmatprep.subr.bf16.mxu0 0
        %5661 = vmatpush2.bf16.msra.mxu0 0
        %5662 = vmatprep.subr.bf16.mxu0 0
        %5663 = vmatpush2.bf16.msra.mxu0 0
        %5664 = vmatprep.subr.bf16.mxu0 0
        %5665 = vmatpush2.bf16.msra.mxu0 0
        %5666 = vmatprep.subr.bf16.mxu0 0
        %5667 = vmatpush2.bf16.msra.mxu0 0
        %5668 = vmatprep.subr.bf16.mxu0 0
        %5669 = vmatpush2.bf16.msra.mxu0 0
        %5670 = vmatprep.subr.bf16.mxu0 0
        %5671 = vmatpush2.bf16.msra.mxu0 0
        %5672 = vmatprep.subr.bf16.mxu0 0
        %5673 = vmatpush2.bf16.msra.mxu0 0
        %5674 = vmatprep.subr.bf16.mxu0 0
        %5675 = vmatpush2.bf16.msra.mxu0 0
        %5676 = vmatprep.mubr.bf16.mxu0 0
        %5677 = vmatmul.mubr.bf16.gmra.mxu0 %v5642
        %v5678 = vpop.f32.mrf.mxu0
        %v5679 = vadd.f32 0.0, %v5678
        %v5680 = vpop.f32.mrf.mxu0
        %v5681 = vpop.f32.mrf.mxu0
        %v5682 = vpop.f32.mrf.mxu0
        %5683 = vdwg.mxu0
        %v5684 = vpack.c.bf16 %v5679, %v5679
        %5686 = vrot.lane.b32.xlu0 %v5580, 120
        %v5687 = vpop.permute.xlu0 %5686
        %5689 = vrot.lane.b32.xlu0 %v5581, 120
        %v5690 = vpop.permute.xlu0 %5689
        %v5692 = vsel %vm2031, %v5687, 0
        %v5695 = vsel %vm2031, %v5690, 0
        %5697 = vmatprep.subr.bf16.mxu0 0
        %5698 = vmatpush1.bf16.xpose.msra.mxu0 0
        %5699 = vmatprep.subr.bf16.mxu0 0
        %5700 = vmatpush1.bf16.xpose.msra.mxu0 0
        %5701 = vmatprep.subr.bf16.mxu0 0
        %5702 = vmatpush1.bf16.xpose.msra.mxu0 0
        %5703 = vmatprep.subr.bf16.mxu0 0
        %5704 = vmatpush1.bf16.xpose.msra.mxu0 0
        %5705 = vmatprep.subr.bf16.mxu0 0
        %5706 = vmatpush1.bf16.xpose.msra.mxu0 0
        %5707 = vmatprep.subr.bf16.mxu0 0
        %5708 = vmatpush1.bf16.xpose.msra.mxu0 0
        %5709 = vmatprep.subr.bf16.mxu0 0
        %5710 = vmatpush1.bf16.xpose.msra.mxu0 0
        %5711 = vmatprep.subr.bf16.mxu0 0
        %5712 = vmatpush1.bf16.xpose.msra.mxu0 %v5695
        %5713 = vmatprep.subr.bf16.mxu0 0
        %5714 = vmatpush2.bf16.xpose.msra.mxu0 0
        %5715 = vmatprep.subr.bf16.mxu0 0
        %5716 = vmatpush2.bf16.xpose.msra.mxu0 0
        %5717 = vmatprep.subr.bf16.mxu0 0
        %5718 = vmatpush2.bf16.xpose.msra.mxu0 0
        %5719 = vmatprep.subr.bf16.mxu0 0
        %5720 = vmatpush2.bf16.xpose.msra.mxu0 0
        %5721 = vmatprep.subr.bf16.mxu0 0
        %5722 = vmatpush2.bf16.xpose.msra.mxu0 0
        %5723 = vmatprep.subr.bf16.mxu0 0
        %5724 = vmatpush2.bf16.xpose.msra.mxu0 0
        %5725 = vmatprep.subr.bf16.mxu0 0
        %5726 = vmatpush2.bf16.xpose.msra.mxu0 0
        %5727 = vmatprep.subr.bf16.mxu0 0
        %5728 = vmatpush2.bf16.xpose.msra.mxu0 0
        %5729 = vmatprep.mubr.bf16.mxu0 0
        %5730 = vmatmul.mubr.bf16.gmra.mxu0 %v5692
        %v5731 = vpop.f32.mrf.mxu0
        %v5732 = vadd.f32 %v2896, %v5731
        %v5733 = vpop.f32.mrf.mxu0
        %v5734 = vpop.f32.mrf.mxu0
        %v5735 = vpop.f32.mrf.mxu0
        %5736 = vdwg.mxu0
        %v5737 = vsel %vm2944, %v5732, -inf
        %5738 = vmax.xlane.f32.xlu0 %v5737
        %v5739 = vpop.xlane.xlu0 %5738
        %v5740 = vsub.f32 %v5732, %v5739
        %v5741 = vmul.f32 %v5740, 1.442695
        %v5742 = vpow.pop %v5741
        %v5743 = vsel %vm2944, %v5742, 0.0
        %5744 = vadd.xlane.f32.xlu0 %v5743
        %v5745 = vpop.xlane.xlu0 %5744
        %v5746 = vrcp.pop %v5745
        %v5747 = vmul.f32 %v5742, %v5746
        %v5748 = vpack.c.bf16 %v5747, %v5747
        %5750 = vrot.lane.b32.xlu0 %v5640, 120
        %v5751 = vpop.permute.xlu0 %5750
        %v5754 = vsel %vm2944, %v5748, 0
        %5756 = vmatprep.subr.bf16.mxu0 0
        %5757 = vmatpush1.bf16.msra.mxu0 0
        %5758 = vmatprep.subr.bf16.mxu0 0
        %5759 = vmatpush1.bf16.msra.mxu0 0
        %5760 = vmatprep.subr.bf16.mxu0 0
        %5761 = vmatpush1.bf16.msra.mxu0 0
        %5762 = vmatprep.subr.bf16.mxu0 0
        %5763 = vmatpush1.bf16.msra.mxu0 0
        %5764 = vmatprep.subr.bf16.mxu0 0
        %5765 = vmatpush1.bf16.msra.mxu0 0
        %5766 = vmatprep.subr.bf16.mxu0 0
        %5767 = vmatpush1.bf16.msra.mxu0 0
        %5768 = vmatprep.subr.bf16.mxu0 0
        %5769 = vmatpush1.bf16.msra.mxu0 0
        %5770 = vmatprep.subr.bf16.mxu0 0
        %5771 = vmatpush1.bf16.msra.mxu0 %v5751
        %5772 = vmatprep.subr.bf16.mxu0 0
        %5773 = vmatpush2.bf16.msra.mxu0 0
        %5774 = vmatprep.subr.bf16.mxu0 0
        %5775 = vmatpush2.bf16.msra.mxu0 0
        %5776 = vmatprep.subr.bf16.mxu0 0
        %5777 = vmatpush2.bf16.msra.mxu0 0
        %5778 = vmatprep.subr.bf16.mxu0 0
        %5779 = vmatpush2.bf16.msra.mxu0 0
        %5780 = vmatprep.subr.bf16.mxu0 0
        %5781 = vmatpush2.bf16.msra.mxu0 0
        %5782 = vmatprep.subr.bf16.mxu0 0
        %5783 = vmatpush2.bf16.msra.mxu0 0
        %5784 = vmatprep.subr.bf16.mxu0 0
        %5785 = vmatpush2.bf16.msra.mxu0 0
        %5786 = vmatprep.subr.bf16.mxu0 0
        %5787 = vmatpush2.bf16.msra.mxu0 0
        %5788 = vmatprep.mubr.bf16.mxu0 0
        %5789 = vmatmul.mubr.bf16.gmra.mxu0 %v5754
        %v5790 = vpop.f32.mrf.mxu0
        %v5791 = vadd.f32 0.0, %v5790
        %v5792 = vpop.f32.mrf.mxu0
        %v5793 = vpop.f32.mrf.mxu0
        %v5794 = vpop.f32.mrf.mxu0
        %5795 = vdwg.mxu0
        %v5796 = vpack.c.bf16 %v5791, %v5791
        %v5798 = vsel %vm2031, %v5796, 0
        %v5801 = vsel %vm2094, %v5378, 0
        %5803 = vmatprep.subr.bf16.mxu0 0
        %5804 = vmatpush1.bf16.msra.mxu0 0
        %5805 = vmatprep.subr.bf16.mxu0 0
        %5806 = vmatpush1.bf16.msra.mxu0 0
        %5807 = vmatprep.subr.bf16.mxu0 0
        %5808 = vmatpush1.bf16.msra.mxu0 0
        %5809 = vmatprep.subr.bf16.mxu0 0
        %5810 = vmatpush1.bf16.msra.mxu0 0
        %5811 = vmatprep.subr.bf16.mxu0 0
        %5812 = vmatpush1.bf16.msra.mxu0 0
        %5813 = vmatprep.subr.bf16.mxu0 0
        %5814 = vmatpush1.bf16.msra.mxu0 0
        %5815 = vmatprep.subr.bf16.mxu0 0
        %5816 = vmatpush1.bf16.msra.mxu0 0
        %5817 = vmatprep.subr.bf16.mxu0 0
        %5818 = vmatpush1.bf16.msra.mxu0 %v5801
        %5819 = vmatprep.subr.bf16.mxu0 0
        %5820 = vmatpush2.bf16.msra.mxu0 0
        %5821 = vmatprep.subr.bf16.mxu0 0
        %5822 = vmatpush2.bf16.msra.mxu0 0
        %5823 = vmatprep.subr.bf16.mxu0 0
        %5824 = vmatpush2.bf16.msra.mxu0 0
        %5825 = vmatprep.subr.bf16.mxu0 0
        %5826 = vmatpush2.bf16.msra.mxu0 0
        %5827 = vmatprep.subr.bf16.mxu0 0
        %5828 = vmatpush2.bf16.msra.mxu0 0
        %5829 = vmatprep.subr.bf16.mxu0 0
        %5830 = vmatpush2.bf16.msra.mxu0 0
        %5831 = vmatprep.subr.bf16.mxu0 0
        %5832 = vmatpush2.bf16.msra.mxu0 0
        %5833 = vmatprep.subr.bf16.mxu0 0
        %5834 = vmatpush2.bf16.msra.mxu0 0
        %5835 = vmatprep.mubr.bf16.mxu0 0
        %5836 = vmatmul.mubr.bf16.gmra.mxu0 %v5798
        %v5837 = vpop.f32.mrf.mxu0
        %v5838 = vadd.f32 0.0, %v5837
        %v5839 = vpop.f32.mrf.mxu0
        %v5840 = vpop.f32.mrf.mxu0
        %v5841 = vpop.f32.mrf.mxu0
        %5842 = vdwg.mxu0
        %v5844 = vsel %vm2031, %v5684, 0
        %v5847 = vsel %vm2094, %v5377, 0
        %5849 = vmatprep.subr.bf16.mxu0 0
        %5850 = vmatpush1.bf16.msra.mxu0 0
        %5851 = vmatprep.subr.bf16.mxu0 0
        %5852 = vmatpush1.bf16.msra.mxu0 0
        %5853 = vmatprep.subr.bf16.mxu0 0
        %5854 = vmatpush1.bf16.msra.mxu0 0
        %5855 = vmatprep.subr.bf16.mxu0 0
        %5856 = vmatpush1.bf16.msra.mxu0 0
        %5857 = vmatprep.subr.bf16.mxu0 0
        %5858 = vmatpush1.bf16.msra.mxu0 0
        %5859 = vmatprep.subr.bf16.mxu0 0
        %5860 = vmatpush1.bf16.msra.mxu0 0
        %5861 = vmatprep.subr.bf16.mxu0 0
        %5862 = vmatpush1.bf16.msra.mxu0 0
        %5863 = vmatprep.subr.bf16.mxu0 0
        %5864 = vmatpush1.bf16.msra.mxu0 %v5847
        %5865 = vmatprep.subr.bf16.mxu0 0
        %5866 = vmatpush2.bf16.msra.mxu0 0
        %5867 = vmatprep.subr.bf16.mxu0 0
        %5868 = vmatpush2.bf16.msra.mxu0 0
        %5869 = vmatprep.subr.bf16.mxu0 0
        %5870 = vmatpush2.bf16.msra.mxu0 0
        %5871 = vmatprep.subr.bf16.mxu0 0
        %5872 = vmatpush2.bf16.msra.mxu0 0
        %5873 = vmatprep.subr.bf16.mxu0 0
        %5874 = vmatpush2.bf16.msra.mxu0 0
        %5875 = vmatprep.subr.bf16.mxu0 0
        %5876 = vmatpush2.bf16.msra.mxu0 0
        %5877 = vmatprep.subr.bf16.mxu0 0
        %5878 = vmatpush2.bf16.msra.mxu0 0
        %5879 = vmatprep.subr.bf16.mxu0 0
        %5880 = vmatpush2.bf16.msra.mxu0 0
        %5881 = vmatprep.mubr.bf16.mxu0 0
        %5882 = vmatmul.mubr.bf16.gmra.mxu0 %v5844
        %v5883 = vpop.f32.mrf.mxu0
        %v5884 = vadd.f32 %v5838, %v5883
        %v5885 = vpop.f32.mrf.mxu0
        %v5886 = vpop.f32.mrf.mxu0
        %v5887 = vpop.f32.mrf.mxu0
        %5888 = vdwg.mxu0
        %5889 = vrot.lane.b32.xlu0 %v5580, 112
        %v5890 = vpop.permute.xlu0 %5889
        %5891 = vrot.lane.b32.xlu0 %v5581, 112
        %v5892 = vpop.permute.xlu0 %5891
        %v5894 = vsel %vm2031, %v5890, 0
        %v5897 = vsel %vm2031, %v5892, 0
        %5899 = vmatprep.subr.bf16.mxu0 0
        %5900 = vmatpush1.bf16.xpose.msra.mxu0 0
        %5901 = vmatprep.subr.bf16.mxu0 0
        %5902 = vmatpush1.bf16.xpose.msra.mxu0 0
        %5903 = vmatprep.subr.bf16.mxu0 0
        %5904 = vmatpush1.bf16.xpose.msra.mxu0 0
        %5905 = vmatprep.subr.bf16.mxu0 0
        %5906 = vmatpush1.bf16.xpose.msra.mxu0 0
        %5907 = vmatprep.subr.bf16.mxu0 0
        %5908 = vmatpush1.bf16.xpose.msra.mxu0 0
        %5909 = vmatprep.subr.bf16.mxu0 0
        %5910 = vmatpush1.bf16.xpose.msra.mxu0 0
        %5911 = vmatprep.subr.bf16.mxu0 0
        %5912 = vmatpush1.bf16.xpose.msra.mxu0 0
        %5913 = vmatprep.subr.bf16.mxu0 0
        %5914 = vmatpush1.bf16.xpose.msra.mxu0 %v5897
        %5915 = vmatprep.subr.bf16.mxu0 0
        %5916 = vmatpush2.bf16.xpose.msra.mxu0 0
        %5917 = vmatprep.subr.bf16.mxu0 0
        %5918 = vmatpush2.bf16.xpose.msra.mxu0 0
        %5919 = vmatprep.subr.bf16.mxu0 0
        %5920 = vmatpush2.bf16.xpose.msra.mxu0 0
        %5921 = vmatprep.subr.bf16.mxu0 0
        %5922 = vmatpush2.bf16.xpose.msra.mxu0 0
        %5923 = vmatprep.subr.bf16.mxu0 0
        %5924 = vmatpush2.bf16.xpose.msra.mxu0 0
        %5925 = vmatprep.subr.bf16.mxu0 0
        %5926 = vmatpush2.bf16.xpose.msra.mxu0 0
        %5927 = vmatprep.subr.bf16.mxu0 0
        %5928 = vmatpush2.bf16.xpose.msra.mxu0 0
        %5929 = vmatprep.subr.bf16.mxu0 0
        %5930 = vmatpush2.bf16.xpose.msra.mxu0 0
        %5931 = vmatprep.mubr.bf16.mxu0 0
        %5932 = vmatmul.mubr.bf16.gmra.mxu0 %v5894
        %v5933 = vpop.f32.mrf.mxu0
        %v5934 = vadd.f32 %v2896, %v5933
        %v5935 = vpop.f32.mrf.mxu0
        %v5936 = vpop.f32.mrf.mxu0
        %v5937 = vpop.f32.mrf.mxu0
        %5938 = vdwg.mxu0
        %v5939 = vsel %vm2944, %v5934, -inf
        %5940 = vmax.xlane.f32.xlu0 %v5939
        %v5941 = vpop.xlane.xlu0 %5940
        %v5942 = vsub.f32 %v5934, %v5941
        %v5943 = vmul.f32 %v5942, 1.442695
        %v5944 = vpow.pop %v5943
        %v5945 = vsel %vm2944, %v5944, 0.0
        %5946 = vadd.xlane.f32.xlu0 %v5945
        %v5947 = vpop.xlane.xlu0 %5946
        %v5948 = vrcp.pop %v5947
        %v5949 = vmul.f32 %v5944, %v5948
        %v5950 = vpack.c.bf16 %v5949, %v5949
        %5951 = vrot.lane.b32.xlu0 %v5640, 112
        %v5952 = vpop.permute.xlu0 %5951
        %v5955 = vsel %vm2944, %v5950, 0
        %5957 = vmatprep.subr.bf16.mxu0 0
        %5958 = vmatpush1.bf16.msra.mxu0 0
        %5959 = vmatprep.subr.bf16.mxu0 0
        %5960 = vmatpush1.bf16.msra.mxu0 0
        %5961 = vmatprep.subr.bf16.mxu0 0
        %5962 = vmatpush1.bf16.msra.mxu0 0
        %5963 = vmatprep.subr.bf16.mxu0 0
        %5964 = vmatpush1.bf16.msra.mxu0 0
        %5965 = vmatprep.subr.bf16.mxu0 0
        %5966 = vmatpush1.bf16.msra.mxu0 0
        %5967 = vmatprep.subr.bf16.mxu0 0
        %5968 = vmatpush1.bf16.msra.mxu0 0
        %5969 = vmatprep.subr.bf16.mxu0 0
        %5970 = vmatpush1.bf16.msra.mxu0 0
        %5971 = vmatprep.subr.bf16.mxu0 0
        %5972 = vmatpush1.bf16.msra.mxu0 %v5952
        %5973 = vmatprep.subr.bf16.mxu0 0
        %5974 = vmatpush2.bf16.msra.mxu0 0
        %5975 = vmatprep.subr.bf16.mxu0 0
        %5976 = vmatpush2.bf16.msra.mxu0 0
        %5977 = vmatprep.subr.bf16.mxu0 0
        %5978 = vmatpush2.bf16.msra.mxu0 0
        %5979 = vmatprep.subr.bf16.mxu0 0
        %5980 = vmatpush2.bf16.msra.mxu0 0
        %5981 = vmatprep.subr.bf16.mxu0 0
        %5982 = vmatpush2.bf16.msra.mxu0 0
        %5983 = vmatprep.subr.bf16.mxu0 0
        %5984 = vmatpush2.bf16.msra.mxu0 0
        %5985 = vmatprep.subr.bf16.mxu0 0
        %5986 = vmatpush2.bf16.msra.mxu0 0
        %5987 = vmatprep.subr.bf16.mxu0 0
        %5988 = vmatpush2.bf16.msra.mxu0 0
        %5989 = vmatprep.mubr.bf16.mxu0 0
        %5990 = vmatmul.mubr.bf16.gmra.mxu0 %v5955
        %v5991 = vpop.f32.mrf.mxu0
        %v5992 = vadd.f32 0.0, %v5991
        %v5993 = vpop.f32.mrf.mxu0
        %v5994 = vpop.f32.mrf.mxu0
        %v5995 = vpop.f32.mrf.mxu0
        %5996 = vdwg.mxu0
        %v5997 = vpack.c.bf16 %v5992, %v5992
        %v5999 = vsel %vm2031, %v5997, 0
        %v6002 = vsel %vm2094, %v5379, 0
        %6004 = vmatprep.subr.bf16.mxu0 0
        %6005 = vmatpush1.bf16.msra.mxu0 0
        %6006 = vmatprep.subr.bf16.mxu0 0
        %6007 = vmatpush1.bf16.msra.mxu0 0
        %6008 = vmatprep.subr.bf16.mxu0 0
        %6009 = vmatpush1.bf16.msra.mxu0 0
        %6010 = vmatprep.subr.bf16.mxu0 0
        %6011 = vmatpush1.bf16.msra.mxu0 0
        %6012 = vmatprep.subr.bf16.mxu0 0
        %6013 = vmatpush1.bf16.msra.mxu0 0
        %6014 = vmatprep.subr.bf16.mxu0 0
        %6015 = vmatpush1.bf16.msra.mxu0 0
        %6016 = vmatprep.subr.bf16.mxu0 0
        %6017 = vmatpush1.bf16.msra.mxu0 0
        %6018 = vmatprep.subr.bf16.mxu0 0
        %6019 = vmatpush1.bf16.msra.mxu0 %v6002
        %6020 = vmatprep.subr.bf16.mxu0 0
        %6021 = vmatpush2.bf16.msra.mxu0 0
        %6022 = vmatprep.subr.bf16.mxu0 0
        %6023 = vmatpush2.bf16.msra.mxu0 0
        %6024 = vmatprep.subr.bf16.mxu0 0
        %6025 = vmatpush2.bf16.msra.mxu0 0
        %6026 = vmatprep.subr.bf16.mxu0 0
        %6027 = vmatpush2.bf16.msra.mxu0 0
        %6028 = vmatprep.subr.bf16.mxu0 0
        %6029 = vmatpush2.bf16.msra.mxu0 0
        %6030 = vmatprep.subr.bf16.mxu0 0
        %6031 = vmatpush2.bf16.msra.mxu0 0
        %6032 = vmatprep.subr.bf16.mxu0 0
        %6033 = vmatpush2.bf16.msra.mxu0 0
        %6034 = vmatprep.subr.bf16.mxu0 0
        %6035 = vmatpush2.bf16.msra.mxu0 0
        %6036 = vmatprep.mubr.bf16.mxu0 0
        %6037 = vmatmul.mubr.bf16.gmra.mxu0 %v5999
        %v6038 = vpop.f32.mrf.mxu0
        %v6039 = vadd.f32 0.0, %v6038
        %v6040 = vpop.f32.mrf.mxu0
        %v6041 = vpop.f32.mrf.mxu0
        %v6042 = vpop.f32.mrf.mxu0
        %6043 = vdwg.mxu0
        %v6044 = vadd.f32 %v5884, %v6039
        %6045 = vrot.lane.b32.xlu0 %v5580, 104
        %v6046 = vpop.permute.xlu0 %6045
        %6047 = vrot.lane.b32.xlu0 %v5581, 104
        %v6048 = vpop.permute.xlu0 %6047
        %v6050 = vsel %vm2031, %v6046, 0
        %v6053 = vsel %vm2031, %v6048, 0
        %6055 = vmatprep.subr.bf16.mxu0 0
        %6056 = vmatpush1.bf16.xpose.msra.mxu0 0
        %6057 = vmatprep.subr.bf16.mxu0 0
        %6058 = vmatpush1.bf16.xpose.msra.mxu0 0
        %6059 = vmatprep.subr.bf16.mxu0 0
        %6060 = vmatpush1.bf16.xpose.msra.mxu0 0
        %6061 = vmatprep.subr.bf16.mxu0 0
        %6062 = vmatpush1.bf16.xpose.msra.mxu0 0
        %6063 = vmatprep.subr.bf16.mxu0 0
        %6064 = vmatpush1.bf16.xpose.msra.mxu0 0
        %6065 = vmatprep.subr.bf16.mxu0 0
        %6066 = vmatpush1.bf16.xpose.msra.mxu0 0
        %6067 = vmatprep.subr.bf16.mxu0 0
        %6068 = vmatpush1.bf16.xpose.msra.mxu0 0
        %6069 = vmatprep.subr.bf16.mxu0 0
        %6070 = vmatpush1.bf16.xpose.msra.mxu0 %v6053
        %6071 = vmatprep.subr.bf16.mxu0 0
        %6072 = vmatpush2.bf16.xpose.msra.mxu0 0
        %6073 = vmatprep.subr.bf16.mxu0 0
        %6074 = vmatpush2.bf16.xpose.msra.mxu0 0
        %6075 = vmatprep.subr.bf16.mxu0 0
        %6076 = vmatpush2.bf16.xpose.msra.mxu0 0
        %6077 = vmatprep.subr.bf16.mxu0 0
        %6078 = vmatpush2.bf16.xpose.msra.mxu0 0
        %6079 = vmatprep.subr.bf16.mxu0 0
        %6080 = vmatpush2.bf16.xpose.msra.mxu0 0
        %6081 = vmatprep.subr.bf16.mxu0 0
        %6082 = vmatpush2.bf16.xpose.msra.mxu0 0
        %6083 = vmatprep.subr.bf16.mxu0 0
        %6084 = vmatpush2.bf16.xpose.msra.mxu0 0
        %6085 = vmatprep.subr.bf16.mxu0 0
        %6086 = vmatpush2.bf16.xpose.msra.mxu0 0
        %6087 = vmatprep.mubr.bf16.mxu0 0
        %6088 = vmatmul.mubr.bf16.gmra.mxu0 %v6050
        %v6089 = vpop.f32.mrf.mxu0
        %v6090 = vadd.f32 %v2896, %v6089
        %v6091 = vpop.f32.mrf.mxu0
        %v6092 = vpop.f32.mrf.mxu0
        %v6093 = vpop.f32.mrf.mxu0
        %6094 = vdwg.mxu0
        %v6095 = vsel %vm2944, %v6090, -inf
        %6096 = vmax.xlane.f32.xlu0 %v6095
        %v6097 = vpop.xlane.xlu0 %6096
        %v6098 = vsub.f32 %v6090, %v6097
        %v6099 = vmul.f32 %v6098, 1.442695
        %v6100 = vpow.pop %v6099
        %v6101 = vsel %vm2944, %v6100, 0.0
        %6102 = vadd.xlane.f32.xlu0 %v6101
        %v6103 = vpop.xlane.xlu0 %6102
        %v6104 = vrcp.pop %v6103
        %v6105 = vmul.f32 %v6100, %v6104
        %v6106 = vpack.c.bf16 %v6105, %v6105
        %6107 = vrot.lane.b32.xlu0 %v5640, 104
        %v6108 = vpop.permute.xlu0 %6107
        %v6111 = vsel %vm2944, %v6106, 0
        %6113 = vmatprep.subr.bf16.mxu0 0
        %6114 = vmatpush1.bf16.msra.mxu0 0
        %6115 = vmatprep.subr.bf16.mxu0 0
        %6116 = vmatpush1.bf16.msra.mxu0 0
        %6117 = vmatprep.subr.bf16.mxu0 0
        %6118 = vmatpush1.bf16.msra.mxu0 0
        %6119 = vmatprep.subr.bf16.mxu0 0
        %6120 = vmatpush1.bf16.msra.mxu0 0
        %6121 = vmatprep.subr.bf16.mxu0 0
        %6122 = vmatpush1.bf16.msra.mxu0 0
        %6123 = vmatprep.subr.bf16.mxu0 0
        %6124 = vmatpush1.bf16.msra.mxu0 0
        %6125 = vmatprep.subr.bf16.mxu0 0
        %6126 = vmatpush1.bf16.msra.mxu0 0
        %6127 = vmatprep.subr.bf16.mxu0 0
        %6128 = vmatpush1.bf16.msra.mxu0 %v6108
        %6129 = vmatprep.subr.bf16.mxu0 0
        %6130 = vmatpush2.bf16.msra.mxu0 0
        %6131 = vmatprep.subr.bf16.mxu0 0
        %6132 = vmatpush2.bf16.msra.mxu0 0
        %6133 = vmatprep.subr.bf16.mxu0 0
        %6134 = vmatpush2.bf16.msra.mxu0 0
        %6135 = vmatprep.subr.bf16.mxu0 0
        %6136 = vmatpush2.bf16.msra.mxu0 0
        %6137 = vmatprep.subr.bf16.mxu0 0
        %6138 = vmatpush2.bf16.msra.mxu0 0
        %6139 = vmatprep.subr.bf16.mxu0 0
        %6140 = vmatpush2.bf16.msra.mxu0 0
        %6141 = vmatprep.subr.bf16.mxu0 0
        %6142 = vmatpush2.bf16.msra.mxu0 0
        %6143 = vmatprep.subr.bf16.mxu0 0
        %6144 = vmatpush2.bf16.msra.mxu0 0
        %6145 = vmatprep.mubr.bf16.mxu0 0
        %6146 = vmatmul.mubr.bf16.gmra.mxu0 %v6111
        %v6147 = vpop.f32.mrf.mxu0
        %v6148 = vadd.f32 0.0, %v6147
        %v6149 = vpop.f32.mrf.mxu0
        %v6150 = vpop.f32.mrf.mxu0
        %v6151 = vpop.f32.mrf.mxu0
        %6152 = vdwg.mxu0
        %v6153 = vpack.c.bf16 %v6148, %v6148
        %v6155 = vsel %vm2031, %v6153, 0
        %v6158 = vsel %vm2094, %v5380, 0
        %6160 = vmatprep.subr.bf16.mxu0 0
        %6161 = vmatpush1.bf16.msra.mxu0 0
        %6162 = vmatprep.subr.bf16.mxu0 0
        %6163 = vmatpush1.bf16.msra.mxu0 0
        %6164 = vmatprep.subr.bf16.mxu0 0
        %6165 = vmatpush1.bf16.msra.mxu0 0
        %6166 = vmatprep.subr.bf16.mxu0 0
        %6167 = vmatpush1.bf16.msra.mxu0 0
        %6168 = vmatprep.subr.bf16.mxu0 0
        %6169 = vmatpush1.bf16.msra.mxu0 0
        %6170 = vmatprep.subr.bf16.mxu0 0
        %6171 = vmatpush1.bf16.msra.mxu0 0
        %6172 = vmatprep.subr.bf16.mxu0 0
        %6173 = vmatpush1.bf16.msra.mxu0 0
        %6174 = vmatprep.subr.bf16.mxu0 0
        %6175 = vmatpush1.bf16.msra.mxu0 %v6158
        %6176 = vmatprep.subr.bf16.mxu0 0
        %6177 = vmatpush2.bf16.msra.mxu0 0
        %6178 = vmatprep.subr.bf16.mxu0 0
        %6179 = vmatpush2.bf16.msra.mxu0 0
        %6180 = vmatprep.subr.bf16.mxu0 0
        %6181 = vmatpush2.bf16.msra.mxu0 0
        %6182 = vmatprep.subr.bf16.mxu0 0
        %6183 = vmatpush2.bf16.msra.mxu0 0
        %6184 = vmatprep.subr.bf16.mxu0 0
        %6185 = vmatpush2.bf16.msra.mxu0 0
        %6186 = vmatprep.subr.bf16.mxu0 0
        %6187 = vmatpush2.bf16.msra.mxu0 0
        %6188 = vmatprep.subr.bf16.mxu0 0
        %6189 = vmatpush2.bf16.msra.mxu0 0
        %6190 = vmatprep.subr.bf16.mxu0 0
        %6191 = vmatpush2.bf16.msra.mxu0 0
        %6192 = vmatprep.mubr.bf16.mxu0 0
        %6193 = vmatmul.mubr.bf16.gmra.mxu0 %v6155
        %v6194 = vpop.f32.mrf.mxu0
        %v6195 = vadd.f32 0.0, %v6194
        %v6196 = vpop.f32.mrf.mxu0
        %v6197 = vpop.f32.mrf.mxu0
        %v6198 = vpop.f32.mrf.mxu0
        %6199 = vdwg.mxu0
        %v6200 = vadd.f32 %v6044, %v6195
        %v6201 = vadd.f32 %v5355, %v6200
        %v6202 = vlaneseq
        %v6203 = vshrl.u32 %v6202, 7
        %v6204 = vsub.s32 0, %v6203
        %v6205 = vrot.slane %v5381, %v6204
        %v6206 = vadd.f32 %v6201, %v6205
        %v6207 = vld [vmem:[#allocation41 + $0x1] sm:$0x1]
        %v6208 = vld [vmem:[#allocation43 + $0x1] sm:$0x1]
        %s6209 = scalar_lea.vmem [#allocation44], 16
        %v6210 = vld [vmem:[%s6209] sm:$0xf]
        %v6211 = vld [vmem:[%s6209 + $0x4] sm:$0xf]
        %v6212 = vld [vmem:[%s6209 + $0x8] sm:$0xf]
        %v6213 = vld [vmem:[%s6209 + $0xc] sm:$0xf]
        %v6214 = vld [vmem:[#allocation46 + $0x1] sm:$0x1]
        %s6215 = scalar_lea.vmem [#allocation47], 16
        %v6216 = vld [vmem:[%s6215] sm:$0xf]
        %v6217 = vld [vmem:[%s6215 + $0x4] sm:$0xf]
        %v6218 = vld [vmem:[%s6215 + $0x8] sm:$0xf]
        %v6219 = vld [vmem:[%s6215 + $0xc] sm:$0xf]
        %v6220 = vld [vmem:[#allocation49 + $0x1] sm:$0x1]
        %s6221 = scalar_lea.vmem [#allocation50], 16
        %v6222 = vld [vmem:[%s6221] sm:$0xf]
        %v6223 = vld [vmem:[%s6221 + $0x4] sm:$0xf]
        %v6224 = vld [vmem:[%s6221 + $0x8] sm:$0xf]
        %v6225 = vld [vmem:[%s6221 + $0xc] sm:$0xf]
        %v6226 = vld [vmem:[#allocation52 + $0x1] sm:$0x1]
        %s6227 = scalar_lea.vmem %s71, 16
        %v6228 = vld [vmem:[%s6227] sm:$0xf]
        %v6229 = vld [vmem:[%s6227 + $0x4] sm:$0xf]
        %v6230 = vld [vmem:[%s6227 + $0x8] sm:$0xf]
        %v6231 = vld [vmem:[%s6227 + $0xc] sm:$0xf]
        %v6232 = vld [vmem:[%s73 + $0x1] sm:$0x1]
        %v6233 = vlaneseq
        %v6234 = vshrl.u32 %v6233, 7
        %v6235 = vsub.s32 0, %v6234
        %v6236 = vrot.slane %v6207, %v6235
        %v6237 = vmul.f32 %v5394, %v6236
        %v6238 = vlaneseq
        %v6239 = vshrl.u32 %v6238, 7
        %v6240 = vsub.s32 0, %v6239
        %v6241 = vrot.slane %v6208, %v6240
        %v6242 = vadd.f32 %v6237, %v6241
        %v6243 = vpack.c.bf16 %v6242, %v6242
        %v6244 = vlaneseq
        %v6245 = vshrl.u32 %v6244, 7
        %v6246 = vsub.s32 0, %v6245
        %v6247 = vrot.slane %v6214, %v6246
        %v6252 = vunpack.c.l.b16 %v6210
        %v6253 = vunpack.c.l.b16 %v6211
        %v6254 = vunpack.c.l.b16 %v6212
        %v6255 = vunpack.c.l.b16 %v6213
        %v6256 = vpack.c.b16 %v6253, %v6252
        %v6257 = vpack.c.b16 %v6255, %v6254
        %v6261 = vsel %vm1831, %v6243, 0
        %6263 = vmatprep.subr.bf16.mxu0 0
        %6264 = vmatpush1.bf16.msra.mxu0 0
        %6265 = vmatprep.subr.bf16.mxu0 0
        %6266 = vmatpush1.bf16.msra.mxu0 0
        %6267 = vmatprep.subr.bf16.mxu0 0
        %6268 = vmatpush1.bf16.msra.mxu0 0
        %6269 = vmatprep.subr.bf16.mxu0 0
        %6270 = vmatpush1.bf16.msra.mxu0 0
        %6271 = vmatprep.subr.bf16.mxu0 0
        %6272 = vmatpush1.bf16.msra.mxu0 0
        %6273 = vmatprep.subr.bf16.mxu0 0
        %6274 = vmatpush1.bf16.msra.mxu0 0
        %6275 = vmatprep.subr.bf16.mxu0 0
        %6276 = vmatpush1.bf16.msra.mxu0 %v6257
        %6277 = vmatprep.subr.bf16.mxu0 0
        %6278 = vmatpush1.bf16.msra.mxu0 %v6256
        %6279 = vmatprep.subr.bf16.mxu0 0
        %6280 = vmatpush2.bf16.msra.mxu0 0
        %6281 = vmatprep.subr.bf16.mxu0 0
        %6282 = vmatpush2.bf16.msra.mxu0 0
        %6283 = vmatprep.subr.bf16.mxu0 0
        %6284 = vmatpush2.bf16.msra.mxu0 0
        %6285 = vmatprep.subr.bf16.mxu0 0
        %6286 = vmatpush2.bf16.msra.mxu0 0
        %6287 = vmatprep.subr.bf16.mxu0 0
        %6288 = vmatpush2.bf16.msra.mxu0 0
        %6289 = vmatprep.subr.bf16.mxu0 0
        %6290 = vmatpush2.bf16.msra.mxu0 0
        %6291 = vmatprep.subr.bf16.mxu0 0
        %6292 = vmatpush2.bf16.msra.mxu0 0
        %6293 = vmatprep.subr.bf16.mxu0 0
        %6294 = vmatpush2.bf16.msra.mxu0 0
        %6295 = vmatprep.mubr.bf16.mxu0 0
        %6296 = vmatmul.mubr.bf16.gmra.mxu0 %v6261
        %v6297 = vpop.f32.mrf.mxu0
        %v6298 = vadd.f32 %v6247, %v6297
        %v6299 = vpop.f32.mrf.mxu0
        %v6300 = vpop.f32.mrf.mxu0
        %v6301 = vpop.f32.mrf.mxu0
        %6302 = vdwg.mxu0
        %v6303 = vlaneseq
        %v6304 = vshrl.u32 %v6303, 7
        %v6305 = vsub.s32 0, %v6304
        %v6306 = vrot.slane %v6220, %v6305
        %v6311 = vunpack.c.l.b16 %v6216
        %v6312 = vunpack.c.l.b16 %v6217
        %v6313 = vunpack.c.l.b16 %v6218
        %v6314 = vunpack.c.l.b16 %v6219
        %v6315 = vpack.c.b16 %v6312, %v6311
        %v6316 = vpack.c.b16 %v6314, %v6313
        %6319 = vmatprep.subr.bf16.mxu0 0
        %6320 = vmatpush1.bf16.msra.mxu0 0
        %6321 = vmatprep.subr.bf16.mxu0 0
        %6322 = vmatpush1.bf16.msra.mxu0 0
        %6323 = vmatprep.subr.bf16.mxu0 0
        %6324 = vmatpush1.bf16.msra.mxu0 0
        %6325 = vmatprep.subr.bf16.mxu0 0
        %6326 = vmatpush1.bf16.msra.mxu0 0
        %6327 = vmatprep.subr.bf16.mxu0 0
        %6328 = vmatpush1.bf16.msra.mxu0 0
        %6329 = vmatprep.subr.bf16.mxu0 0
        %6330 = vmatpush1.bf16.msra.mxu0 0
        %6331 = vmatprep.subr.bf16.mxu0 0
        %6332 = vmatpush1.bf16.msra.mxu0 %v6316
        %6333 = vmatprep.subr.bf16.mxu0 0
        %6334 = vmatpush1.bf16.msra.mxu0 %v6315
        %6335 = vmatprep.subr.bf16.mxu0 0
        %6336 = vmatpush2.bf16.msra.mxu0 0
        %6337 = vmatprep.subr.bf16.mxu0 0
        %6338 = vmatpush2.bf16.msra.mxu0 0
        %6339 = vmatprep.subr.bf16.mxu0 0
        %6340 = vmatpush2.bf16.msra.mxu0 0
        %6341 = vmatprep.subr.bf16.mxu0 0
        %6342 = vmatpush2.bf16.msra.mxu0 0
        %6343 = vmatprep.subr.bf16.mxu0 0
        %6344 = vmatpush2.bf16.msra.mxu0 0
        %6345 = vmatprep.subr.bf16.mxu0 0
        %6346 = vmatpush2.bf16.msra.mxu0 0
        %6347 = vmatprep.subr.bf16.mxu0 0
        %6348 = vmatpush2.bf16.msra.mxu0 0
        %6349 = vmatprep.subr.bf16.mxu0 0
        %6350 = vmatpush2.bf16.msra.mxu0 0
        %6351 = vmatprep.mubr.bf16.mxu0 0
        %6352 = vmatmul.mubr.bf16.gmra.mxu0 %v3633
        %v6353 = vpop.f32.mrf.mxu0
        %v6354 = vadd.f32 %v6306, %v6353
        %v6355 = vpop.f32.mrf.mxu0
        %v6356 = vpop.f32.mrf.mxu0
        %v6357 = vadd.f32 %v6306, %v6356
        %v6358 = vpop.f32.mrf.mxu0
        %6359 = vmatprep.mubr.bf16.mxu0 0
        %6360 = vmatmul.mubr.bf16.gmra.mxu0 %v3636
        %v6361 = vpop.f32.mrf.mxu0
        %v6362 = vadd.f32 %v6306, %v6361
        %v6363 = vpop.f32.mrf.mxu0
        %v6364 = vpop.f32.mrf.mxu0
        %v6365 = vpop.f32.mrf.mxu0
        %6366 = vdwg.mxu0
        %v6367 = vlaneseq
        %v6368 = vshrl.u32 %v6367, 7
        %v6369 = vsub.s32 0, %v6368
        %v6370 = vrot.slane %v6226, %v6369
        %v6375 = vunpack.c.l.b16 %v6222
        %v6376 = vunpack.c.l.b16 %v6223
        %v6377 = vunpack.c.l.b16 %v6224
        %v6378 = vunpack.c.l.b16 %v6225
        %v6379 = vpack.c.b16 %v6376, %v6375
        %v6380 = vpack.c.b16 %v6378, %v6377
        %6383 = vmatprep.subr.bf16.mxu0 0
        %6384 = vmatpush1.bf16.msra.mxu0 0
        %6385 = vmatprep.subr.bf16.mxu0 0
        %6386 = vmatpush1.bf16.msra.mxu0 0
        %6387 = vmatprep.subr.bf16.mxu0 0
        %6388 = vmatpush1.bf16.msra.mxu0 0
        %6389 = vmatprep.subr.bf16.mxu0 0
        %6390 = vmatpush1.bf16.msra.mxu0 0
        %6391 = vmatprep.subr.bf16.mxu0 0
        %6392 = vmatpush1.bf16.msra.mxu0 0
        %6393 = vmatprep.subr.bf16.mxu0 0
        %6394 = vmatpush1.bf16.msra.mxu0 0
        %6395 = vmatprep.subr.bf16.mxu0 0
        %6396 = vmatpush1.bf16.msra.mxu0 %v6380
        %6397 = vmatprep.subr.bf16.mxu0 0
        %6398 = vmatpush1.bf16.msra.mxu0 %v6379
        %6399 = vmatprep.subr.bf16.mxu0 0
        %6400 = vmatpush2.bf16.msra.mxu0 0
        %6401 = vmatprep.subr.bf16.mxu0 0
        %6402 = vmatpush2.bf16.msra.mxu0 0
        %6403 = vmatprep.subr.bf16.mxu0 0
        %6404 = vmatpush2.bf16.msra.mxu0 0
        %6405 = vmatprep.subr.bf16.mxu0 0
        %6406 = vmatpush2.bf16.msra.mxu0 0
        %6407 = vmatprep.subr.bf16.mxu0 0
        %6408 = vmatpush2.bf16.msra.mxu0 0
        %6409 = vmatprep.subr.bf16.mxu0 0
        %6410 = vmatpush2.bf16.msra.mxu0 0
        %6411 = vmatprep.subr.bf16.mxu0 0
        %6412 = vmatpush2.bf16.msra.mxu0 0
        %6413 = vmatprep.subr.bf16.mxu0 0
        %6414 = vmatpush2.bf16.msra.mxu0 0
        %6415 = vmatprep.mubr.bf16.mxu0 0
        %6416 = vmatmul.mubr.bf16.gmra.mxu0 %v3633
        %v6417 = vpop.f32.mrf.mxu0
        %v6418 = vadd.f32 %v6370, %v6417
        %v6419 = vpop.f32.mrf.mxu0
        %v6420 = vpop.f32.mrf.mxu0
        %v6421 = vadd.f32 %v6370, %v6420
        %v6422 = vpop.f32.mrf.mxu0
        %6423 = vmatprep.mubr.bf16.mxu0 0
        %6424 = vmatmul.mubr.bf16.gmra.mxu0 %v3636
        %v6425 = vpop.f32.mrf.mxu0
        %v6426 = vadd.f32 %v6370, %v6425
        %v6427 = vpop.f32.mrf.mxu0
        %v6428 = vpop.f32.mrf.mxu0
        %v6429 = vpop.f32.mrf.mxu0
        %6430 = vdwg.mxu0
        %v6431 = vmul.f32 %v6298, 0.35355338
        %v6432 = vpack.c.bf16 %v6431, %v6431
        %v6433 = vpack.c.bf16 %v6357, %v6354
        %v6434 = vpack.c.bf16 %v6362, %v6362
        %v6436 = vsel %vm2031, %v6432, 0
        %v6439 = vsel %vm2031, %v6433, 0
        %v6442 = vsel %vm2031, %v6434, 0
        %6444 = vmatprep.subr.bf16.mxu0 0
        %6445 = vmatpush1.bf16.xpose.msra.mxu0 0
        %6446 = vmatprep.subr.bf16.mxu0 0
        %6447 = vmatpush1.bf16.xpose.msra.mxu0 0
        %6448 = vmatprep.subr.bf16.mxu0 0
        %6449 = vmatpush1.bf16.xpose.msra.mxu0 0
        %6450 = vmatprep.subr.bf16.mxu0 0
        %6451 = vmatpush1.bf16.xpose.msra.mxu0 0
        %6452 = vmatprep.subr.bf16.mxu0 0
        %6453 = vmatpush1.bf16.xpose.msra.mxu0 0
        %6454 = vmatprep.subr.bf16.mxu0 0
        %6455 = vmatpush1.bf16.xpose.msra.mxu0 0
        %6456 = vmatprep.subr.bf16.mxu0 0
        %6457 = vmatpush1.bf16.xpose.msra.mxu0 %v6442
        %6458 = vmatprep.subr.bf16.mxu0 0
        %6459 = vmatpush1.bf16.xpose.msra.mxu0 %v6439
        %6460 = vmatprep.subr.bf16.mxu0 0
        %6461 = vmatpush2.bf16.xpose.msra.mxu0 0
        %6462 = vmatprep.subr.bf16.mxu0 0
        %6463 = vmatpush2.bf16.xpose.msra.mxu0 0
        %6464 = vmatprep.subr.bf16.mxu0 0
        %6465 = vmatpush2.bf16.xpose.msra.mxu0 0
        %6466 = vmatprep.subr.bf16.mxu0 0
        %6467 = vmatpush2.bf16.xpose.msra.mxu0 0
        %6468 = vmatprep.subr.bf16.mxu0 0
        %6469 = vmatpush2.bf16.xpose.msra.mxu0 0
        %6470 = vmatprep.subr.bf16.mxu0 0
        %6471 = vmatpush2.bf16.xpose.msra.mxu0 0
        %6472 = vmatprep.subr.bf16.mxu0 0
        %6473 = vmatpush2.bf16.xpose.msra.mxu0 0
        %6474 = vmatprep.subr.bf16.mxu0 0
        %6475 = vmatpush2.bf16.xpose.msra.mxu0 0
        %6476 = vmatprep.mubr.bf16.mxu0 0
        %6477 = vmatmul.mubr.bf16.gmra.mxu0 %v6436
        %v6478 = vpop.f32.mrf.mxu0
        %v6479 = vadd.f32 %v3758, %v6478
        %v6480 = vpop.f32.mrf.mxu0
        %v6481 = vpop.f32.mrf.mxu0
        %v6482 = vpop.f32.mrf.mxu0
        %6483 = vdwg.mxu0
        %v6484 = vsel %vm3809, %v6479, -inf
        %6485 = vmax.xlane.f32.xlu0 %v6484
        %v6486 = vpop.xlane.xlu0 %6485
        %v6487 = vsub.f32 %v6479, %v6486
        %v6488 = vmul.f32 %v6487, 1.442695
        %v6489 = vpow.pop %v6488
        %v6490 = vsel %vm3809, %v6489, 0.0
        %6491 = vadd.xlane.f32.xlu0 %v6490
        %v6492 = vpop.xlane.xlu0 %6491
        %v6493 = vrcp.pop %v6492
        %v6494 = vmul.f32 %v6489, %v6493
        %v6495 = vpack.c.bf16 %v6494, %v6494
        %v6496 = vpack.c.bf16 %v6421, %v6418
        %v6497 = vpack.c.bf16 %v6426, %v6426
        %v6499 = vsel %vm3809, %v6495, 0
        %v6502 = vsel %vm2094, %v6497, 0
        %6504 = vmatprep.subr.bf16.mxu0 0
        %6505 = vmatpush1.bf16.msra.mxu0 0
        %6506 = vmatprep.subr.bf16.mxu0 0
        %6507 = vmatpush1.bf16.msra.mxu0 0
        %6508 = vmatprep.subr.bf16.mxu0 0
        %6509 = vmatpush1.bf16.msra.mxu0 0
        %6510 = vmatprep.subr.bf16.mxu0 0
        %6511 = vmatpush1.bf16.msra.mxu0 0
        %6512 = vmatprep.subr.bf16.mxu0 0
        %6513 = vmatpush1.bf16.msra.mxu0 0
        %6514 = vmatprep.subr.bf16.mxu0 0
        %6515 = vmatpush1.bf16.msra.mxu0 0
        %6516 = vmatprep.subr.bf16.mxu0 0
        %6517 = vmatpush1.bf16.msra.mxu0 %v6502
        %6518 = vmatprep.subr.bf16.mxu0 0
        %6519 = vmatpush1.bf16.msra.mxu0 %v6496
        %6520 = vmatprep.subr.bf16.mxu0 0
        %6521 = vmatpush2.bf16.msra.mxu0 0
        %6522 = vmatprep.subr.bf16.mxu0 0
        %6523 = vmatpush2.bf16.msra.mxu0 0
        %6524 = vmatprep.subr.bf16.mxu0 0
        %6525 = vmatpush2.bf16.msra.mxu0 0
        %6526 = vmatprep.subr.bf16.mxu0 0
        %6527 = vmatpush2.bf16.msra.mxu0 0
        %6528 = vmatprep.subr.bf16.mxu0 0
        %6529 = vmatpush2.bf16.msra.mxu0 0
        %6530 = vmatprep.subr.bf16.mxu0 0
        %6531 = vmatpush2.bf16.msra.mxu0 0
        %6532 = vmatprep.subr.bf16.mxu0 0
        %6533 = vmatpush2.bf16.msra.mxu0 0
        %6534 = vmatprep.subr.bf16.mxu0 0
        %6535 = vmatpush2.bf16.msra.mxu0 0
        %6536 = vmatprep.mubr.bf16.mxu0 0
        %6537 = vmatmul.mubr.bf16.gmra.mxu0 %v6499
        %v6538 = vpop.f32.mrf.mxu0
        %v6539 = vadd.f32 0.0, %v6538
        %v6540 = vpop.f32.mrf.mxu0
        %v6541 = vpop.f32.mrf.mxu0
        %v6542 = vpop.f32.mrf.mxu0
        %6543 = vdwg.mxu0
        %v6544 = vpack.c.bf16 %v6539, %v6539
        %6546 = vrot.lane.b32.xlu0 %v6432, 120
        %v6547 = vpop.permute.xlu0 %6546
        %6550 = vrot.lane.b32.xlu0 %v6433, 120
        %v6551 = vpop.permute.xlu0 %6550
        %6552 = vrot.lane.b32.xlu0 %v6434, 120
        %v6553 = vpop.permute.xlu0 %6552
        %v6555 = vsel %vm2031, %v6547, 0
        %v6558 = vsel %vm2031, %v6551, 0
        %v6561 = vsel %vm2031, %v6553, 0
        %6563 = vmatprep.subr.bf16.mxu0 0
        %6564 = vmatpush1.bf16.xpose.msra.mxu0 0
        %6565 = vmatprep.subr.bf16.mxu0 0
        %6566 = vmatpush1.bf16.xpose.msra.mxu0 0
        %6567 = vmatprep.subr.bf16.mxu0 0
        %6568 = vmatpush1.bf16.xpose.msra.mxu0 0
        %6569 = vmatprep.subr.bf16.mxu0 0
        %6570 = vmatpush1.bf16.xpose.msra.mxu0 0
        %6571 = vmatprep.subr.bf16.mxu0 0
        %6572 = vmatpush1.bf16.xpose.msra.mxu0 0
        %6573 = vmatprep.subr.bf16.mxu0 0
        %6574 = vmatpush1.bf16.xpose.msra.mxu0 0
        %6575 = vmatprep.subr.bf16.mxu0 0
        %6576 = vmatpush1.bf16.xpose.msra.mxu0 %v6561
        %6577 = vmatprep.subr.bf16.mxu0 0
        %6578 = vmatpush1.bf16.xpose.msra.mxu0 %v6558
        %6579 = vmatprep.subr.bf16.mxu0 0
        %6580 = vmatpush2.bf16.xpose.msra.mxu0 0
        %6581 = vmatprep.subr.bf16.mxu0 0
        %6582 = vmatpush2.bf16.xpose.msra.mxu0 0
        %6583 = vmatprep.subr.bf16.mxu0 0
        %6584 = vmatpush2.bf16.xpose.msra.mxu0 0
        %6585 = vmatprep.subr.bf16.mxu0 0
        %6586 = vmatpush2.bf16.xpose.msra.mxu0 0
        %6587 = vmatprep.subr.bf16.mxu0 0
        %6588 = vmatpush2.bf16.xpose.msra.mxu0 0
        %6589 = vmatprep.subr.bf16.mxu0 0
        %6590 = vmatpush2.bf16.xpose.msra.mxu0 0
        %6591 = vmatprep.subr.bf16.mxu0 0
        %6592 = vmatpush2.bf16.xpose.msra.mxu0 0
        %6593 = vmatprep.subr.bf16.mxu0 0
        %6594 = vmatpush2.bf16.xpose.msra.mxu0 0
        %6595 = vmatprep.mubr.bf16.mxu0 0
        %6596 = vmatmul.mubr.bf16.gmra.mxu0 %v6555
        %v6597 = vpop.f32.mrf.mxu0
        %v6598 = vadd.f32 %v3758, %v6597
        %v6599 = vpop.f32.mrf.mxu0
        %v6600 = vpop.f32.mrf.mxu0
        %v6601 = vpop.f32.mrf.mxu0
        %6602 = vdwg.mxu0
        %v6603 = vsel %vm3809, %v6598, -inf
        %6604 = vmax.xlane.f32.xlu0 %v6603
        %v6605 = vpop.xlane.xlu0 %6604
        %v6606 = vsub.f32 %v6598, %v6605
        %v6607 = vmul.f32 %v6606, 1.442695
        %v6608 = vpow.pop %v6607
        %v6609 = vsel %vm3809, %v6608, 0.0
        %6610 = vadd.xlane.f32.xlu0 %v6609
        %v6611 = vpop.xlane.xlu0 %6610
        %v6612 = vrcp.pop %v6611
        %v6613 = vmul.f32 %v6608, %v6612
        %v6614 = vpack.c.bf16 %v6613, %v6613
        %6617 = vrot.lane.b32.xlu0 %v6496, 120
        %v6618 = vpop.permute.xlu0 %6617
        %6619 = vrot.lane.b32.xlu0 %v6497, 120
        %v6620 = vpop.permute.xlu0 %6619
        %v6623 = vsel %vm3809, %v6614, 0
        %v6626 = vsel %vm2094, %v6620, 0
        %6628 = vmatprep.subr.bf16.mxu0 0
        %6629 = vmatpush1.bf16.msra.mxu0 0
        %6630 = vmatprep.subr.bf16.mxu0 0
        %6631 = vmatpush1.bf16.msra.mxu0 0
        %6632 = vmatprep.subr.bf16.mxu0 0
        %6633 = vmatpush1.bf16.msra.mxu0 0
        %6634 = vmatprep.subr.bf16.mxu0 0
        %6635 = vmatpush1.bf16.msra.mxu0 0
        %6636 = vmatprep.subr.bf16.mxu0 0
        %6637 = vmatpush1.bf16.msra.mxu0 0
        %6638 = vmatprep.subr.bf16.mxu0 0
        %6639 = vmatpush1.bf16.msra.mxu0 0
        %6640 = vmatprep.subr.bf16.mxu0 0
        %6641 = vmatpush1.bf16.msra.mxu0 %v6626
        %6642 = vmatprep.subr.bf16.mxu0 0
        %6643 = vmatpush1.bf16.msra.mxu0 %v6618
        %6644 = vmatprep.subr.bf16.mxu0 0
        %6645 = vmatpush2.bf16.msra.mxu0 0
        %6646 = vmatprep.subr.bf16.mxu0 0
        %6647 = vmatpush2.bf16.msra.mxu0 0
        %6648 = vmatprep.subr.bf16.mxu0 0
        %6649 = vmatpush2.bf16.msra.mxu0 0
        %6650 = vmatprep.subr.bf16.mxu0 0
        %6651 = vmatpush2.bf16.msra.mxu0 0
        %6652 = vmatprep.subr.bf16.mxu0 0
        %6653 = vmatpush2.bf16.msra.mxu0 0
        %6654 = vmatprep.subr.bf16.mxu0 0
        %6655 = vmatpush2.bf16.msra.mxu0 0
        %6656 = vmatprep.subr.bf16.mxu0 0
        %6657 = vmatpush2.bf16.msra.mxu0 0
        %6658 = vmatprep.subr.bf16.mxu0 0
        %6659 = vmatpush2.bf16.msra.mxu0 0
        %6660 = vmatprep.mubr.bf16.mxu0 0
        %6661 = vmatmul.mubr.bf16.gmra.mxu0 %v6623
        %v6662 = vpop.f32.mrf.mxu0
        %v6663 = vadd.f32 0.0, %v6662
        %v6664 = vpop.f32.mrf.mxu0
        %v6665 = vpop.f32.mrf.mxu0
        %v6666 = vpop.f32.mrf.mxu0
        %6667 = vdwg.mxu0
        %v6668 = vpack.c.bf16 %v6663, %v6663
        %v6670 = vsel %vm2031, %v6668, 0
        %v6673 = vsel %vm2094, %v6229, 0
        %6675 = vmatprep.subr.bf16.mxu0 0
        %6676 = vmatpush1.bf16.msra.mxu0 0
        %6677 = vmatprep.subr.bf16.mxu0 0
        %6678 = vmatpush1.bf16.msra.mxu0 0
        %6679 = vmatprep.subr.bf16.mxu0 0
        %6680 = vmatpush1.bf16.msra.mxu0 0
        %6681 = vmatprep.subr.bf16.mxu0 0
        %6682 = vmatpush1.bf16.msra.mxu0 0
        %6683 = vmatprep.subr.bf16.mxu0 0
        %6684 = vmatpush1.bf16.msra.mxu0 0
        %6685 = vmatprep.subr.bf16.mxu0 0
        %6686 = vmatpush1.bf16.msra.mxu0 0
        %6687 = vmatprep.subr.bf16.mxu0 0
        %6688 = vmatpush1.bf16.msra.mxu0 0
        %6689 = vmatprep.subr.bf16.mxu0 0
        %6690 = vmatpush1.bf16.msra.mxu0 %v6673
        %6691 = vmatprep.subr.bf16.mxu0 0
        %6692 = vmatpush2.bf16.msra.mxu0 0
        %6693 = vmatprep.subr.bf16.mxu0 0
        %6694 = vmatpush2.bf16.msra.mxu0 0
        %6695 = vmatprep.subr.bf16.mxu0 0
        %6696 = vmatpush2.bf16.msra.mxu0 0
        %6697 = vmatprep.subr.bf16.mxu0 0
        %6698 = vmatpush2.bf16.msra.mxu0 0
        %6699 = vmatprep.subr.bf16.mxu0 0
        %6700 = vmatpush2.bf16.msra.mxu0 0
        %6701 = vmatprep.subr.bf16.mxu0 0
        %6702 = vmatpush2.bf16.msra.mxu0 0
        %6703 = vmatprep.subr.bf16.mxu0 0
        %6704 = vmatpush2.bf16.msra.mxu0 0
        %6705 = vmatprep.subr.bf16.mxu0 0
        %6706 = vmatpush2.bf16.msra.mxu0 0
        %6707 = vmatprep.mubr.bf16.mxu0 0
        %6708 = vmatmul.mubr.bf16.gmra.mxu0 %v6670
        %v6709 = vpop.f32.mrf.mxu0
        %v6710 = vadd.f32 0.0, %v6709
        %v6711 = vpop.f32.mrf.mxu0
        %v6712 = vpop.f32.mrf.mxu0
        %v6713 = vpop.f32.mrf.mxu0
        %6714 = vdwg.mxu0
        %v6716 = vsel %vm2031, %v6544, 0
        %v6719 = vsel %vm2094, %v6228, 0
        %6721 = vmatprep.subr.bf16.mxu0 0
        %6722 = vmatpush1.bf16.msra.mxu0 0
        %6723 = vmatprep.subr.bf16.mxu0 0
        %6724 = vmatpush1.bf16.msra.mxu0 0
        %6725 = vmatprep.subr.bf16.mxu0 0
        %6726 = vmatpush1.bf16.msra.mxu0 0
        %6727 = vmatprep.subr.bf16.mxu0 0
        %6728 = vmatpush1.bf16.msra.mxu0 0
        %6729 = vmatprep.subr.bf16.mxu0 0
        %6730 = vmatpush1.bf16.msra.mxu0 0
        %6731 = vmatprep.subr.bf16.mxu0 0
        %6732 = vmatpush1.bf16.msra.mxu0 0
        %6733 = vmatprep.subr.bf16.mxu0 0
        %6734 = vmatpush1.bf16.msra.mxu0 0
        %6735 = vmatprep.subr.bf16.mxu0 0
        %6736 = vmatpush1.bf16.msra.mxu0 %v6719
        %6737 = vmatprep.subr.bf16.mxu0 0
        %6738 = vmatpush2.bf16.msra.mxu0 0
        %6739 = vmatprep.subr.bf16.mxu0 0
        %6740 = vmatpush2.bf16.msra.mxu0 0
        %6741 = vmatprep.subr.bf16.mxu0 0
        %6742 = vmatpush2.bf16.msra.mxu0 0
        %6743 = vmatprep.subr.bf16.mxu0 0
        %6744 = vmatpush2.bf16.msra.mxu0 0
        %6745 = vmatprep.subr.bf16.mxu0 0
        %6746 = vmatpush2.bf16.msra.mxu0 0
        %6747 = vmatprep.subr.bf16.mxu0 0
        %6748 = vmatpush2.bf16.msra.mxu0 0
        %6749 = vmatprep.subr.bf16.mxu0 0
        %6750 = vmatpush2.bf16.msra.mxu0 0
        %6751 = vmatprep.subr.bf16.mxu0 0
        %6752 = vmatpush2.bf16.msra.mxu0 0
        %6753 = vmatprep.mubr.bf16.mxu0 0
        %6754 = vmatmul.mubr.bf16.gmra.mxu0 %v6716
        %v6755 = vpop.f32.mrf.mxu0
        %v6756 = vadd.f32 %v6710, %v6755
        %v6757 = vpop.f32.mrf.mxu0
        %v6758 = vpop.f32.mrf.mxu0
        %v6759 = vpop.f32.mrf.mxu0
        %6760 = vdwg.mxu0
        %6761 = vrot.lane.b32.xlu0 %v6432, 112
        %v6762 = vpop.permute.xlu0 %6761
        %6763 = vrot.lane.b32.xlu0 %v6433, 112
        %v6764 = vpop.permute.xlu0 %6763
        %6765 = vrot.lane.b32.xlu0 %v6434, 112
        %v6766 = vpop.permute.xlu0 %6765
        %v6768 = vsel %vm2031, %v6762, 0
        %v6771 = vsel %vm2031, %v6764, 0
        %v6774 = vsel %vm2031, %v6766, 0
        %6776 = vmatprep.subr.bf16.mxu0 0
        %6777 = vmatpush1.bf16.xpose.msra.mxu0 0
        %6778 = vmatprep.subr.bf16.mxu0 0
        %6779 = vmatpush1.bf16.xpose.msra.mxu0 0
        %6780 = vmatprep.subr.bf16.mxu0 0
        %6781 = vmatpush1.bf16.xpose.msra.mxu0 0
        %6782 = vmatprep.subr.bf16.mxu0 0
        %6783 = vmatpush1.bf16.xpose.msra.mxu0 0
        %6784 = vmatprep.subr.bf16.mxu0 0
        %6785 = vmatpush1.bf16.xpose.msra.mxu0 0
        %6786 = vmatprep.subr.bf16.mxu0 0
        %6787 = vmatpush1.bf16.xpose.msra.mxu0 0
        %6788 = vmatprep.subr.bf16.mxu0 0
        %6789 = vmatpush1.bf16.xpose.msra.mxu0 %v6774
        %6790 = vmatprep.subr.bf16.mxu0 0
        %6791 = vmatpush1.bf16.xpose.msra.mxu0 %v6771
        %6792 = vmatprep.subr.bf16.mxu0 0
        %6793 = vmatpush2.bf16.xpose.msra.mxu0 0
        %6794 = vmatprep.subr.bf16.mxu0 0
        %6795 = vmatpush2.bf16.xpose.msra.mxu0 0
        %6796 = vmatprep.subr.bf16.mxu0 0
        %6797 = vmatpush2.bf16.xpose.msra.mxu0 0
        %6798 = vmatprep.subr.bf16.mxu0 0
        %6799 = vmatpush2.bf16.xpose.msra.mxu0 0
        %6800 = vmatprep.subr.bf16.mxu0 0
        %6801 = vmatpush2.bf16.xpose.msra.mxu0 0
        %6802 = vmatprep.subr.bf16.mxu0 0
        %6803 = vmatpush2.bf16.xpose.msra.mxu0 0
        %6804 = vmatprep.subr.bf16.mxu0 0
        %6805 = vmatpush2.bf16.xpose.msra.mxu0 0
        %6806 = vmatprep.subr.bf16.mxu0 0
        %6807 = vmatpush2.bf16.xpose.msra.mxu0 0
        %6808 = vmatprep.mubr.bf16.mxu0 0
        %6809 = vmatmul.mubr.bf16.gmra.mxu0 %v6768
        %v6810 = vpop.f32.mrf.mxu0
        %v6811 = vadd.f32 %v3758, %v6810
        %v6812 = vpop.f32.mrf.mxu0
        %v6813 = vpop.f32.mrf.mxu0
        %v6814 = vpop.f32.mrf.mxu0
        %6815 = vdwg.mxu0
        %v6816 = vsel %vm3809, %v6811, -inf
        %6817 = vmax.xlane.f32.xlu0 %v6816
        %v6818 = vpop.xlane.xlu0 %6817
        %v6819 = vsub.f32 %v6811, %v6818
        %v6820 = vmul.f32 %v6819, 1.442695
        %v6821 = vpow.pop %v6820
        %v6822 = vsel %vm3809, %v6821, 0.0
        %6823 = vadd.xlane.f32.xlu0 %v6822
        %v6824 = vpop.xlane.xlu0 %6823
        %v6825 = vrcp.pop %v6824
        %v6826 = vmul.f32 %v6821, %v6825
        %v6827 = vpack.c.bf16 %v6826, %v6826
        %6828 = vrot.lane.b32.xlu0 %v6496, 112
        %v6829 = vpop.permute.xlu0 %6828
        %6830 = vrot.lane.b32.xlu0 %v6497, 112
        %v6831 = vpop.permute.xlu0 %6830
        %v6834 = vsel %vm3809, %v6827, 0
        %v6837 = vsel %vm2094, %v6831, 0
        %6839 = vmatprep.subr.bf16.mxu0 0
        %6840 = vmatpush1.bf16.msra.mxu0 0
        %6841 = vmatprep.subr.bf16.mxu0 0
        %6842 = vmatpush1.bf16.msra.mxu0 0
        %6843 = vmatprep.subr.bf16.mxu0 0
        %6844 = vmatpush1.bf16.msra.mxu0 0
        %6845 = vmatprep.subr.bf16.mxu0 0
        %6846 = vmatpush1.bf16.msra.mxu0 0
        %6847 = vmatprep.subr.bf16.mxu0 0
        %6848 = vmatpush1.bf16.msra.mxu0 0
        %6849 = vmatprep.subr.bf16.mxu0 0
        %6850 = vmatpush1.bf16.msra.mxu0 0
        %6851 = vmatprep.subr.bf16.mxu0 0
        %6852 = vmatpush1.bf16.msra.mxu0 %v6837
        %6853 = vmatprep.subr.bf16.mxu0 0
        %6854 = vmatpush1.bf16.msra.mxu0 %v6829
        %6855 = vmatprep.subr.bf16.mxu0 0
        %6856 = vmatpush2.bf16.msra.mxu0 0
        %6857 = vmatprep.subr.bf16.mxu0 0
        %6858 = vmatpush2.bf16.msra.mxu0 0
        %6859 = vmatprep.subr.bf16.mxu0 0
        %6860 = vmatpush2.bf16.msra.mxu0 0
        %6861 = vmatprep.subr.bf16.mxu0 0
        %6862 = vmatpush2.bf16.msra.mxu0 0
        %6863 = vmatprep.subr.bf16.mxu0 0
        %6864 = vmatpush2.bf16.msra.mxu0 0
        %6865 = vmatprep.subr.bf16.mxu0 0
        %6866 = vmatpush2.bf16.msra.mxu0 0
        %6867 = vmatprep.subr.bf16.mxu0 0
        %6868 = vmatpush2.bf16.msra.mxu0 0
        %6869 = vmatprep.subr.bf16.mxu0 0
        %6870 = vmatpush2.bf16.msra.mxu0 0
        %6871 = vmatprep.mubr.bf16.mxu0 0
        %6872 = vmatmul.mubr.bf16.gmra.mxu0 %v6834
        %v6873 = vpop.f32.mrf.mxu0
        %v6874 = vadd.f32 0.0, %v6873
        %v6875 = vpop.f32.mrf.mxu0
        %v6876 = vpop.f32.mrf.mxu0
        %v6877 = vpop.f32.mrf.mxu0
        %6878 = vdwg.mxu0
        %v6879 = vpack.c.bf16 %v6874, %v6874
        %v6881 = vsel %vm2031, %v6879, 0
        %v6884 = vsel %vm2094, %v6230, 0
        %6886 = vmatprep.subr.bf16.mxu0 0
        %6887 = vmatpush1.bf16.msra.mxu0 0
        %6888 = vmatprep.subr.bf16.mxu0 0
        %6889 = vmatpush1.bf16.msra.mxu0 0
        %6890 = vmatprep.subr.bf16.mxu0 0
        %6891 = vmatpush1.bf16.msra.mxu0 0
        %6892 = vmatprep.subr.bf16.mxu0 0
        %6893 = vmatpush1.bf16.msra.mxu0 0
        %6894 = vmatprep.subr.bf16.mxu0 0
        %6895 = vmatpush1.bf16.msra.mxu0 0
        %6896 = vmatprep.subr.bf16.mxu0 0
        %6897 = vmatpush1.bf16.msra.mxu0 0
        %6898 = vmatprep.subr.bf16.mxu0 0
        %6899 = vmatpush1.bf16.msra.mxu0 0
        %6900 = vmatprep.subr.bf16.mxu0 0
        %6901 = vmatpush1.bf16.msra.mxu0 %v6884
        %6902 = vmatprep.subr.bf16.mxu0 0
        %6903 = vmatpush2.bf16.msra.mxu0 0
        %6904 = vmatprep.subr.bf16.mxu0 0
        %6905 = vmatpush2.bf16.msra.mxu0 0
        %6906 = vmatprep.subr.bf16.mxu0 0
        %6907 = vmatpush2.bf16.msra.mxu0 0
        %6908 = vmatprep.subr.bf16.mxu0 0
        %6909 = vmatpush2.bf16.msra.mxu0 0
        %6910 = vmatprep.subr.bf16.mxu0 0
        %6911 = vmatpush2.bf16.msra.mxu0 0
        %6912 = vmatprep.subr.bf16.mxu0 0
        %6913 = vmatpush2.bf16.msra.mxu0 0
        %6914 = vmatprep.subr.bf16.mxu0 0
        %6915 = vmatpush2.bf16.msra.mxu0 0
        %6916 = vmatprep.subr.bf16.mxu0 0
        %6917 = vmatpush2.bf16.msra.mxu0 0
        %6918 = vmatprep.mubr.bf16.mxu0 0
        %6919 = vmatmul.mubr.bf16.gmra.mxu0 %v6881
        %v6920 = vpop.f32.mrf.mxu0
        %v6921 = vadd.f32 0.0, %v6920
        %v6922 = vpop.f32.mrf.mxu0
        %v6923 = vpop.f32.mrf.mxu0
        %v6924 = vpop.f32.mrf.mxu0
        %6925 = vdwg.mxu0
        %v6926 = vadd.f32 %v6756, %v6921
        %6927 = vrot.lane.b32.xlu0 %v6432, 104
        %v6928 = vpop.permute.xlu0 %6927
        %6929 = vrot.lane.b32.xlu0 %v6433, 104
        %v6930 = vpop.permute.xlu0 %6929
        %6931 = vrot.lane.b32.xlu0 %v6434, 104
        %v6932 = vpop.permute.xlu0 %6931
        %v6934 = vsel %vm2031, %v6928, 0
        %v6937 = vsel %vm2031, %v6930, 0
        %v6940 = vsel %vm2031, %v6932, 0
        %6942 = vmatprep.subr.bf16.mxu0 0
        %6943 = vmatpush1.bf16.xpose.msra.mxu0 0
        %6944 = vmatprep.subr.bf16.mxu0 0
        %6945 = vmatpush1.bf16.xpose.msra.mxu0 0
        %6946 = vmatprep.subr.bf16.mxu0 0
        %6947 = vmatpush1.bf16.xpose.msra.mxu0 0
        %6948 = vmatprep.subr.bf16.mxu0 0
        %6949 = vmatpush1.bf16.xpose.msra.mxu0 0
        %6950 = vmatprep.subr.bf16.mxu0 0
        %6951 = vmatpush1.bf16.xpose.msra.mxu0 0
        %6952 = vmatprep.subr.bf16.mxu0 0
        %6953 = vmatpush1.bf16.xpose.msra.mxu0 0
        %6954 = vmatprep.subr.bf16.mxu0 0
        %6955 = vmatpush1.bf16.xpose.msra.mxu0 %v6940
        %6956 = vmatprep.subr.bf16.mxu0 0
        %6957 = vmatpush1.bf16.xpose.msra.mxu0 %v6937
        %6958 = vmatprep.subr.bf16.mxu0 0
        %6959 = vmatpush2.bf16.xpose.msra.mxu0 0
        %6960 = vmatprep.subr.bf16.mxu0 0
        %6961 = vmatpush2.bf16.xpose.msra.mxu0 0
        %6962 = vmatprep.subr.bf16.mxu0 0
        %6963 = vmatpush2.bf16.xpose.msra.mxu0 0
        %6964 = vmatprep.subr.bf16.mxu0 0
        %6965 = vmatpush2.bf16.xpose.msra.mxu0 0
        %6966 = vmatprep.subr.bf16.mxu0 0
        %6967 = vmatpush2.bf16.xpose.msra.mxu0 0
        %6968 = vmatprep.subr.bf16.mxu0 0
        %6969 = vmatpush2.bf16.xpose.msra.mxu0 0
        %6970 = vmatprep.subr.bf16.mxu0 0
        %6971 = vmatpush2.bf16.xpose.msra.mxu0 0
        %6972 = vmatprep.subr.bf16.mxu0 0
        %6973 = vmatpush2.bf16.xpose.msra.mxu0 0
        %6974 = vmatprep.mubr.bf16.mxu0 0
        %6975 = vmatmul.mubr.bf16.gmra.mxu0 %v6934
        %v6976 = vpop.f32.mrf.mxu0
        %v6977 = vadd.f32 %v3758, %v6976
        %v6978 = vpop.f32.mrf.mxu0
        %v6979 = vpop.f32.mrf.mxu0
        %v6980 = vpop.f32.mrf.mxu0
        %6981 = vdwg.mxu0
        %v6982 = vsel %vm3809, %v6977, -inf
        %6983 = vmax.xlane.f32.xlu0 %v6982
        %v6984 = vpop.xlane.xlu0 %6983
        %v6985 = vsub.f32 %v6977, %v6984
        %v6986 = vmul.f32 %v6985, 1.442695
        %v6987 = vpow.pop %v6986
        %v6988 = vsel %vm3809, %v6987, 0.0
        %6989 = vadd.xlane.f32.xlu0 %v6988
        %v6990 = vpop.xlane.xlu0 %6989
        %v6991 = vrcp.pop %v6990
        %v6992 = vmul.f32 %v6987, %v6991
        %v6993 = vpack.c.bf16 %v6992, %v6992
        %6994 = vrot.lane.b32.xlu0 %v6496, 104
        %v6995 = vpop.permute.xlu0 %6994
        %6996 = vrot.lane.b32.xlu0 %v6497, 104
        %v6997 = vpop.permute.xlu0 %6996
        %v7000 = vsel %vm3809, %v6993, 0
        %v7003 = vsel %vm2094, %v6997, 0
        %7005 = vmatprep.subr.bf16.mxu0 0
        %7006 = vmatpush1.bf16.msra.mxu0 0
        %7007 = vmatprep.subr.bf16.mxu0 0
        %7008 = vmatpush1.bf16.msra.mxu0 0
        %7009 = vmatprep.subr.bf16.mxu0 0
        %7010 = vmatpush1.bf16.msra.mxu0 0
        %7011 = vmatprep.subr.bf16.mxu0 0
        %7012 = vmatpush1.bf16.msra.mxu0 0
        %7013 = vmatprep.subr.bf16.mxu0 0
        %7014 = vmatpush1.bf16.msra.mxu0 0
        %7015 = vmatprep.subr.bf16.mxu0 0
        %7016 = vmatpush1.bf16.msra.mxu0 0
        %7017 = vmatprep.subr.bf16.mxu0 0
        %7018 = vmatpush1.bf16.msra.mxu0 %v7003
        %7019 = vmatprep.subr.bf16.mxu0 0
        %7020 = vmatpush1.bf16.msra.mxu0 %v6995
        %7021 = vmatprep.subr.bf16.mxu0 0
        %7022 = vmatpush2.bf16.msra.mxu0 0
        %7023 = vmatprep.subr.bf16.mxu0 0
        %7024 = vmatpush2.bf16.msra.mxu0 0
        %7025 = vmatprep.subr.bf16.mxu0 0
        %7026 = vmatpush2.bf16.msra.mxu0 0
        %7027 = vmatprep.subr.bf16.mxu0 0
        %7028 = vmatpush2.bf16.msra.mxu0 0
        %7029 = vmatprep.subr.bf16.mxu0 0
        %7030 = vmatpush2.bf16.msra.mxu0 0
        %7031 = vmatprep.subr.bf16.mxu0 0
        %7032 = vmatpush2.bf16.msra.mxu0 0
        %7033 = vmatprep.subr.bf16.mxu0 0
        %7034 = vmatpush2.bf16.msra.mxu0 0
        %7035 = vmatprep.subr.bf16.mxu0 0
        %7036 = vmatpush2.bf16.msra.mxu0 0
        %7037 = vmatprep.mubr.bf16.mxu0 0
        %7038 = vmatmul.mubr.bf16.gmra.mxu0 %v7000
        %v7039 = vpop.f32.mrf.mxu0
        %v7040 = vadd.f32 0.0, %v7039
        %v7041 = vpop.f32.mrf.mxu0
        %v7042 = vpop.f32.mrf.mxu0
        %v7043 = vpop.f32.mrf.mxu0
        %7044 = vdwg.mxu0
        %v7045 = vpack.c.bf16 %v7040, %v7040
        %v7047 = vsel %vm2031, %v7045, 0
        %v7050 = vsel %vm2094, %v6231, 0
        %7052 = vmatprep.subr.bf16.mxu0 0
        %7053 = vmatpush1.bf16.msra.mxu0 0
        %7054 = vmatprep.subr.bf16.mxu0 0
        %7055 = vmatpush1.bf16.msra.mxu0 0
        %7056 = vmatprep.subr.bf16.mxu0 0
        %7057 = vmatpush1.bf16.msra.mxu0 0
        %7058 = vmatprep.subr.bf16.mxu0 0
        %7059 = vmatpush1.bf16.msra.mxu0 0
        %7060 = vmatprep.subr.bf16.mxu0 0
        %7061 = vmatpush1.bf16.msra.mxu0 0
        %7062 = vmatprep.subr.bf16.mxu0 0
        %7063 = vmatpush1.bf16.msra.mxu0 0
        %7064 = vmatprep.subr.bf16.mxu0 0
        %7065 = vmatpush1.bf16.msra.mxu0 0
        %7066 = vmatprep.subr.bf16.mxu0 0
        %7067 = vmatpush1.bf16.msra.mxu0 %v7050
        %7068 = vmatprep.subr.bf16.mxu0 0
        %7069 = vmatpush2.bf16.msra.mxu0 0
        %7070 = vmatprep.subr.bf16.mxu0 0
        %7071 = vmatpush2.bf16.msra.mxu0 0
        %7072 = vmatprep.subr.bf16.mxu0 0
        %7073 = vmatpush2.bf16.msra.mxu0 0
        %7074 = vmatprep.subr.bf16.mxu0 0
        %7075 = vmatpush2.bf16.msra.mxu0 0
        %7076 = vmatprep.subr.bf16.mxu0 0
        %7077 = vmatpush2.bf16.msra.mxu0 0
        %7078 = vmatprep.subr.bf16.mxu0 0
        %7079 = vmatpush2.bf16.msra.mxu0 0
        %7080 = vmatprep.subr.bf16.mxu0 0
        %7081 = vmatpush2.bf16.msra.mxu0 0
        %7082 = vmatprep.subr.bf16.mxu0 0
        %7083 = vmatpush2.bf16.msra.mxu0 0
        %7084 = vmatprep.mubr.bf16.mxu0 0
        %7085 = vmatmul.mubr.bf16.gmra.mxu0 %v7047
        %v7086 = vpop.f32.mrf.mxu0
        %v7087 = vadd.f32 0.0, %v7086
        %v7088 = vpop.f32.mrf.mxu0
        %v7089 = vpop.f32.mrf.mxu0
        %v7090 = vpop.f32.mrf.mxu0
        %7091 = vdwg.mxu0
        %v7092 = vadd.f32 %v6926, %v7087
        %v7093 = vadd.f32 %v5355, %v7092
        %v7094 = vlaneseq
        %v7095 = vshrl.u32 %v7094, 7
        %v7096 = vsub.s32 0, %v7095
        %v7097 = vrot.slane %v6232, %v7096
        %v7098 = vadd.f32 %v7093, %v7097
        %v7099 = vld [vmem:[%s75 + $0x1] sm:$0x1]
        %v7100 = vld [vmem:[%s77 + $0x1] sm:$0x1]
        %v7101 = vsel %vm1831, %v6206, 0.0
        %7102 = vadd.xlane.f32.xlu0 %v7101
        %v7103 = vpop.xlane.xlu0 %7102
        %v7104 = vmul.f32 %v7103, %v1835
        %v7105 = vsub.f32 %v6206, %v7104
        %v7106 = vmul.f32 %v7105, %v7105
        %v7107 = vsel %vm1831, %v7106, 0.0
        %7108 = vadd.xlane.f32.xlu0 %v7107
        %v7109 = vpop.xlane.xlu0 %7108
        %v7110 = vmul.f32 %v7109, %v1835
        %v7111 = vadd.f32 %v7110, 1e-05
        %v7112 = vrsqrt.pop %v7111
        %v7113 = vmul.f32 %v7105, %v7112
        %v7114 = vlaneseq
        %v7115 = vshrl.u32 %v7114, 7
        %v7116 = vsub.s32 0, %v7115
        %v7117 = vrot.slane %v7099, %v7116
        %v7118 = vmul.f32 %v7113, %v7117
        %v7119 = vlaneseq
        %v7120 = vshrl.u32 %v7119, 7
        %v7121 = vsub.s32 0, %v7120
        %v7122 = vrot.slane %v7100, %v7121
        %v7123 = vadd.f32 %v7118, %v7122
        %v7124 = vld [vmem:[%s79 + $0x1] sm:$0x1]
        %v7125 = vld [vmem:[%s81 + $0x1] sm:$0x1]
        %v7126 = vsel %vm1831, %v7098, 0.0
        %7127 = vadd.xlane.f32.xlu0 %v7126
        %v7128 = vpop.xlane.xlu0 %7127
        %v7129 = vmul.f32 %v7128, %v1835
        %v7130 = vsub.f32 %v7098, %v7129
        %v7131 = vmul.f32 %v7130, %v7130
        %v7132 = vsel %vm1831, %v7131, 0.0
        %7133 = vadd.xlane.f32.xlu0 %v7132
        %v7134 = vpop.xlane.xlu0 %7133
        %v7135 = vmul.f32 %v7134, %v1835
        %v7136 = vadd.f32 %v7135, 1e-05
        %v7137 = vrsqrt.pop %v7136
        %v7138 = vmul.f32 %v7130, %v7137
        %v7139 = vlaneseq
        %v7140 = vshrl.u32 %v7139, 7
        %v7141 = vsub.s32 0, %v7140
        %v7142 = vrot.slane %v7124, %v7141
        %v7143 = vmul.f32 %v7138, %v7142
        %v7144 = vlaneseq
        %v7145 = vshrl.u32 %v7144, 7
        %v7146 = vsub.s32 0, %v7145
        %v7147 = vrot.slane %v7125, %v7146
        %v7148 = vadd.f32 %v7143, %v7147
        %s7149 = scalar_lea.vmem %s13, 1
        %v7150 = vld [vmem:[%s7149] sm:$0x1]
        %v7152 = vlaneseq
        %v7153 = vshrl.u32 %v7152, 7
        %v7154 = vsub.s32 0, %v7153
        %v7155 = vrot.slane %v7150, %v7154
        %7156 = vset.pattern.permute.xlu0 0
        %7157 = vperm.xlu0 %7156, %v7155
        %v7158 = vpop.permute.xlu0 %7157
        %v7160 = vmul.f32 %v7158, %v7148
        %v7161 = vsub.f32 1.0, %v7150
        %v7163 = vlaneseq
        %v7164 = vshrl.u32 %v7163, 7
        %v7165 = vsub.s32 0, %v7164
        %v7166 = vrot.slane %v7161, %v7165
        %7167 = vset.pattern.permute.xlu0 0
        %7168 = vperm.xlu0 %7167, %v7166
        %v7169 = vpop.permute.xlu0 %7168
        %v7171 = vmul.f32 %v7169, %v7123
        %v7172 = vadd.f32 %v7160, %v7171
        %7173 = vst.msk [vmem:[%s1789] sm:$0xff] %vm1831, %v7172
        %s7174 = sand.u32 %s1021, 1
        %s7175 = scalar_lea.sflag [#allocation4], %s7174
        %s7176 = sand.u32 %s1021, 1
        %s7177 = smul.addr %s7176, 8
        %s7178 = scalar_lea.vmem [#allocation53], %s7177
        // Predicated region
        $region317: #{tpu_custom_call.1} parent=183 // pred_check
          %p7179 = pneg %p1031
        $region318: #{tpu_custom_call.1} parent=183 // pred_check_branch
          %7181 = sbr.rel (%p7179) target = $region320
        $region319: #{tpu_custom_call.1} parent=183 // pred_region
          %s7183 = ssub.s32 128, 128
          %7184 = vsyncadd %s7175, %s7183
          %s7185 = smul.addr %s122, 128
          %s7186 = scalar_lea.hbm %s83, %s7185
          %s7188 = sshll.u32 %s7178, 4
          %s7189 = int_to_ptr.vmem [resolvable:$true] %s7188
          %7191 = dma.vmem_to_hbm [thread:$0]  %s7189, 128, %s7186, %s7175
        $region320: #{tpu_custom_call.1} parent=183 // pred_fallthru
          _
      $region184: #{tpu_custom_call.1} parent=5 // pred_fallthru
        _
      %p7192 = scmp.le.s32.totalorder 2, %s117
      // Predicated region
      $region321: #{tpu_custom_call.1} parent=5 // pred_check
        %p7193 = pneg %p7192
      $region322: #{tpu_custom_call.1} parent=5 // pred_check_branch
        %7195 = sbr.rel (%p7193) target = $region324
      $region323: #{tpu_custom_call.1} parent=5 // pred_region
        %s7196 = ssub.s32 %s117, 2
        // Predicated region
        $region325: #{tpu_custom_call.1} parent=323 // pred_check
          %p7197 = pneg %p1037
        $region326: #{tpu_custom_call.1} parent=323 // pred_check_branch
          %7199 = sbr.rel (%p7197) target = $region328
        $region327: #{tpu_custom_call.1} parent=323 // pred_region
          %s7200 = sand.u32 %s1022, 1
          %s7201 = scalar_lea.sflag [#allocation4], %s7200
          %s7202 = sand.u32 %s1022, 1
          %s7203 = smul.addr %s7202, 8
          %s7204 = scalar_lea.vmem [#allocation53], %s7203
          %7205 = dma.done %s7201, 128
        $region328: #{tpu_custom_call.1} parent=323 // pred_fallthru
          _
      $region324: #{tpu_custom_call.1} parent=5 // pred_fallthru
        _
    $region6: #{tpu_custom_call.1} parent=1 // loop_footer
      %s121 = sadd.s32 1, %s117
    $region7: #{tpu_custom_call.1} parent=1 // loop_footer_branch
      %116 = sbr.rel target = $region3
    $region8: #{tpu_custom_call.1} parent=1 // loop_exit
      _
    %7206 = vsyncpa [#allocation3], 1
    %s7207 = scalar_lea.sflag [#allocation3], 1
    %7208 = vsyncpa %s7207, 1
    %7209 = vsyncpa [#allocation6], 1
    %s7210 = scalar_lea.sflag [#allocation6], 1
    %7211 = vsyncpa %s7210, 1
    %7212 = vsyncpa [#allocation9], 1
    %s7213 = scalar_lea.sflag [#allocation9], 1
    %7214 = vsyncpa %s7213, 1
    %7215 = vsyncpa [#allocation12], 1
    %s7216 = scalar_lea.sflag [#allocation12], 1
    %7217 = vsyncpa %s7216, 1
    %7218 = vsyncpa [#allocation15], 1
    %7219 = vsyncpa [#allocation18], 1
    %7220 = vsyncpa [#allocation21], 1
    %7221 = vsyncpa [#allocation24], 1
    %7222 = vsyncpa [#allocation27], 1
    %7223 = vsyncpa [#allocation30], 1
    %7224 = vsyncpa [#allocation33], 1
    %7225 = vsyncpa [#allocation36], 1
    %7226 = vsyncpa [#allocation39], 1
    %7227 = vsyncpa [#allocation42], 1
    %7228 = vsyncpa [#allocation45], 1
    %7229 = vsyncpa [#allocation48], 1
    %7230 = vsyncpa [#allocation51], 1
    %7231 = vsyncpa [#allocation4], 1
    %s7232 = scalar_lea.sflag [#allocation4], 1
    %7233 = vsyncpa %s7232, 1

</llo_original>
